<compile_context>
chip_gen: v5e
topology: v5e:2x2
jax: 0.10.0
libtpu: 0.0.40
codegen_flags: <defaults>
</compile_context>

<pallas_src>
import functools

import jax
import jax.numpy as jnp
from jax.experimental import pallas as pl
from jax.experimental.pallas import tpu as pltpu

LRELU_SLOPE = 0.2
NORM_EPS = 1e-5


def _round_up(x, m):
    return ((x + m - 1) // m) * m


# ---------------------------------------------------------------------------
# Layout glue (plain JAX): im2col patch extraction and weight repacking.
# TODO(synk): build the 16 shifted im2col views in-kernel from a halo'd VMEM
#             tile (strided pl.ds slices) instead of materializing the patch
#             tensor in HBM.
# ---------------------------------------------------------------------------
def _im2col(x_nhwc, ksize, stride, pad, m_block):
    """-> (N, M_pad, K) bf16 patches; K = k*k*Cin_pad (multiple of 128)."""
    N, H, W, C = x_nhwc.shape
    c_in_pad = _round_up(C, 8)                      # 16 * c_in_pad % 128 == 0
    xp = jnp.pad(x_nhwc.astype(jnp.bfloat16),
                 ((0, 0), (pad, pad), (pad, pad), (0, c_in_pad - C)))
    OH = (H + 2 * pad - ksize) // stride + 1
    OW = (W + 2 * pad - ksize) // stride + 1
    views = []
    for di in range(ksize):
        for dj in range(ksize):
            views.append(xp[:, di:di + stride * OH:stride,
                             dj:dj + stride * OW:stride, :])
    p = jnp.stack(views, axis=3)                    # (N, OH, OW, k*k, Cin_pad)
    M = OH * OW
    p = p.reshape(N, M, ksize * ksize * c_in_pad)   # K order = (kh, kw, cin)
    M_pad = _round_up(M, m_block)
    if M_pad != M:
        p = jnp.pad(p, ((0, 0), (0, M_pad - M), (0, 0)))
    return p, OH, OW, c_in_pad


def _prep_weight(w_oikk, c_in_pad, c_out_pad):
    """PyTorch-layout (Cout, Cin, kh, kw) -> (K, Cout_pad) bf16."""
    Cout, Cin, KH, KW = w_oikk.shape
    w = jnp.transpose(w_oikk, (2, 3, 1, 0))         # (kh, kw, Cin, Cout)
    w = jnp.pad(w, ((0, 0), (0, 0), (0, c_in_pad - Cin), (0, c_out_pad - Cout)))
    return w.reshape(KH * KW * c_in_pad, c_out_pad).astype(jnp.bfloat16)


# ---------------------------------------------------------------------------
# Pallas kernels
# ---------------------------------------------------------------------------
def _mm_act_kernel(p_ref, w_ref, o_ref, *, act):
    # p: (1, bM, K) bf16   w: (K, Cp) bf16   o: (1, bM, Cp)
    y = jnp.dot(p_ref[0], w_ref[...], preferred_element_type=jnp.float32)
    if act == "lrelu":
        y = jnp.where(y > 0, y, LRELU_SLOPE * y)
    elif act == "sigmoid":
        y = jax.nn.sigmoid(y)
    o_ref[0] = y.astype(o_ref.dtype)


def _mm_stats_kernel(p_ref, w_ref, y_ref, s_ref):
    # matmul + per-block partial sum / sum-of-squares (streamed norm, pass A)
    y = jnp.dot(p_ref[0], w_ref[...], preferred_element_type=jnp.float32)
    y_ref[0] = y.astype(y_ref.dtype)
    s = jnp.sum(y, axis=0, keepdims=True)           # (1, Cp)
    sq = jnp.sum(y * y, axis=0, keepdims=True)      # (1, Cp)
    s_ref[...] = jnp.concatenate([s, sq], axis=0)[None]   # (1, 2, Cp)


def _norm_act_kernel(y_ref, ss_ref, o_ref):
    # normalize + affine + LeakyReLU (streamed norm, pass B)
    y = y_ref[0].astype(jnp.float32)                # (bM, Cp)
    ss = ss_ref[0]                                  # (2, Cp) f32
    scale = ss[0:1, :]
    shift = ss[1:2, :]
    z = y * scale + shift
    o_ref[0] = jnp.where(z > 0, z, LRELU_SLOPE * z).astype(o_ref.dtype)


# ---------------------------------------------------------------------------
# One conv layer: Conv2d(k=4, bias=False) [+ Batch/Instance norm] [+ act]
# ---------------------------------------------------------------------------
def conv_layer(x_nhwc, w, *, stride, pad, norm="none", act="lrelu",
               gamma=None, beta=None, out_dtype=jnp.bfloat16, m_block_max=512):
    N, H, W, Cin = x_nhwc.shape
    Cout, _, ksize, _ = w.shape
    OH = (H + 2 * pad - ksize) // stride + 1
    OW = (W + 2 * pad - ksize) // stride + 1
    M = OH * OW
    bM = min(m_block_max, _round_up(M, 8))          # row-tile (multiple of 8)

    patches, OH, OW, c_in_pad = _im2col(x_nhwc, ksize, stride, pad, bM)
    _, M_pad, K = patches.shape
    m_blocks = M_pad // bM
    c_pad = _round_up(Cout, 128)                    # lane-dense output channels
    w_kc = _prep_weight(w, c_in_pad, c_pad)

    grid = (N, m_blocks)
    p_spec = pl.BlockSpec((1, bM, K), lambda n, m: (n, m, 0))
    w_spec = pl.BlockSpec((K, c_pad), lambda n, m: (0, 0))
    y_spec = pl.BlockSpec((1, bM, c_pad), lambda n, m: (n, m, 0))
    cparams = pltpu.CompilerParams(
        dimension_semantics=("parallel", "parallel"))

    if norm == "none":
        y = pl.pallas_call(
            functools.partial(_mm_act_kernel, act=act),
            grid=grid,
            in_specs=[p_spec, w_spec],
            out_specs=y_spec,
            out_shape=jax.ShapeDtypeStruct((N, M_pad, c_pad), out_dtype),
            compiler_params=cparams,
        )(patches, w_kc)
        return y[:, :M, :Cout].reshape(N, OH, OW, Cout)

    # ---- norm layers: pass A (matmul + partial stats) ----------------------
    s_spec = pl.BlockSpec((1, 2, c_pad), lambda n, m: (n * m_blocks + m, 0, 0))
    y_raw, stats = pl.pallas_call(
        _mm_stats_kernel,
        grid=grid,
        in_specs=[p_spec, w_spec],
        out_specs=[y_spec, s_spec],
        out_shape=[
            jax.ShapeDtypeStruct((N, M_pad, c_pad), jnp.bfloat16),
            jax.ShapeDtypeStruct((N * m_blocks, 2, c_pad), jnp.float32),
        ],
        compiler_params=cparams,
    )(patches, w_kc)

    # ---- tiny JAX reduction: finalize mean/var -> per-channel scale/shift --
    per_sample = stats.reshape(N, m_blocks, 2, c_pad).sum(axis=1)   # (N, 2, Cp)
    g = jnp.pad(gamma.astype(jnp.float32), (0, c_pad - Cout))
    b = jnp.pad(beta.astype(jnp.float32), (0, c_pad - Cout))
    if norm == "batch":                 # BatchNorm2d, training-mode batch stats
        tot = per_sample.sum(axis=0)                                # (2, Cp)
        cnt = float(N * M)
        mean = tot[0] / cnt
        var = jnp.maximum(tot[1] / cnt - mean * mean, 0.0)
        scale = g * jax.lax.rsqrt(var + NORM_EPS)
        shift = b - mean * scale
        ss = jnp.broadcast_to(jnp.stack([scale, shift], axis=0)[None],
                              (N, 2, c_pad))
    else:                               # InstanceNorm2d(affine=True)
        cnt = float(M)
        mean = per_sample[:, 0] / cnt                               # (N, Cp)
        var = jnp.maximum(per_sample[:, 1] / cnt - mean * mean, 0.0)
        scale = g[None, :] * jax.lax.rsqrt(var + NORM_EPS)
        shift = b[None, :] - mean * scale
        ss = jnp.stack([scale, shift], axis=1)                      # (N, 2, Cp)

    # ---- pass B: tiled normalize + affine + LeakyReLU ----------------------
    out = pl.pallas_call(
        _norm_act_kernel,
        grid=grid,
        in_specs=[y_spec, pl.BlockSpec((1, 2, c_pad), lambda n, m: (n, 0, 0))],
        out_specs=y_spec,
        out_shape=jax.ShapeDtypeStruct((N, M_pad, c_pad), out_dtype),
        compiler_params=cparams,
    )(y_raw, ss)
    return out[:, :M, :Cout].reshape(N, OH, OW, Cout)


# ---------------------------------------------------------------------------
# Parameters (PyTorch weight layout (Cout, Cin, kh, kw), DCGAN-style init)
# ---------------------------------------------------------------------------
def init_params(key, nc, label_dim, ndf):
    def conv_w(k, cout, cin, ksize=4):
        return 0.02 * jax.random.normal(k, (cout, cin, ksize, ksize), jnp.float32)

    keys = jax.random.split(key, 16)
    p = {"w_img": conv_w(keys[0], ndf // 2, nc),
         "w_lab": conv_w(keys[1], ndf // 2, label_dim)}
    chans = [(ndf, ndf * 2), (ndf * 2, ndf * 4), (ndf * 4, ndf * 8), (ndf * 8, ndf * 16)]
    ki = 2
    for i, (cin, cout) in enumerate(chans, start=1):
        for sfx in ("a", "w"):
            p[f"w{i}_{sfx}"] = conv_w(keys[ki], cout, cin)
            p[f"g{i}_{sfx}"] = jnp.ones((cout,), jnp.float32)
            p[f"b{i}_{sfx}"] = jnp.zeros((cout,), jnp.float32)
            ki += 1
    for sfx in ("a", "w"):
        p[f"w5_{sfx}"] = conv_w(keys[ki], 1, ndf * 16); ki += 1
        p[f"w6_{sfx}"] = conv_w(keys[ki], label_dim, ndf * 16); ki += 1
    return p


# ---------------------------------------------------------------------------
# Forward pass (matches Discriminator.forward)
# ---------------------------------------------------------------------------
@functools.partial(jax.jit, static_argnames=("loss",))
def discriminator_forward(params, img_nchw, label_nchw, loss):
    img = jnp.transpose(img_nchw, (0, 2, 3, 1))
    lab = jnp.transpose(label_nchw, (0, 2, 3, 1))

    img_out = conv_layer(img, params["w_img"], stride=2, pad=1, act="lrelu")
    lab_out = conv_layer(lab, params["w_lab"], stride=2, pad=1, act="lrelu")
    x = jnp.concatenate([img_out, lab_out], axis=-1)   # torch cat(dim=1)

    if loss == "adversarial_loss":
        sfx, norm, head_act = "a", "batch", "sigmoid"   # Sigmoid on BOTH heads (per spec)
    elif loss == "wasserstein_loss":
        sfx, norm, head_act = "w", "instance", "none"
    else:
        raise ValueError(loss)

    for i in range(1, 5):
        x = conv_layer(x, params[f"w{i}_{sfx}"], stride=2, pad=1,
                       norm=norm, act="lrelu",
                       gamma=params[f"g{i}_{sfx}"], beta=params[f"b{i}_{sfx}"])

    # Fused heads: one matmul with (1 + label_dim) output channels.
    label_dim = params[f"w6_{sfx}"].shape[0]
    w_head = jnp.concatenate([params[f"w5_{sfx}"], params[f"w6_{sfx}"]], axis=0)
    head = conv_layer(x, w_head, stride=1, pad=0, act=head_act,
                      out_dtype=jnp.float32)            # (N, 1, 1, 1+label_dim)

    out_src = jnp.transpose(head[..., 0:1], (0, 3, 1, 2))     # (N, 1, 1, 1) NCHW
    out_cls = head[:, 0, 0, 1:1 + label_dim]                   # (N, label_dim)
    return out_src, out_cls


# ---------------------------------------------------------------------------
if __name__ == "__main__":
    # Spatial must be 128 so the final 4x4 conv (after 5 stride-2 convs) lands
    # on a 4x4 map -> 1x1 output, matching the PyTorch .view().
    N, NC, LABEL_DIM, NDF, S = 2, 3, 4, 8, 128

    key = jax.random.PRNGKey(0)
    kp, ki, kl = jax.random.split(key, 3)
    params = init_params(kp, NC, LABEL_DIM, NDF)
    img = jax.random.normal(ki, (N, NC, S, S), jnp.float32)
    label = jax.random.normal(kl, (N, LABEL_DIM, S, S), jnp.float32)

    out_src_a, out_cls_a = discriminator_forward(params, img, label, "adversarial_loss")
    out_src_w, out_cls_w = discriminator_forward(params, img, label, "wasserstein_loss")
    jax.block_until_ready((out_src_a, out_cls_a, out_src_w, out_cls_w))

    assert out_src_a.shape == (N, 1, 1, 1) and out_cls_a.shape == (N, LABEL_DIM)
    assert out_src_w.shape == (N, 1, 1, 1) and out_cls_w.shape == (N, LABEL_DIM)
    assert bool(jnp.all(jnp.isfinite(out_src_a))) and bool(jnp.all(jnp.isfinite(out_cls_a)))
    assert bool(jnp.all(jnp.isfinite(out_src_w))) and bool(jnp.all(jnp.isfinite(out_cls_w)))
    print("KERNEL_OK")
</pallas_src>

<mosaic_0001>
module attributes {stable_mosaic.version = 11 : i64} {
  func.func @_mm_act_kernel(%arg0: i32, %arg1: i32, %arg2: memref<1x512x128xbf16, #tpu.memory_space<vmem>>, %arg3: memref<128x128xbf16, #tpu.memory_space<vmem>>, %arg4: memref<1x512x128xbf16, #tpu.memory_space<vmem>>) attributes {dimension_semantics = [#tpu.dimension_semantics<parallel>, #tpu.dimension_semantics<parallel>], iteration_bounds = array<i64: 2, 8>, scalar_prefetch = 0 : i64, scratch_operands = 0 : i64, tpu.core_type = #tpu.core_type<tc>, window_params = [{transform_indices = @transform_0, window_bounds = array<i64: 1, 512, 128>}, {pipeline_mode = #tpu.pipeline_mode<synchronous>, transform_indices = @transform_1, window_bounds = array<i64: 128, 128>}, {transform_indices = @transform_2, window_bounds = array<i64: 1, 512, 128>}]} {
    %c0 = arith.constant 0 : index
    %c0_0 = arith.constant 0 : index
    %c0_1 = arith.constant 0 : index
    %0 = vector.load %arg2[%c0, %c0_0, %c0_1] : memref<1x512x128xbf16, #tpu.memory_space<vmem>>, vector<1x512x128xbf16>
    %1 = vector.shape_cast %0 : vector<1x512x128xbf16> to vector<512x128xbf16>
    %c0_2 = arith.constant 0 : index
    %c0_3 = arith.constant 0 : index
    %2 = vector.load %arg3[%c0_2, %c0_3] : memref<128x128xbf16, #tpu.memory_space<vmem>>, vector<128x128xbf16>
    %cst = arith.constant dense<0.000000e+00> : vector<512x128xf32>
    %3 = tpu.matmul %1, %2, %cst {dimension_numbers = #tpu.dot_dimension_numbers<[1], [0], [0], [1], [0, 0, 1, 1], [], []>} : vector<512x128xbf16>, vector<128x128xbf16>, vector<512x128xf32> -> vector<512x128xf32>
    %cst_4 = arith.constant 0.000000e+00 : f32
    %4 = vector.broadcast %cst_4 : f32 to vector<512x128xf32>
    %5 = arith.cmpf ogt, %3, %4 : vector<512x128xf32>
    %cst_5 = arith.constant 2.000000e-01 : f32
    %6 = vector.broadcast %cst_5 : f32 to vector<512x128xf32>
    %7 = arith.mulf %6, %3 : vector<512x128xf32>
    %8 = arith.select %5, %3, %7 : vector<512x128xi1>, vector<512x128xf32>
    %9 = arith.truncf %8 : vector<512x128xf32> to vector<512x128xbf16>
    %c0_6 = arith.constant 0 : index
    %c0_7 = arith.constant 0 : index
    %c0_8 = arith.constant 0 : index
    %10 = vector.load %arg4[%c0_6, %c0_7, %c0_8] : memref<1x512x128xbf16, #tpu.memory_space<vmem>>, vector<1x512x128xbf16>
    %11 = vector.shape_cast %10 : vector<1x512x128xbf16> to vector<512x128xbf16>
    %12 = vector.shape_cast %9 : vector<512x128xbf16> to vector<1x512x128xbf16>
    tpu.vector_store %arg4[%c0_6, %c0_7, %c0_8], %12 {strides = array<i32>} : memref<1x512x128xbf16, #tpu.memory_space<vmem>>, vector<1x512x128xbf16>,
    return
  }
  func.func @transform_0(%arg0: i32, %arg1: i32) -> (i32, i32, i32) {
    %c0_i32 = arith.constant 0 : i32
    %c0_i32_0 = arith.constant 0 : i32
    return %arg0, %arg1, %c0_i32 : i32, i32, i32
  }
  func.func @transform_1(%arg0: i32, %arg1: i32) -> (i32, i32) {
    %c0_i32 = arith.constant 0 : i32
    %c0_i32_0 = arith.constant 0 : i32
    %c0_i32_1 = arith.constant 0 : i32
    return %c0_i32, %c0_i32_0 : i32, i32
  }
  func.func @transform_2(%arg0: i32, %arg1: i32) -> (i32, i32, i32) {
    %c0_i32 = arith.constant 0 : i32
    %c0_i32_0 = arith.constant 0 : i32
    return %arg0, %arg1, %c0_i32 : i32, i32, i32
  }
}

module attributes {stable_mosaic.version = 11 : i64} {
  func.func @_mm_stats_kernel(%arg0: i32, %arg1: i32, %arg2: memref<1x512x128xbf16, #tpu.memory_space<vmem>>, %arg3: memref<128x128xbf16, #tpu.memory_space<vmem>>, %arg4: memref<1x512x128xbf16, #tpu.memory_space<vmem>>, %arg5: memref<1x2x128xf32, #tpu.memory_space<vmem>>) attributes {dimension_semantics = [#tpu.dimension_semantics<parallel>, #tpu.dimension_semantics<parallel>], iteration_bounds = array<i64: 2, 2>, scalar_prefetch = 0 : i64, scratch_operands = 0 : i64, tpu.core_type = #tpu.core_type<tc>, window_params = [{transform_indices = @transform_0, window_bounds = array<i64: 1, 512, 128>}, {pipeline_mode = #tpu.pipeline_mode<synchronous>, transform_indices = @transform_1, window_bounds = array<i64: 128, 128>}, {transform_indices = @transform_2, window_bounds = array<i64: 1, 512, 128>}, {transform_indices = @transform_3, window_bounds = array<i64: 1, 2, 128>}]} {
    %c0 = arith.constant 0 : index
    %c0_0 = arith.constant 0 : index
    %c0_1 = arith.constant 0 : index
    %0 = vector.load %arg2[%c0, %c0_0, %c0_1] : memref<1x512x128xbf16, #tpu.memory_space<vmem>>, vector<1x512x128xbf16>
    %1 = vector.shape_cast %0 : vector<1x512x128xbf16> to vector<512x128xbf16>
    %c0_2 = arith.constant 0 : index
    %c0_3 = arith.constant 0 : index
    %2 = vector.load %arg3[%c0_2, %c0_3] : memref<128x128xbf16, #tpu.memory_space<vmem>>, vector<128x128xbf16>
    %cst = arith.constant dense<0.000000e+00> : vector<512x128xf32>
    %3 = tpu.matmul %1, %2, %cst {dimension_numbers = #tpu.dot_dimension_numbers<[1], [0], [0], [1], [0, 0, 1, 1], [], []>} : vector<512x128xbf16>, vector<128x128xbf16>, vector<512x128xf32> -> vector<512x128xf32>
    %4 = arith.truncf %3 : vector<512x128xf32> to vector<512x128xbf16>
    %c0_4 = arith.constant 0 : index
    %c0_5 = arith.constant 0 : index
    %c0_6 = arith.constant 0 : index
    %5 = vector.load %arg4[%c0_4, %c0_5, %c0_6] : memref<1x512x128xbf16, #tpu.memory_space<vmem>>, vector<1x512x128xbf16>
    %6 = vector.shape_cast %5 : vector<1x512x128xbf16> to vector<512x128xbf16>
    %7 = vector.shape_cast %4 : vector<512x128xbf16> to vector<1x512x128xbf16>
    tpu.vector_store %arg4[%c0_4, %c0_5, %c0_6], %7 {strides = array<i32>} : memref<1x512x128xbf16, #tpu.memory_space<vmem>>, vector<1x512x128xbf16>,
    %cst_7 = arith.constant dense<0.000000e+00> : vector<128xf32>
    %8 = vector.multi_reduction <add>, %3, %cst_7 [0] : vector<512x128xf32> to vector<128xf32>
    %9 = vector.shape_cast %8 : vector<128xf32> to vector<1x128xf32>
    %10 = arith.mulf %3, %3 : vector<512x128xf32>
    %cst_8 = arith.constant dense<0.000000e+00> : vector<128xf32>
    %11 = vector.multi_reduction <add>, %10, %cst_8 [0] : vector<512x128xf32> to vector<128xf32>
    %12 = vector.shape_cast %11 : vector<128xf32> to vector<1x128xf32>
    %13 = tpu.concatenate %9, %12 in 0 : vector<1x128xf32>, vector<1x128xf32> -> vector<2x128xf32>
    %14 = vector.shape_cast %13 : vector<2x128xf32> to vector<1x2x128xf32>
    %c0_9 = arith.constant 0 : index
    %c0_10 = arith.constant 0 : index
    %c0_11 = arith.constant 0 : index
    %15 = vector.load %arg5[%c0_9, %c0_10, %c0_11] : memref<1x2x128xf32, #tpu.memory_space<vmem>>, vector<1x2x128xf32>
    tpu.vector_store %arg5[%c0_9, %c0_10, %c0_11], %14 {strides = array<i32>} : memref<1x2x128xf32, #tpu.memory_space<vmem>>, vector<1x2x128xf32>,
    return
  }
  func.func @transform_0(%arg0: i32, %arg1: i32) -> (i32, i32, i32) {
    %c0_i32 = arith.constant 0 : i32
    %c0_i32_0 = arith.constant 0 : i32
    return %arg0, %arg1, %c0_i32 : i32, i32, i32
  }
  func.func @transform_1(%arg0: i32, %arg1: i32) -> (i32, i32) {
    %c0_i32 = arith.constant 0 : i32
    %c0_i32_0 = arith.constant 0 : i32
    %c0_i32_1 = arith.constant 0 : i32
    return %c0_i32, %c0_i32_0 : i32, i32
  }
  func.func @transform_2(%arg0: i32, %arg1: i32) -> (i32, i32, i32) {
    %c0_i32 = arith.constant 0 : i32
    %c0_i32_0 = arith.constant 0 : i32
    return %arg0, %arg1, %c0_i32 : i32, i32, i32
  }
  func.func @transform_3(%arg0: i32, %arg1: i32) -> (i32, i32, i32) {
    %c2_i32 = arith.constant 2 : i32
    %0 = arith.muli %arg0, %c2_i32 : i32
    %1 = arith.addi %0, %arg1 : i32
    %c0_i32 = arith.constant 0 : i32
    %c0_i32_0 = arith.constant 0 : i32
    %c0_i32_1 = arith.constant 0 : i32
    return %1, %c0_i32, %c0_i32_0 : i32, i32, i32
  }
}

module attributes {stable_mosaic.version = 11 : i64} {
  func.func @_norm_act_kernel(%arg0: i32, %arg1: i32, %arg2: memref<1x512x128xbf16, #tpu.memory_space<vmem>>, %arg3: memref<1x2x128xf32, #tpu.memory_space<vmem>>, %arg4: memref<1x512x128xbf16, #tpu.memory_space<vmem>>) attributes {dimension_semantics = [#tpu.dimension_semantics<parallel>, #tpu.dimension_semantics<parallel>], iteration_bounds = array<i64: 2, 2>, scalar_prefetch = 0 : i64, scratch_operands = 0 : i64, tpu.core_type = #tpu.core_type<tc>, window_params = [{transform_indices = @transform_0, window_bounds = array<i64: 1, 512, 128>}, {transform_indices = @transform_1, window_bounds = array<i64: 1, 2, 128>}, {transform_indices = @transform_2, window_bounds = array<i64: 1, 512, 128>}]} {
    %c0 = arith.constant 0 : index
    %c0_0 = arith.constant 0 : index
    %c0_1 = arith.constant 0 : index
    %0 = vector.load %arg2[%c0, %c0_0, %c0_1] : memref<1x512x128xbf16, #tpu.memory_space<vmem>>, vector<1x512x128xbf16>
    %1 = vector.shape_cast %0 : vector<1x512x128xbf16> to vector<512x128xbf16>
    %2 = arith.extf %1 : vector<512x128xbf16> to vector<512x128xf32>
    %c0_2 = arith.constant 0 : index
    %c0_3 = arith.constant 0 : index
    %c0_4 = arith.constant 0 : index
    %3 = vector.load %arg3[%c0_2, %c0_3, %c0_4] : memref<1x2x128xf32, #tpu.memory_space<vmem>>, vector<1x2x128xf32>
    %4 = vector.shape_cast %3 : vector<1x2x128xf32> to vector<2x128xf32>
    %5 = vector.extract_strided_slice %4 {offsets = [0, 0], sizes = [1, 128], strides = [1, 1]} : vector<2x128xf32> to vector<1x128xf32>
    %6 = vector.extract_strided_slice %4 {offsets = [1, 0], sizes = [1, 128], strides = [1, 1]} : vector<2x128xf32> to vector<1x128xf32>
    %7 = vector.broadcast %5 : vector<1x128xf32> to vector<512x128xf32>
    %8 = arith.mulf %2, %7 : vector<512x128xf32>
    %9 = vector.broadcast %6 : vector<1x128xf32> to vector<512x128xf32>
    %10 = arith.addf %8, %9 : vector<512x128xf32>
    %cst = arith.constant 0.000000e+00 : f32
    %11 = vector.broadcast %cst : f32 to vector<512x128xf32>
    %12 = arith.cmpf ogt, %10, %11 : vector<512x128xf32>
    %cst_5 = arith.constant 2.000000e-01 : f32
    %13 = vector.broadcast %cst_5 : f32 to vector<512x128xf32>
    %14 = arith.mulf %13, %10 : vector<512x128xf32>
    %15 = arith.select %12, %10, %14 : vector<512x128xi1>, vector<512x128xf32>
    %16 = arith.truncf %15 : vector<512x128xf32> to vector<512x128xbf16>
    %c0_6 = arith.constant 0 : index
    %c0_7 = arith.constant 0 : index
    %c0_8 = arith.constant 0 : index
    %17 = vector.load %arg4[%c0_6, %c0_7, %c0_8] : memref<1x512x128xbf16, #tpu.memory_space<vmem>>, vector<1x512x128xbf16>
    %18 = vector.shape_cast %17 : vector<1x512x128xbf16> to vector<512x128xbf16>
    %19 = vector.shape_cast %16 : vector<512x128xbf16> to vector<1x512x128xbf16>
    tpu.vector_store %arg4[%c0_6, %c0_7, %c0_8], %19 {strides = array<i32>} : memref<1x512x128xbf16, #tpu.memory_space<vmem>>, vector<1x512x128xbf16>,
    return
  }
  func.func @transform_0(%arg0: i32, %arg1: i32) -> (i32, i32, i32) {
    %c0_i32 = arith.constant 0 : i32
    %c0_i32_0 = arith.constant 0 : i32
    return %arg0, %arg1, %c0_i32 : i32, i32, i32
  }
  func.func @transform_1(%arg0: i32, %arg1: i32) -> (i32, i32, i32) {
    %c0_i32 = arith.constant 0 : i32
    %c0_i32_0 = arith.constant 0 : i32
    %c0_i32_1 = arith.constant 0 : i32
    return %arg0, %c0_i32, %c0_i32_0 : i32, i32, i32
  }
  func.func @transform_2(%arg0: i32, %arg1: i32) -> (i32, i32, i32) {
    %c0_i32 = arith.constant 0 : i32
    %c0_i32_0 = arith.constant 0 : i32
    return %arg0, %arg1, %c0_i32 : i32, i32, i32
  }
}

module attributes {stable_mosaic.version = 11 : i64} {
  func.func @_mm_stats_kernel(%arg0: i32, %arg1: i32, %arg2: memref<1x256x256xbf16, #tpu.memory_space<vmem>>, %arg3: memref<256x128xbf16, #tpu.memory_space<vmem>>, %arg4: memref<1x256x128xbf16, #tpu.memory_space<vmem>>, %arg5: memref<1x2x128xf32, #tpu.memory_space<vmem>>) attributes {dimension_semantics = [#tpu.dimension_semantics<parallel>, #tpu.dimension_semantics<parallel>], iteration_bounds = array<i64: 2, 1>, scalar_prefetch = 0 : i64, scratch_operands = 0 : i64, tpu.core_type = #tpu.core_type<tc>, window_params = [{transform_indices = @transform_0, window_bounds = array<i64: 1, 256, 256>}, {pipeline_mode = #tpu.pipeline_mode<synchronous>, transform_indices = @transform_1, window_bounds = array<i64: 256, 128>}, {transform_indices = @transform_2, window_bounds = array<i64: 1, 256, 128>}, {transform_indices = @transform_3, window_bounds = array<i64: 1, 2, 128>}]} {
    %c0 = arith.constant 0 : index
    %c0_0 = arith.constant 0 : index
    %c0_1 = arith.constant 0 : index
    %0 = vector.load %arg2[%c0, %c0_0, %c0_1] : memref<1x256x256xbf16, #tpu.memory_space<vmem>>, vector<1x256x256xbf16>
    %1 = vector.shape_cast %0 : vector<1x256x256xbf16> to vector<256x256xbf16>
    %c0_2 = arith.constant 0 : index
    %c0_3 = arith.constant 0 : index
    %2 = vector.load %arg3[%c0_2, %c0_3] : memref<256x128xbf16, #tpu.memory_space<vmem>>, vector<256x128xbf16>
    %cst = arith.constant dense<0.000000e+00> : vector<256x128xf32>
    %3 = tpu.matmul %1, %2, %cst {dimension_numbers = #tpu.dot_dimension_numbers<[1], [0], [0], [1], [0, 0, 1, 1], [], []>} : vector<256x256xbf16>, vector<256x128xbf16>, vector<256x128xf32> -> vector<256x128xf32>
    %4 = arith.truncf %3 : vector<256x128xf32> to vector<256x128xbf16>
    %c0_4 = arith.constant 0 : index
    %c0_5 = arith.constant 0 : index
    %c0_6 = arith.constant 0 : index
    %5 = vector.load %arg4[%c0_4, %c0_5, %c0_6] : memref<1x256x128xbf16, #tpu.memory_space<vmem>>, vector<1x256x128xbf16>
    %6 = vector.shape_cast %5 : vector<1x256x128xbf16> to vector<256x128xbf16>
    %7 = vector.shape_cast %4 : vector<256x128xbf16> to vector<1x256x128xbf16>
    tpu.vector_store %arg4[%c0_4, %c0_5, %c0_6], %7 {strides = array<i32>} : memref<1x256x128xbf16, #tpu.memory_space<vmem>>, vector<1x256x128xbf16>,
    %cst_7 = arith.constant dense<0.000000e+00> : vector<128xf32>
    %8 = vector.multi_reduction <add>, %3, %cst_7 [0] : vector<256x128xf32> to vector<128xf32>
    %9 = vector.shape_cast %8 : vector<128xf32> to vector<1x128xf32>
    %10 = arith.mulf %3, %3 : vector<256x128xf32>
    %cst_8 = arith.constant dense<0.000000e+00> : vector<128xf32>
    %11 = vector.multi_reduction <add>, %10, %cst_8 [0] : vector<256x128xf32> to vector<128xf32>
    %12 = vector.shape_cast %11 : vector<128xf32> to vector<1x128xf32>
    %13 = tpu.concatenate %9, %12 in 0 : vector<1x128xf32>, vector<1x128xf32> -> vector<2x128xf32>
    %14 = vector.shape_cast %13 : vector<2x128xf32> to vector<1x2x128xf32>
    %c0_9 = arith.constant 0 : index
    %c0_10 = arith.constant 0 : index
    %c0_11 = arith.constant 0 : index
    %15 = vector.load %arg5[%c0_9, %c0_10, %c0_11] : memref<1x2x128xf32, #tpu.memory_space<vmem>>, vector<1x2x128xf32>
    tpu.vector_store %arg5[%c0_9, %c0_10, %c0_11], %14 {strides = array<i32>} : memref<1x2x128xf32, #tpu.memory_space<vmem>>, vector<1x2x128xf32>,
    return
  }
  func.func @transform_0(%arg0: i32, %arg1: i32) -> (i32, i32, i32) {
    %c0_i32 = arith.constant 0 : i32
    %c0_i32_0 = arith.constant 0 : i32
    return %arg0, %arg1, %c0_i32 : i32, i32, i32
  }
  func.func @transform_1(%arg0: i32, %arg1: i32) -> (i32, i32) {
    %c0_i32 = arith.constant 0 : i32
    %c0_i32_0 = arith.constant 0 : i32
    %c0_i32_1 = arith.constant 0 : i32
    return %c0_i32, %c0_i32_0 : i32, i32
  }
  func.func @transform_2(%arg0: i32, %arg1: i32) -> (i32, i32, i32) {
    %c0_i32 = arith.constant 0 : i32
    %c0_i32_0 = arith.constant 0 : i32
    return %arg0, %arg1, %c0_i32 : i32, i32, i32
  }
  func.func @transform_3(%arg0: i32, %arg1: i32) -> (i32, i32, i32) {
    %c1_i32 = arith.constant 1 : i32
    %0 = arith.muli %arg0, %c1_i32 : i32
    %1 = arith.addi %0, %arg1 : i32
    %c0_i32 = arith.constant 0 : i32
    %c0_i32_0 = arith.constant 0 : i32
    %c0_i32_1 = arith.constant 0 : i32
    return %1, %c0_i32, %c0_i32_0 : i32, i32, i32
  }
}

module attributes {stable_mosaic.version = 11 : i64} {
  func.func @_norm_act_kernel(%arg0: i32, %arg1: i32, %arg2: memref<1x256x128xbf16, #tpu.memory_space<vmem>>, %arg3: memref<1x2x128xf32, #tpu.memory_space<vmem>>, %arg4: memref<1x256x128xbf16, #tpu.memory_space<vmem>>) attributes {dimension_semantics = [#tpu.dimension_semantics<parallel>, #tpu.dimension_semantics<parallel>], iteration_bounds = array<i64: 2, 1>, scalar_prefetch = 0 : i64, scratch_operands = 0 : i64, tpu.core_type = #tpu.core_type<tc>, window_params = [{transform_indices = @transform_0, window_bounds = array<i64: 1, 256, 128>}, {transform_indices = @transform_1, window_bounds = array<i64: 1, 2, 128>}, {transform_indices = @transform_2, window_bounds = array<i64: 1, 256, 128>}]} {
    %c0 = arith.constant 0 : index
    %c0_0 = arith.constant 0 : index
    %c0_1 = arith.constant 0 : index
    %0 = vector.load %arg2[%c0, %c0_0, %c0_1] : memref<1x256x128xbf16, #tpu.memory_space<vmem>>, vector<1x256x128xbf16>
    %1 = vector.shape_cast %0 : vector<1x256x128xbf16> to vector<256x128xbf16>
    %2 = arith.extf %1 : vector<256x128xbf16> to vector<256x128xf32>
    %c0_2 = arith.constant 0 : index
    %c0_3 = arith.constant 0 : index
    %c0_4 = arith.constant 0 : index
    %3 = vector.load %arg3[%c0_2, %c0_3, %c0_4] : memref<1x2x128xf32, #tpu.memory_space<vmem>>, vector<1x2x128xf32>
    %4 = vector.shape_cast %3 : vector<1x2x128xf32> to vector<2x128xf32>
    %5 = vector.extract_strided_slice %4 {offsets = [0, 0], sizes = [1, 128], strides = [1, 1]} : vector<2x128xf32> to vector<1x128xf32>
    %6 = vector.extract_strided_slice %4 {offsets = [1, 0], sizes = [1, 128], strides = [1, 1]} : vector<2x128xf32> to vector<1x128xf32>
    %7 = vector.broadcast %5 : vector<1x128xf32> to vector<256x128xf32>
    %8 = arith.mulf %2, %7 : vector<256x128xf32>
    %9 = vector.broadcast %6 : vector<1x128xf32> to vector<256x128xf32>
    %10 = arith.addf %8, %9 : vector<256x128xf32>
    %cst = arith.constant 0.000000e+00 : f32
    %11 = vector.broadcast %cst : f32 to vector<256x128xf32>
    %12 = arith.cmpf ogt, %10, %11 : vector<256x128xf32>
    %cst_5 = arith.constant 2.000000e-01 : f32
    %13 = vector.broadcast %cst_5 : f32 to vector<256x128xf32>
    %14 = arith.mulf %13, %10 : vector<256x128xf32>
    %15 = arith.select %12, %10, %14 : vector<256x128xi1>, vector<256x128xf32>
    %16 = arith.truncf %15 : vector<256x128xf32> to vector<256x128xbf16>
    %c0_6 = arith.constant 0 : index
    %c0_7 = arith.constant 0 : index
    %c0_8 = arith.constant 0 : index
    %17 = vector.load %arg4[%c0_6, %c0_7, %c0_8] : memref<1x256x128xbf16, #tpu.memory_space<vmem>>, vector<1x256x128xbf16>
    %18 = vector.shape_cast %17 : vector<1x256x128xbf16> to vector<256x128xbf16>
    %19 = vector.shape_cast %16 : vector<256x128xbf16> to vector<1x256x128xbf16>
    tpu.vector_store %arg4[%c0_6, %c0_7, %c0_8], %19 {strides = array<i32>} : memref<1x256x128xbf16, #tpu.memory_space<vmem>>, vector<1x256x128xbf16>,
    return
  }
  func.func @transform_0(%arg0: i32, %arg1: i32) -> (i32, i32, i32) {
    %c0_i32 = arith.constant 0 : i32
    %c0_i32_0 = arith.constant 0 : i32
    return %arg0, %arg1, %c0_i32 : i32, i32, i32
  }
  func.func @transform_1(%arg0: i32, %arg1: i32) -> (i32, i32, i32) {
    %c0_i32 = arith.constant 0 : i32
    %c0_i32_0 = arith.constant 0 : i32
    %c0_i32_1 = arith.constant 0 : i32
    return %arg0, %c0_i32, %c0_i32_0 : i32, i32, i32
  }
  func.func @transform_2(%arg0: i32, %arg1: i32) -> (i32, i32, i32) {
    %c0_i32 = arith.constant 0 : i32
    %c0_i32_0 = arith.constant 0 : i32
    return %arg0, %arg1, %c0_i32 : i32, i32, i32
  }
}

module attributes {stable_mosaic.version = 11 : i64} {
  func.func @_mm_stats_kernel(%arg0: i32, %arg1: i32, %arg2: memref<1x64x512xbf16, #tpu.memory_space<vmem>>, %arg3: memref<512x128xbf16, #tpu.memory_space<vmem>>, %arg4: memref<1x64x128xbf16, #tpu.memory_space<vmem>>, %arg5: memref<1x2x128xf32, #tpu.memory_space<vmem>>) attributes {dimension_semantics = [#tpu.dimension_semantics<parallel>, #tpu.dimension_semantics<parallel>], iteration_bounds = array<i64: 2, 1>, scalar_prefetch = 0 : i64, scratch_operands = 0 : i64, tpu.core_type = #tpu.core_type<tc>, window_params = [{transform_indices = @transform_0, window_bounds = array<i64: 1, 64, 512>}, {pipeline_mode = #tpu.pipeline_mode<synchronous>, transform_indices = @transform_1, window_bounds = array<i64: 512, 128>}, {transform_indices = @transform_2, window_bounds = array<i64: 1, 64, 128>}, {transform_indices = @transform_3, window_bounds = array<i64: 1, 2, 128>}]} {
    %c0 = arith.constant 0 : index
    %c0_0 = arith.constant 0 : index
    %c0_1 = arith.constant 0 : index
    %0 = vector.load %arg2[%c0, %c0_0, %c0_1] : memref<1x64x512xbf16, #tpu.memory_space<vmem>>, vector<1x64x512xbf16>
    %1 = vector.shape_cast %0 : vector<1x64x512xbf16> to vector<64x512xbf16>
    %c0_2 = arith.constant 0 : index
    %c0_3 = arith.constant 0 : index
    %2 = vector.load %arg3[%c0_2, %c0_3] : memref<512x128xbf16, #tpu.memory_space<vmem>>, vector<512x128xbf16>
    %cst = arith.constant dense<0.000000e+00> : vector<64x128xf32>
    %3 = tpu.matmul %1, %2, %cst {dimension_numbers = #tpu.dot_dimension_numbers<[1], [0], [0], [1], [0, 0, 1, 1], [], []>} : vector<64x512xbf16>, vector<512x128xbf16>, vector<64x128xf32> -> vector<64x128xf32>
    %4 = arith.truncf %3 : vector<64x128xf32> to vector<64x128xbf16>
    %c0_4 = arith.constant 0 : index
    %c0_5 = arith.constant 0 : index
    %c0_6 = arith.constant 0 : index
    %5 = vector.load %arg4[%c0_4, %c0_5, %c0_6] : memref<1x64x128xbf16, #tpu.memory_space<vmem>>, vector<1x64x128xbf16>
    %6 = vector.shape_cast %5 : vector<1x64x128xbf16> to vector<64x128xbf16>
    %7 = vector.shape_cast %4 : vector<64x128xbf16> to vector<1x64x128xbf16>
    tpu.vector_store %arg4[%c0_4, %c0_5, %c0_6], %7 {strides = array<i32>} : memref<1x64x128xbf16, #tpu.memory_space<vmem>>, vector<1x64x128xbf16>,
    %cst_7 = arith.constant dense<0.000000e+00> : vector<128xf32>
    %8 = vector.multi_reduction <add>, %3, %cst_7 [0] : vector<64x128xf32> to vector<128xf32>
    %9 = vector.shape_cast %8 : vector<128xf32> to vector<1x128xf32>
    %10 = arith.mulf %3, %3 : vector<64x128xf32>
    %cst_8 = arith.constant dense<0.000000e+00> : vector<128xf32>
    %11 = vector.multi_reduction <add>, %10, %cst_8 [0] : vector<64x128xf32> to vector<128xf32>
    %12 = vector.shape_cast %11 : vector<128xf32> to vector<1x128xf32>
    %13 = tpu.concatenate %9, %12 in 0 : vector<1x128xf32>, vector<1x128xf32> -> vector<2x128xf32>
    %14 = vector.shape_cast %13 : vector<2x128xf32> to vector<1x2x128xf32>
    %c0_9 = arith.constant 0 : index
    %c0_10 = arith.constant 0 : index
    %c0_11 = arith.constant 0 : index
    %15 = vector.load %arg5[%c0_9, %c0_10, %c0_11] : memref<1x2x128xf32, #tpu.memory_space<vmem>>, vector<1x2x128xf32>
    tpu.vector_store %arg5[%c0_9, %c0_10, %c0_11], %14 {strides = array<i32>} : memref<1x2x128xf32, #tpu.memory_space<vmem>>, vector<1x2x128xf32>,
    return
  }
  func.func @transform_0(%arg0: i32, %arg1: i32) -> (i32, i32, i32) {
    %c0_i32 = arith.constant 0 : i32
    %c0_i32_0 = arith.constant 0 : i32
    return %arg0, %arg1, %c0_i32 : i32, i32, i32
  }
  func.func @transform_1(%arg0: i32, %arg1: i32) -> (i32, i32) {
    %c0_i32 = arith.constant 0 : i32
    %c0_i32_0 = arith.constant 0 : i32
    %c0_i32_1 = arith.constant 0 : i32
    return %c0_i32, %c0_i32_0 : i32, i32
  }
  func.func @transform_2(%arg0: i32, %arg1: i32) -> (i32, i32, i32) {
    %c0_i32 = arith.constant 0 : i32
    %c0_i32_0 = arith.constant 0 : i32
    return %arg0, %arg1, %c0_i32 : i32, i32, i32
  }
  func.func @transform_3(%arg0: i32, %arg1: i32) -> (i32, i32, i32) {
    %c1_i32 = arith.constant 1 : i32
    %0 = arith.muli %arg0, %c1_i32 : i32
    %1 = arith.addi %0, %arg1 : i32
    %c0_i32 = arith.constant 0 : i32
    %c0_i32_0 = arith.constant 0 : i32
    %c0_i32_1 = arith.constant 0 : i32
    return %1, %c0_i32, %c0_i32_0 : i32, i32, i32
  }
}

module attributes {stable_mosaic.version = 11 : i64} {
  func.func @_norm_act_kernel(%arg0: i32, %arg1: i32, %arg2: memref<1x64x128xbf16, #tpu.memory_space<vmem>>, %arg3: memref<1x2x128xf32, #tpu.memory_space<vmem>>, %arg4: memref<1x64x128xbf16, #tpu.memory_space<vmem>>) attributes {dimension_semantics = [#tpu.dimension_semantics<parallel>, #tpu.dimension_semantics<parallel>], iteration_bounds = array<i64: 2, 1>, scalar_prefetch = 0 : i64, scratch_operands = 0 : i64, tpu.core_type = #tpu.core_type<tc>, window_params = [{transform_indices = @transform_0, window_bounds = array<i64: 1, 64, 128>}, {transform_indices = @transform_1, window_bounds = array<i64: 1, 2, 128>}, {transform_indices = @transform_2, window_bounds = array<i64: 1, 64, 128>}]} {
    %c0 = arith.constant 0 : index
    %c0_0 = arith.constant 0 : index
    %c0_1 = arith.constant 0 : index
    %0 = vector.load %arg2[%c0, %c0_0, %c0_1] : memref<1x64x128xbf16, #tpu.memory_space<vmem>>, vector<1x64x128xbf16>
    %1 = vector.shape_cast %0 : vector<1x64x128xbf16> to vector<64x128xbf16>
    %2 = arith.extf %1 : vector<64x128xbf16> to vector<64x128xf32>
    %c0_2 = arith.constant 0 : index
    %c0_3 = arith.constant 0 : index
    %c0_4 = arith.constant 0 : index
    %3 = vector.load %arg3[%c0_2, %c0_3, %c0_4] : memref<1x2x128xf32, #tpu.memory_space<vmem>>, vector<1x2x128xf32>
    %4 = vector.shape_cast %3 : vector<1x2x128xf32> to vector<2x128xf32>
    %5 = vector.extract_strided_slice %4 {offsets = [0, 0], sizes = [1, 128], strides = [1, 1]} : vector<2x128xf32> to vector<1x128xf32>
    %6 = vector.extract_strided_slice %4 {offsets = [1, 0], sizes = [1, 128], strides = [1, 1]} : vector<2x128xf32> to vector<1x128xf32>
    %7 = vector.broadcast %5 : vector<1x128xf32> to vector<64x128xf32>
    %8 = arith.mulf %2, %7 : vector<64x128xf32>
    %9 = vector.broadcast %6 : vector<1x128xf32> to vector<64x128xf32>
    %10 = arith.addf %8, %9 : vector<64x128xf32>
    %cst = arith.constant 0.000000e+00 : f32
    %11 = vector.broadcast %cst : f32 to vector<64x128xf32>
    %12 = arith.cmpf ogt, %10, %11 : vector<64x128xf32>
    %cst_5 = arith.constant 2.000000e-01 : f32
    %13 = vector.broadcast %cst_5 : f32 to vector<64x128xf32>
    %14 = arith.mulf %13, %10 : vector<64x128xf32>
    %15 = arith.select %12, %10, %14 : vector<64x128xi1>, vector<64x128xf32>
    %16 = arith.truncf %15 : vector<64x128xf32> to vector<64x128xbf16>
    %c0_6 = arith.constant 0 : index
    %c0_7 = arith.constant 0 : index
    %c0_8 = arith.constant 0 : index
    %17 = vector.load %arg4[%c0_6, %c0_7, %c0_8] : memref<1x64x128xbf16, #tpu.memory_space<vmem>>, vector<1x64x128xbf16>
    %18 = vector.shape_cast %17 : vector<1x64x128xbf16> to vector<64x128xbf16>
    %19 = vector.shape_cast %16 : vector<64x128xbf16> to vector<1x64x128xbf16>
    tpu.vector_store %arg4[%c0_6, %c0_7, %c0_8], %19 {strides = array<i32>} : memref<1x64x128xbf16, #tpu.memory_space<vmem>>, vector<1x64x128xbf16>,
    return
  }
  func.func @transform_0(%arg0: i32, %arg1: i32) -> (i32, i32, i32) {
    %c0_i32 = arith.constant 0 : i32
    %c0_i32_0 = arith.constant 0 : i32
    return %arg0, %arg1, %c0_i32 : i32, i32, i32
  }
  func.func @transform_1(%arg0: i32, %arg1: i32) -> (i32, i32, i32) {
    %c0_i32 = arith.constant 0 : i32
    %c0_i32_0 = arith.constant 0 : i32
    %c0_i32_1 = arith.constant 0 : i32
    return %arg0, %c0_i32, %c0_i32_0 : i32, i32, i32
  }
  func.func @transform_2(%arg0: i32, %arg1: i32) -> (i32, i32, i32) {
    %c0_i32 = arith.constant 0 : i32
    %c0_i32_0 = arith.constant 0 : i32
    return %arg0, %arg1, %c0_i32 : i32, i32, i32
  }
}

module attributes {stable_mosaic.version = 11 : i64} {
  func.func @_mm_stats_kernel(%arg0: i32, %arg1: i32, %arg2: memref<1x16x1024xbf16, #tpu.memory_space<vmem>>, %arg3: memref<1024x128xbf16, #tpu.memory_space<vmem>>, %arg4: memref<1x16x128xbf16, #tpu.memory_space<vmem>>, %arg5: memref<1x2x128xf32, #tpu.memory_space<vmem>>) attributes {dimension_semantics = [#tpu.dimension_semantics<parallel>, #tpu.dimension_semantics<parallel>], iteration_bounds = array<i64: 2, 1>, scalar_prefetch = 0 : i64, scratch_operands = 0 : i64, tpu.core_type = #tpu.core_type<tc>, window_params = [{transform_indices = @transform_0, window_bounds = array<i64: 1, 16, 1024>}, {pipeline_mode = #tpu.pipeline_mode<synchronous>, transform_indices = @transform_1, window_bounds = array<i64: 1024, 128>}, {transform_indices = @transform_2, window_bounds = array<i64: 1, 16, 128>}, {transform_indices = @transform_3, window_bounds = array<i64: 1, 2, 128>}]} {
    %c0 = arith.constant 0 : index
    %c0_0 = arith.constant 0 : index
    %c0_1 = arith.constant 0 : index
    %0 = vector.load %arg2[%c0, %c0_0, %c0_1] : memref<1x16x1024xbf16, #tpu.memory_space<vmem>>, vector<1x16x1024xbf16>
    %1 = vector.shape_cast %0 : vector<1x16x1024xbf16> to vector<16x1024xbf16>
    %c0_2 = arith.constant 0 : index
    %c0_3 = arith.constant 0 : index
    %2 = vector.load %arg3[%c0_2, %c0_3] : memref<1024x128xbf16, #tpu.memory_space<vmem>>, vector<1024x128xbf16>
    %cst = arith.constant dense<0.000000e+00> : vector<16x128xf32>
    %3 = tpu.matmul %1, %2, %cst {dimension_numbers = #tpu.dot_dimension_numbers<[1], [0], [0], [1], [0, 0, 1, 1], [], []>} : vector<16x1024xbf16>, vector<1024x128xbf16>, vector<16x128xf32> -> vector<16x128xf32>
    %4 = arith.truncf %3 : vector<16x128xf32> to vector<16x128xbf16>
    %c0_4 = arith.constant 0 : index
    %c0_5 = arith.constant 0 : index
    %c0_6 = arith.constant 0 : index
    %5 = vector.load %arg4[%c0_4, %c0_5, %c0_6] : memref<1x16x128xbf16, #tpu.memory_space<vmem>>, vector<1x16x128xbf16>
    %6 = vector.shape_cast %5 : vector<1x16x128xbf16> to vector<16x128xbf16>
    %7 = vector.shape_cast %4 : vector<16x128xbf16> to vector<1x16x128xbf16>
    tpu.vector_store %arg4[%c0_4, %c0_5, %c0_6], %7 {strides = array<i32>} : memref<1x16x128xbf16, #tpu.memory_space<vmem>>, vector<1x16x128xbf16>,
    %cst_7 = arith.constant dense<0.000000e+00> : vector<128xf32>
    %8 = vector.multi_reduction <add>, %3, %cst_7 [0] : vector<16x128xf32> to vector<128xf32>
    %9 = vector.shape_cast %8 : vector<128xf32> to vector<1x128xf32>
    %10 = arith.mulf %3, %3 : vector<16x128xf32>
    %cst_8 = arith.constant dense<0.000000e+00> : vector<128xf32>
    %11 = vector.multi_reduction <add>, %10, %cst_8 [0] : vector<16x128xf32> to vector<128xf32>
    %12 = vector.shape_cast %11 : vector<128xf32> to vector<1x128xf32>
    %13 = tpu.concatenate %9, %12 in 0 : vector<1x128xf32>, vector<1x128xf32> -> vector<2x128xf32>
    %14 = vector.shape_cast %13 : vector<2x128xf32> to vector<1x2x128xf32>
    %c0_9 = arith.constant 0 : index
    %c0_10 = arith.constant 0 : index
    %c0_11 = arith.constant 0 : index
    %15 = vector.load %arg5[%c0_9, %c0_10, %c0_11] : memref<1x2x128xf32, #tpu.memory_space<vmem>>, vector<1x2x128xf32>
    tpu.vector_store %arg5[%c0_9, %c0_10, %c0_11], %14 {strides = array<i32>} : memref<1x2x128xf32, #tpu.memory_space<vmem>>, vector<1x2x128xf32>,
    return
  }
  func.func @transform_0(%arg0: i32, %arg1: i32) -> (i32, i32, i32) {
    %c0_i32 = arith.constant 0 : i32
    %c0_i32_0 = arith.constant 0 : i32
    return %arg0, %arg1, %c0_i32 : i32, i32, i32
  }
  func.func @transform_1(%arg0: i32, %arg1: i32) -> (i32, i32) {
    %c0_i32 = arith.constant 0 : i32
    %c0_i32_0 = arith.constant 0 : i32
    %c0_i32_1 = arith.constant 0 : i32
    return %c0_i32, %c0_i32_0 : i32, i32
  }
  func.func @transform_2(%arg0: i32, %arg1: i32) -> (i32, i32, i32) {
    %c0_i32 = arith.constant 0 : i32
    %c0_i32_0 = arith.constant 0 : i32
    return %arg0, %arg1, %c0_i32 : i32, i32, i32
  }
  func.func @transform_3(%arg0: i32, %arg1: i32) -> (i32, i32, i32) {
    %c1_i32 = arith.constant 1 : i32
    %0 = arith.muli %arg0, %c1_i32 : i32
    %1 = arith.addi %0, %arg1 : i32
    %c0_i32 = arith.constant 0 : i32
    %c0_i32_0 = arith.constant 0 : i32
    %c0_i32_1 = arith.constant 0 : i32
    return %1, %c0_i32, %c0_i32_0 : i32, i32, i32
  }
}

module attributes {stable_mosaic.version = 11 : i64} {
  func.func @_norm_act_kernel(%arg0: i32, %arg1: i32, %arg2: memref<1x16x128xbf16, #tpu.memory_space<vmem>>, %arg3: memref<1x2x128xf32, #tpu.memory_space<vmem>>, %arg4: memref<1x16x128xbf16, #tpu.memory_space<vmem>>) attributes {dimension_semantics = [#tpu.dimension_semantics<parallel>, #tpu.dimension_semantics<parallel>], iteration_bounds = array<i64: 2, 1>, scalar_prefetch = 0 : i64, scratch_operands = 0 : i64, tpu.core_type = #tpu.core_type<tc>, window_params = [{transform_indices = @transform_0, window_bounds = array<i64: 1, 16, 128>}, {transform_indices = @transform_1, window_bounds = array<i64: 1, 2, 128>}, {transform_indices = @transform_2, window_bounds = array<i64: 1, 16, 128>}]} {
    %c0 = arith.constant 0 : index
    %c0_0 = arith.constant 0 : index
    %c0_1 = arith.constant 0 : index
    %0 = vector.load %arg2[%c0, %c0_0, %c0_1] : memref<1x16x128xbf16, #tpu.memory_space<vmem>>, vector<1x16x128xbf16>
    %1 = vector.shape_cast %0 : vector<1x16x128xbf16> to vector<16x128xbf16>
    %2 = arith.extf %1 : vector<16x128xbf16> to vector<16x128xf32>
    %c0_2 = arith.constant 0 : index
    %c0_3 = arith.constant 0 : index
    %c0_4 = arith.constant 0 : index
    %3 = vector.load %arg3[%c0_2, %c0_3, %c0_4] : memref<1x2x128xf32, #tpu.memory_space<vmem>>, vector<1x2x128xf32>
    %4 = vector.shape_cast %3 : vector<1x2x128xf32> to vector<2x128xf32>
    %5 = vector.extract_strided_slice %4 {offsets = [0, 0], sizes = [1, 128], strides = [1, 1]} : vector<2x128xf32> to vector<1x128xf32>
    %6 = vector.extract_strided_slice %4 {offsets = [1, 0], sizes = [1, 128], strides = [1, 1]} : vector<2x128xf32> to vector<1x128xf32>
    %7 = vector.broadcast %5 : vector<1x128xf32> to vector<16x128xf32>
    %8 = arith.mulf %2, %7 : vector<16x128xf32>
    %9 = vector.broadcast %6 : vector<1x128xf32> to vector<16x128xf32>
    %10 = arith.addf %8, %9 : vector<16x128xf32>
    %cst = arith.constant 0.000000e+00 : f32
    %11 = vector.broadcast %cst : f32 to vector<16x128xf32>
    %12 = arith.cmpf ogt, %10, %11 : vector<16x128xf32>
    %cst_5 = arith.constant 2.000000e-01 : f32
    %13 = vector.broadcast %cst_5 : f32 to vector<16x128xf32>
    %14 = arith.mulf %13, %10 : vector<16x128xf32>
    %15 = arith.select %12, %10, %14 : vector<16x128xi1>, vector<16x128xf32>
    %16 = arith.truncf %15 : vector<16x128xf32> to vector<16x128xbf16>
    %c0_6 = arith.constant 0 : index
    %c0_7 = arith.constant 0 : index
    %c0_8 = arith.constant 0 : index
    %17 = vector.load %arg4[%c0_6, %c0_7, %c0_8] : memref<1x16x128xbf16, #tpu.memory_space<vmem>>, vector<1x16x128xbf16>
    %18 = vector.shape_cast %17 : vector<1x16x128xbf16> to vector<16x128xbf16>
    %19 = vector.shape_cast %16 : vector<16x128xbf16> to vector<1x16x128xbf16>
    tpu.vector_store %arg4[%c0_6, %c0_7, %c0_8], %19 {strides = array<i32>} : memref<1x16x128xbf16, #tpu.memory_space<vmem>>, vector<1x16x128xbf16>,
    return
  }
  func.func @transform_0(%arg0: i32, %arg1: i32) -> (i32, i32, i32) {
    %c0_i32 = arith.constant 0 : i32
    %c0_i32_0 = arith.constant 0 : i32
    return %arg0, %arg1, %c0_i32 : i32, i32, i32
  }
  func.func @transform_1(%arg0: i32, %arg1: i32) -> (i32, i32, i32) {
    %c0_i32 = arith.constant 0 : i32
    %c0_i32_0 = arith.constant 0 : i32
    %c0_i32_1 = arith.constant 0 : i32
    return %arg0, %c0_i32, %c0_i32_0 : i32, i32, i32
  }
  func.func @transform_2(%arg0: i32, %arg1: i32) -> (i32, i32, i32) {
    %c0_i32 = arith.constant 0 : i32
    %c0_i32_0 = arith.constant 0 : i32
    return %arg0, %arg1, %c0_i32 : i32, i32, i32
  }
}

module attributes {stable_mosaic.version = 11 : i64} {
  func.func @_mm_act_kernel(%arg0: i32, %arg1: i32, %arg2: memref<1x8x2048xbf16, #tpu.memory_space<vmem>>, %arg3: memref<2048x128xbf16, #tpu.memory_space<vmem>>, %arg4: memref<1x8x128xf32, #tpu.memory_space<vmem>>) attributes {dimension_semantics = [#tpu.dimension_semantics<parallel>, #tpu.dimension_semantics<parallel>], iteration_bounds = array<i64: 2, 1>, scalar_prefetch = 0 : i64, scratch_operands = 0 : i64, tpu.core_type = #tpu.core_type<tc>, window_params = [{transform_indices = @transform_0, window_bounds = array<i64: 1, 8, 2048>}, {pipeline_mode = #tpu.pipeline_mode<synchronous>, transform_indices = @transform_1, window_bounds = array<i64: 2048, 128>}, {transform_indices = @transform_2, window_bounds = array<i64: 1, 8, 128>}]} {
    %c0 = arith.constant 0 : index
    %c0_0 = arith.constant 0 : index
    %c0_1 = arith.constant 0 : index
    %0 = vector.load %arg2[%c0, %c0_0, %c0_1] : memref<1x8x2048xbf16, #tpu.memory_space<vmem>>, vector<1x8x2048xbf16>
    %1 = vector.shape_cast %0 : vector<1x8x2048xbf16> to vector<8x2048xbf16>
    %c0_2 = arith.constant 0 : index
    %c0_3 = arith.constant 0 : index
    %2 = vector.load %arg3[%c0_2, %c0_3] : memref<2048x128xbf16, #tpu.memory_space<vmem>>, vector<2048x128xbf16>
    %cst = arith.constant dense<0.000000e+00> : vector<8x128xf32>
    %3 = tpu.matmul %1, %2, %cst {dimension_numbers = #tpu.dot_dimension_numbers<[1], [0], [0], [1], [0, 0, 1, 1], [], []>} : vector<8x2048xbf16>, vector<2048x128xbf16>, vector<8x128xf32> -> vector<8x128xf32>
    %4 = arith.negf %3 : vector<8x128xf32>
    %5 = math.exp %4 : vector<8x128xf32>
    %cst_4 = arith.constant 1.000000e+00 : f32
    %6 = vector.broadcast %cst_4 : f32 to vector<8x128xf32>
    %7 = arith.addf %6, %5 : vector<8x128xf32>
    %8 = arith.divf %6, %7 : vector<8x128xf32>
    %c0_5 = arith.constant 0 : index
    %c0_6 = arith.constant 0 : index
    %c0_7 = arith.constant 0 : index
    %9 = vector.load %arg4[%c0_5, %c0_6, %c0_7] : memref<1x8x128xf32, #tpu.memory_space<vmem>>, vector<1x8x128xf32>
    %10 = vector.shape_cast %9 : vector<1x8x128xf32> to vector<8x128xf32>
    %11 = vector.shape_cast %8 : vector<8x128xf32> to vector<1x8x128xf32>
    tpu.vector_store %arg4[%c0_5, %c0_6, %c0_7], %11 {strides = array<i32>} : memref<1x8x128xf32, #tpu.memory_space<vmem>>, vector<1x8x128xf32>,
    return
  }
  func.func @transform_0(%arg0: i32, %arg1: i32) -> (i32, i32, i32) {
    %c0_i32 = arith.constant 0 : i32
    %c0_i32_0 = arith.constant 0 : i32
    return %arg0, %arg1, %c0_i32 : i32, i32, i32
  }
  func.func @transform_1(%arg0: i32, %arg1: i32) -> (i32, i32) {
    %c0_i32 = arith.constant 0 : i32
    %c0_i32_0 = arith.constant 0 : i32
    %c0_i32_1 = arith.constant 0 : i32
    return %c0_i32, %c0_i32_0 : i32, i32
  }
  func.func @transform_2(%arg0: i32, %arg1: i32) -> (i32, i32, i32) {
    %c0_i32 = arith.constant 0 : i32
    %c0_i32_0 = arith.constant 0 : i32
    return %arg0, %arg1, %c0_i32 : i32, i32, i32
  }
}

</mosaic_0001>

<llo_original>
// kernel: discriminator_forward.11
$region0: #{discriminator_forward.11}
  #allocation0 [shape = 'u32[]', space=smem, size = 0x4, offset = 0x4, fixed_abs, tag = 'smem constant byte address 0x4 - core index']
  #allocation1 [shape = 'u32[72,128]{1,0:T(1,128)}', space=vmem, size = 0x9000, scoped, tag = 'internal scratch']
  %s0 = inlined_call_operand.vmem [shape: bf16[2,4096,128], index: 0, kind: input, shape index: {}]
  %s1 = inlined_call_operand.vmem [shape: bf16[128,128], index: 1, kind: input, shape index: {}]
  %s2 = inlined_call_operand.vmem [shape: bf16[2,4096,128], index: 2, kind: output, shape index: {}]
  %s3 = sld [smem:[#allocation0]]
  $region41: #{discriminator_forward.11} parent=0
    _
  %s5 = ssub.s32 1, %s3
  %s6 = scalar_select 0, %s5, %s3
  loop: start=0, step=1, limit=18
  $region2: #{discriminator_forward.11} parent=0 // loop_pre_header
    _
  $region3: #{discriminator_forward.11} parent=0 // loop_header
    %s8 = sphi 0, %s12
    %p9 = scmp.ge.s32.totalorder %s8, 18
    %s15 = sphi 0, %s27
    %s16 = sphi 0, %s23
    %s17 = sphi 0, %s15
    %s18 = sphi 0, %s16
    %s19 = sphi 0, %s17
    %s20 = sphi 0, %s18
    %s32 = sphi 0, %s34
    %s35 = sphi 0, %s32
    %s36 = sphi 0, %s35
    %s52 = sphi 0, %s36
    %s56 = sphi 0, %s56
    %s58 = sphi 0, %s56
    %s59 = sphi 0, %s58
    %s73 = sphi 0, %s59
    %s81 = sphi 0, %s83
    %s84 = sphi 0, %s81
    %s85 = sphi 0, %s84
    %s101 = sphi 0, %s85
  $region4: #{discriminator_forward.11} parent=0 // loop_header_branch
    %11 = sbr.rel (%p9) target = $region8
  $region5: #{discriminator_forward.11} parent=0 // loop_body
    %s13 = ssub.s32 %s8, 1
    %s14 = ssub.s32 %s8, 2
    %s21 = sadd.s32 1, %s16
    %p22 = scmp.ge.s32.totalorder %s21, 8
    %s23 = scalar_select %p22, 0, %s21
    %s24 = sadd.s32 1, %s15
    %s25 = scalar_select %p22, %s24, %s15
    %p26 = scmp.ge.s32.totalorder %s25, 2
    %s27 = scalar_select %p26, 0, %s25
    %s28 = ssub.s32 %s15, %s27
    %s29 = ssub.s32 %s16, %s23
    %s30 = sor.u32 %s28, %s29
    %p31 = scmp.eq.s32.totalorder %s30, 0
    %s33 = sadd.s32 %s32, 1
    %s34 = scalar_select %p31, %s32, %s33
    %p37 = pneg %p31
    %p38 = scmp.eq.s32.totalorder %s8, 15
    %p39 = por %p37, %p38
    %p40 = scmp.ne.s32.totalorder %s32, %s35
    %p41 = scmp.eq.s32.totalorder %s8, 0
    %p42 = por %p40, %p41
    %p43 = scmp.ne.s32.totalorder %s32, %s35
    %p44 = scmp.eq.s32.totalorder %s13, 15
    %p45 = por %p43, %p44
    %p46 = scmp.ne.s32.totalorder %s35, %s36
    %p47 = scmp.eq.s32.totalorder %s13, 0
    %p48 = por %p46, %p47
    %p49 = scmp.ne.s32.totalorder %s35, %s36
    %p50 = scmp.eq.s32.totalorder %s14, 15
    %p51 = por %p49, %p50
    %p53 = scmp.ne.s32.totalorder %s36, %s52
    %p54 = scmp.eq.s32.totalorder %s14, 0
    %p55 = por %p53, %p54
    %s57 = sadd.s32 %s56, 1
    %p60 = scmp.eq.s32.totalorder %s8, 15
    %p61 = scmp.ne.s32.totalorder %s56, %s58
    %p62 = scmp.eq.s32.totalorder %s8, 0
    %p63 = por %p61, %p62
    %p64 = scmp.ne.s32.totalorder %s56, %s58
    %p65 = scmp.eq.s32.totalorder %s13, 15
    %p66 = por %p64, %p65
    %p67 = scmp.ne.s32.totalorder %s58, %s59
    %p68 = scmp.eq.s32.totalorder %s13, 0
    %p69 = por %p67, %p68
    %p70 = scmp.ne.s32.totalorder %s58, %s59
    %p71 = scmp.eq.s32.totalorder %s14, 15
    %p72 = por %p70, %p71
    %p74 = scmp.ne.s32.totalorder %s59, %s73
    %p75 = scmp.eq.s32.totalorder %s14, 0
    %p76 = por %p74, %p75
    %s77 = ssub.s32 %s15, %s27
    %s78 = ssub.s32 %s16, %s23
    %s79 = sor.u32 %s77, %s78
    %p80 = scmp.eq.s32.totalorder %s79, 0
    %s82 = sadd.s32 %s81, 1
    %s83 = scalar_select %p80, %s81, %s82
    %p86 = pneg %p80
    %p87 = scmp.eq.s32.totalorder %s8, 15
    %p88 = por %p86, %p87
    %p89 = scmp.ne.s32.totalorder %s81, %s84
    %p90 = scmp.eq.s32.totalorder %s8, 0
    %p91 = por %p89, %p90
    %p92 = scmp.ne.s32.totalorder %s81, %s84
    %p93 = scmp.eq.s32.totalorder %s13, 15
    %p94 = por %p92, %p93
    %p95 = scmp.ne.s32.totalorder %s84, %s85
    %p96 = scmp.eq.s32.totalorder %s13, 0
    %p97 = por %p95, %p96
    %p98 = scmp.ne.s32.totalorder %s84, %s85
    %p99 = scmp.eq.s32.totalorder %s14, 15
    %p100 = por %p98, %p99
    %p102 = scmp.ne.s32.totalorder %s85, %s101
    %p103 = scmp.eq.s32.totalorder %s14, 0
    %p104 = por %p102, %p103
    %p105 = scmp.le.s32.totalorder 1, %s8
    %p106 = scmp.lt.s32.totalorder %s8, 17
    %p107 = pnand %p105, %p106
    %p108 = pneg %p107
    // Predicated region
    $region9: #{discriminator_forward.11} parent=5 // pred_check
      _
    $region10: #{discriminator_forward.11} parent=5 // pred_check_branch
      %110 = sbr.rel (%p107) target = $region12
    $region11: #{discriminator_forward.11} parent=5 // pred_region
      %s111 = ssub.s32 %s8, 1
      // Predicated region
      $region13: #{discriminator_forward.11} parent=11 // pred_check
        %p112 = pneg %p69
      $region14: #{discriminator_forward.11} parent=11 // pred_check_branch
        %114 = sbr.rel (%p112) target = $region16
      $region15: #{discriminator_forward.11} parent=11 // pred_region
        _
      $region16: #{discriminator_forward.11} parent=11 // pred_fallthru
        _
    $region12: #{discriminator_forward.11} parent=5 // pred_fallthru
      _
    %p115 = scmp.lt.s32.totalorder %s8, 16
    // Predicated region
    $region17: #{discriminator_forward.11} parent=5 // pred_check
      %p116 = pneg %p115
    $region18: #{discriminator_forward.11} parent=5 // pred_check_branch
      %118 = sbr.rel (%p116) target = $region20
    $region19: #{discriminator_forward.11} parent=5 // pred_region
      // Predicated region
      $region21: #{discriminator_forward.11} parent=19 // pred_check
        %p119 = pneg %p42
      $region22: #{discriminator_forward.11} parent=19 // pred_check_branch
        %121 = sbr.rel (%p119) target = $region24
      $region23: #{discriminator_forward.11} parent=19 // pred_region
        %s122 = smul.u32 64, %s16
        %p123 = scmp.lt.s32.totalorder %s15, 1
        %s124 = scalar_select %p123, %s15, 1
        %p125 = scmp.lt.s32.totalorder %s122, 511
        %s126 = scalar_select %p125, %s122, 511
        %s127 = smul.addr %s124, 512
        %s128 = sadd.s32 %s126, %s127
        %s129 = smul.addr %s128, 4
        %s130 = scalar_lea.vmem %s0, %s129
        %s131 = smul.u32 64, %s16
      $region24: #{discriminator_forward.11} parent=19 // pred_fallthru
        _
    $region20: #{discriminator_forward.11} parent=5 // pred_fallthru
      _
    %p132 = scmp.le.s32.totalorder 1, %s8
    %p133 = scmp.lt.s32.totalorder %s8, 17
    %p134 = pnand %p132, %p133
    %p135 = pneg %p134
    // Predicated region
    $region25: #{discriminator_forward.11} parent=5 // pred_check
      _
    $region26: #{discriminator_forward.11} parent=5 // pred_check_branch
      %137 = sbr.rel (%p134) target = $region28
    $region27: #{discriminator_forward.11} parent=5 // pred_region
      %s138 = ssub.s32 %s8, 1
      %s139 = smul.u32 64, %s18
      %p140 = scmp.lt.s32.totalorder %s17, 1
      %s141 = scalar_select %p140, %s17, 1
      %p142 = scmp.lt.s32.totalorder %s139, 511
      %s143 = scalar_select %p142, %s139, 511
      %s144 = smul.addr %s141, 512
      %s145 = sadd.s32 %s143, %s144
      %s146 = smul.addr %s145, 4
      %s147 = scalar_lea.vmem %s0, %s146
      %p148 = pneg %p48
      %p149 = pneg %p45
      %p150 = pneg %p69
      %p151 = pneg %p66
      %p152 = pneg %p97
      %p153 = pneg %p94
      %s154 = smul.u32 64, %s18
      %p155 = scmp.lt.s32.totalorder %s17, 1
      %s156 = scalar_select %p155, %s17, 1
      %p157 = scmp.lt.s32.totalorder %s154, 511
      %s158 = scalar_select %p157, %s154, 511
      %s159 = smul.addr %s156, 512
      %s160 = sadd.s32 %s158, %s159
      %s161 = smul.addr %s160, 4
      %s162 = scalar_lea.vmem %s2, %s161
      %s163 = smul.u32 64, %s18
      %p164 = scmp.lt.s32.totalorder %s17, 1
      %s165 = scalar_select %p164, %s17, 1
      %p166 = scmp.lt.s32.totalorder %s163, 511
      %s167 = scalar_select %p166, %s163, 511
      %s168 = smul.addr %s165, 512
      %s169 = sadd.s32 %s167, %s168
      %s170 = smul.addr %s169, 4
      %s171 = scalar_lea.vmem %s0, %s170
      %s172 = smul.u32 64, %s18
      %s173 = smul.u32 64, %s18
      %p174 = scmp.lt.s32.totalorder %s17, 1
      %s175 = scalar_select %p174, %s17, 1
      %p176 = scmp.lt.s32.totalorder %s173, 511
      %s177 = scalar_select %p176, %s173, 511
      %s178 = smul.addr %s175, 512
      %s179 = sadd.s32 %s177, %s178
      %s180 = smul.addr %s179, 4
      %s181 = scalar_lea.vmem %s2, %s180
      %s182 = smul.u32 64, %s18
      %v183 = vld [vmem:[%s171] sm:$0xf]
      %v184 = vld [vmem:[%s171 + $0x4] sm:$0xf]
      %v185 = vld [vmem:[%s171 + $0x8] sm:$0xf]
      %v186 = vld [vmem:[%s171 + $0xc] sm:$0xf]
      %v187 = vld [vmem:[%s171 + $0x10] sm:$0xf]
      %v188 = vld [vmem:[%s171 + $0x14] sm:$0xf]
      %v189 = vld [vmem:[%s171 + $0x18] sm:$0xf]
      %v190 = vld [vmem:[%s171 + $0x1c] sm:$0xf]
      %v191 = vld [vmem:[%s171 + $0x20] sm:$0xf]
      %v192 = vld [vmem:[%s171 + $0x24] sm:$0xf]
      %v193 = vld [vmem:[%s171 + $0x28] sm:$0xf]
      %v194 = vld [vmem:[%s171 + $0x2c] sm:$0xf]
      %v195 = vld [vmem:[%s171 + $0x30] sm:$0xf]
      %v196 = vld [vmem:[%s171 + $0x34] sm:$0xf]
      %v197 = vld [vmem:[%s171 + $0x38] sm:$0xf]
      %v198 = vld [vmem:[%s171 + $0x3c] sm:$0xf]
      %v199 = vld [vmem:[%s171 + $0x40] sm:$0xf]
      %v200 = vld [vmem:[%s171 + $0x44] sm:$0xf]
      %v201 = vld [vmem:[%s171 + $0x48] sm:$0xf]
      %v202 = vld [vmem:[%s171 + $0x4c] sm:$0xf]
      %v203 = vld [vmem:[%s171 + $0x50] sm:$0xf]
      %v204 = vld [vmem:[%s171 + $0x54] sm:$0xf]
      %v205 = vld [vmem:[%s171 + $0x58] sm:$0xf]
      %v206 = vld [vmem:[%s171 + $0x5c] sm:$0xf]
      %v207 = vld [vmem:[%s171 + $0x60] sm:$0xf]
      %v208 = vld [vmem:[%s171 + $0x64] sm:$0xf]
      %v209 = vld [vmem:[%s171 + $0x68] sm:$0xf]
      %v210 = vld [vmem:[%s171 + $0x6c] sm:$0xf]
      %v211 = vld [vmem:[%s171 + $0x70] sm:$0xf]
      %v212 = vld [vmem:[%s171 + $0x74] sm:$0xf]
      %v213 = vld [vmem:[%s171 + $0x78] sm:$0xf]
      %v214 = vld [vmem:[%s171 + $0x7c] sm:$0xf]
      %v215 = vld [vmem:[%s171 + $0x80] sm:$0xf]
      %v216 = vld [vmem:[%s171 + $0x84] sm:$0xf]
      %v217 = vld [vmem:[%s171 + $0x88] sm:$0xf]
      %v218 = vld [vmem:[%s171 + $0x8c] sm:$0xf]
      %v219 = vld [vmem:[%s171 + $0x90] sm:$0xf]
      %v220 = vld [vmem:[%s171 + $0x94] sm:$0xf]
      %v221 = vld [vmem:[%s171 + $0x98] sm:$0xf]
      %v222 = vld [vmem:[%s171 + $0x9c] sm:$0xf]
      %v223 = vld [vmem:[%s171 + $0xa0] sm:$0xf]
      %v224 = vld [vmem:[%s171 + $0xa4] sm:$0xf]
      %v225 = vld [vmem:[%s171 + $0xa8] sm:$0xf]
      %v226 = vld [vmem:[%s171 + $0xac] sm:$0xf]
      %v227 = vld [vmem:[%s171 + $0xb0] sm:$0xf]
      %v228 = vld [vmem:[%s171 + $0xb4] sm:$0xf]
      %v229 = vld [vmem:[%s171 + $0xb8] sm:$0xf]
      %v230 = vld [vmem:[%s171 + $0xbc] sm:$0xf]
      %v231 = vld [vmem:[%s171 + $0xc0] sm:$0xf]
      %v232 = vld [vmem:[%s171 + $0xc4] sm:$0xf]
      %v233 = vld [vmem:[%s171 + $0xc8] sm:$0xf]
      %v234 = vld [vmem:[%s171 + $0xcc] sm:$0xf]
      %v235 = vld [vmem:[%s171 + $0xd0] sm:$0xf]
      %v236 = vld [vmem:[%s171 + $0xd4] sm:$0xf]
      %v237 = vld [vmem:[%s171 + $0xd8] sm:$0xf]
      %v238 = vld [vmem:[%s171 + $0xdc] sm:$0xf]
      %v239 = vld [vmem:[%s171 + $0xe0] sm:$0xf]
      %v240 = vld [vmem:[%s171 + $0xe4] sm:$0xf]
      %v241 = vld [vmem:[%s171 + $0xe8] sm:$0xf]
      %v242 = vld [vmem:[%s171 + $0xec] sm:$0xf]
      %v243 = vld [vmem:[%s171 + $0xf0] sm:$0xf]
      %v244 = vld [vmem:[%s171 + $0xf4] sm:$0xf]
      %v245 = vld [vmem:[%s171 + $0xf8] sm:$0xf]
      %v246 = vld [vmem:[%s171 + $0xfc] sm:$0xf]
      %v247 = vld [vmem:[%s1] sm:$0xf]
      %v248 = vld [vmem:[%s1 + $0x4] sm:$0xf]
      %v249 = vld [vmem:[%s1 + $0x8] sm:$0xf]
      %v250 = vld [vmem:[%s1 + $0xc] sm:$0xf]
      %v251 = vld [vmem:[%s1 + $0x10] sm:$0xf]
      %v252 = vld [vmem:[%s1 + $0x14] sm:$0xf]
      %v253 = vld [vmem:[%s1 + $0x18] sm:$0xf]
      %v254 = vld [vmem:[%s1 + $0x1c] sm:$0xf]
      %v255 = vld [vmem:[%s1 + $0x20] sm:$0xf]
      %v256 = vld [vmem:[%s1 + $0x24] sm:$0xf]
      %v257 = vld [vmem:[%s1 + $0x28] sm:$0xf]
      %v258 = vld [vmem:[%s1 + $0x2c] sm:$0xf]
      %v259 = vld [vmem:[%s1 + $0x30] sm:$0xf]
      %v260 = vld [vmem:[%s1 + $0x34] sm:$0xf]
      %v261 = vld [vmem:[%s1 + $0x38] sm:$0xf]
      %v262 = vld [vmem:[%s1 + $0x3c] sm:$0xf]
      %v327 = vunpack.c.l.b16 %v183
      %v328 = vunpack.c.l.b16 %v184
      %v329 = vunpack.c.l.b16 %v185
      %v330 = vunpack.c.l.b16 %v186
      %v331 = vunpack.c.l.b16 %v187
      %v332 = vunpack.c.l.b16 %v188
      %v333 = vunpack.c.l.b16 %v189
      %v334 = vunpack.c.l.b16 %v190
      %v335 = vunpack.c.l.b16 %v191
      %v336 = vunpack.c.l.b16 %v192
      %v337 = vunpack.c.l.b16 %v193
      %v338 = vunpack.c.l.b16 %v194
      %v339 = vunpack.c.l.b16 %v195
      %v340 = vunpack.c.l.b16 %v196
      %v341 = vunpack.c.l.b16 %v197
      %v342 = vunpack.c.l.b16 %v198
      %v343 = vunpack.c.l.b16 %v199
      %v344 = vunpack.c.l.b16 %v200
      %v345 = vunpack.c.l.b16 %v201
      %v346 = vunpack.c.l.b16 %v202
      %v347 = vunpack.c.l.b16 %v203
      %v348 = vunpack.c.l.b16 %v204
      %v349 = vunpack.c.l.b16 %v205
      %v350 = vunpack.c.l.b16 %v206
      %v351 = vunpack.c.l.b16 %v207
      %v352 = vunpack.c.l.b16 %v208
      %v353 = vunpack.c.l.b16 %v209
      %v354 = vunpack.c.l.b16 %v210
      %v355 = vunpack.c.l.b16 %v211
      %v356 = vunpack.c.l.b16 %v212
      %v357 = vunpack.c.l.b16 %v213
      %v358 = vunpack.c.l.b16 %v214
      %v359 = vunpack.c.l.b16 %v215
      %v360 = vunpack.c.l.b16 %v216
      %v361 = vunpack.c.l.b16 %v217
      %v362 = vunpack.c.l.b16 %v218
      %v363 = vunpack.c.l.b16 %v219
      %v364 = vunpack.c.l.b16 %v220
      %v365 = vunpack.c.l.b16 %v221
      %v366 = vunpack.c.l.b16 %v222
      %v367 = vunpack.c.l.b16 %v223
      %v368 = vunpack.c.l.b16 %v224
      %v369 = vunpack.c.l.b16 %v225
      %v370 = vunpack.c.l.b16 %v226
      %v371 = vunpack.c.l.b16 %v227
      %v372 = vunpack.c.l.b16 %v228
      %v373 = vunpack.c.l.b16 %v229
      %v374 = vunpack.c.l.b16 %v230
      %v375 = vunpack.c.l.b16 %v231
      %v376 = vunpack.c.l.b16 %v232
      %v377 = vunpack.c.l.b16 %v233
      %v378 = vunpack.c.l.b16 %v234
      %v379 = vunpack.c.l.b16 %v235
      %v380 = vunpack.c.l.b16 %v236
      %v381 = vunpack.c.l.b16 %v237
      %v382 = vunpack.c.l.b16 %v238
      %v383 = vunpack.c.l.b16 %v239
      %v384 = vunpack.c.l.b16 %v240
      %v385 = vunpack.c.l.b16 %v241
      %v386 = vunpack.c.l.b16 %v242
      %v387 = vunpack.c.l.b16 %v243
      %v388 = vunpack.c.l.b16 %v244
      %v389 = vunpack.c.l.b16 %v245
      %v390 = vunpack.c.l.b16 %v246
      %v391 = vpack.c.b16 %v328, %v327
      %v392 = vpack.c.b16 %v330, %v329
      %v393 = vpack.c.b16 %v332, %v331
      %v394 = vpack.c.b16 %v334, %v333
      %v395 = vpack.c.b16 %v336, %v335
      %v396 = vpack.c.b16 %v338, %v337
      %v397 = vpack.c.b16 %v340, %v339
      %v398 = vpack.c.b16 %v342, %v341
      %v399 = vpack.c.b16 %v344, %v343
      %v400 = vpack.c.b16 %v346, %v345
      %v401 = vpack.c.b16 %v348, %v347
      %v402 = vpack.c.b16 %v350, %v349
      %v403 = vpack.c.b16 %v352, %v351
      %v404 = vpack.c.b16 %v354, %v353
      %v405 = vpack.c.b16 %v356, %v355
      %v406 = vpack.c.b16 %v358, %v357
      %v407 = vpack.c.b16 %v360, %v359
      %v408 = vpack.c.b16 %v362, %v361
      %v409 = vpack.c.b16 %v364, %v363
      %v410 = vpack.c.b16 %v366, %v365
      %v411 = vpack.c.b16 %v368, %v367
      %v412 = vpack.c.b16 %v370, %v369
      %v413 = vpack.c.b16 %v372, %v371
      %v414 = vpack.c.b16 %v374, %v373
      %v415 = vpack.c.b16 %v376, %v375
      %v416 = vpack.c.b16 %v378, %v377
      %v417 = vpack.c.b16 %v380, %v379
      %v418 = vpack.c.b16 %v382, %v381
      %v419 = vpack.c.b16 %v384, %v383
      %v420 = vpack.c.b16 %v386, %v385
      %v421 = vpack.c.b16 %v388, %v387
      %v422 = vpack.c.b16 %v390, %v389
      %v471 = vunpack.c.l.b16 %v247
      %v472 = vunpack.c.l.b16 %v248
      %v473 = vunpack.c.l.b16 %v249
      %v474 = vunpack.c.l.b16 %v250
      %v475 = vunpack.c.l.b16 %v251
      %v476 = vunpack.c.l.b16 %v252
      %v477 = vunpack.c.l.b16 %v253
      %v478 = vunpack.c.l.b16 %v254
      %v479 = vunpack.c.l.b16 %v255
      %v480 = vunpack.c.l.b16 %v256
      %v481 = vunpack.c.l.b16 %v257
      %v482 = vunpack.c.l.b16 %v258
      %v483 = vunpack.c.l.b16 %v259
      %v484 = vunpack.c.l.b16 %v260
      %v485 = vunpack.c.l.b16 %v261
      %v486 = vunpack.c.l.b16 %v262
      %v487 = vpack.c.b16 %v472, %v471
      %v488 = vpack.c.b16 %v474, %v473
      %v489 = vpack.c.b16 %v476, %v475
      %v490 = vpack.c.b16 %v478, %v477
      %v491 = vpack.c.b16 %v480, %v479
      %v492 = vpack.c.b16 %v482, %v481
      %v493 = vpack.c.b16 %v484, %v483
      %v494 = vpack.c.b16 %v486, %v485
      %503 = vmatpush.bf16.msra.mxu0 %v494
      %504 = vmatpush.bf16.msra.mxu0 %v493
      %505 = vmatpush.bf16.msra.mxu0 %v492
      %506 = vmatpush.bf16.msra.mxu0 %v491
      %507 = vmatpush.bf16.msra.mxu0 %v490
      %508 = vmatpush.bf16.msra.mxu0 %v489
      %509 = vmatpush.bf16.msra.mxu0 %v488
      %510 = vmatpush.bf16.msra.mxu0 %v487
      %511 = vmatmul.bf16.gmra.mxu0 %v391
      %v512 = vpop.f32.mrf.mxu0
      %v513 = vadd.f32 0.0, %v512
      %v514 = vpop.f32.mrf.mxu0
      %v515 = vadd.f32 0.0, %v514
      %516 = vmatmul.bf16.gmra.mxu0 %v392
      %v517 = vpop.f32.mrf.mxu0
      %v518 = vadd.f32 0.0, %v517
      %v519 = vpop.f32.mrf.mxu0
      %v520 = vadd.f32 0.0, %v519
      %521 = vmatmul.bf16.gmra.mxu0 %v393
      %v522 = vpop.f32.mrf.mxu0
      %v523 = vadd.f32 0.0, %v522
      %v524 = vpop.f32.mrf.mxu0
      %v525 = vadd.f32 0.0, %v524
      %526 = vmatmul.bf16.gmra.mxu0 %v394
      %v527 = vpop.f32.mrf.mxu0
      %v528 = vadd.f32 0.0, %v527
      %v529 = vpop.f32.mrf.mxu0
      %v530 = vadd.f32 0.0, %v529
      %531 = vmatmul.bf16.gmra.mxu0 %v395
      %v532 = vpop.f32.mrf.mxu0
      %v533 = vadd.f32 0.0, %v532
      %v534 = vpop.f32.mrf.mxu0
      %v535 = vadd.f32 0.0, %v534
      %536 = vmatmul.bf16.gmra.mxu0 %v396
      %v537 = vpop.f32.mrf.mxu0
      %v538 = vadd.f32 0.0, %v537
      %v539 = vpop.f32.mrf.mxu0
      %v540 = vadd.f32 0.0, %v539
      %541 = vmatmul.bf16.gmra.mxu0 %v397
      %v542 = vpop.f32.mrf.mxu0
      %v543 = vadd.f32 0.0, %v542
      %v544 = vpop.f32.mrf.mxu0
      %v545 = vadd.f32 0.0, %v544
      %546 = vmatmul.bf16.gmra.mxu0 %v398
      %v547 = vpop.f32.mrf.mxu0
      %v548 = vadd.f32 0.0, %v547
      %v549 = vpop.f32.mrf.mxu0
      %v550 = vadd.f32 0.0, %v549
      %551 = vmatmul.bf16.gmra.mxu0 %v399
      %v552 = vpop.f32.mrf.mxu0
      %v553 = vadd.f32 0.0, %v552
      %v554 = vpop.f32.mrf.mxu0
      %v555 = vadd.f32 0.0, %v554
      %556 = vmatmul.bf16.gmra.mxu0 %v400
      %v557 = vpop.f32.mrf.mxu0
      %v558 = vadd.f32 0.0, %v557
      %v559 = vpop.f32.mrf.mxu0
      %v560 = vadd.f32 0.0, %v559
      %561 = vmatmul.bf16.gmra.mxu0 %v401
      %v562 = vpop.f32.mrf.mxu0
      %v563 = vadd.f32 0.0, %v562
      %v564 = vpop.f32.mrf.mxu0
      %v565 = vadd.f32 0.0, %v564
      %566 = vmatmul.bf16.gmra.mxu0 %v402
      %v567 = vpop.f32.mrf.mxu0
      %v568 = vadd.f32 0.0, %v567
      %v569 = vpop.f32.mrf.mxu0
      %v570 = vadd.f32 0.0, %v569
      %571 = vmatmul.bf16.gmra.mxu0 %v403
      %v572 = vpop.f32.mrf.mxu0
      %v573 = vadd.f32 0.0, %v572
      %v574 = vpop.f32.mrf.mxu0
      %v575 = vadd.f32 0.0, %v574
      %576 = vmatmul.bf16.gmra.mxu0 %v404
      %v577 = vpop.f32.mrf.mxu0
      %v578 = vadd.f32 0.0, %v577
      %v579 = vpop.f32.mrf.mxu0
      %v580 = vadd.f32 0.0, %v579
      %581 = vmatmul.bf16.gmra.mxu0 %v405
      %v582 = vpop.f32.mrf.mxu0
      %v583 = vadd.f32 0.0, %v582
      %v584 = vpop.f32.mrf.mxu0
      %v585 = vadd.f32 0.0, %v584
      %586 = vmatmul.bf16.gmra.mxu0 %v406
      %v587 = vpop.f32.mrf.mxu0
      %v588 = vadd.f32 0.0, %v587
      %v589 = vpop.f32.mrf.mxu0
      %v590 = vadd.f32 0.0, %v589
      %591 = vmatmul.bf16.gmra.mxu0 %v407
      %v592 = vpop.f32.mrf.mxu0
      %v593 = vadd.f32 0.0, %v592
      %v594 = vpop.f32.mrf.mxu0
      %v595 = vadd.f32 0.0, %v594
      %596 = vmatmul.bf16.gmra.mxu0 %v408
      %v597 = vpop.f32.mrf.mxu0
      %v598 = vadd.f32 0.0, %v597
      %v599 = vpop.f32.mrf.mxu0
      %v600 = vadd.f32 0.0, %v599
      %601 = vmatmul.bf16.gmra.mxu0 %v409
      %v602 = vpop.f32.mrf.mxu0
      %v603 = vadd.f32 0.0, %v602
      %v604 = vpop.f32.mrf.mxu0
      %v605 = vadd.f32 0.0, %v604
      %606 = vmatmul.bf16.gmra.mxu0 %v410
      %v607 = vpop.f32.mrf.mxu0
      %v608 = vadd.f32 0.0, %v607
      %v609 = vpop.f32.mrf.mxu0
      %v610 = vadd.f32 0.0, %v609
      %611 = vmatmul.bf16.gmra.mxu0 %v411
      %v612 = vpop.f32.mrf.mxu0
      %v613 = vadd.f32 0.0, %v612
      %v614 = vpop.f32.mrf.mxu0
      %v615 = vadd.f32 0.0, %v614
      %616 = vmatmul.bf16.gmra.mxu0 %v412
      %v617 = vpop.f32.mrf.mxu0
      %v618 = vadd.f32 0.0, %v617
      %v619 = vpop.f32.mrf.mxu0
      %v620 = vadd.f32 0.0, %v619
      %621 = vmatmul.bf16.gmra.mxu0 %v413
      %v622 = vpop.f32.mrf.mxu0
      %v623 = vadd.f32 0.0, %v622
      %v624 = vpop.f32.mrf.mxu0
      %v625 = vadd.f32 0.0, %v624
      %626 = vmatmul.bf16.gmra.mxu0 %v414
      %v627 = vpop.f32.mrf.mxu0
      %v628 = vadd.f32 0.0, %v627
      %v629 = vpop.f32.mrf.mxu0
      %v630 = vadd.f32 0.0, %v629
      %631 = vmatmul.bf16.gmra.mxu0 %v415
      %v632 = vpop.f32.mrf.mxu0
      %v633 = vadd.f32 0.0, %v632
      %v634 = vpop.f32.mrf.mxu0
      %v635 = vadd.f32 0.0, %v634
      %636 = vmatmul.bf16.gmra.mxu0 %v416
      %v637 = vpop.f32.mrf.mxu0
      %v638 = vadd.f32 0.0, %v637
      %v639 = vpop.f32.mrf.mxu0
      %v640 = vadd.f32 0.0, %v639
      %641 = vmatmul.bf16.gmra.mxu0 %v417
      %v642 = vpop.f32.mrf.mxu0
      %v643 = vadd.f32 0.0, %v642
      %v644 = vpop.f32.mrf.mxu0
      %v645 = vadd.f32 0.0, %v644
      %646 = vmatmul.bf16.gmra.mxu0 %v418
      %v647 = vpop.f32.mrf.mxu0
      %v648 = vadd.f32 0.0, %v647
      %v649 = vpop.f32.mrf.mxu0
      %v650 = vadd.f32 0.0, %v649
      %651 = vmatmul.bf16.gmra.mxu0 %v419
      %v652 = vpop.f32.mrf.mxu0
      %v653 = vadd.f32 0.0, %v652
      %v654 = vpop.f32.mrf.mxu0
      %v655 = vadd.f32 0.0, %v654
      %656 = vmatmul.bf16.gmra.mxu0 %v420
      %v657 = vpop.f32.mrf.mxu0
      %v658 = vadd.f32 0.0, %v657
      %v659 = vpop.f32.mrf.mxu0
      %v660 = vadd.f32 0.0, %v659
      %661 = vmatmul.bf16.gmra.mxu0 %v421
      %v662 = vpop.f32.mrf.mxu0
      %v663 = vadd.f32 0.0, %v662
      %v664 = vpop.f32.mrf.mxu0
      %v665 = vadd.f32 0.0, %v664
      %666 = vmatmul.bf16.gmra.mxu0 %v422
      %v667 = vpop.f32.mrf.mxu0
      %v668 = vadd.f32 0.0, %v667
      %v669 = vpop.f32.mrf.mxu0
      %v670 = vadd.f32 0.0, %v669
      %671 = vdwg.mxu0
      %vm672 = vcmp.gt.f32.partialorder %v513, 0.0
      %vm673 = vcmp.gt.f32.partialorder %v515, 0.0
      %vm674 = vcmp.gt.f32.partialorder %v518, 0.0
      %vm675 = vcmp.gt.f32.partialorder %v520, 0.0
      %vm676 = vcmp.gt.f32.partialorder %v523, 0.0
      %vm677 = vcmp.gt.f32.partialorder %v525, 0.0
      %vm678 = vcmp.gt.f32.partialorder %v528, 0.0
      %vm679 = vcmp.gt.f32.partialorder %v530, 0.0
      %vm680 = vcmp.gt.f32.partialorder %v533, 0.0
      %vm681 = vcmp.gt.f32.partialorder %v535, 0.0
      %vm682 = vcmp.gt.f32.partialorder %v538, 0.0
      %vm683 = vcmp.gt.f32.partialorder %v540, 0.0
      %vm684 = vcmp.gt.f32.partialorder %v543, 0.0
      %vm685 = vcmp.gt.f32.partialorder %v545, 0.0
      %vm686 = vcmp.gt.f32.partialorder %v548, 0.0
      %vm687 = vcmp.gt.f32.partialorder %v550, 0.0
      %vm688 = vcmp.gt.f32.partialorder %v553, 0.0
      %vm689 = vcmp.gt.f32.partialorder %v555, 0.0
      %vm690 = vcmp.gt.f32.partialorder %v558, 0.0
      %vm691 = vcmp.gt.f32.partialorder %v560, 0.0
      %vm692 = vcmp.gt.f32.partialorder %v563, 0.0
      %vm693 = vcmp.gt.f32.partialorder %v565, 0.0
      %vm694 = vcmp.gt.f32.partialorder %v568, 0.0
      %vm695 = vcmp.gt.f32.partialorder %v570, 0.0
      %vm696 = vcmp.gt.f32.partialorder %v573, 0.0
      %vm697 = vcmp.gt.f32.partialorder %v575, 0.0
      %vm698 = vcmp.gt.f32.partialorder %v578, 0.0
      %vm699 = vcmp.gt.f32.partialorder %v580, 0.0
      %vm700 = vcmp.gt.f32.partialorder %v583, 0.0
      %vm701 = vcmp.gt.f32.partialorder %v585, 0.0
      %vm702 = vcmp.gt.f32.partialorder %v588, 0.0
      %vm703 = vcmp.gt.f32.partialorder %v590, 0.0
      %vm704 = vcmp.gt.f32.partialorder %v593, 0.0
      %vm705 = vcmp.gt.f32.partialorder %v595, 0.0
      %vm706 = vcmp.gt.f32.partialorder %v598, 0.0
      %vm707 = vcmp.gt.f32.partialorder %v600, 0.0
      %vm708 = vcmp.gt.f32.partialorder %v603, 0.0
      %vm709 = vcmp.gt.f32.partialorder %v605, 0.0
      %vm710 = vcmp.gt.f32.partialorder %v608, 0.0
      %vm711 = vcmp.gt.f32.partialorder %v610, 0.0
      %vm712 = vcmp.gt.f32.partialorder %v613, 0.0
      %vm713 = vcmp.gt.f32.partialorder %v615, 0.0
      %vm714 = vcmp.gt.f32.partialorder %v618, 0.0
      %vm715 = vcmp.gt.f32.partialorder %v620, 0.0
      %vm716 = vcmp.gt.f32.partialorder %v623, 0.0
      %vm717 = vcmp.gt.f32.partialorder %v625, 0.0
      %vm718 = vcmp.gt.f32.partialorder %v628, 0.0
      %vm719 = vcmp.gt.f32.partialorder %v630, 0.0
      %vm720 = vcmp.gt.f32.partialorder %v633, 0.0
      %vm721 = vcmp.gt.f32.partialorder %v635, 0.0
      %vm722 = vcmp.gt.f32.partialorder %v638, 0.0
      %vm723 = vcmp.gt.f32.partialorder %v640, 0.0
      %vm724 = vcmp.gt.f32.partialorder %v643, 0.0
      %vm725 = vcmp.gt.f32.partialorder %v645, 0.0
      %vm726 = vcmp.gt.f32.partialorder %v648, 0.0
      %vm727 = vcmp.gt.f32.partialorder %v650, 0.0
      %vm728 = vcmp.gt.f32.partialorder %v653, 0.0
      %vm729 = vcmp.gt.f32.partialorder %v655, 0.0
      %vm730 = vcmp.gt.f32.partialorder %v658, 0.0
      %vm731 = vcmp.gt.f32.partialorder %v660, 0.0
      %vm732 = vcmp.gt.f32.partialorder %v663, 0.0
      %vm733 = vcmp.gt.f32.partialorder %v665, 0.0
      %vm734 = vcmp.gt.f32.partialorder %v668, 0.0
      %vm735 = vcmp.gt.f32.partialorder %v670, 0.0
      %v736 = vmul.f32 %v513, 0.2
      %v737 = vmul.f32 %v515, 0.2
      %v738 = vmul.f32 %v518, 0.2
      %v739 = vmul.f32 %v520, 0.2
      %v740 = vmul.f32 %v523, 0.2
      %v741 = vmul.f32 %v525, 0.2
      %v742 = vmul.f32 %v528, 0.2
      %v743 = vmul.f32 %v530, 0.2
      %v744 = vmul.f32 %v533, 0.2
      %v745 = vmul.f32 %v535, 0.2
      %v746 = vmul.f32 %v538, 0.2
      %v747 = vmul.f32 %v540, 0.2
      %v748 = vmul.f32 %v543, 0.2
      %v749 = vmul.f32 %v545, 0.2
      %v750 = vmul.f32 %v548, 0.2
      %v751 = vmul.f32 %v550, 0.2
      %v752 = vmul.f32 %v553, 0.2
      %v753 = vmul.f32 %v555, 0.2
      %v754 = vmul.f32 %v558, 0.2
      %v755 = vmul.f32 %v560, 0.2
      %v756 = vmul.f32 %v563, 0.2
      %v757 = vmul.f32 %v565, 0.2
      %v758 = vmul.f32 %v568, 0.2
      %v759 = vmul.f32 %v570, 0.2
      %v760 = vmul.f32 %v573, 0.2
      %v761 = vmul.f32 %v575, 0.2
      %v762 = vmul.f32 %v578, 0.2
      %v763 = vmul.f32 %v580, 0.2
      %v764 = vmul.f32 %v583, 0.2
      %v765 = vmul.f32 %v585, 0.2
      %v766 = vmul.f32 %v588, 0.2
      %v767 = vmul.f32 %v590, 0.2
      %v768 = vmul.f32 %v593, 0.2
      %v769 = vmul.f32 %v595, 0.2
      %v770 = vmul.f32 %v598, 0.2
      %v771 = vmul.f32 %v600, 0.2
      %v772 = vmul.f32 %v603, 0.2
      %v773 = vmul.f32 %v605, 0.2
      %v774 = vmul.f32 %v608, 0.2
      %v775 = vmul.f32 %v610, 0.2
      %v776 = vmul.f32 %v613, 0.2
      %v777 = vmul.f32 %v615, 0.2
      %v778 = vmul.f32 %v618, 0.2
      %v779 = vmul.f32 %v620, 0.2
      %v780 = vmul.f32 %v623, 0.2
      %v781 = vmul.f32 %v625, 0.2
      %v782 = vmul.f32 %v628, 0.2
      %v783 = vmul.f32 %v630, 0.2
      %v784 = vmul.f32 %v633, 0.2
      %v785 = vmul.f32 %v635, 0.2
      %v786 = vmul.f32 %v638, 0.2
      %v787 = vmul.f32 %v640, 0.2
      %v788 = vmul.f32 %v643, 0.2
      %v789 = vmul.f32 %v645, 0.2
      %v790 = vmul.f32 %v648, 0.2
      %v791 = vmul.f32 %v650, 0.2
      %v792 = vmul.f32 %v653, 0.2
      %v793 = vmul.f32 %v655, 0.2
      %v794 = vmul.f32 %v658, 0.2
      %v795 = vmul.f32 %v660, 0.2
      %v796 = vmul.f32 %v663, 0.2
      %v797 = vmul.f32 %v665, 0.2
      %v798 = vmul.f32 %v668, 0.2
      %v799 = vmul.f32 %v670, 0.2
      %v800 = vsel %vm672, %v513, %v736
      %v801 = vsel %vm673, %v515, %v737
      %v802 = vsel %vm674, %v518, %v738
      %v803 = vsel %vm675, %v520, %v739
      %v804 = vsel %vm676, %v523, %v740
      %v805 = vsel %vm677, %v525, %v741
      %v806 = vsel %vm678, %v528, %v742
      %v807 = vsel %vm679, %v530, %v743
      %v808 = vsel %vm680, %v533, %v744
      %v809 = vsel %vm681, %v535, %v745
      %v810 = vsel %vm682, %v538, %v746
      %v811 = vsel %vm683, %v540, %v747
      %v812 = vsel %vm684, %v543, %v748
      %v813 = vsel %vm685, %v545, %v749
      %v814 = vsel %vm686, %v548, %v750
      %v815 = vsel %vm687, %v550, %v751
      %v816 = vsel %vm688, %v553, %v752
      %v817 = vsel %vm689, %v555, %v753
      %v818 = vsel %vm690, %v558, %v754
      %v819 = vsel %vm691, %v560, %v755
      %v820 = vsel %vm692, %v563, %v756
      %v821 = vsel %vm693, %v565, %v757
      %v822 = vsel %vm694, %v568, %v758
      %v823 = vsel %vm695, %v570, %v759
      %v824 = vsel %vm696, %v573, %v760
      %v825 = vsel %vm697, %v575, %v761
      %v826 = vsel %vm698, %v578, %v762
      %v827 = vsel %vm699, %v580, %v763
      %v828 = vsel %vm700, %v583, %v764
      %v829 = vsel %vm701, %v585, %v765
      %v830 = vsel %vm702, %v588, %v766
      %v831 = vsel %vm703, %v590, %v767
      %v832 = vsel %vm704, %v593, %v768
      %v833 = vsel %vm705, %v595, %v769
      %v834 = vsel %vm706, %v598, %v770
      %v835 = vsel %vm707, %v600, %v771
      %v836 = vsel %vm708, %v603, %v772
      %v837 = vsel %vm709, %v605, %v773
      %v838 = vsel %vm710, %v608, %v774
      %v839 = vsel %vm711, %v610, %v775
      %v840 = vsel %vm712, %v613, %v776
      %v841 = vsel %vm713, %v615, %v777
      %v842 = vsel %vm714, %v618, %v778
      %v843 = vsel %vm715, %v620, %v779
      %v844 = vsel %vm716, %v623, %v780
      %v845 = vsel %vm717, %v625, %v781
      %v846 = vsel %vm718, %v628, %v782
      %v847 = vsel %vm719, %v630, %v783
      %v848 = vsel %vm720, %v633, %v784
      %v849 = vsel %vm721, %v635, %v785
      %v850 = vsel %vm722, %v638, %v786
      %v851 = vsel %vm723, %v640, %v787
      %v852 = vsel %vm724, %v643, %v788
      %v853 = vsel %vm725, %v645, %v789
      %v854 = vsel %vm726, %v648, %v790
      %v855 = vsel %vm727, %v650, %v791
      %v856 = vsel %vm728, %v653, %v792
      %v857 = vsel %vm729, %v655, %v793
      %v858 = vsel %vm730, %v658, %v794
      %v859 = vsel %vm731, %v660, %v795
      %v860 = vsel %vm732, %v663, %v796
      %v861 = vsel %vm733, %v665, %v797
      %v862 = vsel %vm734, %v668, %v798
      %v863 = vsel %vm735, %v670, %v799
      %v864 = vpack.c.bf16 %v800, %v800
      %v865 = vpack.c.bf16 %v801, %v801
      %v866 = vpack.c.bf16 %v802, %v802
      %v867 = vpack.c.bf16 %v803, %v803
      %v868 = vpack.c.bf16 %v804, %v804
      %v869 = vpack.c.bf16 %v805, %v805
      %v870 = vpack.c.bf16 %v806, %v806
      %v871 = vpack.c.bf16 %v807, %v807
      %v872 = vpack.c.bf16 %v808, %v808
      %v873 = vpack.c.bf16 %v809, %v809
      %v874 = vpack.c.bf16 %v810, %v810
      %v875 = vpack.c.bf16 %v811, %v811
      %v876 = vpack.c.bf16 %v812, %v812
      %v877 = vpack.c.bf16 %v813, %v813
      %v878 = vpack.c.bf16 %v814, %v814
      %v879 = vpack.c.bf16 %v815, %v815
      %v880 = vpack.c.bf16 %v816, %v816
      %v881 = vpack.c.bf16 %v817, %v817
      %v882 = vpack.c.bf16 %v818, %v818
      %v883 = vpack.c.bf16 %v819, %v819
      %v884 = vpack.c.bf16 %v820, %v820
      %v885 = vpack.c.bf16 %v821, %v821
      %v886 = vpack.c.bf16 %v822, %v822
      %v887 = vpack.c.bf16 %v823, %v823
      %v888 = vpack.c.bf16 %v824, %v824
      %v889 = vpack.c.bf16 %v825, %v825
      %v890 = vpack.c.bf16 %v826, %v826
      %v891 = vpack.c.bf16 %v827, %v827
      %v892 = vpack.c.bf16 %v828, %v828
      %v893 = vpack.c.bf16 %v829, %v829
      %v894 = vpack.c.bf16 %v830, %v830
      %v895 = vpack.c.bf16 %v831, %v831
      %v896 = vpack.c.bf16 %v832, %v832
      %v897 = vpack.c.bf16 %v833, %v833
      %v898 = vpack.c.bf16 %v834, %v834
      %v899 = vpack.c.bf16 %v835, %v835
      %v900 = vpack.c.bf16 %v836, %v836
      %v901 = vpack.c.bf16 %v837, %v837
      %v902 = vpack.c.bf16 %v838, %v838
      %v903 = vpack.c.bf16 %v839, %v839
      %v904 = vpack.c.bf16 %v840, %v840
      %v905 = vpack.c.bf16 %v841, %v841
      %v906 = vpack.c.bf16 %v842, %v842
      %v907 = vpack.c.bf16 %v843, %v843
      %v908 = vpack.c.bf16 %v844, %v844
      %v909 = vpack.c.bf16 %v845, %v845
      %v910 = vpack.c.bf16 %v846, %v846
      %v911 = vpack.c.bf16 %v847, %v847
      %v912 = vpack.c.bf16 %v848, %v848
      %v913 = vpack.c.bf16 %v849, %v849
      %v914 = vpack.c.bf16 %v850, %v850
      %v915 = vpack.c.bf16 %v851, %v851
      %v916 = vpack.c.bf16 %v852, %v852
      %v917 = vpack.c.bf16 %v853, %v853
      %v918 = vpack.c.bf16 %v854, %v854
      %v919 = vpack.c.bf16 %v855, %v855
      %v920 = vpack.c.bf16 %v856, %v856
      %v921 = vpack.c.bf16 %v857, %v857
      %v922 = vpack.c.bf16 %v858, %v858
      %v923 = vpack.c.bf16 %v859, %v859
      %v924 = vpack.c.bf16 %v860, %v860
      %v925 = vpack.c.bf16 %v861, %v861
      %v926 = vpack.c.bf16 %v862, %v862
      %v927 = vpack.c.bf16 %v863, %v863
      %928 = vst [vmem:[%s181] sm:$0xf] %v864
      %929 = vst [vmem:[%s181 + $0x4] sm:$0xf] %v865
      %930 = vst [vmem:[%s181 + $0x8] sm:$0xf] %v866
      %931 = vst [vmem:[%s181 + $0xc] sm:$0xf] %v867
      %932 = vst [vmem:[%s181 + $0x10] sm:$0xf] %v868
      %933 = vst [vmem:[%s181 + $0x14] sm:$0xf] %v869
      %934 = vst [vmem:[%s181 + $0x18] sm:$0xf] %v870
      %935 = vst [vmem:[%s181 + $0x1c] sm:$0xf] %v871
      %936 = vst [vmem:[%s181 + $0x20] sm:$0xf] %v872
      %937 = vst [vmem:[%s181 + $0x24] sm:$0xf] %v873
      %938 = vst [vmem:[%s181 + $0x28] sm:$0xf] %v874
      %939 = vst [vmem:[%s181 + $0x2c] sm:$0xf] %v875
      %940 = vst [vmem:[%s181 + $0x30] sm:$0xf] %v876
      %941 = vst [vmem:[%s181 + $0x34] sm:$0xf] %v877
      %942 = vst [vmem:[%s181 + $0x38] sm:$0xf] %v878
      %943 = vst [vmem:[%s181 + $0x3c] sm:$0xf] %v879
      %944 = vst [vmem:[%s181 + $0x40] sm:$0xf] %v880
      %945 = vst [vmem:[%s181 + $0x44] sm:$0xf] %v881
      %946 = vst [vmem:[%s181 + $0x48] sm:$0xf] %v882
      %947 = vst [vmem:[%s181 + $0x4c] sm:$0xf] %v883
      %948 = vst [vmem:[%s181 + $0x50] sm:$0xf] %v884
      %949 = vst [vmem:[%s181 + $0x54] sm:$0xf] %v885
      %950 = vst [vmem:[%s181 + $0x58] sm:$0xf] %v886
      %951 = vst [vmem:[%s181 + $0x5c] sm:$0xf] %v887
      %952 = vst [vmem:[%s181 + $0x60] sm:$0xf] %v888
      %953 = vst [vmem:[%s181 + $0x64] sm:$0xf] %v889
      %954 = vst [vmem:[%s181 + $0x68] sm:$0xf] %v890
      %955 = vst [vmem:[%s181 + $0x6c] sm:$0xf] %v891
      %956 = vst [vmem:[%s181 + $0x70] sm:$0xf] %v892
      %957 = vst [vmem:[%s181 + $0x74] sm:$0xf] %v893
      %958 = vst [vmem:[%s181 + $0x78] sm:$0xf] %v894
      %959 = vst [vmem:[%s181 + $0x7c] sm:$0xf] %v895
      %960 = vst [vmem:[%s181 + $0x80] sm:$0xf] %v896
      %961 = vst [vmem:[%s181 + $0x84] sm:$0xf] %v897
      %962 = vst [vmem:[%s181 + $0x88] sm:$0xf] %v898
      %963 = vst [vmem:[%s181 + $0x8c] sm:$0xf] %v899
      %964 = vst [vmem:[%s181 + $0x90] sm:$0xf] %v900
      %965 = vst [vmem:[%s181 + $0x94] sm:$0xf] %v901
      %966 = vst [vmem:[%s181 + $0x98] sm:$0xf] %v902
      %967 = vst [vmem:[%s181 + $0x9c] sm:$0xf] %v903
      %968 = vst [vmem:[%s181 + $0xa0] sm:$0xf] %v904
      %969 = vst [vmem:[%s181 + $0xa4] sm:$0xf] %v905
      %970 = vst [vmem:[%s181 + $0xa8] sm:$0xf] %v906
      %971 = vst [vmem:[%s181 + $0xac] sm:$0xf] %v907
      %972 = vst [vmem:[%s181 + $0xb0] sm:$0xf] %v908
      %973 = vst [vmem:[%s181 + $0xb4] sm:$0xf] %v909
      %974 = vst [vmem:[%s181 + $0xb8] sm:$0xf] %v910
      %975 = vst [vmem:[%s181 + $0xbc] sm:$0xf] %v911
      %976 = vst [vmem:[%s181 + $0xc0] sm:$0xf] %v912
      %977 = vst [vmem:[%s181 + $0xc4] sm:$0xf] %v913
      %978 = vst [vmem:[%s181 + $0xc8] sm:$0xf] %v914
      %979 = vst [vmem:[%s181 + $0xcc] sm:$0xf] %v915
      %980 = vst [vmem:[%s181 + $0xd0] sm:$0xf] %v916
      %981 = vst [vmem:[%s181 + $0xd4] sm:$0xf] %v917
      %982 = vst [vmem:[%s181 + $0xd8] sm:$0xf] %v918
      %983 = vst [vmem:[%s181 + $0xdc] sm:$0xf] %v919
      %984 = vst [vmem:[%s181 + $0xe0] sm:$0xf] %v920
      %985 = vst [vmem:[%s181 + $0xe4] sm:$0xf] %v921
      %986 = vst [vmem:[%s181 + $0xe8] sm:$0xf] %v922
      %987 = vst [vmem:[%s181 + $0xec] sm:$0xf] %v923
      %988 = vst [vmem:[%s181 + $0xf0] sm:$0xf] %v924
      %989 = vst [vmem:[%s181 + $0xf4] sm:$0xf] %v925
      %990 = vst [vmem:[%s181 + $0xf8] sm:$0xf] %v926
      %991 = vst [vmem:[%s181 + $0xfc] sm:$0xf] %v927
      %s992 = smul.u32 64, %s18
      %p993 = scmp.lt.s32.totalorder %s17, 1
      %s994 = scalar_select %p993, %s17, 1
      %p995 = scmp.lt.s32.totalorder %s992, 511
      %s996 = scalar_select %p995, %s992, 511
      %s997 = smul.addr %s994, 512
      %s998 = sadd.s32 %s996, %s997
      %s999 = smul.addr %s998, 4
      %s1000 = scalar_lea.vmem %s2, %s999
      // Predicated region
      $region29: #{discriminator_forward.11} parent=27 // pred_check
        %p1001 = pneg %p94
      $region30: #{discriminator_forward.11} parent=27 // pred_check_branch
        %1003 = sbr.rel (%p1001) target = $region32
      $region31: #{discriminator_forward.11} parent=27 // pred_region
        %s1004 = smul.u32 64, %s18
      $region32: #{discriminator_forward.11} parent=27 // pred_fallthru
        _
    $region28: #{discriminator_forward.11} parent=5 // pred_fallthru
      _
    %p1005 = scmp.le.s32.totalorder 2, %s8
    // Predicated region
    $region33: #{discriminator_forward.11} parent=5 // pred_check
      %p1006 = pneg %p1005
    $region34: #{discriminator_forward.11} parent=5 // pred_check_branch
      %1008 = sbr.rel (%p1006) target = $region36
    $region35: #{discriminator_forward.11} parent=5 // pred_region
      %s1009 = ssub.s32 %s8, 2
      // Predicated region
      $region37: #{discriminator_forward.11} parent=35 // pred_check
        %p1010 = pneg %p100
      $region38: #{discriminator_forward.11} parent=35 // pred_check_branch
        %1012 = sbr.rel (%p1010) target = $region40
      $region39: #{discriminator_forward.11} parent=35 // pred_region
        %s1013 = smul.u32 64, %s20
        %p1014 = scmp.lt.s32.totalorder %s19, 1
        %s1015 = scalar_select %p1014, %s19, 1
        %p1016 = scmp.lt.s32.totalorder %s1013, 511
        %s1017 = scalar_select %p1016, %s1013, 511
        %s1018 = smul.addr %s1015, 512
        %s1019 = sadd.s32 %s1017, %s1018
        %s1020 = smul.addr %s1019, 4
        %s1021 = scalar_lea.vmem %s2, %s1020
      $region40: #{discriminator_forward.11} parent=35 // pred_fallthru
        _
    $region36: #{discriminator_forward.11} parent=5 // pred_fallthru
      _
  $region6: #{discriminator_forward.11} parent=0 // loop_footer
    %s12 = sadd.s32 1, %s8
  $region7: #{discriminator_forward.11} parent=0 // loop_footer_branch
    %7 = sbr.rel target = $region3
  $region8: #{discriminator_forward.11} parent=0 // loop_exit
    _

// kernel: discriminator_forward.14
$region0: #{discriminator_forward.14}
  #allocation0 [shape = 'u32[]', space=smem, size = 0x4, offset = 0x4, fixed_abs, tag = 'smem constant byte address 0x4 - core index']
  #allocation1 [shape = 'u32[72,128]{1,0:T(1,128)}', space=vmem, size = 0x9000, scoped, tag = 'internal scratch']
  %s0 = inlined_call_operand.vmem [shape: bf16[2,1024,128], index: 0, kind: input, shape index: {}]
  %s1 = inlined_call_operand.vmem [shape: f32[2,2,128], index: 1, kind: input, shape index: {}]
  %s2 = inlined_call_operand.vmem [shape: bf16[2,1024,128], index: 2, kind: output, shape index: {}]
  %s3 = sld [smem:[#allocation0]]
  $region41: #{discriminator_forward.14} parent=0
    _
  %s5 = ssub.s32 1, %s3
  %s6 = scalar_select 0, %s5, %s3
  loop: start=0, step=1, limit=6
  $region2: #{discriminator_forward.14} parent=0 // loop_pre_header
    _
  $region3: #{discriminator_forward.14} parent=0 // loop_header
    %s8 = sphi 0, %s12
    %p9 = scmp.ge.s32.totalorder %s8, 6
    %s15 = sphi 0, %s27
    %s16 = sphi 0, %s23
    %s17 = sphi 0, %s15
    %s18 = sphi 0, %s16
    %s19 = sphi 0, %s17
    %s20 = sphi 0, %s18
    %s32 = sphi 0, %s34
    %s35 = sphi 0, %s32
    %s36 = sphi 0, %s35
    %s52 = sphi 0, %s36
    %s58 = sphi 0, %s60
    %s61 = sphi 0, %s58
    %s62 = sphi 0, %s61
    %s78 = sphi 0, %s62
    %s86 = sphi 0, %s88
    %s89 = sphi 0, %s86
    %s90 = sphi 0, %s89
    %s106 = sphi 0, %s90
  $region4: #{discriminator_forward.14} parent=0 // loop_header_branch
    %11 = sbr.rel (%p9) target = $region8
  $region5: #{discriminator_forward.14} parent=0 // loop_body
    %s13 = ssub.s32 %s8, 1
    %s14 = ssub.s32 %s8, 2
    %s21 = sadd.s32 1, %s16
    %p22 = scmp.ge.s32.totalorder %s21, 2
    %s23 = scalar_select %p22, 0, %s21
    %s24 = sadd.s32 1, %s15
    %s25 = scalar_select %p22, %s24, %s15
    %p26 = scmp.ge.s32.totalorder %s25, 2
    %s27 = scalar_select %p26, 0, %s25
    %s28 = ssub.s32 %s15, %s27
    %s29 = ssub.s32 %s16, %s23
    %s30 = sor.u32 %s28, %s29
    %p31 = scmp.eq.s32.totalorder %s30, 0
    %s33 = sadd.s32 %s32, 1
    %s34 = scalar_select %p31, %s32, %s33
    %p37 = pneg %p31
    %p38 = scmp.eq.s32.totalorder %s8, 3
    %p39 = por %p37, %p38
    %p40 = scmp.ne.s32.totalorder %s32, %s35
    %p41 = scmp.eq.s32.totalorder %s8, 0
    %p42 = por %p40, %p41
    %p43 = scmp.ne.s32.totalorder %s32, %s35
    %p44 = scmp.eq.s32.totalorder %s13, 3
    %p45 = por %p43, %p44
    %p46 = scmp.ne.s32.totalorder %s35, %s36
    %p47 = scmp.eq.s32.totalorder %s13, 0
    %p48 = por %p46, %p47
    %p49 = scmp.ne.s32.totalorder %s35, %s36
    %p50 = scmp.eq.s32.totalorder %s14, 3
    %p51 = por %p49, %p50
    %p53 = scmp.ne.s32.totalorder %s36, %s52
    %p54 = scmp.eq.s32.totalorder %s14, 0
    %p55 = por %p53, %p54
    %s56 = ssub.s32 %s15, %s27
    %p57 = scmp.eq.s32.totalorder %s56, 0
    %s59 = sadd.s32 %s58, 1
    %s60 = scalar_select %p57, %s58, %s59
    %p63 = pneg %p57
    %p64 = scmp.eq.s32.totalorder %s8, 3
    %p65 = por %p63, %p64
    %p66 = scmp.ne.s32.totalorder %s58, %s61
    %p67 = scmp.eq.s32.totalorder %s8, 0
    %p68 = por %p66, %p67
    %p69 = scmp.ne.s32.totalorder %s58, %s61
    %p70 = scmp.eq.s32.totalorder %s13, 3
    %p71 = por %p69, %p70
    %p72 = scmp.ne.s32.totalorder %s61, %s62
    %p73 = scmp.eq.s32.totalorder %s13, 0
    %p74 = por %p72, %p73
    %p75 = scmp.ne.s32.totalorder %s61, %s62
    %p76 = scmp.eq.s32.totalorder %s14, 3
    %p77 = por %p75, %p76
    %p79 = scmp.ne.s32.totalorder %s62, %s78
    %p80 = scmp.eq.s32.totalorder %s14, 0
    %p81 = por %p79, %p80
    %s82 = ssub.s32 %s15, %s27
    %s83 = ssub.s32 %s16, %s23
    %s84 = sor.u32 %s82, %s83
    %p85 = scmp.eq.s32.totalorder %s84, 0
    %s87 = sadd.s32 %s86, 1
    %s88 = scalar_select %p85, %s86, %s87
    %p91 = pneg %p85
    %p92 = scmp.eq.s32.totalorder %s8, 3
    %p93 = por %p91, %p92
    %p94 = scmp.ne.s32.totalorder %s86, %s89
    %p95 = scmp.eq.s32.totalorder %s8, 0
    %p96 = por %p94, %p95
    %p97 = scmp.ne.s32.totalorder %s86, %s89
    %p98 = scmp.eq.s32.totalorder %s13, 3
    %p99 = por %p97, %p98
    %p100 = scmp.ne.s32.totalorder %s89, %s90
    %p101 = scmp.eq.s32.totalorder %s13, 0
    %p102 = por %p100, %p101
    %p103 = scmp.ne.s32.totalorder %s89, %s90
    %p104 = scmp.eq.s32.totalorder %s14, 3
    %p105 = por %p103, %p104
    %p107 = scmp.ne.s32.totalorder %s90, %s106
    %p108 = scmp.eq.s32.totalorder %s14, 0
    %p109 = por %p107, %p108
    %p110 = scmp.le.s32.totalorder 1, %s8
    %p111 = scmp.lt.s32.totalorder %s8, 5
    %p112 = pnand %p110, %p111
    %p113 = pneg %p112
    // Predicated region
    $region9: #{discriminator_forward.14} parent=5 // pred_check
      _
    $region10: #{discriminator_forward.14} parent=5 // pred_check_branch
      %115 = sbr.rel (%p112) target = $region12
    $region11: #{discriminator_forward.14} parent=5 // pred_region
      %s116 = ssub.s32 %s8, 1
    $region12: #{discriminator_forward.14} parent=5 // pred_fallthru
      _
    %p117 = scmp.lt.s32.totalorder %s8, 4
    // Predicated region
    $region13: #{discriminator_forward.14} parent=5 // pred_check
      %p118 = pneg %p117
    $region14: #{discriminator_forward.14} parent=5 // pred_check_branch
      %120 = sbr.rel (%p118) target = $region16
    $region15: #{discriminator_forward.14} parent=5 // pred_region
      // Predicated region
      $region17: #{discriminator_forward.14} parent=15 // pred_check
        %p121 = pneg %p42
      $region18: #{discriminator_forward.14} parent=15 // pred_check_branch
        %123 = sbr.rel (%p121) target = $region20
      $region19: #{discriminator_forward.14} parent=15 // pred_region
        %s124 = smul.u32 64, %s16
        %p125 = scmp.lt.s32.totalorder %s15, 1
        %s126 = scalar_select %p125, %s15, 1
        %p127 = scmp.lt.s32.totalorder %s124, 127
        %s128 = scalar_select %p127, %s124, 127
        %s129 = smul.addr %s126, 128
        %s130 = sadd.s32 %s128, %s129
        %s131 = smul.addr %s130, 4
        %s132 = scalar_lea.vmem %s0, %s131
        %s133 = smul.u32 64, %s16
      $region20: #{discriminator_forward.14} parent=15 // pred_fallthru
        _
      // Predicated region
      $region21: #{discriminator_forward.14} parent=15 // pred_check
        %p134 = pneg %p68
      $region22: #{discriminator_forward.14} parent=15 // pred_check_branch
        %136 = sbr.rel (%p134) target = $region24
      $region23: #{discriminator_forward.14} parent=15 // pred_region
        %p137 = scmp.lt.s32.totalorder %s15, 1
        %s138 = scalar_select %p137, %s15, 1
        %s139 = smul.addr %s138, 2
        %s140 = scalar_lea.vmem %s1, %s139
      $region24: #{discriminator_forward.14} parent=15 // pred_fallthru
        _
    $region16: #{discriminator_forward.14} parent=5 // pred_fallthru
      _
    %p141 = scmp.le.s32.totalorder 1, %s8
    %p142 = scmp.lt.s32.totalorder %s8, 5
    %p143 = pnand %p141, %p142
    %p144 = pneg %p143
    // Predicated region
    $region25: #{discriminator_forward.14} parent=5 // pred_check
      _
    $region26: #{discriminator_forward.14} parent=5 // pred_check_branch
      %146 = sbr.rel (%p143) target = $region28
    $region27: #{discriminator_forward.14} parent=5 // pred_region
      %s147 = ssub.s32 %s8, 1
      %s148 = smul.u32 64, %s18
      %p149 = scmp.lt.s32.totalorder %s17, 1
      %s150 = scalar_select %p149, %s17, 1
      %p151 = scmp.lt.s32.totalorder %s148, 127
      %s152 = scalar_select %p151, %s148, 127
      %s153 = smul.addr %s150, 128
      %s154 = sadd.s32 %s152, %s153
      %s155 = smul.addr %s154, 4
      %s156 = scalar_lea.vmem %s0, %s155
      %p157 = pneg %p48
      %p158 = pneg %p45
      %p159 = scmp.lt.s32.totalorder %s17, 1
      %s160 = scalar_select %p159, %s17, 1
      %s161 = smul.addr %s160, 2
      %s162 = scalar_lea.vmem %s1, %s161
      %p163 = pneg %p74
      %p164 = pneg %p71
      %p165 = pneg %p102
      %p166 = pneg %p99
      %s167 = smul.u32 64, %s18
      %p168 = scmp.lt.s32.totalorder %s17, 1
      %s169 = scalar_select %p168, %s17, 1
      %p170 = scmp.lt.s32.totalorder %s167, 127
      %s171 = scalar_select %p170, %s167, 127
      %s172 = smul.addr %s169, 128
      %s173 = sadd.s32 %s171, %s172
      %s174 = smul.addr %s173, 4
      %s175 = scalar_lea.vmem %s2, %s174
      %s176 = smul.u32 64, %s18
      %p177 = scmp.lt.s32.totalorder %s17, 1
      %s178 = scalar_select %p177, %s17, 1
      %p179 = scmp.lt.s32.totalorder %s176, 127
      %s180 = scalar_select %p179, %s176, 127
      %s181 = smul.addr %s178, 128
      %s182 = sadd.s32 %s180, %s181
      %s183 = smul.addr %s182, 4
      %s184 = scalar_lea.vmem %s0, %s183
      %s185 = smul.u32 64, %s18
      %p186 = scmp.lt.s32.totalorder %s17, 1
      %s187 = scalar_select %p186, %s17, 1
      %s188 = smul.addr %s187, 2
      %s189 = scalar_lea.vmem %s1, %s188
      %s190 = smul.u32 64, %s18
      %p191 = scmp.lt.s32.totalorder %s17, 1
      %s192 = scalar_select %p191, %s17, 1
      %p193 = scmp.lt.s32.totalorder %s190, 127
      %s194 = scalar_select %p193, %s190, 127
      %s195 = smul.addr %s192, 128
      %s196 = sadd.s32 %s194, %s195
      %s197 = smul.addr %s196, 4
      %s198 = scalar_lea.vmem %s2, %s197
      %s199 = smul.u32 64, %s18
      %v200 = vld [vmem:[%s184] sm:$0xf]
      %v201 = vld [vmem:[%s184 + $0x4] sm:$0xf]
      %v202 = vld [vmem:[%s184 + $0x8] sm:$0xf]
      %v203 = vld [vmem:[%s184 + $0xc] sm:$0xf]
      %v204 = vld [vmem:[%s184 + $0x10] sm:$0xf]
      %v205 = vld [vmem:[%s184 + $0x14] sm:$0xf]
      %v206 = vld [vmem:[%s184 + $0x18] sm:$0xf]
      %v207 = vld [vmem:[%s184 + $0x1c] sm:$0xf]
      %v208 = vld [vmem:[%s184 + $0x20] sm:$0xf]
      %v209 = vld [vmem:[%s184 + $0x24] sm:$0xf]
      %v210 = vld [vmem:[%s184 + $0x28] sm:$0xf]
      %v211 = vld [vmem:[%s184 + $0x2c] sm:$0xf]
      %v212 = vld [vmem:[%s184 + $0x30] sm:$0xf]
      %v213 = vld [vmem:[%s184 + $0x34] sm:$0xf]
      %v214 = vld [vmem:[%s184 + $0x38] sm:$0xf]
      %v215 = vld [vmem:[%s184 + $0x3c] sm:$0xf]
      %v216 = vld [vmem:[%s184 + $0x40] sm:$0xf]
      %v217 = vld [vmem:[%s184 + $0x44] sm:$0xf]
      %v218 = vld [vmem:[%s184 + $0x48] sm:$0xf]
      %v219 = vld [vmem:[%s184 + $0x4c] sm:$0xf]
      %v220 = vld [vmem:[%s184 + $0x50] sm:$0xf]
      %v221 = vld [vmem:[%s184 + $0x54] sm:$0xf]
      %v222 = vld [vmem:[%s184 + $0x58] sm:$0xf]
      %v223 = vld [vmem:[%s184 + $0x5c] sm:$0xf]
      %v224 = vld [vmem:[%s184 + $0x60] sm:$0xf]
      %v225 = vld [vmem:[%s184 + $0x64] sm:$0xf]
      %v226 = vld [vmem:[%s184 + $0x68] sm:$0xf]
      %v227 = vld [vmem:[%s184 + $0x6c] sm:$0xf]
      %v228 = vld [vmem:[%s184 + $0x70] sm:$0xf]
      %v229 = vld [vmem:[%s184 + $0x74] sm:$0xf]
      %v230 = vld [vmem:[%s184 + $0x78] sm:$0xf]
      %v231 = vld [vmem:[%s184 + $0x7c] sm:$0xf]
      %v232 = vld [vmem:[%s184 + $0x80] sm:$0xf]
      %v233 = vld [vmem:[%s184 + $0x84] sm:$0xf]
      %v234 = vld [vmem:[%s184 + $0x88] sm:$0xf]
      %v235 = vld [vmem:[%s184 + $0x8c] sm:$0xf]
      %v236 = vld [vmem:[%s184 + $0x90] sm:$0xf]
      %v237 = vld [vmem:[%s184 + $0x94] sm:$0xf]
      %v238 = vld [vmem:[%s184 + $0x98] sm:$0xf]
      %v239 = vld [vmem:[%s184 + $0x9c] sm:$0xf]
      %v240 = vld [vmem:[%s184 + $0xa0] sm:$0xf]
      %v241 = vld [vmem:[%s184 + $0xa4] sm:$0xf]
      %v242 = vld [vmem:[%s184 + $0xa8] sm:$0xf]
      %v243 = vld [vmem:[%s184 + $0xac] sm:$0xf]
      %v244 = vld [vmem:[%s184 + $0xb0] sm:$0xf]
      %v245 = vld [vmem:[%s184 + $0xb4] sm:$0xf]
      %v246 = vld [vmem:[%s184 + $0xb8] sm:$0xf]
      %v247 = vld [vmem:[%s184 + $0xbc] sm:$0xf]
      %v248 = vld [vmem:[%s184 + $0xc0] sm:$0xf]
      %v249 = vld [vmem:[%s184 + $0xc4] sm:$0xf]
      %v250 = vld [vmem:[%s184 + $0xc8] sm:$0xf]
      %v251 = vld [vmem:[%s184 + $0xcc] sm:$0xf]
      %v252 = vld [vmem:[%s184 + $0xd0] sm:$0xf]
      %v253 = vld [vmem:[%s184 + $0xd4] sm:$0xf]
      %v254 = vld [vmem:[%s184 + $0xd8] sm:$0xf]
      %v255 = vld [vmem:[%s184 + $0xdc] sm:$0xf]
      %v256 = vld [vmem:[%s184 + $0xe0] sm:$0xf]
      %v257 = vld [vmem:[%s184 + $0xe4] sm:$0xf]
      %v258 = vld [vmem:[%s184 + $0xe8] sm:$0xf]
      %v259 = vld [vmem:[%s184 + $0xec] sm:$0xf]
      %v260 = vld [vmem:[%s184 + $0xf0] sm:$0xf]
      %v261 = vld [vmem:[%s184 + $0xf4] sm:$0xf]
      %v262 = vld [vmem:[%s184 + $0xf8] sm:$0xf]
      %v263 = vld [vmem:[%s184 + $0xfc] sm:$0xf]
      %v264 = vunpack.c.l.bf16 %v200
      %v265 = vunpack.c.l.bf16 %v201
      %v266 = vunpack.c.l.bf16 %v202
      %v267 = vunpack.c.l.bf16 %v203
      %v268 = vunpack.c.l.bf16 %v204
      %v269 = vunpack.c.l.bf16 %v205
      %v270 = vunpack.c.l.bf16 %v206
      %v271 = vunpack.c.l.bf16 %v207
      %v272 = vunpack.c.l.bf16 %v208
      %v273 = vunpack.c.l.bf16 %v209
      %v274 = vunpack.c.l.bf16 %v210
      %v275 = vunpack.c.l.bf16 %v211
      %v276 = vunpack.c.l.bf16 %v212
      %v277 = vunpack.c.l.bf16 %v213
      %v278 = vunpack.c.l.bf16 %v214
      %v279 = vunpack.c.l.bf16 %v215
      %v280 = vunpack.c.l.bf16 %v216
      %v281 = vunpack.c.l.bf16 %v217
      %v282 = vunpack.c.l.bf16 %v218
      %v283 = vunpack.c.l.bf16 %v219
      %v284 = vunpack.c.l.bf16 %v220
      %v285 = vunpack.c.l.bf16 %v221
      %v286 = vunpack.c.l.bf16 %v222
      %v287 = vunpack.c.l.bf16 %v223
      %v288 = vunpack.c.l.bf16 %v224
      %v289 = vunpack.c.l.bf16 %v225
      %v290 = vunpack.c.l.bf16 %v226
      %v291 = vunpack.c.l.bf16 %v227
      %v292 = vunpack.c.l.bf16 %v228
      %v293 = vunpack.c.l.bf16 %v229
      %v294 = vunpack.c.l.bf16 %v230
      %v295 = vunpack.c.l.bf16 %v231
      %v296 = vunpack.c.l.bf16 %v232
      %v297 = vunpack.c.l.bf16 %v233
      %v298 = vunpack.c.l.bf16 %v234
      %v299 = vunpack.c.l.bf16 %v235
      %v300 = vunpack.c.l.bf16 %v236
      %v301 = vunpack.c.l.bf16 %v237
      %v302 = vunpack.c.l.bf16 %v238
      %v303 = vunpack.c.l.bf16 %v239
      %v304 = vunpack.c.l.bf16 %v240
      %v305 = vunpack.c.l.bf16 %v241
      %v306 = vunpack.c.l.bf16 %v242
      %v307 = vunpack.c.l.bf16 %v243
      %v308 = vunpack.c.l.bf16 %v244
      %v309 = vunpack.c.l.bf16 %v245
      %v310 = vunpack.c.l.bf16 %v246
      %v311 = vunpack.c.l.bf16 %v247
      %v312 = vunpack.c.l.bf16 %v248
      %v313 = vunpack.c.l.bf16 %v249
      %v314 = vunpack.c.l.bf16 %v250
      %v315 = vunpack.c.l.bf16 %v251
      %v316 = vunpack.c.l.bf16 %v252
      %v317 = vunpack.c.l.bf16 %v253
      %v318 = vunpack.c.l.bf16 %v254
      %v319 = vunpack.c.l.bf16 %v255
      %v320 = vunpack.c.l.bf16 %v256
      %v321 = vunpack.c.l.bf16 %v257
      %v322 = vunpack.c.l.bf16 %v258
      %v323 = vunpack.c.l.bf16 %v259
      %v324 = vunpack.c.l.bf16 %v260
      %v325 = vunpack.c.l.bf16 %v261
      %v326 = vunpack.c.l.bf16 %v262
      %v327 = vunpack.c.l.bf16 %v263
      %v328 = vld [vmem:[%s189] sm:$0x3]
      %v329 = vperm.slane %v328, 0
      %v330 = vmul.f32 %v264, %v329
      %v331 = vmul.f32 %v265, %v329
      %v332 = vmul.f32 %v266, %v329
      %v333 = vmul.f32 %v267, %v329
      %v334 = vmul.f32 %v268, %v329
      %v335 = vmul.f32 %v269, %v329
      %v336 = vmul.f32 %v270, %v329
      %v337 = vmul.f32 %v271, %v329
      %v338 = vmul.f32 %v272, %v329
      %v339 = vmul.f32 %v273, %v329
      %v340 = vmul.f32 %v274, %v329
      %v341 = vmul.f32 %v275, %v329
      %v342 = vmul.f32 %v276, %v329
      %v343 = vmul.f32 %v277, %v329
      %v344 = vmul.f32 %v278, %v329
      %v345 = vmul.f32 %v279, %v329
      %v346 = vmul.f32 %v280, %v329
      %v347 = vmul.f32 %v281, %v329
      %v348 = vmul.f32 %v282, %v329
      %v349 = vmul.f32 %v283, %v329
      %v350 = vmul.f32 %v284, %v329
      %v351 = vmul.f32 %v285, %v329
      %v352 = vmul.f32 %v286, %v329
      %v353 = vmul.f32 %v287, %v329
      %v354 = vmul.f32 %v288, %v329
      %v355 = vmul.f32 %v289, %v329
      %v356 = vmul.f32 %v290, %v329
      %v357 = vmul.f32 %v291, %v329
      %v358 = vmul.f32 %v292, %v329
      %v359 = vmul.f32 %v293, %v329
      %v360 = vmul.f32 %v294, %v329
      %v361 = vmul.f32 %v295, %v329
      %v362 = vmul.f32 %v296, %v329
      %v363 = vmul.f32 %v297, %v329
      %v364 = vmul.f32 %v298, %v329
      %v365 = vmul.f32 %v299, %v329
      %v366 = vmul.f32 %v300, %v329
      %v367 = vmul.f32 %v301, %v329
      %v368 = vmul.f32 %v302, %v329
      %v369 = vmul.f32 %v303, %v329
      %v370 = vmul.f32 %v304, %v329
      %v371 = vmul.f32 %v305, %v329
      %v372 = vmul.f32 %v306, %v329
      %v373 = vmul.f32 %v307, %v329
      %v374 = vmul.f32 %v308, %v329
      %v375 = vmul.f32 %v309, %v329
      %v376 = vmul.f32 %v310, %v329
      %v377 = vmul.f32 %v311, %v329
      %v378 = vmul.f32 %v312, %v329
      %v379 = vmul.f32 %v313, %v329
      %v380 = vmul.f32 %v314, %v329
      %v381 = vmul.f32 %v315, %v329
      %v382 = vmul.f32 %v316, %v329
      %v383 = vmul.f32 %v317, %v329
      %v384 = vmul.f32 %v318, %v329
      %v385 = vmul.f32 %v319, %v329
      %v386 = vmul.f32 %v320, %v329
      %v387 = vmul.f32 %v321, %v329
      %v388 = vmul.f32 %v322, %v329
      %v389 = vmul.f32 %v323, %v329
      %v390 = vmul.f32 %v324, %v329
      %v391 = vmul.f32 %v325, %v329
      %v392 = vmul.f32 %v326, %v329
      %v393 = vmul.f32 %v327, %v329
      %v394 = vperm.slane %v328, 1
      %v395 = vadd.f32 %v330, %v394
      %v396 = vadd.f32 %v331, %v394
      %v397 = vadd.f32 %v332, %v394
      %v398 = vadd.f32 %v333, %v394
      %v399 = vadd.f32 %v334, %v394
      %v400 = vadd.f32 %v335, %v394
      %v401 = vadd.f32 %v336, %v394
      %v402 = vadd.f32 %v337, %v394
      %v403 = vadd.f32 %v338, %v394
      %v404 = vadd.f32 %v339, %v394
      %v405 = vadd.f32 %v340, %v394
      %v406 = vadd.f32 %v341, %v394
      %v407 = vadd.f32 %v342, %v394
      %v408 = vadd.f32 %v343, %v394
      %v409 = vadd.f32 %v344, %v394
      %v410 = vadd.f32 %v345, %v394
      %v411 = vadd.f32 %v346, %v394
      %v412 = vadd.f32 %v347, %v394
      %v413 = vadd.f32 %v348, %v394
      %v414 = vadd.f32 %v349, %v394
      %v415 = vadd.f32 %v350, %v394
      %v416 = vadd.f32 %v351, %v394
      %v417 = vadd.f32 %v352, %v394
      %v418 = vadd.f32 %v353, %v394
      %v419 = vadd.f32 %v354, %v394
      %v420 = vadd.f32 %v355, %v394
      %v421 = vadd.f32 %v356, %v394
      %v422 = vadd.f32 %v357, %v394
      %v423 = vadd.f32 %v358, %v394
      %v424 = vadd.f32 %v359, %v394
      %v425 = vadd.f32 %v360, %v394
      %v426 = vadd.f32 %v361, %v394
      %v427 = vadd.f32 %v362, %v394
      %v428 = vadd.f32 %v363, %v394
      %v429 = vadd.f32 %v364, %v394
      %v430 = vadd.f32 %v365, %v394
      %v431 = vadd.f32 %v366, %v394
      %v432 = vadd.f32 %v367, %v394
      %v433 = vadd.f32 %v368, %v394
      %v434 = vadd.f32 %v369, %v394
      %v435 = vadd.f32 %v370, %v394
      %v436 = vadd.f32 %v371, %v394
      %v437 = vadd.f32 %v372, %v394
      %v438 = vadd.f32 %v373, %v394
      %v439 = vadd.f32 %v374, %v394
      %v440 = vadd.f32 %v375, %v394
      %v441 = vadd.f32 %v376, %v394
      %v442 = vadd.f32 %v377, %v394
      %v443 = vadd.f32 %v378, %v394
      %v444 = vadd.f32 %v379, %v394
      %v445 = vadd.f32 %v380, %v394
      %v446 = vadd.f32 %v381, %v394
      %v447 = vadd.f32 %v382, %v394
      %v448 = vadd.f32 %v383, %v394
      %v449 = vadd.f32 %v384, %v394
      %v450 = vadd.f32 %v385, %v394
      %v451 = vadd.f32 %v386, %v394
      %v452 = vadd.f32 %v387, %v394
      %v453 = vadd.f32 %v388, %v394
      %v454 = vadd.f32 %v389, %v394
      %v455 = vadd.f32 %v390, %v394
      %v456 = vadd.f32 %v391, %v394
      %v457 = vadd.f32 %v392, %v394
      %v458 = vadd.f32 %v393, %v394
      %vm459 = vcmp.gt.f32.partialorder %v395, 0.0
      %vm460 = vcmp.gt.f32.partialorder %v396, 0.0
      %vm461 = vcmp.gt.f32.partialorder %v397, 0.0
      %vm462 = vcmp.gt.f32.partialorder %v398, 0.0
      %vm463 = vcmp.gt.f32.partialorder %v399, 0.0
      %vm464 = vcmp.gt.f32.partialorder %v400, 0.0
      %vm465 = vcmp.gt.f32.partialorder %v401, 0.0
      %vm466 = vcmp.gt.f32.partialorder %v402, 0.0
      %vm467 = vcmp.gt.f32.partialorder %v403, 0.0
      %vm468 = vcmp.gt.f32.partialorder %v404, 0.0
      %vm469 = vcmp.gt.f32.partialorder %v405, 0.0
      %vm470 = vcmp.gt.f32.partialorder %v406, 0.0
      %vm471 = vcmp.gt.f32.partialorder %v407, 0.0
      %vm472 = vcmp.gt.f32.partialorder %v408, 0.0
      %vm473 = vcmp.gt.f32.partialorder %v409, 0.0
      %vm474 = vcmp.gt.f32.partialorder %v410, 0.0
      %vm475 = vcmp.gt.f32.partialorder %v411, 0.0
      %vm476 = vcmp.gt.f32.partialorder %v412, 0.0
      %vm477 = vcmp.gt.f32.partialorder %v413, 0.0
      %vm478 = vcmp.gt.f32.partialorder %v414, 0.0
      %vm479 = vcmp.gt.f32.partialorder %v415, 0.0
      %vm480 = vcmp.gt.f32.partialorder %v416, 0.0
      %vm481 = vcmp.gt.f32.partialorder %v417, 0.0
      %vm482 = vcmp.gt.f32.partialorder %v418, 0.0
      %vm483 = vcmp.gt.f32.partialorder %v419, 0.0
      %vm484 = vcmp.gt.f32.partialorder %v420, 0.0
      %vm485 = vcmp.gt.f32.partialorder %v421, 0.0
      %vm486 = vcmp.gt.f32.partialorder %v422, 0.0
      %vm487 = vcmp.gt.f32.partialorder %v423, 0.0
      %vm488 = vcmp.gt.f32.partialorder %v424, 0.0
      %vm489 = vcmp.gt.f32.partialorder %v425, 0.0
      %vm490 = vcmp.gt.f32.partialorder %v426, 0.0
      %vm491 = vcmp.gt.f32.partialorder %v427, 0.0
      %vm492 = vcmp.gt.f32.partialorder %v428, 0.0
      %vm493 = vcmp.gt.f32.partialorder %v429, 0.0
      %vm494 = vcmp.gt.f32.partialorder %v430, 0.0
      %vm495 = vcmp.gt.f32.partialorder %v431, 0.0
      %vm496 = vcmp.gt.f32.partialorder %v432, 0.0
      %vm497 = vcmp.gt.f32.partialorder %v433, 0.0
      %vm498 = vcmp.gt.f32.partialorder %v434, 0.0
      %vm499 = vcmp.gt.f32.partialorder %v435, 0.0
      %vm500 = vcmp.gt.f32.partialorder %v436, 0.0
      %vm501 = vcmp.gt.f32.partialorder %v437, 0.0
      %vm502 = vcmp.gt.f32.partialorder %v438, 0.0
      %vm503 = vcmp.gt.f32.partialorder %v439, 0.0
      %vm504 = vcmp.gt.f32.partialorder %v440, 0.0
      %vm505 = vcmp.gt.f32.partialorder %v441, 0.0
      %vm506 = vcmp.gt.f32.partialorder %v442, 0.0
      %vm507 = vcmp.gt.f32.partialorder %v443, 0.0
      %vm508 = vcmp.gt.f32.partialorder %v444, 0.0
      %vm509 = vcmp.gt.f32.partialorder %v445, 0.0
      %vm510 = vcmp.gt.f32.partialorder %v446, 0.0
      %vm511 = vcmp.gt.f32.partialorder %v447, 0.0
      %vm512 = vcmp.gt.f32.partialorder %v448, 0.0
      %vm513 = vcmp.gt.f32.partialorder %v449, 0.0
      %vm514 = vcmp.gt.f32.partialorder %v450, 0.0
      %vm515 = vcmp.gt.f32.partialorder %v451, 0.0
      %vm516 = vcmp.gt.f32.partialorder %v452, 0.0
      %vm517 = vcmp.gt.f32.partialorder %v453, 0.0
      %vm518 = vcmp.gt.f32.partialorder %v454, 0.0
      %vm519 = vcmp.gt.f32.partialorder %v455, 0.0
      %vm520 = vcmp.gt.f32.partialorder %v456, 0.0
      %vm521 = vcmp.gt.f32.partialorder %v457, 0.0
      %vm522 = vcmp.gt.f32.partialorder %v458, 0.0
      %v523 = vmul.f32 %v395, 0.2
      %v524 = vmul.f32 %v396, 0.2
      %v525 = vmul.f32 %v397, 0.2
      %v526 = vmul.f32 %v398, 0.2
      %v527 = vmul.f32 %v399, 0.2
      %v528 = vmul.f32 %v400, 0.2
      %v529 = vmul.f32 %v401, 0.2
      %v530 = vmul.f32 %v402, 0.2
      %v531 = vmul.f32 %v403, 0.2
      %v532 = vmul.f32 %v404, 0.2
      %v533 = vmul.f32 %v405, 0.2
      %v534 = vmul.f32 %v406, 0.2
      %v535 = vmul.f32 %v407, 0.2
      %v536 = vmul.f32 %v408, 0.2
      %v537 = vmul.f32 %v409, 0.2
      %v538 = vmul.f32 %v410, 0.2
      %v539 = vmul.f32 %v411, 0.2
      %v540 = vmul.f32 %v412, 0.2
      %v541 = vmul.f32 %v413, 0.2
      %v542 = vmul.f32 %v414, 0.2
      %v543 = vmul.f32 %v415, 0.2
      %v544 = vmul.f32 %v416, 0.2
      %v545 = vmul.f32 %v417, 0.2
      %v546 = vmul.f32 %v418, 0.2
      %v547 = vmul.f32 %v419, 0.2
      %v548 = vmul.f32 %v420, 0.2
      %v549 = vmul.f32 %v421, 0.2
      %v550 = vmul.f32 %v422, 0.2
      %v551 = vmul.f32 %v423, 0.2
      %v552 = vmul.f32 %v424, 0.2
      %v553 = vmul.f32 %v425, 0.2
      %v554 = vmul.f32 %v426, 0.2
      %v555 = vmul.f32 %v427, 0.2
      %v556 = vmul.f32 %v428, 0.2
      %v557 = vmul.f32 %v429, 0.2
      %v558 = vmul.f32 %v430, 0.2
      %v559 = vmul.f32 %v431, 0.2
      %v560 = vmul.f32 %v432, 0.2
      %v561 = vmul.f32 %v433, 0.2
      %v562 = vmul.f32 %v434, 0.2
      %v563 = vmul.f32 %v435, 0.2
      %v564 = vmul.f32 %v436, 0.2
      %v565 = vmul.f32 %v437, 0.2
      %v566 = vmul.f32 %v438, 0.2
      %v567 = vmul.f32 %v439, 0.2
      %v568 = vmul.f32 %v440, 0.2
      %v569 = vmul.f32 %v441, 0.2
      %v570 = vmul.f32 %v442, 0.2
      %v571 = vmul.f32 %v443, 0.2
      %v572 = vmul.f32 %v444, 0.2
      %v573 = vmul.f32 %v445, 0.2
      %v574 = vmul.f32 %v446, 0.2
      %v575 = vmul.f32 %v447, 0.2
      %v576 = vmul.f32 %v448, 0.2
      %v577 = vmul.f32 %v449, 0.2
      %v578 = vmul.f32 %v450, 0.2
      %v579 = vmul.f32 %v451, 0.2
      %v580 = vmul.f32 %v452, 0.2
      %v581 = vmul.f32 %v453, 0.2
      %v582 = vmul.f32 %v454, 0.2
      %v583 = vmul.f32 %v455, 0.2
      %v584 = vmul.f32 %v456, 0.2
      %v585 = vmul.f32 %v457, 0.2
      %v586 = vmul.f32 %v458, 0.2
      %v587 = vsel %vm459, %v395, %v523
      %v588 = vsel %vm460, %v396, %v524
      %v589 = vsel %vm461, %v397, %v525
      %v590 = vsel %vm462, %v398, %v526
      %v591 = vsel %vm463, %v399, %v527
      %v592 = vsel %vm464, %v400, %v528
      %v593 = vsel %vm465, %v401, %v529
      %v594 = vsel %vm466, %v402, %v530
      %v595 = vsel %vm467, %v403, %v531
      %v596 = vsel %vm468, %v404, %v532
      %v597 = vsel %vm469, %v405, %v533
      %v598 = vsel %vm470, %v406, %v534
      %v599 = vsel %vm471, %v407, %v535
      %v600 = vsel %vm472, %v408, %v536
      %v601 = vsel %vm473, %v409, %v537
      %v602 = vsel %vm474, %v410, %v538
      %v603 = vsel %vm475, %v411, %v539
      %v604 = vsel %vm476, %v412, %v540
      %v605 = vsel %vm477, %v413, %v541
      %v606 = vsel %vm478, %v414, %v542
      %v607 = vsel %vm479, %v415, %v543
      %v608 = vsel %vm480, %v416, %v544
      %v609 = vsel %vm481, %v417, %v545
      %v610 = vsel %vm482, %v418, %v546
      %v611 = vsel %vm483, %v419, %v547
      %v612 = vsel %vm484, %v420, %v548
      %v613 = vsel %vm485, %v421, %v549
      %v614 = vsel %vm486, %v422, %v550
      %v615 = vsel %vm487, %v423, %v551
      %v616 = vsel %vm488, %v424, %v552
      %v617 = vsel %vm489, %v425, %v553
      %v618 = vsel %vm490, %v426, %v554
      %v619 = vsel %vm491, %v427, %v555
      %v620 = vsel %vm492, %v428, %v556
      %v621 = vsel %vm493, %v429, %v557
      %v622 = vsel %vm494, %v430, %v558
      %v623 = vsel %vm495, %v431, %v559
      %v624 = vsel %vm496, %v432, %v560
      %v625 = vsel %vm497, %v433, %v561
      %v626 = vsel %vm498, %v434, %v562
      %v627 = vsel %vm499, %v435, %v563
      %v628 = vsel %vm500, %v436, %v564
      %v629 = vsel %vm501, %v437, %v565
      %v630 = vsel %vm502, %v438, %v566
      %v631 = vsel %vm503, %v439, %v567
      %v632 = vsel %vm504, %v440, %v568
      %v633 = vsel %vm505, %v441, %v569
      %v634 = vsel %vm506, %v442, %v570
      %v635 = vsel %vm507, %v443, %v571
      %v636 = vsel %vm508, %v444, %v572
      %v637 = vsel %vm509, %v445, %v573
      %v638 = vsel %vm510, %v446, %v574
      %v639 = vsel %vm511, %v447, %v575
      %v640 = vsel %vm512, %v448, %v576
      %v641 = vsel %vm513, %v449, %v577
      %v642 = vsel %vm514, %v450, %v578
      %v643 = vsel %vm515, %v451, %v579
      %v644 = vsel %vm516, %v452, %v580
      %v645 = vsel %vm517, %v453, %v581
      %v646 = vsel %vm518, %v454, %v582
      %v647 = vsel %vm519, %v455, %v583
      %v648 = vsel %vm520, %v456, %v584
      %v649 = vsel %vm521, %v457, %v585
      %v650 = vsel %vm522, %v458, %v586
      %v651 = vpack.c.bf16 %v587, %v587
      %v652 = vpack.c.bf16 %v588, %v588
      %v653 = vpack.c.bf16 %v589, %v589
      %v654 = vpack.c.bf16 %v590, %v590
      %v655 = vpack.c.bf16 %v591, %v591
      %v656 = vpack.c.bf16 %v592, %v592
      %v657 = vpack.c.bf16 %v593, %v593
      %v658 = vpack.c.bf16 %v594, %v594
      %v659 = vpack.c.bf16 %v595, %v595
      %v660 = vpack.c.bf16 %v596, %v596
      %v661 = vpack.c.bf16 %v597, %v597
      %v662 = vpack.c.bf16 %v598, %v598
      %v663 = vpack.c.bf16 %v599, %v599
      %v664 = vpack.c.bf16 %v600, %v600
      %v665 = vpack.c.bf16 %v601, %v601
      %v666 = vpack.c.bf16 %v602, %v602
      %v667 = vpack.c.bf16 %v603, %v603
      %v668 = vpack.c.bf16 %v604, %v604
      %v669 = vpack.c.bf16 %v605, %v605
      %v670 = vpack.c.bf16 %v606, %v606
      %v671 = vpack.c.bf16 %v607, %v607
      %v672 = vpack.c.bf16 %v608, %v608
      %v673 = vpack.c.bf16 %v609, %v609
      %v674 = vpack.c.bf16 %v610, %v610
      %v675 = vpack.c.bf16 %v611, %v611
      %v676 = vpack.c.bf16 %v612, %v612
      %v677 = vpack.c.bf16 %v613, %v613
      %v678 = vpack.c.bf16 %v614, %v614
      %v679 = vpack.c.bf16 %v615, %v615
      %v680 = vpack.c.bf16 %v616, %v616
      %v681 = vpack.c.bf16 %v617, %v617
      %v682 = vpack.c.bf16 %v618, %v618
      %v683 = vpack.c.bf16 %v619, %v619
      %v684 = vpack.c.bf16 %v620, %v620
      %v685 = vpack.c.bf16 %v621, %v621
      %v686 = vpack.c.bf16 %v622, %v622
      %v687 = vpack.c.bf16 %v623, %v623
      %v688 = vpack.c.bf16 %v624, %v624
      %v689 = vpack.c.bf16 %v625, %v625
      %v690 = vpack.c.bf16 %v626, %v626
      %v691 = vpack.c.bf16 %v627, %v627
      %v692 = vpack.c.bf16 %v628, %v628
      %v693 = vpack.c.bf16 %v629, %v629
      %v694 = vpack.c.bf16 %v630, %v630
      %v695 = vpack.c.bf16 %v631, %v631
      %v696 = vpack.c.bf16 %v632, %v632
      %v697 = vpack.c.bf16 %v633, %v633
      %v698 = vpack.c.bf16 %v634, %v634
      %v699 = vpack.c.bf16 %v635, %v635
      %v700 = vpack.c.bf16 %v636, %v636
      %v701 = vpack.c.bf16 %v637, %v637
      %v702 = vpack.c.bf16 %v638, %v638
      %v703 = vpack.c.bf16 %v639, %v639
      %v704 = vpack.c.bf16 %v640, %v640
      %v705 = vpack.c.bf16 %v641, %v641
      %v706 = vpack.c.bf16 %v642, %v642
      %v707 = vpack.c.bf16 %v643, %v643
      %v708 = vpack.c.bf16 %v644, %v644
      %v709 = vpack.c.bf16 %v645, %v645
      %v710 = vpack.c.bf16 %v646, %v646
      %v711 = vpack.c.bf16 %v647, %v647
      %v712 = vpack.c.bf16 %v648, %v648
      %v713 = vpack.c.bf16 %v649, %v649
      %v714 = vpack.c.bf16 %v650, %v650
      %715 = vst [vmem:[%s198] sm:$0xf] %v651
      %716 = vst [vmem:[%s198 + $0x4] sm:$0xf] %v652
      %717 = vst [vmem:[%s198 + $0x8] sm:$0xf] %v653
      %718 = vst [vmem:[%s198 + $0xc] sm:$0xf] %v654
      %719 = vst [vmem:[%s198 + $0x10] sm:$0xf] %v655
      %720 = vst [vmem:[%s198 + $0x14] sm:$0xf] %v656
      %721 = vst [vmem:[%s198 + $0x18] sm:$0xf] %v657
      %722 = vst [vmem:[%s198 + $0x1c] sm:$0xf] %v658
      %723 = vst [vmem:[%s198 + $0x20] sm:$0xf] %v659
      %724 = vst [vmem:[%s198 + $0x24] sm:$0xf] %v660
      %725 = vst [vmem:[%s198 + $0x28] sm:$0xf] %v661
      %726 = vst [vmem:[%s198 + $0x2c] sm:$0xf] %v662
      %727 = vst [vmem:[%s198 + $0x30] sm:$0xf] %v663
      %728 = vst [vmem:[%s198 + $0x34] sm:$0xf] %v664
      %729 = vst [vmem:[%s198 + $0x38] sm:$0xf] %v665
      %730 = vst [vmem:[%s198 + $0x3c] sm:$0xf] %v666
      %731 = vst [vmem:[%s198 + $0x40] sm:$0xf] %v667
      %732 = vst [vmem:[%s198 + $0x44] sm:$0xf] %v668
      %733 = vst [vmem:[%s198 + $0x48] sm:$0xf] %v669
      %734 = vst [vmem:[%s198 + $0x4c] sm:$0xf] %v670
      %735 = vst [vmem:[%s198 + $0x50] sm:$0xf] %v671
      %736 = vst [vmem:[%s198 + $0x54] sm:$0xf] %v672
      %737 = vst [vmem:[%s198 + $0x58] sm:$0xf] %v673
      %738 = vst [vmem:[%s198 + $0x5c] sm:$0xf] %v674
      %739 = vst [vmem:[%s198 + $0x60] sm:$0xf] %v675
      %740 = vst [vmem:[%s198 + $0x64] sm:$0xf] %v676
      %741 = vst [vmem:[%s198 + $0x68] sm:$0xf] %v677
      %742 = vst [vmem:[%s198 + $0x6c] sm:$0xf] %v678
      %743 = vst [vmem:[%s198 + $0x70] sm:$0xf] %v679
      %744 = vst [vmem:[%s198 + $0x74] sm:$0xf] %v680
      %745 = vst [vmem:[%s198 + $0x78] sm:$0xf] %v681
      %746 = vst [vmem:[%s198 + $0x7c] sm:$0xf] %v682
      %747 = vst [vmem:[%s198 + $0x80] sm:$0xf] %v683
      %748 = vst [vmem:[%s198 + $0x84] sm:$0xf] %v684
      %749 = vst [vmem:[%s198 + $0x88] sm:$0xf] %v685
      %750 = vst [vmem:[%s198 + $0x8c] sm:$0xf] %v686
      %751 = vst [vmem:[%s198 + $0x90] sm:$0xf] %v687
      %752 = vst [vmem:[%s198 + $0x94] sm:$0xf] %v688
      %753 = vst [vmem:[%s198 + $0x98] sm:$0xf] %v689
      %754 = vst [vmem:[%s198 + $0x9c] sm:$0xf] %v690
      %755 = vst [vmem:[%s198 + $0xa0] sm:$0xf] %v691
      %756 = vst [vmem:[%s198 + $0xa4] sm:$0xf] %v692
      %757 = vst [vmem:[%s198 + $0xa8] sm:$0xf] %v693
      %758 = vst [vmem:[%s198 + $0xac] sm:$0xf] %v694
      %759 = vst [vmem:[%s198 + $0xb0] sm:$0xf] %v695
      %760 = vst [vmem:[%s198 + $0xb4] sm:$0xf] %v696
      %761 = vst [vmem:[%s198 + $0xb8] sm:$0xf] %v697
      %762 = vst [vmem:[%s198 + $0xbc] sm:$0xf] %v698
      %763 = vst [vmem:[%s198 + $0xc0] sm:$0xf] %v699
      %764 = vst [vmem:[%s198 + $0xc4] sm:$0xf] %v700
      %765 = vst [vmem:[%s198 + $0xc8] sm:$0xf] %v701
      %766 = vst [vmem:[%s198 + $0xcc] sm:$0xf] %v702
      %767 = vst [vmem:[%s198 + $0xd0] sm:$0xf] %v703
      %768 = vst [vmem:[%s198 + $0xd4] sm:$0xf] %v704
      %769 = vst [vmem:[%s198 + $0xd8] sm:$0xf] %v705
      %770 = vst [vmem:[%s198 + $0xdc] sm:$0xf] %v706
      %771 = vst [vmem:[%s198 + $0xe0] sm:$0xf] %v707
      %772 = vst [vmem:[%s198 + $0xe4] sm:$0xf] %v708
      %773 = vst [vmem:[%s198 + $0xe8] sm:$0xf] %v709
      %774 = vst [vmem:[%s198 + $0xec] sm:$0xf] %v710
      %775 = vst [vmem:[%s198 + $0xf0] sm:$0xf] %v711
      %776 = vst [vmem:[%s198 + $0xf4] sm:$0xf] %v712
      %777 = vst [vmem:[%s198 + $0xf8] sm:$0xf] %v713
      %778 = vst [vmem:[%s198 + $0xfc] sm:$0xf] %v714
      %s779 = smul.u32 64, %s18
      %p780 = scmp.lt.s32.totalorder %s17, 1
      %s781 = scalar_select %p780, %s17, 1
      %p782 = scmp.lt.s32.totalorder %s779, 127
      %s783 = scalar_select %p782, %s779, 127
      %s784 = smul.addr %s781, 128
      %s785 = sadd.s32 %s783, %s784
      %s786 = smul.addr %s785, 4
      %s787 = scalar_lea.vmem %s2, %s786
      // Predicated region
      $region29: #{discriminator_forward.14} parent=27 // pred_check
        %p788 = pneg %p99
      $region30: #{discriminator_forward.14} parent=27 // pred_check_branch
        %790 = sbr.rel (%p788) target = $region32
      $region31: #{discriminator_forward.14} parent=27 // pred_region
        %s791 = smul.u32 64, %s18
      $region32: #{discriminator_forward.14} parent=27 // pred_fallthru
        _
    $region28: #{discriminator_forward.14} parent=5 // pred_fallthru
      _
    %p792 = scmp.le.s32.totalorder 2, %s8
    // Predicated region
    $region33: #{discriminator_forward.14} parent=5 // pred_check
      %p793 = pneg %p792
    $region34: #{discriminator_forward.14} parent=5 // pred_check_branch
      %795 = sbr.rel (%p793) target = $region36
    $region35: #{discriminator_forward.14} parent=5 // pred_region
      %s796 = ssub.s32 %s8, 2
      // Predicated region
      $region37: #{discriminator_forward.14} parent=35 // pred_check
        %p797 = pneg %p105
      $region38: #{discriminator_forward.14} parent=35 // pred_check_branch
        %799 = sbr.rel (%p797) target = $region40
      $region39: #{discriminator_forward.14} parent=35 // pred_region
        %s800 = smul.u32 64, %s20
        %p801 = scmp.lt.s32.totalorder %s19, 1
        %s802 = scalar_select %p801, %s19, 1
        %p803 = scmp.lt.s32.totalorder %s800, 127
        %s804 = scalar_select %p803, %s800, 127
        %s805 = smul.addr %s802, 128
        %s806 = sadd.s32 %s804, %s805
        %s807 = smul.addr %s806, 4
        %s808 = scalar_lea.vmem %s2, %s807
      $region40: #{discriminator_forward.14} parent=35 // pred_fallthru
        _
    $region36: #{discriminator_forward.14} parent=5 // pred_fallthru
      _
  $region6: #{discriminator_forward.14} parent=0 // loop_footer
    %s12 = sadd.s32 1, %s8
  $region7: #{discriminator_forward.14} parent=0 // loop_footer_branch
    %7 = sbr.rel target = $region3
  $region8: #{discriminator_forward.14} parent=0 // loop_exit
    _

// kernel: discriminator_forward.13
$region0: #{discriminator_forward.13}
  #allocation0 [shape = 'u32[]', space=smem, size = 0x4, offset = 0x4, fixed_abs, tag = 'smem constant byte address 0x4 - core index']
  #allocation1 [shape = 'u32[72,128]{1,0:T(1,128)}', space=vmem, size = 0x9000, scoped, tag = 'internal scratch']
  %s0 = inlined_call_operand.vmem [shape: bf16[2,1024,128], index: 0, kind: input, shape index: {}]
  %s1 = inlined_call_operand.vmem [shape: bf16[128,128], index: 1, kind: input, shape index: {}]
  %s2 = inlined_call_operand.vmem [shape: bf16[2,1024,128], index: 2, kind: output, shape index: {0}]
  %s3 = inlined_call_operand.vmem [shape: f32[4,2,128], index: 3, kind: output, shape index: {1}]
  %4 = xla_tuple %s2, %s3
  %s5 = sld [smem:[#allocation0]]
  $region49: #{discriminator_forward.13} parent=0
    _
  %s7 = ssub.s32 1, %s5
  %s8 = scalar_select 0, %s7, %s5
  loop: start=0, step=1, limit=6
  $region2: #{discriminator_forward.13} parent=0 // loop_pre_header
    _
  $region3: #{discriminator_forward.13} parent=0 // loop_header
    %s10 = sphi 0, %s14
    %p11 = scmp.ge.s32.totalorder %s10, 6
    %s17 = sphi 0, %s29
    %s18 = sphi 0, %s25
    %s19 = sphi 0, %s17
    %s20 = sphi 0, %s18
    %s21 = sphi 0, %s19
    %s22 = sphi 0, %s20
    %s34 = sphi 0, %s36
    %s37 = sphi 0, %s34
    %s38 = sphi 0, %s37
    %s54 = sphi 0, %s38
    %s58 = sphi 0, %s58
    %s60 = sphi 0, %s58
    %s61 = sphi 0, %s60
    %s75 = sphi 0, %s61
    %s83 = sphi 0, %s85
    %s86 = sphi 0, %s83
    %s87 = sphi 0, %s86
    %s103 = sphi 0, %s87
    %s113 = sphi 0, %s115
    %s116 = sphi 0, %s113
    %s117 = sphi 0, %s116
    %s133 = sphi 0, %s117
  $region4: #{discriminator_forward.13} parent=0 // loop_header_branch
    %13 = sbr.rel (%p11) target = $region8
  $region5: #{discriminator_forward.13} parent=0 // loop_body
    %s15 = ssub.s32 %s10, 1
    %s16 = ssub.s32 %s10, 2
    %s23 = sadd.s32 1, %s18
    %p24 = scmp.ge.s32.totalorder %s23, 2
    %s25 = scalar_select %p24, 0, %s23
    %s26 = sadd.s32 1, %s17
    %s27 = scalar_select %p24, %s26, %s17
    %p28 = scmp.ge.s32.totalorder %s27, 2
    %s29 = scalar_select %p28, 0, %s27
    %s30 = ssub.s32 %s17, %s29
    %s31 = ssub.s32 %s18, %s25
    %s32 = sor.u32 %s30, %s31
    %p33 = scmp.eq.s32.totalorder %s32, 0
    %s35 = sadd.s32 %s34, 1
    %s36 = scalar_select %p33, %s34, %s35
    %p39 = pneg %p33
    %p40 = scmp.eq.s32.totalorder %s10, 3
    %p41 = por %p39, %p40
    %p42 = scmp.ne.s32.totalorder %s34, %s37
    %p43 = scmp.eq.s32.totalorder %s10, 0
    %p44 = por %p42, %p43
    %p45 = scmp.ne.s32.totalorder %s34, %s37
    %p46 = scmp.eq.s32.totalorder %s15, 3
    %p47 = por %p45, %p46
    %p48 = scmp.ne.s32.totalorder %s37, %s38
    %p49 = scmp.eq.s32.totalorder %s15, 0
    %p50 = por %p48, %p49
    %p51 = scmp.ne.s32.totalorder %s37, %s38
    %p52 = scmp.eq.s32.totalorder %s16, 3
    %p53 = por %p51, %p52
    %p55 = scmp.ne.s32.totalorder %s38, %s54
    %p56 = scmp.eq.s32.totalorder %s16, 0
    %p57 = por %p55, %p56
    %s59 = sadd.s32 %s58, 1
    %p62 = scmp.eq.s32.totalorder %s10, 3
    %p63 = scmp.ne.s32.totalorder %s58, %s60
    %p64 = scmp.eq.s32.totalorder %s10, 0
    %p65 = por %p63, %p64
    %p66 = scmp.ne.s32.totalorder %s58, %s60
    %p67 = scmp.eq.s32.totalorder %s15, 3
    %p68 = por %p66, %p67
    %p69 = scmp.ne.s32.totalorder %s60, %s61
    %p70 = scmp.eq.s32.totalorder %s15, 0
    %p71 = por %p69, %p70
    %p72 = scmp.ne.s32.totalorder %s60, %s61
    %p73 = scmp.eq.s32.totalorder %s16, 3
    %p74 = por %p72, %p73
    %p76 = scmp.ne.s32.totalorder %s61, %s75
    %p77 = scmp.eq.s32.totalorder %s16, 0
    %p78 = por %p76, %p77
    %s79 = ssub.s32 %s17, %s29
    %s80 = ssub.s32 %s18, %s25
    %s81 = sor.u32 %s79, %s80
    %p82 = scmp.eq.s32.totalorder %s81, 0
    %s84 = sadd.s32 %s83, 1
    %s85 = scalar_select %p82, %s83, %s84
    %p88 = pneg %p82
    %p89 = scmp.eq.s32.totalorder %s10, 3
    %p90 = por %p88, %p89
    %p91 = scmp.ne.s32.totalorder %s83, %s86
    %p92 = scmp.eq.s32.totalorder %s10, 0
    %p93 = por %p91, %p92
    %p94 = scmp.ne.s32.totalorder %s83, %s86
    %p95 = scmp.eq.s32.totalorder %s15, 3
    %p96 = por %p94, %p95
    %p97 = scmp.ne.s32.totalorder %s86, %s87
    %p98 = scmp.eq.s32.totalorder %s15, 0
    %p99 = por %p97, %p98
    %p100 = scmp.ne.s32.totalorder %s86, %s87
    %p101 = scmp.eq.s32.totalorder %s16, 3
    %p102 = por %p100, %p101
    %p104 = scmp.ne.s32.totalorder %s87, %s103
    %p105 = scmp.eq.s32.totalorder %s16, 0
    %p106 = por %p104, %p105
    %s107 = smul.u32 %s17, 2
    %s108 = sadd.s32 %s107, %s18
    %s109 = smul.u32 %s29, 2
    %s110 = sadd.s32 %s109, %s25
    %s111 = ssub.s32 %s108, %s110
    %p112 = scmp.eq.s32.totalorder %s111, 0
    %s114 = sadd.s32 %s113, 1
    %s115 = scalar_select %p112, %s113, %s114
    %p118 = pneg %p112
    %p119 = scmp.eq.s32.totalorder %s10, 3
    %p120 = por %p118, %p119
    %p121 = scmp.ne.s32.totalorder %s113, %s116
    %p122 = scmp.eq.s32.totalorder %s10, 0
    %p123 = por %p121, %p122
    %p124 = scmp.ne.s32.totalorder %s113, %s116
    %p125 = scmp.eq.s32.totalorder %s15, 3
    %p126 = por %p124, %p125
    %p127 = scmp.ne.s32.totalorder %s116, %s117
    %p128 = scmp.eq.s32.totalorder %s15, 0
    %p129 = por %p127, %p128
    %p130 = scmp.ne.s32.totalorder %s116, %s117
    %p131 = scmp.eq.s32.totalorder %s16, 3
    %p132 = por %p130, %p131
    %p134 = scmp.ne.s32.totalorder %s117, %s133
    %p135 = scmp.eq.s32.totalorder %s16, 0
    %p136 = por %p134, %p135
    %p137 = scmp.le.s32.totalorder 1, %s10
    %p138 = scmp.lt.s32.totalorder %s10, 5
    %p139 = pnand %p137, %p138
    %p140 = pneg %p139
    // Predicated region
    $region9: #{discriminator_forward.13} parent=5 // pred_check
      _
    $region10: #{discriminator_forward.13} parent=5 // pred_check_branch
      %142 = sbr.rel (%p139) target = $region12
    $region11: #{discriminator_forward.13} parent=5 // pred_region
      %s143 = ssub.s32 %s10, 1
      // Predicated region
      $region13: #{discriminator_forward.13} parent=11 // pred_check
        %p144 = pneg %p71
      $region14: #{discriminator_forward.13} parent=11 // pred_check_branch
        %146 = sbr.rel (%p144) target = $region16
      $region15: #{discriminator_forward.13} parent=11 // pred_region
        _
      $region16: #{discriminator_forward.13} parent=11 // pred_fallthru
        _
    $region12: #{discriminator_forward.13} parent=5 // pred_fallthru
      _
    %p147 = scmp.lt.s32.totalorder %s10, 4
    // Predicated region
    $region17: #{discriminator_forward.13} parent=5 // pred_check
      %p148 = pneg %p147
    $region18: #{discriminator_forward.13} parent=5 // pred_check_branch
      %150 = sbr.rel (%p148) target = $region20
    $region19: #{discriminator_forward.13} parent=5 // pred_region
      // Predicated region
      $region21: #{discriminator_forward.13} parent=19 // pred_check
        %p151 = pneg %p44
      $region22: #{discriminator_forward.13} parent=19 // pred_check_branch
        %153 = sbr.rel (%p151) target = $region24
      $region23: #{discriminator_forward.13} parent=19 // pred_region
        %s154 = smul.u32 64, %s18
        %p155 = scmp.lt.s32.totalorder %s17, 1
        %s156 = scalar_select %p155, %s17, 1
        %p157 = scmp.lt.s32.totalorder %s154, 127
        %s158 = scalar_select %p157, %s154, 127
        %s159 = smul.addr %s156, 128
        %s160 = sadd.s32 %s158, %s159
        %s161 = smul.addr %s160, 4
        %s162 = scalar_lea.vmem %s0, %s161
        %s163 = smul.u32 64, %s18
      $region24: #{discriminator_forward.13} parent=19 // pred_fallthru
        _
    $region20: #{discriminator_forward.13} parent=5 // pred_fallthru
      _
    %p164 = scmp.le.s32.totalorder 1, %s10
    %p165 = scmp.lt.s32.totalorder %s10, 5
    %p166 = pnand %p164, %p165
    %p167 = pneg %p166
    // Predicated region
    $region25: #{discriminator_forward.13} parent=5 // pred_check
      _
    $region26: #{discriminator_forward.13} parent=5 // pred_check_branch
      %169 = sbr.rel (%p166) target = $region28
    $region27: #{discriminator_forward.13} parent=5 // pred_region
      %s170 = ssub.s32 %s10, 1
      %s171 = smul.u32 64, %s20
      %p172 = scmp.lt.s32.totalorder %s19, 1
      %s173 = scalar_select %p172, %s19, 1
      %p174 = scmp.lt.s32.totalorder %s171, 127
      %s175 = scalar_select %p174, %s171, 127
      %s176 = smul.addr %s173, 128
      %s177 = sadd.s32 %s175, %s176
      %s178 = smul.addr %s177, 4
      %s179 = scalar_lea.vmem %s0, %s178
      %p180 = pneg %p50
      %p181 = pneg %p47
      %p182 = pneg %p71
      %p183 = pneg %p68
      %p184 = pneg %p99
      %p185 = pneg %p96
      %s186 = smul.u32 64, %s20
      %p187 = scmp.lt.s32.totalorder %s19, 1
      %s188 = scalar_select %p187, %s19, 1
      %p189 = scmp.lt.s32.totalorder %s186, 127
      %s190 = scalar_select %p189, %s186, 127
      %s191 = smul.addr %s188, 128
      %s192 = sadd.s32 %s190, %s191
      %s193 = smul.addr %s192, 4
      %s194 = scalar_lea.vmem %s2, %s193
      %p195 = pneg %p129
      %p196 = pneg %p126
      %s197 = smul.u32 %s19, 2
      %s198 = sadd.s32 %s197, %s20
      %p199 = scmp.lt.s32.totalorder %s198, 3
      %s200 = scalar_select %p199, %s198, 3
      %s201 = smul.addr %s200, 2
      %s202 = scalar_lea.vmem %s3, %s201
      %s203 = smul.u32 64, %s20
      %p204 = scmp.lt.s32.totalorder %s19, 1
      %s205 = scalar_select %p204, %s19, 1
      %p206 = scmp.lt.s32.totalorder %s203, 127
      %s207 = scalar_select %p206, %s203, 127
      %s208 = smul.addr %s205, 128
      %s209 = sadd.s32 %s207, %s208
      %s210 = smul.addr %s209, 4
      %s211 = scalar_lea.vmem %s0, %s210
      %s212 = smul.u32 64, %s20
      %s213 = smul.u32 64, %s20
      %p214 = scmp.lt.s32.totalorder %s19, 1
      %s215 = scalar_select %p214, %s19, 1
      %p216 = scmp.lt.s32.totalorder %s213, 127
      %s217 = scalar_select %p216, %s213, 127
      %s218 = smul.addr %s215, 128
      %s219 = sadd.s32 %s217, %s218
      %s220 = smul.addr %s219, 4
      %s221 = scalar_lea.vmem %s2, %s220
      %s222 = smul.u32 64, %s20
      %s223 = smul.u32 %s19, 2
      %s224 = sadd.s32 %s223, %s20
      %p225 = scmp.lt.s32.totalorder %s224, 3
      %s226 = scalar_select %p225, %s224, 3
      %s227 = smul.addr %s226, 2
      %s228 = scalar_lea.vmem %s3, %s227
      %s229 = smul.u32 %s19, 2
      %s230 = sadd.s32 %s229, %s20
      %v231 = vld [vmem:[%s211] sm:$0xf]
      %v232 = vld [vmem:[%s211 + $0x4] sm:$0xf]
      %v233 = vld [vmem:[%s211 + $0x8] sm:$0xf]
      %v234 = vld [vmem:[%s211 + $0xc] sm:$0xf]
      %v235 = vld [vmem:[%s211 + $0x10] sm:$0xf]
      %v236 = vld [vmem:[%s211 + $0x14] sm:$0xf]
      %v237 = vld [vmem:[%s211 + $0x18] sm:$0xf]
      %v238 = vld [vmem:[%s211 + $0x1c] sm:$0xf]
      %v239 = vld [vmem:[%s211 + $0x20] sm:$0xf]
      %v240 = vld [vmem:[%s211 + $0x24] sm:$0xf]
      %v241 = vld [vmem:[%s211 + $0x28] sm:$0xf]
      %v242 = vld [vmem:[%s211 + $0x2c] sm:$0xf]
      %v243 = vld [vmem:[%s211 + $0x30] sm:$0xf]
      %v244 = vld [vmem:[%s211 + $0x34] sm:$0xf]
      %v245 = vld [vmem:[%s211 + $0x38] sm:$0xf]
      %v246 = vld [vmem:[%s211 + $0x3c] sm:$0xf]
      %v247 = vld [vmem:[%s211 + $0x40] sm:$0xf]
      %v248 = vld [vmem:[%s211 + $0x44] sm:$0xf]
      %v249 = vld [vmem:[%s211 + $0x48] sm:$0xf]
      %v250 = vld [vmem:[%s211 + $0x4c] sm:$0xf]
      %v251 = vld [vmem:[%s211 + $0x50] sm:$0xf]
      %v252 = vld [vmem:[%s211 + $0x54] sm:$0xf]
      %v253 = vld [vmem:[%s211 + $0x58] sm:$0xf]
      %v254 = vld [vmem:[%s211 + $0x5c] sm:$0xf]
      %v255 = vld [vmem:[%s211 + $0x60] sm:$0xf]
      %v256 = vld [vmem:[%s211 + $0x64] sm:$0xf]
      %v257 = vld [vmem:[%s211 + $0x68] sm:$0xf]
      %v258 = vld [vmem:[%s211 + $0x6c] sm:$0xf]
      %v259 = vld [vmem:[%s211 + $0x70] sm:$0xf]
      %v260 = vld [vmem:[%s211 + $0x74] sm:$0xf]
      %v261 = vld [vmem:[%s211 + $0x78] sm:$0xf]
      %v262 = vld [vmem:[%s211 + $0x7c] sm:$0xf]
      %v263 = vld [vmem:[%s211 + $0x80] sm:$0xf]
      %v264 = vld [vmem:[%s211 + $0x84] sm:$0xf]
      %v265 = vld [vmem:[%s211 + $0x88] sm:$0xf]
      %v266 = vld [vmem:[%s211 + $0x8c] sm:$0xf]
      %v267 = vld [vmem:[%s211 + $0x90] sm:$0xf]
      %v268 = vld [vmem:[%s211 + $0x94] sm:$0xf]
      %v269 = vld [vmem:[%s211 + $0x98] sm:$0xf]
      %v270 = vld [vmem:[%s211 + $0x9c] sm:$0xf]
      %v271 = vld [vmem:[%s211 + $0xa0] sm:$0xf]
      %v272 = vld [vmem:[%s211 + $0xa4] sm:$0xf]
      %v273 = vld [vmem:[%s211 + $0xa8] sm:$0xf]
      %v274 = vld [vmem:[%s211 + $0xac] sm:$0xf]
      %v275 = vld [vmem:[%s211 + $0xb0] sm:$0xf]
      %v276 = vld [vmem:[%s211 + $0xb4] sm:$0xf]
      %v277 = vld [vmem:[%s211 + $0xb8] sm:$0xf]
      %v278 = vld [vmem:[%s211 + $0xbc] sm:$0xf]
      %v279 = vld [vmem:[%s211 + $0xc0] sm:$0xf]
      %v280 = vld [vmem:[%s211 + $0xc4] sm:$0xf]
      %v281 = vld [vmem:[%s211 + $0xc8] sm:$0xf]
      %v282 = vld [vmem:[%s211 + $0xcc] sm:$0xf]
      %v283 = vld [vmem:[%s211 + $0xd0] sm:$0xf]
      %v284 = vld [vmem:[%s211 + $0xd4] sm:$0xf]
      %v285 = vld [vmem:[%s211 + $0xd8] sm:$0xf]
      %v286 = vld [vmem:[%s211 + $0xdc] sm:$0xf]
      %v287 = vld [vmem:[%s211 + $0xe0] sm:$0xf]
      %v288 = vld [vmem:[%s211 + $0xe4] sm:$0xf]
      %v289 = vld [vmem:[%s211 + $0xe8] sm:$0xf]
      %v290 = vld [vmem:[%s211 + $0xec] sm:$0xf]
      %v291 = vld [vmem:[%s211 + $0xf0] sm:$0xf]
      %v292 = vld [vmem:[%s211 + $0xf4] sm:$0xf]
      %v293 = vld [vmem:[%s211 + $0xf8] sm:$0xf]
      %v294 = vld [vmem:[%s211 + $0xfc] sm:$0xf]
      %v295 = vld [vmem:[%s1] sm:$0xf]
      %v296 = vld [vmem:[%s1 + $0x4] sm:$0xf]
      %v297 = vld [vmem:[%s1 + $0x8] sm:$0xf]
      %v298 = vld [vmem:[%s1 + $0xc] sm:$0xf]
      %v299 = vld [vmem:[%s1 + $0x10] sm:$0xf]
      %v300 = vld [vmem:[%s1 + $0x14] sm:$0xf]
      %v301 = vld [vmem:[%s1 + $0x18] sm:$0xf]
      %v302 = vld [vmem:[%s1 + $0x1c] sm:$0xf]
      %v303 = vld [vmem:[%s1 + $0x20] sm:$0xf]
      %v304 = vld [vmem:[%s1 + $0x24] sm:$0xf]
      %v305 = vld [vmem:[%s1 + $0x28] sm:$0xf]
      %v306 = vld [vmem:[%s1 + $0x2c] sm:$0xf]
      %v307 = vld [vmem:[%s1 + $0x30] sm:$0xf]
      %v308 = vld [vmem:[%s1 + $0x34] sm:$0xf]
      %v309 = vld [vmem:[%s1 + $0x38] sm:$0xf]
      %v310 = vld [vmem:[%s1 + $0x3c] sm:$0xf]
      %v375 = vunpack.c.l.b16 %v231
      %v376 = vunpack.c.l.b16 %v232
      %v377 = vunpack.c.l.b16 %v233
      %v378 = vunpack.c.l.b16 %v234
      %v379 = vunpack.c.l.b16 %v235
      %v380 = vunpack.c.l.b16 %v236
      %v381 = vunpack.c.l.b16 %v237
      %v382 = vunpack.c.l.b16 %v238
      %v383 = vunpack.c.l.b16 %v239
      %v384 = vunpack.c.l.b16 %v240
      %v385 = vunpack.c.l.b16 %v241
      %v386 = vunpack.c.l.b16 %v242
      %v387 = vunpack.c.l.b16 %v243
      %v388 = vunpack.c.l.b16 %v244
      %v389 = vunpack.c.l.b16 %v245
      %v390 = vunpack.c.l.b16 %v246
      %v391 = vunpack.c.l.b16 %v247
      %v392 = vunpack.c.l.b16 %v248
      %v393 = vunpack.c.l.b16 %v249
      %v394 = vunpack.c.l.b16 %v250
      %v395 = vunpack.c.l.b16 %v251
      %v396 = vunpack.c.l.b16 %v252
      %v397 = vunpack.c.l.b16 %v253
      %v398 = vunpack.c.l.b16 %v254
      %v399 = vunpack.c.l.b16 %v255
      %v400 = vunpack.c.l.b16 %v256
      %v401 = vunpack.c.l.b16 %v257
      %v402 = vunpack.c.l.b16 %v258
      %v403 = vunpack.c.l.b16 %v259
      %v404 = vunpack.c.l.b16 %v260
      %v405 = vunpack.c.l.b16 %v261
      %v406 = vunpack.c.l.b16 %v262
      %v407 = vunpack.c.l.b16 %v263
      %v408 = vunpack.c.l.b16 %v264
      %v409 = vunpack.c.l.b16 %v265
      %v410 = vunpack.c.l.b16 %v266
      %v411 = vunpack.c.l.b16 %v267
      %v412 = vunpack.c.l.b16 %v268
      %v413 = vunpack.c.l.b16 %v269
      %v414 = vunpack.c.l.b16 %v270
      %v415 = vunpack.c.l.b16 %v271
      %v416 = vunpack.c.l.b16 %v272
      %v417 = vunpack.c.l.b16 %v273
      %v418 = vunpack.c.l.b16 %v274
      %v419 = vunpack.c.l.b16 %v275
      %v420 = vunpack.c.l.b16 %v276
      %v421 = vunpack.c.l.b16 %v277
      %v422 = vunpack.c.l.b16 %v278
      %v423 = vunpack.c.l.b16 %v279
      %v424 = vunpack.c.l.b16 %v280
      %v425 = vunpack.c.l.b16 %v281
      %v426 = vunpack.c.l.b16 %v282
      %v427 = vunpack.c.l.b16 %v283
      %v428 = vunpack.c.l.b16 %v284
      %v429 = vunpack.c.l.b16 %v285
      %v430 = vunpack.c.l.b16 %v286
      %v431 = vunpack.c.l.b16 %v287
      %v432 = vunpack.c.l.b16 %v288
      %v433 = vunpack.c.l.b16 %v289
      %v434 = vunpack.c.l.b16 %v290
      %v435 = vunpack.c.l.b16 %v291
      %v436 = vunpack.c.l.b16 %v292
      %v437 = vunpack.c.l.b16 %v293
      %v438 = vunpack.c.l.b16 %v294
      %v439 = vpack.c.b16 %v376, %v375
      %v440 = vpack.c.b16 %v378, %v377
      %v441 = vpack.c.b16 %v380, %v379
      %v442 = vpack.c.b16 %v382, %v381
      %v443 = vpack.c.b16 %v384, %v383
      %v444 = vpack.c.b16 %v386, %v385
      %v445 = vpack.c.b16 %v388, %v387
      %v446 = vpack.c.b16 %v390, %v389
      %v447 = vpack.c.b16 %v392, %v391
      %v448 = vpack.c.b16 %v394, %v393
      %v449 = vpack.c.b16 %v396, %v395
      %v450 = vpack.c.b16 %v398, %v397
      %v451 = vpack.c.b16 %v400, %v399
      %v452 = vpack.c.b16 %v402, %v401
      %v453 = vpack.c.b16 %v404, %v403
      %v454 = vpack.c.b16 %v406, %v405
      %v455 = vpack.c.b16 %v408, %v407
      %v456 = vpack.c.b16 %v410, %v409
      %v457 = vpack.c.b16 %v412, %v411
      %v458 = vpack.c.b16 %v414, %v413
      %v459 = vpack.c.b16 %v416, %v415
      %v460 = vpack.c.b16 %v418, %v417
      %v461 = vpack.c.b16 %v420, %v419
      %v462 = vpack.c.b16 %v422, %v421
      %v463 = vpack.c.b16 %v424, %v423
      %v464 = vpack.c.b16 %v426, %v425
      %v465 = vpack.c.b16 %v428, %v427
      %v466 = vpack.c.b16 %v430, %v429
      %v467 = vpack.c.b16 %v432, %v431
      %v468 = vpack.c.b16 %v434, %v433
      %v469 = vpack.c.b16 %v436, %v435
      %v470 = vpack.c.b16 %v438, %v437
      %v519 = vunpack.c.l.b16 %v295
      %v520 = vunpack.c.l.b16 %v296
      %v521 = vunpack.c.l.b16 %v297
      %v522 = vunpack.c.l.b16 %v298
      %v523 = vunpack.c.l.b16 %v299
      %v524 = vunpack.c.l.b16 %v300
      %v525 = vunpack.c.l.b16 %v301
      %v526 = vunpack.c.l.b16 %v302
      %v527 = vunpack.c.l.b16 %v303
      %v528 = vunpack.c.l.b16 %v304
      %v529 = vunpack.c.l.b16 %v305
      %v530 = vunpack.c.l.b16 %v306
      %v531 = vunpack.c.l.b16 %v307
      %v532 = vunpack.c.l.b16 %v308
      %v533 = vunpack.c.l.b16 %v309
      %v534 = vunpack.c.l.b16 %v310
      %v535 = vpack.c.b16 %v520, %v519
      %v536 = vpack.c.b16 %v522, %v521
      %v537 = vpack.c.b16 %v524, %v523
      %v538 = vpack.c.b16 %v526, %v525
      %v539 = vpack.c.b16 %v528, %v527
      %v540 = vpack.c.b16 %v530, %v529
      %v541 = vpack.c.b16 %v532, %v531
      %v542 = vpack.c.b16 %v534, %v533
      %551 = vmatpush.bf16.msra.mxu0 %v542
      %552 = vmatpush.bf16.msra.mxu0 %v541
      %553 = vmatpush.bf16.msra.mxu0 %v540
      %554 = vmatpush.bf16.msra.mxu0 %v539
      %555 = vmatpush.bf16.msra.mxu0 %v538
      %556 = vmatpush.bf16.msra.mxu0 %v537
      %557 = vmatpush.bf16.msra.mxu0 %v536
      %558 = vmatpush.bf16.msra.mxu0 %v535
      %559 = vmatmul.bf16.gmra.mxu0 %v439
      %v560 = vpop.f32.mrf.mxu0
      %v561 = vadd.f32 0.0, %v560
      %v562 = vpop.f32.mrf.mxu0
      %v563 = vadd.f32 0.0, %v562
      %564 = vmatmul.bf16.gmra.mxu0 %v440
      %v565 = vpop.f32.mrf.mxu0
      %v566 = vadd.f32 0.0, %v565
      %v567 = vpop.f32.mrf.mxu0
      %v568 = vadd.f32 0.0, %v567
      %569 = vmatmul.bf16.gmra.mxu0 %v441
      %v570 = vpop.f32.mrf.mxu0
      %v571 = vadd.f32 0.0, %v570
      %v572 = vpop.f32.mrf.mxu0
      %v573 = vadd.f32 0.0, %v572
      %574 = vmatmul.bf16.gmra.mxu0 %v442
      %v575 = vpop.f32.mrf.mxu0
      %v576 = vadd.f32 0.0, %v575
      %v577 = vpop.f32.mrf.mxu0
      %v578 = vadd.f32 0.0, %v577
      %579 = vmatmul.bf16.gmra.mxu0 %v443
      %v580 = vpop.f32.mrf.mxu0
      %v581 = vadd.f32 0.0, %v580
      %v582 = vpop.f32.mrf.mxu0
      %v583 = vadd.f32 0.0, %v582
      %584 = vmatmul.bf16.gmra.mxu0 %v444
      %v585 = vpop.f32.mrf.mxu0
      %v586 = vadd.f32 0.0, %v585
      %v587 = vpop.f32.mrf.mxu0
      %v588 = vadd.f32 0.0, %v587
      %589 = vmatmul.bf16.gmra.mxu0 %v445
      %v590 = vpop.f32.mrf.mxu0
      %v591 = vadd.f32 0.0, %v590
      %v592 = vpop.f32.mrf.mxu0
      %v593 = vadd.f32 0.0, %v592
      %594 = vmatmul.bf16.gmra.mxu0 %v446
      %v595 = vpop.f32.mrf.mxu0
      %v596 = vadd.f32 0.0, %v595
      %v597 = vpop.f32.mrf.mxu0
      %v598 = vadd.f32 0.0, %v597
      %599 = vmatmul.bf16.gmra.mxu0 %v447
      %v600 = vpop.f32.mrf.mxu0
      %v601 = vadd.f32 0.0, %v600
      %v602 = vpop.f32.mrf.mxu0
      %v603 = vadd.f32 0.0, %v602
      %604 = vmatmul.bf16.gmra.mxu0 %v448
      %v605 = vpop.f32.mrf.mxu0
      %v606 = vadd.f32 0.0, %v605
      %v607 = vpop.f32.mrf.mxu0
      %v608 = vadd.f32 0.0, %v607
      %609 = vmatmul.bf16.gmra.mxu0 %v449
      %v610 = vpop.f32.mrf.mxu0
      %v611 = vadd.f32 0.0, %v610
      %v612 = vpop.f32.mrf.mxu0
      %v613 = vadd.f32 0.0, %v612
      %614 = vmatmul.bf16.gmra.mxu0 %v450
      %v615 = vpop.f32.mrf.mxu0
      %v616 = vadd.f32 0.0, %v615
      %v617 = vpop.f32.mrf.mxu0
      %v618 = vadd.f32 0.0, %v617
      %619 = vmatmul.bf16.gmra.mxu0 %v451
      %v620 = vpop.f32.mrf.mxu0
      %v621 = vadd.f32 0.0, %v620
      %v622 = vpop.f32.mrf.mxu0
      %v623 = vadd.f32 0.0, %v622
      %624 = vmatmul.bf16.gmra.mxu0 %v452
      %v625 = vpop.f32.mrf.mxu0
      %v626 = vadd.f32 0.0, %v625
      %v627 = vpop.f32.mrf.mxu0
      %v628 = vadd.f32 0.0, %v627
      %629 = vmatmul.bf16.gmra.mxu0 %v453
      %v630 = vpop.f32.mrf.mxu0
      %v631 = vadd.f32 0.0, %v630
      %v632 = vpop.f32.mrf.mxu0
      %v633 = vadd.f32 0.0, %v632
      %634 = vmatmul.bf16.gmra.mxu0 %v454
      %v635 = vpop.f32.mrf.mxu0
      %v636 = vadd.f32 0.0, %v635
      %v637 = vpop.f32.mrf.mxu0
      %v638 = vadd.f32 0.0, %v637
      %639 = vmatmul.bf16.gmra.mxu0 %v455
      %v640 = vpop.f32.mrf.mxu0
      %v641 = vadd.f32 0.0, %v640
      %v642 = vpop.f32.mrf.mxu0
      %v643 = vadd.f32 0.0, %v642
      %644 = vmatmul.bf16.gmra.mxu0 %v456
      %v645 = vpop.f32.mrf.mxu0
      %v646 = vadd.f32 0.0, %v645
      %v647 = vpop.f32.mrf.mxu0
      %v648 = vadd.f32 0.0, %v647
      %649 = vmatmul.bf16.gmra.mxu0 %v457
      %v650 = vpop.f32.mrf.mxu0
      %v651 = vadd.f32 0.0, %v650
      %v652 = vpop.f32.mrf.mxu0
      %v653 = vadd.f32 0.0, %v652
      %654 = vmatmul.bf16.gmra.mxu0 %v458
      %v655 = vpop.f32.mrf.mxu0
      %v656 = vadd.f32 0.0, %v655
      %v657 = vpop.f32.mrf.mxu0
      %v658 = vadd.f32 0.0, %v657
      %659 = vmatmul.bf16.gmra.mxu0 %v459
      %v660 = vpop.f32.mrf.mxu0
      %v661 = vadd.f32 0.0, %v660
      %v662 = vpop.f32.mrf.mxu0
      %v663 = vadd.f32 0.0, %v662
      %664 = vmatmul.bf16.gmra.mxu0 %v460
      %v665 = vpop.f32.mrf.mxu0
      %v666 = vadd.f32 0.0, %v665
      %v667 = vpop.f32.mrf.mxu0
      %v668 = vadd.f32 0.0, %v667
      %669 = vmatmul.bf16.gmra.mxu0 %v461
      %v670 = vpop.f32.mrf.mxu0
      %v671 = vadd.f32 0.0, %v670
      %v672 = vpop.f32.mrf.mxu0
      %v673 = vadd.f32 0.0, %v672
      %674 = vmatmul.bf16.gmra.mxu0 %v462
      %v675 = vpop.f32.mrf.mxu0
      %v676 = vadd.f32 0.0, %v675
      %v677 = vpop.f32.mrf.mxu0
      %v678 = vadd.f32 0.0, %v677
      %679 = vmatmul.bf16.gmra.mxu0 %v463
      %v680 = vpop.f32.mrf.mxu0
      %v681 = vadd.f32 0.0, %v680
      %v682 = vpop.f32.mrf.mxu0
      %v683 = vadd.f32 0.0, %v682
      %684 = vmatmul.bf16.gmra.mxu0 %v464
      %v685 = vpop.f32.mrf.mxu0
      %v686 = vadd.f32 0.0, %v685
      %v687 = vpop.f32.mrf.mxu0
      %v688 = vadd.f32 0.0, %v687
      %689 = vmatmul.bf16.gmra.mxu0 %v465
      %v690 = vpop.f32.mrf.mxu0
      %v691 = vadd.f32 0.0, %v690
      %v692 = vpop.f32.mrf.mxu0
      %v693 = vadd.f32 0.0, %v692
      %694 = vmatmul.bf16.gmra.mxu0 %v466
      %v695 = vpop.f32.mrf.mxu0
      %v696 = vadd.f32 0.0, %v695
      %v697 = vpop.f32.mrf.mxu0
      %v698 = vadd.f32 0.0, %v697
      %699 = vmatmul.bf16.gmra.mxu0 %v467
      %v700 = vpop.f32.mrf.mxu0
      %v701 = vadd.f32 0.0, %v700
      %v702 = vpop.f32.mrf.mxu0
      %v703 = vadd.f32 0.0, %v702
      %704 = vmatmul.bf16.gmra.mxu0 %v468
      %v705 = vpop.f32.mrf.mxu0
      %v706 = vadd.f32 0.0, %v705
      %v707 = vpop.f32.mrf.mxu0
      %v708 = vadd.f32 0.0, %v707
      %709 = vmatmul.bf16.gmra.mxu0 %v469
      %v710 = vpop.f32.mrf.mxu0
      %v711 = vadd.f32 0.0, %v710
      %v712 = vpop.f32.mrf.mxu0
      %v713 = vadd.f32 0.0, %v712
      %714 = vmatmul.bf16.gmra.mxu0 %v470
      %v715 = vpop.f32.mrf.mxu0
      %v716 = vadd.f32 0.0, %v715
      %v717 = vpop.f32.mrf.mxu0
      %v718 = vadd.f32 0.0, %v717
      %719 = vdwg.mxu0
      %v720 = vpack.c.bf16 %v561, %v561
      %v721 = vpack.c.bf16 %v563, %v563
      %v722 = vpack.c.bf16 %v566, %v566
      %v723 = vpack.c.bf16 %v568, %v568
      %v724 = vpack.c.bf16 %v571, %v571
      %v725 = vpack.c.bf16 %v573, %v573
      %v726 = vpack.c.bf16 %v576, %v576
      %v727 = vpack.c.bf16 %v578, %v578
      %v728 = vpack.c.bf16 %v581, %v581
      %v729 = vpack.c.bf16 %v583, %v583
      %v730 = vpack.c.bf16 %v586, %v586
      %v731 = vpack.c.bf16 %v588, %v588
      %v732 = vpack.c.bf16 %v591, %v591
      %v733 = vpack.c.bf16 %v593, %v593
      %v734 = vpack.c.bf16 %v596, %v596
      %v735 = vpack.c.bf16 %v598, %v598
      %v736 = vpack.c.bf16 %v601, %v601
      %v737 = vpack.c.bf16 %v603, %v603
      %v738 = vpack.c.bf16 %v606, %v606
      %v739 = vpack.c.bf16 %v608, %v608
      %v740 = vpack.c.bf16 %v611, %v611
      %v741 = vpack.c.bf16 %v613, %v613
      %v742 = vpack.c.bf16 %v616, %v616
      %v743 = vpack.c.bf16 %v618, %v618
      %v744 = vpack.c.bf16 %v621, %v621
      %v745 = vpack.c.bf16 %v623, %v623
      %v746 = vpack.c.bf16 %v626, %v626
      %v747 = vpack.c.bf16 %v628, %v628
      %v748 = vpack.c.bf16 %v631, %v631
      %v749 = vpack.c.bf16 %v633, %v633
      %v750 = vpack.c.bf16 %v636, %v636
      %v751 = vpack.c.bf16 %v638, %v638
      %v752 = vpack.c.bf16 %v641, %v641
      %v753 = vpack.c.bf16 %v643, %v643
      %v754 = vpack.c.bf16 %v646, %v646
      %v755 = vpack.c.bf16 %v648, %v648
      %v756 = vpack.c.bf16 %v651, %v651
      %v757 = vpack.c.bf16 %v653, %v653
      %v758 = vpack.c.bf16 %v656, %v656
      %v759 = vpack.c.bf16 %v658, %v658
      %v760 = vpack.c.bf16 %v661, %v661
      %v761 = vpack.c.bf16 %v663, %v663
      %v762 = vpack.c.bf16 %v666, %v666
      %v763 = vpack.c.bf16 %v668, %v668
      %v764 = vpack.c.bf16 %v671, %v671
      %v765 = vpack.c.bf16 %v673, %v673
      %v766 = vpack.c.bf16 %v676, %v676
      %v767 = vpack.c.bf16 %v678, %v678
      %v768 = vpack.c.bf16 %v681, %v681
      %v769 = vpack.c.bf16 %v683, %v683
      %v770 = vpack.c.bf16 %v686, %v686
      %v771 = vpack.c.bf16 %v688, %v688
      %v772 = vpack.c.bf16 %v691, %v691
      %v773 = vpack.c.bf16 %v693, %v693
      %v774 = vpack.c.bf16 %v696, %v696
      %v775 = vpack.c.bf16 %v698, %v698
      %v776 = vpack.c.bf16 %v701, %v701
      %v777 = vpack.c.bf16 %v703, %v703
      %v778 = vpack.c.bf16 %v706, %v706
      %v779 = vpack.c.bf16 %v708, %v708
      %v780 = vpack.c.bf16 %v711, %v711
      %v781 = vpack.c.bf16 %v713, %v713
      %v782 = vpack.c.bf16 %v716, %v716
      %v783 = vpack.c.bf16 %v718, %v718
      %784 = vst [vmem:[%s221] sm:$0xf] %v720
      %785 = vst [vmem:[%s221 + $0x4] sm:$0xf] %v721
      %786 = vst [vmem:[%s221 + $0x8] sm:$0xf] %v722
      %787 = vst [vmem:[%s221 + $0xc] sm:$0xf] %v723
      %788 = vst [vmem:[%s221 + $0x10] sm:$0xf] %v724
      %789 = vst [vmem:[%s221 + $0x14] sm:$0xf] %v725
      %790 = vst [vmem:[%s221 + $0x18] sm:$0xf] %v726
      %791 = vst [vmem:[%s221 + $0x1c] sm:$0xf] %v727
      %792 = vst [vmem:[%s221 + $0x20] sm:$0xf] %v728
      %793 = vst [vmem:[%s221 + $0x24] sm:$0xf] %v729
      %794 = vst [vmem:[%s221 + $0x28] sm:$0xf] %v730
      %795 = vst [vmem:[%s221 + $0x2c] sm:$0xf] %v731
      %796 = vst [vmem:[%s221 + $0x30] sm:$0xf] %v732
      %797 = vst [vmem:[%s221 + $0x34] sm:$0xf] %v733
      %798 = vst [vmem:[%s221 + $0x38] sm:$0xf] %v734
      %799 = vst [vmem:[%s221 + $0x3c] sm:$0xf] %v735
      %800 = vst [vmem:[%s221 + $0x40] sm:$0xf] %v736
      %801 = vst [vmem:[%s221 + $0x44] sm:$0xf] %v737
      %802 = vst [vmem:[%s221 + $0x48] sm:$0xf] %v738
      %803 = vst [vmem:[%s221 + $0x4c] sm:$0xf] %v739
      %804 = vst [vmem:[%s221 + $0x50] sm:$0xf] %v740
      %805 = vst [vmem:[%s221 + $0x54] sm:$0xf] %v741
      %806 = vst [vmem:[%s221 + $0x58] sm:$0xf] %v742
      %807 = vst [vmem:[%s221 + $0x5c] sm:$0xf] %v743
      %808 = vst [vmem:[%s221 + $0x60] sm:$0xf] %v744
      %809 = vst [vmem:[%s221 + $0x64] sm:$0xf] %v745
      %810 = vst [vmem:[%s221 + $0x68] sm:$0xf] %v746
      %811 = vst [vmem:[%s221 + $0x6c] sm:$0xf] %v747
      %812 = vst [vmem:[%s221 + $0x70] sm:$0xf] %v748
      %813 = vst [vmem:[%s221 + $0x74] sm:$0xf] %v749
      %814 = vst [vmem:[%s221 + $0x78] sm:$0xf] %v750
      %815 = vst [vmem:[%s221 + $0x7c] sm:$0xf] %v751
      %816 = vst [vmem:[%s221 + $0x80] sm:$0xf] %v752
      %817 = vst [vmem:[%s221 + $0x84] sm:$0xf] %v753
      %818 = vst [vmem:[%s221 + $0x88] sm:$0xf] %v754
      %819 = vst [vmem:[%s221 + $0x8c] sm:$0xf] %v755
      %820 = vst [vmem:[%s221 + $0x90] sm:$0xf] %v756
      %821 = vst [vmem:[%s221 + $0x94] sm:$0xf] %v757
      %822 = vst [vmem:[%s221 + $0x98] sm:$0xf] %v758
      %823 = vst [vmem:[%s221 + $0x9c] sm:$0xf] %v759
      %824 = vst [vmem:[%s221 + $0xa0] sm:$0xf] %v760
      %825 = vst [vmem:[%s221 + $0xa4] sm:$0xf] %v761
      %826 = vst [vmem:[%s221 + $0xa8] sm:$0xf] %v762
      %827 = vst [vmem:[%s221 + $0xac] sm:$0xf] %v763
      %828 = vst [vmem:[%s221 + $0xb0] sm:$0xf] %v764
      %829 = vst [vmem:[%s221 + $0xb4] sm:$0xf] %v765
      %830 = vst [vmem:[%s221 + $0xb8] sm:$0xf] %v766
      %831 = vst [vmem:[%s221 + $0xbc] sm:$0xf] %v767
      %832 = vst [vmem:[%s221 + $0xc0] sm:$0xf] %v768
      %833 = vst [vmem:[%s221 + $0xc4] sm:$0xf] %v769
      %834 = vst [vmem:[%s221 + $0xc8] sm:$0xf] %v770
      %835 = vst [vmem:[%s221 + $0xcc] sm:$0xf] %v771
      %836 = vst [vmem:[%s221 + $0xd0] sm:$0xf] %v772
      %837 = vst [vmem:[%s221 + $0xd4] sm:$0xf] %v773
      %838 = vst [vmem:[%s221 + $0xd8] sm:$0xf] %v774
      %839 = vst [vmem:[%s221 + $0xdc] sm:$0xf] %v775
      %840 = vst [vmem:[%s221 + $0xe0] sm:$0xf] %v776
      %841 = vst [vmem:[%s221 + $0xe4] sm:$0xf] %v777
      %842 = vst [vmem:[%s221 + $0xe8] sm:$0xf] %v778
      %843 = vst [vmem:[%s221 + $0xec] sm:$0xf] %v779
      %844 = vst [vmem:[%s221 + $0xf0] sm:$0xf] %v780
      %845 = vst [vmem:[%s221 + $0xf4] sm:$0xf] %v781
      %846 = vst [vmem:[%s221 + $0xf8] sm:$0xf] %v782
      %847 = vst [vmem:[%s221 + $0xfc] sm:$0xf] %v783
      %v848 = vadd.f32 %v561, %v563
      %v849 = vadd.f32 %v848, %v566
      %v850 = vadd.f32 %v849, %v568
      %v851 = vadd.f32 %v850, %v571
      %v852 = vadd.f32 %v851, %v573
      %v853 = vadd.f32 %v852, %v576
      %v854 = vadd.f32 %v853, %v578
      %v855 = vadd.f32 %v854, %v581
      %v856 = vadd.f32 %v855, %v583
      %v857 = vadd.f32 %v856, %v586
      %v858 = vadd.f32 %v857, %v588
      %v859 = vadd.f32 %v858, %v591
      %v860 = vadd.f32 %v859, %v593
      %v861 = vadd.f32 %v860, %v596
      %v862 = vadd.f32 %v861, %v598
      %v863 = vadd.f32 %v862, %v601
      %v864 = vadd.f32 %v863, %v603
      %v865 = vadd.f32 %v864, %v606
      %v866 = vadd.f32 %v865, %v608
      %v867 = vadd.f32 %v866, %v611
      %v868 = vadd.f32 %v867, %v613
      %v869 = vadd.f32 %v868, %v616
      %v870 = vadd.f32 %v869, %v618
      %v871 = vadd.f32 %v870, %v621
      %v872 = vadd.f32 %v871, %v623
      %v873 = vadd.f32 %v872, %v626
      %v874 = vadd.f32 %v873, %v628
      %v875 = vadd.f32 %v874, %v631
      %v876 = vadd.f32 %v875, %v633
      %v877 = vadd.f32 %v876, %v636
      %v878 = vadd.f32 %v877, %v638
      %v879 = vadd.f32 %v878, %v641
      %v880 = vadd.f32 %v879, %v643
      %v881 = vadd.f32 %v880, %v646
      %v882 = vadd.f32 %v881, %v648
      %v883 = vadd.f32 %v882, %v651
      %v884 = vadd.f32 %v883, %v653
      %v885 = vadd.f32 %v884, %v656
      %v886 = vadd.f32 %v885, %v658
      %v887 = vadd.f32 %v886, %v661
      %v888 = vadd.f32 %v887, %v663
      %v889 = vadd.f32 %v888, %v666
      %v890 = vadd.f32 %v889, %v668
      %v891 = vadd.f32 %v890, %v671
      %v892 = vadd.f32 %v891, %v673
      %v893 = vadd.f32 %v892, %v676
      %v894 = vadd.f32 %v893, %v678
      %v895 = vadd.f32 %v894, %v681
      %v896 = vadd.f32 %v895, %v683
      %v897 = vadd.f32 %v896, %v686
      %v898 = vadd.f32 %v897, %v688
      %v899 = vadd.f32 %v898, %v691
      %v900 = vadd.f32 %v899, %v693
      %v901 = vadd.f32 %v900, %v696
      %v902 = vadd.f32 %v901, %v698
      %v903 = vadd.f32 %v902, %v701
      %v904 = vadd.f32 %v903, %v703
      %v905 = vadd.f32 %v904, %v706
      %v906 = vadd.f32 %v905, %v708
      %v907 = vadd.f32 %v906, %v711
      %v908 = vadd.f32 %v907, %v713
      %v909 = vadd.f32 %v908, %v716
      %v910 = vadd.f32 %v909, %v718
      %v911 = vrot.slane %v910, 4
      %v912 = vadd.f32 %v910, %v911
      %v913 = vrot.slane %v912, 2
      %v914 = vadd.f32 %v912, %v913
      %v915 = vrot.slane %v914, 1
      %v916 = vadd.f32 %v914, %v915
      %v917 = vmul.f32 %v561, %v561
      %v918 = vmul.f32 %v563, %v563
      %v919 = vmul.f32 %v566, %v566
      %v920 = vmul.f32 %v568, %v568
      %v921 = vmul.f32 %v571, %v571
      %v922 = vmul.f32 %v573, %v573
      %v923 = vmul.f32 %v576, %v576
      %v924 = vmul.f32 %v578, %v578
      %v925 = vmul.f32 %v581, %v581
      %v926 = vmul.f32 %v583, %v583
      %v927 = vmul.f32 %v586, %v586
      %v928 = vmul.f32 %v588, %v588
      %v929 = vmul.f32 %v591, %v591
      %v930 = vmul.f32 %v593, %v593
      %v931 = vmul.f32 %v596, %v596
      %v932 = vmul.f32 %v598, %v598
      %v933 = vmul.f32 %v601, %v601
      %v934 = vmul.f32 %v603, %v603
      %v935 = vmul.f32 %v606, %v606
      %v936 = vmul.f32 %v608, %v608
      %v937 = vmul.f32 %v611, %v611
      %v938 = vmul.f32 %v613, %v613
      %v939 = vmul.f32 %v616, %v616
      %v940 = vmul.f32 %v618, %v618
      %v941 = vmul.f32 %v621, %v621
      %v942 = vmul.f32 %v623, %v623
      %v943 = vmul.f32 %v626, %v626
      %v944 = vmul.f32 %v628, %v628
      %v945 = vmul.f32 %v631, %v631
      %v946 = vmul.f32 %v633, %v633
      %v947 = vmul.f32 %v636, %v636
      %v948 = vmul.f32 %v638, %v638
      %v949 = vmul.f32 %v641, %v641
      %v950 = vmul.f32 %v643, %v643
      %v951 = vmul.f32 %v646, %v646
      %v952 = vmul.f32 %v648, %v648
      %v953 = vmul.f32 %v651, %v651
      %v954 = vmul.f32 %v653, %v653
      %v955 = vmul.f32 %v656, %v656
      %v956 = vmul.f32 %v658, %v658
      %v957 = vmul.f32 %v661, %v661
      %v958 = vmul.f32 %v663, %v663
      %v959 = vmul.f32 %v666, %v666
      %v960 = vmul.f32 %v668, %v668
      %v961 = vmul.f32 %v671, %v671
      %v962 = vmul.f32 %v673, %v673
      %v963 = vmul.f32 %v676, %v676
      %v964 = vmul.f32 %v678, %v678
      %v965 = vmul.f32 %v681, %v681
      %v966 = vmul.f32 %v683, %v683
      %v967 = vmul.f32 %v686, %v686
      %v968 = vmul.f32 %v688, %v688
      %v969 = vmul.f32 %v691, %v691
      %v970 = vmul.f32 %v693, %v693
      %v971 = vmul.f32 %v696, %v696
      %v972 = vmul.f32 %v698, %v698
      %v973 = vmul.f32 %v701, %v701
      %v974 = vmul.f32 %v703, %v703
      %v975 = vmul.f32 %v706, %v706
      %v976 = vmul.f32 %v708, %v708
      %v977 = vmul.f32 %v711, %v711
      %v978 = vmul.f32 %v713, %v713
      %v979 = vmul.f32 %v716, %v716
      %v980 = vmul.f32 %v718, %v718
      %v981 = vadd.f32 %v917, %v918
      %v982 = vadd.f32 %v981, %v919
      %v983 = vadd.f32 %v982, %v920
      %v984 = vadd.f32 %v983, %v921
      %v985 = vadd.f32 %v984, %v922
      %v986 = vadd.f32 %v985, %v923
      %v987 = vadd.f32 %v986, %v924
      %v988 = vadd.f32 %v987, %v925
      %v989 = vadd.f32 %v988, %v926
      %v990 = vadd.f32 %v989, %v927
      %v991 = vadd.f32 %v990, %v928
      %v992 = vadd.f32 %v991, %v929
      %v993 = vadd.f32 %v992, %v930
      %v994 = vadd.f32 %v993, %v931
      %v995 = vadd.f32 %v994, %v932
      %v996 = vadd.f32 %v995, %v933
      %v997 = vadd.f32 %v996, %v934
      %v998 = vadd.f32 %v997, %v935
      %v999 = vadd.f32 %v998, %v936
      %v1000 = vadd.f32 %v999, %v937
      %v1001 = vadd.f32 %v1000, %v938
      %v1002 = vadd.f32 %v1001, %v939
      %v1003 = vadd.f32 %v1002, %v940
      %v1004 = vadd.f32 %v1003, %v941
      %v1005 = vadd.f32 %v1004, %v942
      %v1006 = vadd.f32 %v1005, %v943
      %v1007 = vadd.f32 %v1006, %v944
      %v1008 = vadd.f32 %v1007, %v945
      %v1009 = vadd.f32 %v1008, %v946
      %v1010 = vadd.f32 %v1009, %v947
      %v1011 = vadd.f32 %v1010, %v948
      %v1012 = vadd.f32 %v1011, %v949
      %v1013 = vadd.f32 %v1012, %v950
      %v1014 = vadd.f32 %v1013, %v951
      %v1015 = vadd.f32 %v1014, %v952
      %v1016 = vadd.f32 %v1015, %v953
      %v1017 = vadd.f32 %v1016, %v954
      %v1018 = vadd.f32 %v1017, %v955
      %v1019 = vadd.f32 %v1018, %v956
      %v1020 = vadd.f32 %v1019, %v957
      %v1021 = vadd.f32 %v1020, %v958
      %v1022 = vadd.f32 %v1021, %v959
      %v1023 = vadd.f32 %v1022, %v960
      %v1024 = vadd.f32 %v1023, %v961
      %v1025 = vadd.f32 %v1024, %v962
      %v1026 = vadd.f32 %v1025, %v963
      %v1027 = vadd.f32 %v1026, %v964
      %v1028 = vadd.f32 %v1027, %v965
      %v1029 = vadd.f32 %v1028, %v966
      %v1030 = vadd.f32 %v1029, %v967
      %v1031 = vadd.f32 %v1030, %v968
      %v1032 = vadd.f32 %v1031, %v969
      %v1033 = vadd.f32 %v1032, %v970
      %v1034 = vadd.f32 %v1033, %v971
      %v1035 = vadd.f32 %v1034, %v972
      %v1036 = vadd.f32 %v1035, %v973
      %v1037 = vadd.f32 %v1036, %v974
      %v1038 = vadd.f32 %v1037, %v975
      %v1039 = vadd.f32 %v1038, %v976
      %v1040 = vadd.f32 %v1039, %v977
      %v1041 = vadd.f32 %v1040, %v978
      %v1042 = vadd.f32 %v1041, %v979
      %v1043 = vadd.f32 %v1042, %v980
      %v1044 = vrot.slane %v1043, 4
      %v1045 = vadd.f32 %v1043, %v1044
      %v1046 = vrot.slane %v1045, 2
      %v1047 = vadd.f32 %v1045, %v1046
      %v1048 = vrot.slane %v1047, 1
      %v1049 = vadd.f32 %v1047, %v1048
      %vm1050 = vcmask 1040384
      %v1051 = vsel %vm1050, %v916, %v1049
      %1052 = vst [vmem:[%s228] sm:$0x3] %v1051
      %s1053 = smul.u32 64, %s20
      %p1054 = scmp.lt.s32.totalorder %s19, 1
      %s1055 = scalar_select %p1054, %s19, 1
      %p1056 = scmp.lt.s32.totalorder %s1053, 127
      %s1057 = scalar_select %p1056, %s1053, 127
      %s1058 = smul.addr %s1055, 128
      %s1059 = sadd.s32 %s1057, %s1058
      %s1060 = smul.addr %s1059, 4
      %s1061 = scalar_lea.vmem %s2, %s1060
      %s1062 = smul.u32 %s19, 2
      %s1063 = sadd.s32 %s1062, %s20
      %p1064 = scmp.lt.s32.totalorder %s1063, 3
      %s1065 = scalar_select %p1064, %s1063, 3
      %s1066 = smul.addr %s1065, 2
      %s1067 = scalar_lea.vmem %s3, %s1066
      // Predicated region
      $region29: #{discriminator_forward.13} parent=27 // pred_check
        %p1068 = pneg %p96
      $region30: #{discriminator_forward.13} parent=27 // pred_check_branch
        %1070 = sbr.rel (%p1068) target = $region32
      $region31: #{discriminator_forward.13} parent=27 // pred_region
        %s1071 = smul.u32 64, %s20
      $region32: #{discriminator_forward.13} parent=27 // pred_fallthru
        _
      // Predicated region
      $region33: #{discriminator_forward.13} parent=27 // pred_check
        %p1072 = pneg %p126
      $region34: #{discriminator_forward.13} parent=27 // pred_check_branch
        %1074 = sbr.rel (%p1072) target = $region36
      $region35: #{discriminator_forward.13} parent=27 // pred_region
        %s1075 = smul.u32 %s19, 2
        %s1076 = sadd.s32 %s1075, %s20
      $region36: #{discriminator_forward.13} parent=27 // pred_fallthru
        _
    $region28: #{discriminator_forward.13} parent=5 // pred_fallthru
      _
    %p1077 = scmp.le.s32.totalorder 2, %s10
    // Predicated region
    $region37: #{discriminator_forward.13} parent=5 // pred_check
      %p1078 = pneg %p1077
    $region38: #{discriminator_forward.13} parent=5 // pred_check_branch
      %1080 = sbr.rel (%p1078) target = $region40
    $region39: #{discriminator_forward.13} parent=5 // pred_region
      %s1081 = ssub.s32 %s10, 2
      // Predicated region
      $region41: #{discriminator_forward.13} parent=39 // pred_check
        %p1082 = pneg %p102
      $region42: #{discriminator_forward.13} parent=39 // pred_check_branch
        %1084 = sbr.rel (%p1082) target = $region44
      $region43: #{discriminator_forward.13} parent=39 // pred_region
        %s1085 = smul.u32 64, %s22
        %p1086 = scmp.lt.s32.totalorder %s21, 1
        %s1087 = scalar_select %p1086, %s21, 1
        %p1088 = scmp.lt.s32.totalorder %s1085, 127
        %s1089 = scalar_select %p1088, %s1085, 127
        %s1090 = smul.addr %s1087, 128
        %s1091 = sadd.s32 %s1089, %s1090
        %s1092 = smul.addr %s1091, 4
        %s1093 = scalar_lea.vmem %s2, %s1092
      $region44: #{discriminator_forward.13} parent=39 // pred_fallthru
        _
      // Predicated region
      $region45: #{discriminator_forward.13} parent=39 // pred_check
        %p1094 = pneg %p132
      $region46: #{discriminator_forward.13} parent=39 // pred_check_branch
        %1096 = sbr.rel (%p1094) target = $region48
      $region47: #{discriminator_forward.13} parent=39 // pred_region
        %s1097 = smul.u32 %s21, 2
        %s1098 = sadd.s32 %s1097, %s22
        %p1099 = scmp.lt.s32.totalorder %s1098, 3
        %s1100 = scalar_select %p1099, %s1098, 3
        %s1101 = smul.addr %s1100, 2
        %s1102 = scalar_lea.vmem %s3, %s1101
      $region48: #{discriminator_forward.13} parent=39 // pred_fallthru
        _
    $region40: #{discriminator_forward.13} parent=5 // pred_fallthru
      _
  $region6: #{discriminator_forward.13} parent=0 // loop_footer
    %s14 = sadd.s32 1, %s10
  $region7: #{discriminator_forward.13} parent=0 // loop_footer_branch
    %9 = sbr.rel target = $region3
  $region8: #{discriminator_forward.13} parent=0 // loop_exit
    _

// kernel: discriminator_forward.16
$region0: #{discriminator_forward.16}
  #allocation0 [shape = 'u32[]', space=smem, size = 0x4, offset = 0x4, fixed_abs, tag = 'smem constant byte address 0x4 - core index']
  #allocation1 [shape = 'u32[72,128]{1,0:T(1,128)}', space=vmem, size = 0x9000, scoped, tag = 'internal scratch']
  %s0 = inlined_call_operand.vmem [shape: bf16[2,256,128], index: 0, kind: input, shape index: {}]
  %s1 = inlined_call_operand.vmem [shape: f32[2,2,128], index: 1, kind: input, shape index: {}]
  %s2 = inlined_call_operand.vmem [shape: bf16[2,256,128], index: 2, kind: output, shape index: {}]
  %s3 = sld [smem:[#allocation0]]
  $region41: #{discriminator_forward.16} parent=0
    _
  %s5 = ssub.s32 1, %s3
  %s6 = scalar_select 0, %s5, %s3
  loop: start=0, step=1, limit=4
  $region2: #{discriminator_forward.16} parent=0 // loop_pre_header
    _
  $region3: #{discriminator_forward.16} parent=0 // loop_header
    %s8 = sphi 0, %s12
    %p9 = scmp.ge.s32.totalorder %s8, 4
    %s15 = sphi 0, %s27
    %s16 = sphi 0, %s23
    %s17 = sphi 0, %s15
    %s18 = sphi 0, %s16
    %s19 = sphi 0, %s17
    %s20 = sphi 0, %s18
    %s32 = sphi 0, %s34
    %s35 = sphi 0, %s32
    %s36 = sphi 0, %s35
    %s52 = sphi 0, %s36
    %s58 = sphi 0, %s60
    %s61 = sphi 0, %s58
    %s62 = sphi 0, %s61
    %s78 = sphi 0, %s62
    %s86 = sphi 0, %s88
    %s89 = sphi 0, %s86
    %s90 = sphi 0, %s89
    %s106 = sphi 0, %s90
  $region4: #{discriminator_forward.16} parent=0 // loop_header_branch
    %11 = sbr.rel (%p9) target = $region8
  $region5: #{discriminator_forward.16} parent=0 // loop_body
    %s13 = ssub.s32 %s8, 1
    %s14 = ssub.s32 %s8, 2
    %s21 = sadd.s32 1, %s16
    %p22 = scmp.ge.s32.totalorder %s21, 1
    %s23 = scalar_select %p22, 0, %s21
    %s24 = sadd.s32 1, %s15
    %s25 = scalar_select %p22, %s24, %s15
    %p26 = scmp.ge.s32.totalorder %s25, 2
    %s27 = scalar_select %p26, 0, %s25
    %s28 = ssub.s32 %s15, %s27
    %s29 = ssub.s32 %s16, %s23
    %s30 = sor.u32 %s28, %s29
    %p31 = scmp.eq.s32.totalorder %s30, 0
    %s33 = sadd.s32 %s32, 1
    %s34 = scalar_select %p31, %s32, %s33
    %p37 = pneg %p31
    %p38 = scmp.eq.s32.totalorder %s8, 1
    %p39 = por %p37, %p38
    %p40 = scmp.ne.s32.totalorder %s32, %s35
    %p41 = scmp.eq.s32.totalorder %s8, 0
    %p42 = por %p40, %p41
    %p43 = scmp.ne.s32.totalorder %s32, %s35
    %p44 = scmp.eq.s32.totalorder %s13, 1
    %p45 = por %p43, %p44
    %p46 = scmp.ne.s32.totalorder %s35, %s36
    %p47 = scmp.eq.s32.totalorder %s13, 0
    %p48 = por %p46, %p47
    %p49 = scmp.ne.s32.totalorder %s35, %s36
    %p50 = scmp.eq.s32.totalorder %s14, 1
    %p51 = por %p49, %p50
    %p53 = scmp.ne.s32.totalorder %s36, %s52
    %p54 = scmp.eq.s32.totalorder %s14, 0
    %p55 = por %p53, %p54
    %s56 = ssub.s32 %s15, %s27
    %p57 = scmp.eq.s32.totalorder %s56, 0
    %s59 = sadd.s32 %s58, 1
    %s60 = scalar_select %p57, %s58, %s59
    %p63 = pneg %p57
    %p64 = scmp.eq.s32.totalorder %s8, 1
    %p65 = por %p63, %p64
    %p66 = scmp.ne.s32.totalorder %s58, %s61
    %p67 = scmp.eq.s32.totalorder %s8, 0
    %p68 = por %p66, %p67
    %p69 = scmp.ne.s32.totalorder %s58, %s61
    %p70 = scmp.eq.s32.totalorder %s13, 1
    %p71 = por %p69, %p70
    %p72 = scmp.ne.s32.totalorder %s61, %s62
    %p73 = scmp.eq.s32.totalorder %s13, 0
    %p74 = por %p72, %p73
    %p75 = scmp.ne.s32.totalorder %s61, %s62
    %p76 = scmp.eq.s32.totalorder %s14, 1
    %p77 = por %p75, %p76
    %p79 = scmp.ne.s32.totalorder %s62, %s78
    %p80 = scmp.eq.s32.totalorder %s14, 0
    %p81 = por %p79, %p80
    %s82 = ssub.s32 %s15, %s27
    %s83 = ssub.s32 %s16, %s23
    %s84 = sor.u32 %s82, %s83
    %p85 = scmp.eq.s32.totalorder %s84, 0
    %s87 = sadd.s32 %s86, 1
    %s88 = scalar_select %p85, %s86, %s87
    %p91 = pneg %p85
    %p92 = scmp.eq.s32.totalorder %s8, 1
    %p93 = por %p91, %p92
    %p94 = scmp.ne.s32.totalorder %s86, %s89
    %p95 = scmp.eq.s32.totalorder %s8, 0
    %p96 = por %p94, %p95
    %p97 = scmp.ne.s32.totalorder %s86, %s89
    %p98 = scmp.eq.s32.totalorder %s13, 1
    %p99 = por %p97, %p98
    %p100 = scmp.ne.s32.totalorder %s89, %s90
    %p101 = scmp.eq.s32.totalorder %s13, 0
    %p102 = por %p100, %p101
    %p103 = scmp.ne.s32.totalorder %s89, %s90
    %p104 = scmp.eq.s32.totalorder %s14, 1
    %p105 = por %p103, %p104
    %p107 = scmp.ne.s32.totalorder %s90, %s106
    %p108 = scmp.eq.s32.totalorder %s14, 0
    %p109 = por %p107, %p108
    %p110 = scmp.le.s32.totalorder 1, %s8
    %p111 = scmp.lt.s32.totalorder %s8, 3
    %p112 = pnand %p110, %p111
    %p113 = pneg %p112
    // Predicated region
    $region9: #{discriminator_forward.16} parent=5 // pred_check
      _
    $region10: #{discriminator_forward.16} parent=5 // pred_check_branch
      %115 = sbr.rel (%p112) target = $region12
    $region11: #{discriminator_forward.16} parent=5 // pred_region
      %s116 = ssub.s32 %s8, 1
    $region12: #{discriminator_forward.16} parent=5 // pred_fallthru
      _
    %p117 = scmp.lt.s32.totalorder %s8, 2
    // Predicated region
    $region13: #{discriminator_forward.16} parent=5 // pred_check
      %p118 = pneg %p117
    $region14: #{discriminator_forward.16} parent=5 // pred_check_branch
      %120 = sbr.rel (%p118) target = $region16
    $region15: #{discriminator_forward.16} parent=5 // pred_region
      // Predicated region
      $region17: #{discriminator_forward.16} parent=15 // pred_check
        %p121 = pneg %p42
      $region18: #{discriminator_forward.16} parent=15 // pred_check_branch
        %123 = sbr.rel (%p121) target = $region20
      $region19: #{discriminator_forward.16} parent=15 // pred_region
        %s124 = smul.u32 32, %s16
        %p125 = scmp.lt.s32.totalorder %s15, 1
        %s126 = scalar_select %p125, %s15, 1
        %p127 = scmp.lt.s32.totalorder %s124, 31
        %s128 = scalar_select %p127, %s124, 31
        %s129 = smul.addr %s126, 32
        %s130 = sadd.s32 %s128, %s129
        %s131 = smul.addr %s130, 4
        %s132 = scalar_lea.vmem %s0, %s131
        %s133 = smul.u32 32, %s16
      $region20: #{discriminator_forward.16} parent=15 // pred_fallthru
        _
      // Predicated region
      $region21: #{discriminator_forward.16} parent=15 // pred_check
        %p134 = pneg %p68
      $region22: #{discriminator_forward.16} parent=15 // pred_check_branch
        %136 = sbr.rel (%p134) target = $region24
      $region23: #{discriminator_forward.16} parent=15 // pred_region
        %p137 = scmp.lt.s32.totalorder %s15, 1
        %s138 = scalar_select %p137, %s15, 1
        %s139 = smul.addr %s138, 2
        %s140 = scalar_lea.vmem %s1, %s139
      $region24: #{discriminator_forward.16} parent=15 // pred_fallthru
        _
    $region16: #{discriminator_forward.16} parent=5 // pred_fallthru
      _
    %p141 = scmp.le.s32.totalorder 1, %s8
    %p142 = scmp.lt.s32.totalorder %s8, 3
    %p143 = pnand %p141, %p142
    %p144 = pneg %p143
    // Predicated region
    $region25: #{discriminator_forward.16} parent=5 // pred_check
      _
    $region26: #{discriminator_forward.16} parent=5 // pred_check_branch
      %146 = sbr.rel (%p143) target = $region28
    $region27: #{discriminator_forward.16} parent=5 // pred_region
      %s147 = ssub.s32 %s8, 1
      %s148 = smul.u32 32, %s18
      %p149 = scmp.lt.s32.totalorder %s17, 1
      %s150 = scalar_select %p149, %s17, 1
      %p151 = scmp.lt.s32.totalorder %s148, 31
      %s152 = scalar_select %p151, %s148, 31
      %s153 = smul.addr %s150, 32
      %s154 = sadd.s32 %s152, %s153
      %s155 = smul.addr %s154, 4
      %s156 = scalar_lea.vmem %s0, %s155
      %p157 = pneg %p48
      %p158 = pneg %p45
      %p159 = scmp.lt.s32.totalorder %s17, 1
      %s160 = scalar_select %p159, %s17, 1
      %s161 = smul.addr %s160, 2
      %s162 = scalar_lea.vmem %s1, %s161
      %p163 = pneg %p74
      %p164 = pneg %p71
      %p165 = pneg %p102
      %p166 = pneg %p99
      %s167 = smul.u32 32, %s18
      %p168 = scmp.lt.s32.totalorder %s17, 1
      %s169 = scalar_select %p168, %s17, 1
      %p170 = scmp.lt.s32.totalorder %s167, 31
      %s171 = scalar_select %p170, %s167, 31
      %s172 = smul.addr %s169, 32
      %s173 = sadd.s32 %s171, %s172
      %s174 = smul.addr %s173, 4
      %s175 = scalar_lea.vmem %s2, %s174
      %s176 = smul.u32 32, %s18
      %p177 = scmp.lt.s32.totalorder %s17, 1
      %s178 = scalar_select %p177, %s17, 1
      %p179 = scmp.lt.s32.totalorder %s176, 31
      %s180 = scalar_select %p179, %s176, 31
      %s181 = smul.addr %s178, 32
      %s182 = sadd.s32 %s180, %s181
      %s183 = smul.addr %s182, 4
      %s184 = scalar_lea.vmem %s0, %s183
      %s185 = smul.u32 32, %s18
      %p186 = scmp.lt.s32.totalorder %s17, 1
      %s187 = scalar_select %p186, %s17, 1
      %s188 = smul.addr %s187, 2
      %s189 = scalar_lea.vmem %s1, %s188
      %s190 = smul.u32 32, %s18
      %p191 = scmp.lt.s32.totalorder %s17, 1
      %s192 = scalar_select %p191, %s17, 1
      %p193 = scmp.lt.s32.totalorder %s190, 31
      %s194 = scalar_select %p193, %s190, 31
      %s195 = smul.addr %s192, 32
      %s196 = sadd.s32 %s194, %s195
      %s197 = smul.addr %s196, 4
      %s198 = scalar_lea.vmem %s2, %s197
      %s199 = smul.u32 32, %s18
      %v200 = vld [vmem:[%s184] sm:$0xf]
      %v201 = vld [vmem:[%s184 + $0x4] sm:$0xf]
      %v202 = vld [vmem:[%s184 + $0x8] sm:$0xf]
      %v203 = vld [vmem:[%s184 + $0xc] sm:$0xf]
      %v204 = vld [vmem:[%s184 + $0x10] sm:$0xf]
      %v205 = vld [vmem:[%s184 + $0x14] sm:$0xf]
      %v206 = vld [vmem:[%s184 + $0x18] sm:$0xf]
      %v207 = vld [vmem:[%s184 + $0x1c] sm:$0xf]
      %v208 = vld [vmem:[%s184 + $0x20] sm:$0xf]
      %v209 = vld [vmem:[%s184 + $0x24] sm:$0xf]
      %v210 = vld [vmem:[%s184 + $0x28] sm:$0xf]
      %v211 = vld [vmem:[%s184 + $0x2c] sm:$0xf]
      %v212 = vld [vmem:[%s184 + $0x30] sm:$0xf]
      %v213 = vld [vmem:[%s184 + $0x34] sm:$0xf]
      %v214 = vld [vmem:[%s184 + $0x38] sm:$0xf]
      %v215 = vld [vmem:[%s184 + $0x3c] sm:$0xf]
      %v216 = vld [vmem:[%s184 + $0x40] sm:$0xf]
      %v217 = vld [vmem:[%s184 + $0x44] sm:$0xf]
      %v218 = vld [vmem:[%s184 + $0x48] sm:$0xf]
      %v219 = vld [vmem:[%s184 + $0x4c] sm:$0xf]
      %v220 = vld [vmem:[%s184 + $0x50] sm:$0xf]
      %v221 = vld [vmem:[%s184 + $0x54] sm:$0xf]
      %v222 = vld [vmem:[%s184 + $0x58] sm:$0xf]
      %v223 = vld [vmem:[%s184 + $0x5c] sm:$0xf]
      %v224 = vld [vmem:[%s184 + $0x60] sm:$0xf]
      %v225 = vld [vmem:[%s184 + $0x64] sm:$0xf]
      %v226 = vld [vmem:[%s184 + $0x68] sm:$0xf]
      %v227 = vld [vmem:[%s184 + $0x6c] sm:$0xf]
      %v228 = vld [vmem:[%s184 + $0x70] sm:$0xf]
      %v229 = vld [vmem:[%s184 + $0x74] sm:$0xf]
      %v230 = vld [vmem:[%s184 + $0x78] sm:$0xf]
      %v231 = vld [vmem:[%s184 + $0x7c] sm:$0xf]
      %v232 = vunpack.c.l.bf16 %v200
      %v233 = vunpack.c.l.bf16 %v201
      %v234 = vunpack.c.l.bf16 %v202
      %v235 = vunpack.c.l.bf16 %v203
      %v236 = vunpack.c.l.bf16 %v204
      %v237 = vunpack.c.l.bf16 %v205
      %v238 = vunpack.c.l.bf16 %v206
      %v239 = vunpack.c.l.bf16 %v207
      %v240 = vunpack.c.l.bf16 %v208
      %v241 = vunpack.c.l.bf16 %v209
      %v242 = vunpack.c.l.bf16 %v210
      %v243 = vunpack.c.l.bf16 %v211
      %v244 = vunpack.c.l.bf16 %v212
      %v245 = vunpack.c.l.bf16 %v213
      %v246 = vunpack.c.l.bf16 %v214
      %v247 = vunpack.c.l.bf16 %v215
      %v248 = vunpack.c.l.bf16 %v216
      %v249 = vunpack.c.l.bf16 %v217
      %v250 = vunpack.c.l.bf16 %v218
      %v251 = vunpack.c.l.bf16 %v219
      %v252 = vunpack.c.l.bf16 %v220
      %v253 = vunpack.c.l.bf16 %v221
      %v254 = vunpack.c.l.bf16 %v222
      %v255 = vunpack.c.l.bf16 %v223
      %v256 = vunpack.c.l.bf16 %v224
      %v257 = vunpack.c.l.bf16 %v225
      %v258 = vunpack.c.l.bf16 %v226
      %v259 = vunpack.c.l.bf16 %v227
      %v260 = vunpack.c.l.bf16 %v228
      %v261 = vunpack.c.l.bf16 %v229
      %v262 = vunpack.c.l.bf16 %v230
      %v263 = vunpack.c.l.bf16 %v231
      %v264 = vld [vmem:[%s189] sm:$0x3]
      %v265 = vperm.slane %v264, 0
      %v266 = vmul.f32 %v232, %v265
      %v267 = vmul.f32 %v233, %v265
      %v268 = vmul.f32 %v234, %v265
      %v269 = vmul.f32 %v235, %v265
      %v270 = vmul.f32 %v236, %v265
      %v271 = vmul.f32 %v237, %v265
      %v272 = vmul.f32 %v238, %v265
      %v273 = vmul.f32 %v239, %v265
      %v274 = vmul.f32 %v240, %v265
      %v275 = vmul.f32 %v241, %v265
      %v276 = vmul.f32 %v242, %v265
      %v277 = vmul.f32 %v243, %v265
      %v278 = vmul.f32 %v244, %v265
      %v279 = vmul.f32 %v245, %v265
      %v280 = vmul.f32 %v246, %v265
      %v281 = vmul.f32 %v247, %v265
      %v282 = vmul.f32 %v248, %v265
      %v283 = vmul.f32 %v249, %v265
      %v284 = vmul.f32 %v250, %v265
      %v285 = vmul.f32 %v251, %v265
      %v286 = vmul.f32 %v252, %v265
      %v287 = vmul.f32 %v253, %v265
      %v288 = vmul.f32 %v254, %v265
      %v289 = vmul.f32 %v255, %v265
      %v290 = vmul.f32 %v256, %v265
      %v291 = vmul.f32 %v257, %v265
      %v292 = vmul.f32 %v258, %v265
      %v293 = vmul.f32 %v259, %v265
      %v294 = vmul.f32 %v260, %v265
      %v295 = vmul.f32 %v261, %v265
      %v296 = vmul.f32 %v262, %v265
      %v297 = vmul.f32 %v263, %v265
      %v298 = vperm.slane %v264, 1
      %v299 = vadd.f32 %v266, %v298
      %v300 = vadd.f32 %v267, %v298
      %v301 = vadd.f32 %v268, %v298
      %v302 = vadd.f32 %v269, %v298
      %v303 = vadd.f32 %v270, %v298
      %v304 = vadd.f32 %v271, %v298
      %v305 = vadd.f32 %v272, %v298
      %v306 = vadd.f32 %v273, %v298
      %v307 = vadd.f32 %v274, %v298
      %v308 = vadd.f32 %v275, %v298
      %v309 = vadd.f32 %v276, %v298
      %v310 = vadd.f32 %v277, %v298
      %v311 = vadd.f32 %v278, %v298
      %v312 = vadd.f32 %v279, %v298
      %v313 = vadd.f32 %v280, %v298
      %v314 = vadd.f32 %v281, %v298
      %v315 = vadd.f32 %v282, %v298
      %v316 = vadd.f32 %v283, %v298
      %v317 = vadd.f32 %v284, %v298
      %v318 = vadd.f32 %v285, %v298
      %v319 = vadd.f32 %v286, %v298
      %v320 = vadd.f32 %v287, %v298
      %v321 = vadd.f32 %v288, %v298
      %v322 = vadd.f32 %v289, %v298
      %v323 = vadd.f32 %v290, %v298
      %v324 = vadd.f32 %v291, %v298
      %v325 = vadd.f32 %v292, %v298
      %v326 = vadd.f32 %v293, %v298
      %v327 = vadd.f32 %v294, %v298
      %v328 = vadd.f32 %v295, %v298
      %v329 = vadd.f32 %v296, %v298
      %v330 = vadd.f32 %v297, %v298
      %vm331 = vcmp.gt.f32.partialorder %v299, 0.0
      %vm332 = vcmp.gt.f32.partialorder %v300, 0.0
      %vm333 = vcmp.gt.f32.partialorder %v301, 0.0
      %vm334 = vcmp.gt.f32.partialorder %v302, 0.0
      %vm335 = vcmp.gt.f32.partialorder %v303, 0.0
      %vm336 = vcmp.gt.f32.partialorder %v304, 0.0
      %vm337 = vcmp.gt.f32.partialorder %v305, 0.0
      %vm338 = vcmp.gt.f32.partialorder %v306, 0.0
      %vm339 = vcmp.gt.f32.partialorder %v307, 0.0
      %vm340 = vcmp.gt.f32.partialorder %v308, 0.0
      %vm341 = vcmp.gt.f32.partialorder %v309, 0.0
      %vm342 = vcmp.gt.f32.partialorder %v310, 0.0
      %vm343 = vcmp.gt.f32.partialorder %v311, 0.0
      %vm344 = vcmp.gt.f32.partialorder %v312, 0.0
      %vm345 = vcmp.gt.f32.partialorder %v313, 0.0
      %vm346 = vcmp.gt.f32.partialorder %v314, 0.0
      %vm347 = vcmp.gt.f32.partialorder %v315, 0.0
      %vm348 = vcmp.gt.f32.partialorder %v316, 0.0
      %vm349 = vcmp.gt.f32.partialorder %v317, 0.0
      %vm350 = vcmp.gt.f32.partialorder %v318, 0.0
      %vm351 = vcmp.gt.f32.partialorder %v319, 0.0
      %vm352 = vcmp.gt.f32.partialorder %v320, 0.0
      %vm353 = vcmp.gt.f32.partialorder %v321, 0.0
      %vm354 = vcmp.gt.f32.partialorder %v322, 0.0
      %vm355 = vcmp.gt.f32.partialorder %v323, 0.0
      %vm356 = vcmp.gt.f32.partialorder %v324, 0.0
      %vm357 = vcmp.gt.f32.partialorder %v325, 0.0
      %vm358 = vcmp.gt.f32.partialorder %v326, 0.0
      %vm359 = vcmp.gt.f32.partialorder %v327, 0.0
      %vm360 = vcmp.gt.f32.partialorder %v328, 0.0
      %vm361 = vcmp.gt.f32.partialorder %v329, 0.0
      %vm362 = vcmp.gt.f32.partialorder %v330, 0.0
      %v363 = vmul.f32 %v299, 0.2
      %v364 = vmul.f32 %v300, 0.2
      %v365 = vmul.f32 %v301, 0.2
      %v366 = vmul.f32 %v302, 0.2
      %v367 = vmul.f32 %v303, 0.2
      %v368 = vmul.f32 %v304, 0.2
      %v369 = vmul.f32 %v305, 0.2
      %v370 = vmul.f32 %v306, 0.2
      %v371 = vmul.f32 %v307, 0.2
      %v372 = vmul.f32 %v308, 0.2
      %v373 = vmul.f32 %v309, 0.2
      %v374 = vmul.f32 %v310, 0.2
      %v375 = vmul.f32 %v311, 0.2
      %v376 = vmul.f32 %v312, 0.2
      %v377 = vmul.f32 %v313, 0.2
      %v378 = vmul.f32 %v314, 0.2
      %v379 = vmul.f32 %v315, 0.2
      %v380 = vmul.f32 %v316, 0.2
      %v381 = vmul.f32 %v317, 0.2
      %v382 = vmul.f32 %v318, 0.2
      %v383 = vmul.f32 %v319, 0.2
      %v384 = vmul.f32 %v320, 0.2
      %v385 = vmul.f32 %v321, 0.2
      %v386 = vmul.f32 %v322, 0.2
      %v387 = vmul.f32 %v323, 0.2
      %v388 = vmul.f32 %v324, 0.2
      %v389 = vmul.f32 %v325, 0.2
      %v390 = vmul.f32 %v326, 0.2
      %v391 = vmul.f32 %v327, 0.2
      %v392 = vmul.f32 %v328, 0.2
      %v393 = vmul.f32 %v329, 0.2
      %v394 = vmul.f32 %v330, 0.2
      %v395 = vsel %vm331, %v299, %v363
      %v396 = vsel %vm332, %v300, %v364
      %v397 = vsel %vm333, %v301, %v365
      %v398 = vsel %vm334, %v302, %v366
      %v399 = vsel %vm335, %v303, %v367
      %v400 = vsel %vm336, %v304, %v368
      %v401 = vsel %vm337, %v305, %v369
      %v402 = vsel %vm338, %v306, %v370
      %v403 = vsel %vm339, %v307, %v371
      %v404 = vsel %vm340, %v308, %v372
      %v405 = vsel %vm341, %v309, %v373
      %v406 = vsel %vm342, %v310, %v374
      %v407 = vsel %vm343, %v311, %v375
      %v408 = vsel %vm344, %v312, %v376
      %v409 = vsel %vm345, %v313, %v377
      %v410 = vsel %vm346, %v314, %v378
      %v411 = vsel %vm347, %v315, %v379
      %v412 = vsel %vm348, %v316, %v380
      %v413 = vsel %vm349, %v317, %v381
      %v414 = vsel %vm350, %v318, %v382
      %v415 = vsel %vm351, %v319, %v383
      %v416 = vsel %vm352, %v320, %v384
      %v417 = vsel %vm353, %v321, %v385
      %v418 = vsel %vm354, %v322, %v386
      %v419 = vsel %vm355, %v323, %v387
      %v420 = vsel %vm356, %v324, %v388
      %v421 = vsel %vm357, %v325, %v389
      %v422 = vsel %vm358, %v326, %v390
      %v423 = vsel %vm359, %v327, %v391
      %v424 = vsel %vm360, %v328, %v392
      %v425 = vsel %vm361, %v329, %v393
      %v426 = vsel %vm362, %v330, %v394
      %v427 = vpack.c.bf16 %v395, %v395
      %v428 = vpack.c.bf16 %v396, %v396
      %v429 = vpack.c.bf16 %v397, %v397
      %v430 = vpack.c.bf16 %v398, %v398
      %v431 = vpack.c.bf16 %v399, %v399
      %v432 = vpack.c.bf16 %v400, %v400
      %v433 = vpack.c.bf16 %v401, %v401
      %v434 = vpack.c.bf16 %v402, %v402
      %v435 = vpack.c.bf16 %v403, %v403
      %v436 = vpack.c.bf16 %v404, %v404
      %v437 = vpack.c.bf16 %v405, %v405
      %v438 = vpack.c.bf16 %v406, %v406
      %v439 = vpack.c.bf16 %v407, %v407
      %v440 = vpack.c.bf16 %v408, %v408
      %v441 = vpack.c.bf16 %v409, %v409
      %v442 = vpack.c.bf16 %v410, %v410
      %v443 = vpack.c.bf16 %v411, %v411
      %v444 = vpack.c.bf16 %v412, %v412
      %v445 = vpack.c.bf16 %v413, %v413
      %v446 = vpack.c.bf16 %v414, %v414
      %v447 = vpack.c.bf16 %v415, %v415
      %v448 = vpack.c.bf16 %v416, %v416
      %v449 = vpack.c.bf16 %v417, %v417
      %v450 = vpack.c.bf16 %v418, %v418
      %v451 = vpack.c.bf16 %v419, %v419
      %v452 = vpack.c.bf16 %v420, %v420
      %v453 = vpack.c.bf16 %v421, %v421
      %v454 = vpack.c.bf16 %v422, %v422
      %v455 = vpack.c.bf16 %v423, %v423
      %v456 = vpack.c.bf16 %v424, %v424
      %v457 = vpack.c.bf16 %v425, %v425
      %v458 = vpack.c.bf16 %v426, %v426
      %459 = vst [vmem:[%s198] sm:$0xf] %v427
      %460 = vst [vmem:[%s198 + $0x4] sm:$0xf] %v428
      %461 = vst [vmem:[%s198 + $0x8] sm:$0xf] %v429
      %462 = vst [vmem:[%s198 + $0xc] sm:$0xf] %v430
      %463 = vst [vmem:[%s198 + $0x10] sm:$0xf] %v431
      %464 = vst [vmem:[%s198 + $0x14] sm:$0xf] %v432
      %465 = vst [vmem:[%s198 + $0x18] sm:$0xf] %v433
      %466 = vst [vmem:[%s198 + $0x1c] sm:$0xf] %v434
      %467 = vst [vmem:[%s198 + $0x20] sm:$0xf] %v435
      %468 = vst [vmem:[%s198 + $0x24] sm:$0xf] %v436
      %469 = vst [vmem:[%s198 + $0x28] sm:$0xf] %v437
      %470 = vst [vmem:[%s198 + $0x2c] sm:$0xf] %v438
      %471 = vst [vmem:[%s198 + $0x30] sm:$0xf] %v439
      %472 = vst [vmem:[%s198 + $0x34] sm:$0xf] %v440
      %473 = vst [vmem:[%s198 + $0x38] sm:$0xf] %v441
      %474 = vst [vmem:[%s198 + $0x3c] sm:$0xf] %v442
      %475 = vst [vmem:[%s198 + $0x40] sm:$0xf] %v443
      %476 = vst [vmem:[%s198 + $0x44] sm:$0xf] %v444
      %477 = vst [vmem:[%s198 + $0x48] sm:$0xf] %v445
      %478 = vst [vmem:[%s198 + $0x4c] sm:$0xf] %v446
      %479 = vst [vmem:[%s198 + $0x50] sm:$0xf] %v447
      %480 = vst [vmem:[%s198 + $0x54] sm:$0xf] %v448
      %481 = vst [vmem:[%s198 + $0x58] sm:$0xf] %v449
      %482 = vst [vmem:[%s198 + $0x5c] sm:$0xf] %v450
      %483 = vst [vmem:[%s198 + $0x60] sm:$0xf] %v451
      %484 = vst [vmem:[%s198 + $0x64] sm:$0xf] %v452
      %485 = vst [vmem:[%s198 + $0x68] sm:$0xf] %v453
      %486 = vst [vmem:[%s198 + $0x6c] sm:$0xf] %v454
      %487 = vst [vmem:[%s198 + $0x70] sm:$0xf] %v455
      %488 = vst [vmem:[%s198 + $0x74] sm:$0xf] %v456
      %489 = vst [vmem:[%s198 + $0x78] sm:$0xf] %v457
      %490 = vst [vmem:[%s198 + $0x7c] sm:$0xf] %v458
      %s491 = smul.u32 32, %s18
      %p492 = scmp.lt.s32.totalorder %s17, 1
      %s493 = scalar_select %p492, %s17, 1
      %p494 = scmp.lt.s32.totalorder %s491, 31
      %s495 = scalar_select %p494, %s491, 31
      %s496 = smul.addr %s493, 32
      %s497 = sadd.s32 %s495, %s496
      %s498 = smul.addr %s497, 4
      %s499 = scalar_lea.vmem %s2, %s498
      // Predicated region
      $region29: #{discriminator_forward.16} parent=27 // pred_check
        %p500 = pneg %p99
      $region30: #{discriminator_forward.16} parent=27 // pred_check_branch
        %502 = sbr.rel (%p500) target = $region32
      $region31: #{discriminator_forward.16} parent=27 // pred_region
        %s503 = smul.u32 32, %s18
      $region32: #{discriminator_forward.16} parent=27 // pred_fallthru
        _
    $region28: #{discriminator_forward.16} parent=5 // pred_fallthru
      _
    %p504 = scmp.le.s32.totalorder 2, %s8
    // Predicated region
    $region33: #{discriminator_forward.16} parent=5 // pred_check
      %p505 = pneg %p504
    $region34: #{discriminator_forward.16} parent=5 // pred_check_branch
      %507 = sbr.rel (%p505) target = $region36
    $region35: #{discriminator_forward.16} parent=5 // pred_region
      %s508 = ssub.s32 %s8, 2
      // Predicated region
      $region37: #{discriminator_forward.16} parent=35 // pred_check
        %p509 = pneg %p105
      $region38: #{discriminator_forward.16} parent=35 // pred_check_branch
        %511 = sbr.rel (%p509) target = $region40
      $region39: #{discriminator_forward.16} parent=35 // pred_region
        %s512 = smul.u32 32, %s20
        %p513 = scmp.lt.s32.totalorder %s19, 1
        %s514 = scalar_select %p513, %s19, 1
        %p515 = scmp.lt.s32.totalorder %s512, 31
        %s516 = scalar_select %p515, %s512, 31
        %s517 = smul.addr %s514, 32
        %s518 = sadd.s32 %s516, %s517
        %s519 = smul.addr %s518, 4
        %s520 = scalar_lea.vmem %s2, %s519
      $region40: #{discriminator_forward.16} parent=35 // pred_fallthru
        _
    $region36: #{discriminator_forward.16} parent=5 // pred_fallthru
      _
  $region6: #{discriminator_forward.16} parent=0 // loop_footer
    %s12 = sadd.s32 1, %s8
  $region7: #{discriminator_forward.16} parent=0 // loop_footer_branch
    %7 = sbr.rel target = $region3
  $region8: #{discriminator_forward.16} parent=0 // loop_exit
    _

// kernel: discriminator_forward.15
$region0: #{discriminator_forward.15}
  #allocation0 [shape = 'u32[]', space=smem, size = 0x4, offset = 0x4, fixed_abs, tag = 'smem constant byte address 0x4 - core index']
  #allocation1 [shape = 'u32[72,128]{1,0:T(1,128)}', space=vmem, size = 0x9000, scoped, tag = 'internal scratch']
  %s0 = inlined_call_operand.vmem [shape: bf16[2,256,256], index: 0, kind: input, shape index: {}]
  %s1 = inlined_call_operand.vmem [shape: bf16[256,128], index: 1, kind: input, shape index: {}]
  %s2 = inlined_call_operand.vmem [shape: bf16[2,256,128], index: 2, kind: output, shape index: {0}]
  %s3 = inlined_call_operand.vmem [shape: f32[2,2,128], index: 3, kind: output, shape index: {1}]
  %4 = xla_tuple %s2, %s3
  %s5 = sld [smem:[#allocation0]]
  $region49: #{discriminator_forward.15} parent=0
    _
  %s7 = ssub.s32 1, %s5
  %s8 = scalar_select 0, %s7, %s5
  loop: start=0, step=1, limit=4
  $region2: #{discriminator_forward.15} parent=0 // loop_pre_header
    _
  $region3: #{discriminator_forward.15} parent=0 // loop_header
    %s10 = sphi 0, %s14
    %p11 = scmp.ge.s32.totalorder %s10, 4
    %s17 = sphi 0, %s29
    %s18 = sphi 0, %s25
    %s19 = sphi 0, %s17
    %s20 = sphi 0, %s18
    %s21 = sphi 0, %s19
    %s22 = sphi 0, %s20
    %s34 = sphi 0, %s36
    %s37 = sphi 0, %s34
    %s38 = sphi 0, %s37
    %s54 = sphi 0, %s38
    %s58 = sphi 0, %s58
    %s60 = sphi 0, %s58
    %s61 = sphi 0, %s60
    %s75 = sphi 0, %s61
    %s83 = sphi 0, %s85
    %s86 = sphi 0, %s83
    %s87 = sphi 0, %s86
    %s103 = sphi 0, %s87
    %s111 = sphi 0, %s113
    %s114 = sphi 0, %s111
    %s115 = sphi 0, %s114
    %s131 = sphi 0, %s115
  $region4: #{discriminator_forward.15} parent=0 // loop_header_branch
    %13 = sbr.rel (%p11) target = $region8
  $region5: #{discriminator_forward.15} parent=0 // loop_body
    %s15 = ssub.s32 %s10, 1
    %s16 = ssub.s32 %s10, 2
    %s23 = sadd.s32 1, %s18
    %p24 = scmp.ge.s32.totalorder %s23, 1
    %s25 = scalar_select %p24, 0, %s23
    %s26 = sadd.s32 1, %s17
    %s27 = scalar_select %p24, %s26, %s17
    %p28 = scmp.ge.s32.totalorder %s27, 2
    %s29 = scalar_select %p28, 0, %s27
    %s30 = ssub.s32 %s17, %s29
    %s31 = ssub.s32 %s18, %s25
    %s32 = sor.u32 %s30, %s31
    %p33 = scmp.eq.s32.totalorder %s32, 0
    %s35 = sadd.s32 %s34, 1
    %s36 = scalar_select %p33, %s34, %s35
    %p39 = pneg %p33
    %p40 = scmp.eq.s32.totalorder %s10, 1
    %p41 = por %p39, %p40
    %p42 = scmp.ne.s32.totalorder %s34, %s37
    %p43 = scmp.eq.s32.totalorder %s10, 0
    %p44 = por %p42, %p43
    %p45 = scmp.ne.s32.totalorder %s34, %s37
    %p46 = scmp.eq.s32.totalorder %s15, 1
    %p47 = por %p45, %p46
    %p48 = scmp.ne.s32.totalorder %s37, %s38
    %p49 = scmp.eq.s32.totalorder %s15, 0
    %p50 = por %p48, %p49
    %p51 = scmp.ne.s32.totalorder %s37, %s38
    %p52 = scmp.eq.s32.totalorder %s16, 1
    %p53 = por %p51, %p52
    %p55 = scmp.ne.s32.totalorder %s38, %s54
    %p56 = scmp.eq.s32.totalorder %s16, 0
    %p57 = por %p55, %p56
    %s59 = sadd.s32 %s58, 1
    %p62 = scmp.eq.s32.totalorder %s10, 1
    %p63 = scmp.ne.s32.totalorder %s58, %s60
    %p64 = scmp.eq.s32.totalorder %s10, 0
    %p65 = por %p63, %p64
    %p66 = scmp.ne.s32.totalorder %s58, %s60
    %p67 = scmp.eq.s32.totalorder %s15, 1
    %p68 = por %p66, %p67
    %p69 = scmp.ne.s32.totalorder %s60, %s61
    %p70 = scmp.eq.s32.totalorder %s15, 0
    %p71 = por %p69, %p70
    %p72 = scmp.ne.s32.totalorder %s60, %s61
    %p73 = scmp.eq.s32.totalorder %s16, 1
    %p74 = por %p72, %p73
    %p76 = scmp.ne.s32.totalorder %s61, %s75
    %p77 = scmp.eq.s32.totalorder %s16, 0
    %p78 = por %p76, %p77
    %s79 = ssub.s32 %s17, %s29
    %s80 = ssub.s32 %s18, %s25
    %s81 = sor.u32 %s79, %s80
    %p82 = scmp.eq.s32.totalorder %s81, 0
    %s84 = sadd.s32 %s83, 1
    %s85 = scalar_select %p82, %s83, %s84
    %p88 = pneg %p82
    %p89 = scmp.eq.s32.totalorder %s10, 1
    %p90 = por %p88, %p89
    %p91 = scmp.ne.s32.totalorder %s83, %s86
    %p92 = scmp.eq.s32.totalorder %s10, 0
    %p93 = por %p91, %p92
    %p94 = scmp.ne.s32.totalorder %s83, %s86
    %p95 = scmp.eq.s32.totalorder %s15, 1
    %p96 = por %p94, %p95
    %p97 = scmp.ne.s32.totalorder %s86, %s87
    %p98 = scmp.eq.s32.totalorder %s15, 0
    %p99 = por %p97, %p98
    %p100 = scmp.ne.s32.totalorder %s86, %s87
    %p101 = scmp.eq.s32.totalorder %s16, 1
    %p102 = por %p100, %p101
    %p104 = scmp.ne.s32.totalorder %s87, %s103
    %p105 = scmp.eq.s32.totalorder %s16, 0
    %p106 = por %p104, %p105
    %s107 = sadd.s32 %s17, %s18
    %s108 = sadd.s32 %s29, %s25
    %s109 = ssub.s32 %s107, %s108
    %p110 = scmp.eq.s32.totalorder %s109, 0
    %s112 = sadd.s32 %s111, 1
    %s113 = scalar_select %p110, %s111, %s112
    %p116 = pneg %p110
    %p117 = scmp.eq.s32.totalorder %s10, 1
    %p118 = por %p116, %p117
    %p119 = scmp.ne.s32.totalorder %s111, %s114
    %p120 = scmp.eq.s32.totalorder %s10, 0
    %p121 = por %p119, %p120
    %p122 = scmp.ne.s32.totalorder %s111, %s114
    %p123 = scmp.eq.s32.totalorder %s15, 1
    %p124 = por %p122, %p123
    %p125 = scmp.ne.s32.totalorder %s114, %s115
    %p126 = scmp.eq.s32.totalorder %s15, 0
    %p127 = por %p125, %p126
    %p128 = scmp.ne.s32.totalorder %s114, %s115
    %p129 = scmp.eq.s32.totalorder %s16, 1
    %p130 = por %p128, %p129
    %p132 = scmp.ne.s32.totalorder %s115, %s131
    %p133 = scmp.eq.s32.totalorder %s16, 0
    %p134 = por %p132, %p133
    %p135 = scmp.le.s32.totalorder 1, %s10
    %p136 = scmp.lt.s32.totalorder %s10, 3
    %p137 = pnand %p135, %p136
    %p138 = pneg %p137
    // Predicated region
    $region9: #{discriminator_forward.15} parent=5 // pred_check
      _
    $region10: #{discriminator_forward.15} parent=5 // pred_check_branch
      %140 = sbr.rel (%p137) target = $region12
    $region11: #{discriminator_forward.15} parent=5 // pred_region
      %s141 = ssub.s32 %s10, 1
      // Predicated region
      $region13: #{discriminator_forward.15} parent=11 // pred_check
        %p142 = pneg %p71
      $region14: #{discriminator_forward.15} parent=11 // pred_check_branch
        %144 = sbr.rel (%p142) target = $region16
      $region15: #{discriminator_forward.15} parent=11 // pred_region
        _
      $region16: #{discriminator_forward.15} parent=11 // pred_fallthru
        _
    $region12: #{discriminator_forward.15} parent=5 // pred_fallthru
      _
    %p145 = scmp.lt.s32.totalorder %s10, 2
    // Predicated region
    $region17: #{discriminator_forward.15} parent=5 // pred_check
      %p146 = pneg %p145
    $region18: #{discriminator_forward.15} parent=5 // pred_check_branch
      %148 = sbr.rel (%p146) target = $region20
    $region19: #{discriminator_forward.15} parent=5 // pred_region
      // Predicated region
      $region21: #{discriminator_forward.15} parent=19 // pred_check
        %p149 = pneg %p44
      $region22: #{discriminator_forward.15} parent=19 // pred_check_branch
        %151 = sbr.rel (%p149) target = $region24
      $region23: #{discriminator_forward.15} parent=19 // pred_region
        %s152 = smul.u32 32, %s18
        %p153 = scmp.lt.s32.totalorder %s17, 1
        %s154 = scalar_select %p153, %s17, 1
        %p155 = scmp.lt.s32.totalorder %s152, 31
        %s156 = scalar_select %p155, %s152, 31
        %s157 = smul.addr %s156, 2
        %s158 = smul.addr %s154, 64
        %s159 = sadd.s32 %s157, %s158
        %s160 = smul.addr %s159, 4
        %s161 = scalar_lea.vmem %s0, %s160
        %s162 = smul.u32 32, %s18
      $region24: #{discriminator_forward.15} parent=19 // pred_fallthru
        _
    $region20: #{discriminator_forward.15} parent=5 // pred_fallthru
      _
    %p163 = scmp.le.s32.totalorder 1, %s10
    %p164 = scmp.lt.s32.totalorder %s10, 3
    %p165 = pnand %p163, %p164
    %p166 = pneg %p165
    // Predicated region
    $region25: #{discriminator_forward.15} parent=5 // pred_check
      _
    $region26: #{discriminator_forward.15} parent=5 // pred_check_branch
      %168 = sbr.rel (%p165) target = $region28
    $region27: #{discriminator_forward.15} parent=5 // pred_region
      %s169 = ssub.s32 %s10, 1
      %s170 = smul.u32 32, %s20
      %p171 = scmp.lt.s32.totalorder %s19, 1
      %s172 = scalar_select %p171, %s19, 1
      %p173 = scmp.lt.s32.totalorder %s170, 31
      %s174 = scalar_select %p173, %s170, 31
      %s175 = smul.addr %s174, 2
      %s176 = smul.addr %s172, 64
      %s177 = sadd.s32 %s175, %s176
      %s178 = smul.addr %s177, 4
      %s179 = scalar_lea.vmem %s0, %s178
      %p180 = pneg %p50
      %p181 = pneg %p47
      %p182 = pneg %p71
      %p183 = pneg %p68
      %p184 = pneg %p99
      %p185 = pneg %p96
      %s186 = smul.u32 32, %s20
      %p187 = scmp.lt.s32.totalorder %s19, 1
      %s188 = scalar_select %p187, %s19, 1
      %p189 = scmp.lt.s32.totalorder %s186, 31
      %s190 = scalar_select %p189, %s186, 31
      %s191 = smul.addr %s188, 32
      %s192 = sadd.s32 %s190, %s191
      %s193 = smul.addr %s192, 4
      %s194 = scalar_lea.vmem %s2, %s193
      %p195 = pneg %p127
      %p196 = pneg %p124
      %s197 = sadd.s32 %s19, %s20
      %p198 = scmp.lt.s32.totalorder %s197, 1
      %s199 = scalar_select %p198, %s197, 1
      %s200 = smul.addr %s199, 2
      %s201 = scalar_lea.vmem %s3, %s200
      %s202 = smul.u32 32, %s20
      %p203 = scmp.lt.s32.totalorder %s19, 1
      %s204 = scalar_select %p203, %s19, 1
      %p205 = scmp.lt.s32.totalorder %s202, 31
      %s206 = scalar_select %p205, %s202, 31
      %s207 = smul.addr %s206, 2
      %s208 = smul.addr %s204, 64
      %s209 = sadd.s32 %s207, %s208
      %s210 = smul.addr %s209, 4
      %s211 = scalar_lea.vmem %s0, %s210
      %s212 = smul.u32 32, %s20
      %s213 = smul.u32 32, %s20
      %p214 = scmp.lt.s32.totalorder %s19, 1
      %s215 = scalar_select %p214, %s19, 1
      %p216 = scmp.lt.s32.totalorder %s213, 31
      %s217 = scalar_select %p216, %s213, 31
      %s218 = smul.addr %s215, 32
      %s219 = sadd.s32 %s217, %s218
      %s220 = smul.addr %s219, 4
      %s221 = scalar_lea.vmem %s2, %s220
      %s222 = smul.u32 32, %s20
      %s223 = sadd.s32 %s19, %s20
      %p224 = scmp.lt.s32.totalorder %s223, 1
      %s225 = scalar_select %p224, %s223, 1
      %s226 = smul.addr %s225, 2
      %s227 = scalar_lea.vmem %s3, %s226
      %s228 = sadd.s32 %s19, %s20
      %v229 = vld [vmem:[%s211] sm:$0xff]
      %v230 = vld [vmem:[%s211 + $0x8] sm:$0xff]
      %v231 = vld [vmem:[%s211 + $0x10] sm:$0xff]
      %v232 = vld [vmem:[%s211 + $0x18] sm:$0xff]
      %v233 = vld [vmem:[%s211 + $0x20] sm:$0xff]
      %v234 = vld [vmem:[%s211 + $0x28] sm:$0xff]
      %v235 = vld [vmem:[%s211 + $0x30] sm:$0xff]
      %v236 = vld [vmem:[%s211 + $0x38] sm:$0xff]
      %v237 = vld [vmem:[%s211 + $0x40] sm:$0xff]
      %v238 = vld [vmem:[%s211 + $0x48] sm:$0xff]
      %v239 = vld [vmem:[%s211 + $0x50] sm:$0xff]
      %v240 = vld [vmem:[%s211 + $0x58] sm:$0xff]
      %v241 = vld [vmem:[%s211 + $0x60] sm:$0xff]
      %v242 = vld [vmem:[%s211 + $0x68] sm:$0xff]
      %v243 = vld [vmem:[%s211 + $0x70] sm:$0xff]
      %v244 = vld [vmem:[%s211 + $0x78] sm:$0xff]
      %v245 = vld [vmem:[%s211 + $0x80] sm:$0xff]
      %v246 = vld [vmem:[%s211 + $0x88] sm:$0xff]
      %v247 = vld [vmem:[%s211 + $0x90] sm:$0xff]
      %v248 = vld [vmem:[%s211 + $0x98] sm:$0xff]
      %v249 = vld [vmem:[%s211 + $0xa0] sm:$0xff]
      %v250 = vld [vmem:[%s211 + $0xa8] sm:$0xff]
      %v251 = vld [vmem:[%s211 + $0xb0] sm:$0xff]
      %v252 = vld [vmem:[%s211 + $0xb8] sm:$0xff]
      %v253 = vld [vmem:[%s211 + $0xc0] sm:$0xff]
      %v254 = vld [vmem:[%s211 + $0xc8] sm:$0xff]
      %v255 = vld [vmem:[%s211 + $0xd0] sm:$0xff]
      %v256 = vld [vmem:[%s211 + $0xd8] sm:$0xff]
      %v257 = vld [vmem:[%s211 + $0xe0] sm:$0xff]
      %v258 = vld [vmem:[%s211 + $0xe8] sm:$0xff]
      %v259 = vld [vmem:[%s211 + $0xf0] sm:$0xff]
      %v260 = vld [vmem:[%s211 + $0xf8] sm:$0xff]
      %v261 = vld [vmem:[%s1] sm:$0xf]
      %v262 = vld [vmem:[%s1 + $0x4] sm:$0xf]
      %v263 = vld [vmem:[%s1 + $0x8] sm:$0xf]
      %v264 = vld [vmem:[%s1 + $0xc] sm:$0xf]
      %v265 = vld [vmem:[%s1 + $0x10] sm:$0xf]
      %v266 = vld [vmem:[%s1 + $0x14] sm:$0xf]
      %v267 = vld [vmem:[%s1 + $0x18] sm:$0xf]
      %v268 = vld [vmem:[%s1 + $0x1c] sm:$0xf]
      %v269 = vld [vmem:[%s1 + $0x20] sm:$0xf]
      %v270 = vld [vmem:[%s1 + $0x24] sm:$0xf]
      %v271 = vld [vmem:[%s1 + $0x28] sm:$0xf]
      %v272 = vld [vmem:[%s1 + $0x2c] sm:$0xf]
      %v273 = vld [vmem:[%s1 + $0x30] sm:$0xf]
      %v274 = vld [vmem:[%s1 + $0x34] sm:$0xf]
      %v275 = vld [vmem:[%s1 + $0x38] sm:$0xf]
      %v276 = vld [vmem:[%s1 + $0x3c] sm:$0xf]
      %v277 = vld [vmem:[%s1 + $0x40] sm:$0xf]
      %v278 = vld [vmem:[%s1 + $0x44] sm:$0xf]
      %v279 = vld [vmem:[%s1 + $0x48] sm:$0xf]
      %v280 = vld [vmem:[%s1 + $0x4c] sm:$0xf]
      %v281 = vld [vmem:[%s1 + $0x50] sm:$0xf]
      %v282 = vld [vmem:[%s1 + $0x54] sm:$0xf]
      %v283 = vld [vmem:[%s1 + $0x58] sm:$0xf]
      %v284 = vld [vmem:[%s1 + $0x5c] sm:$0xf]
      %v285 = vld [vmem:[%s1 + $0x60] sm:$0xf]
      %v286 = vld [vmem:[%s1 + $0x64] sm:$0xf]
      %v287 = vld [vmem:[%s1 + $0x68] sm:$0xf]
      %v288 = vld [vmem:[%s1 + $0x6c] sm:$0xf]
      %v289 = vld [vmem:[%s1 + $0x70] sm:$0xf]
      %v290 = vld [vmem:[%s1 + $0x74] sm:$0xf]
      %v291 = vld [vmem:[%s1 + $0x78] sm:$0xf]
      %v292 = vld [vmem:[%s1 + $0x7c] sm:$0xf]
      %v325 = vunpack.c.l.b16 %v229
      %v326 = vunpack.c.h.b16 %v229
      %v327 = vunpack.c.l.b16 %v230
      %v328 = vunpack.c.h.b16 %v230
      %v329 = vunpack.c.l.b16 %v231
      %v330 = vunpack.c.h.b16 %v231
      %v331 = vunpack.c.l.b16 %v232
      %v332 = vunpack.c.h.b16 %v232
      %v333 = vunpack.c.l.b16 %v233
      %v334 = vunpack.c.h.b16 %v233
      %v335 = vunpack.c.l.b16 %v234
      %v336 = vunpack.c.h.b16 %v234
      %v337 = vunpack.c.l.b16 %v235
      %v338 = vunpack.c.h.b16 %v235
      %v339 = vunpack.c.l.b16 %v236
      %v340 = vunpack.c.h.b16 %v236
      %v341 = vunpack.c.l.b16 %v237
      %v342 = vunpack.c.h.b16 %v237
      %v343 = vunpack.c.l.b16 %v238
      %v344 = vunpack.c.h.b16 %v238
      %v345 = vunpack.c.l.b16 %v239
      %v346 = vunpack.c.h.b16 %v239
      %v347 = vunpack.c.l.b16 %v240
      %v348 = vunpack.c.h.b16 %v240
      %v349 = vunpack.c.l.b16 %v241
      %v350 = vunpack.c.h.b16 %v241
      %v351 = vunpack.c.l.b16 %v242
      %v352 = vunpack.c.h.b16 %v242
      %v353 = vunpack.c.l.b16 %v243
      %v354 = vunpack.c.h.b16 %v243
      %v355 = vunpack.c.l.b16 %v244
      %v356 = vunpack.c.h.b16 %v244
      %v357 = vunpack.c.l.b16 %v245
      %v358 = vunpack.c.h.b16 %v245
      %v359 = vunpack.c.l.b16 %v246
      %v360 = vunpack.c.h.b16 %v246
      %v361 = vunpack.c.l.b16 %v247
      %v362 = vunpack.c.h.b16 %v247
      %v363 = vunpack.c.l.b16 %v248
      %v364 = vunpack.c.h.b16 %v248
      %v365 = vunpack.c.l.b16 %v249
      %v366 = vunpack.c.h.b16 %v249
      %v367 = vunpack.c.l.b16 %v250
      %v368 = vunpack.c.h.b16 %v250
      %v369 = vunpack.c.l.b16 %v251
      %v370 = vunpack.c.h.b16 %v251
      %v371 = vunpack.c.l.b16 %v252
      %v372 = vunpack.c.h.b16 %v252
      %v373 = vunpack.c.l.b16 %v253
      %v374 = vunpack.c.h.b16 %v253
      %v375 = vunpack.c.l.b16 %v254
      %v376 = vunpack.c.h.b16 %v254
      %v377 = vunpack.c.l.b16 %v255
      %v378 = vunpack.c.h.b16 %v255
      %v379 = vunpack.c.l.b16 %v256
      %v380 = vunpack.c.h.b16 %v256
      %v381 = vunpack.c.l.b16 %v257
      %v382 = vunpack.c.h.b16 %v257
      %v383 = vunpack.c.l.b16 %v258
      %v384 = vunpack.c.h.b16 %v258
      %v385 = vunpack.c.l.b16 %v259
      %v386 = vunpack.c.h.b16 %v259
      %v387 = vunpack.c.l.b16 %v260
      %v388 = vunpack.c.h.b16 %v260
      %v389 = vpack.c.b16 %v327, %v325
      %v390 = vpack.c.b16 %v328, %v326
      %v391 = vpack.c.b16 %v331, %v329
      %v392 = vpack.c.b16 %v332, %v330
      %v393 = vpack.c.b16 %v335, %v333
      %v394 = vpack.c.b16 %v336, %v334
      %v395 = vpack.c.b16 %v339, %v337
      %v396 = vpack.c.b16 %v340, %v338
      %v397 = vpack.c.b16 %v343, %v341
      %v398 = vpack.c.b16 %v344, %v342
      %v399 = vpack.c.b16 %v347, %v345
      %v400 = vpack.c.b16 %v348, %v346
      %v401 = vpack.c.b16 %v351, %v349
      %v402 = vpack.c.b16 %v352, %v350
      %v403 = vpack.c.b16 %v355, %v353
      %v404 = vpack.c.b16 %v356, %v354
      %v405 = vpack.c.b16 %v359, %v357
      %v406 = vpack.c.b16 %v360, %v358
      %v407 = vpack.c.b16 %v363, %v361
      %v408 = vpack.c.b16 %v364, %v362
      %v409 = vpack.c.b16 %v367, %v365
      %v410 = vpack.c.b16 %v368, %v366
      %v411 = vpack.c.b16 %v371, %v369
      %v412 = vpack.c.b16 %v372, %v370
      %v413 = vpack.c.b16 %v375, %v373
      %v414 = vpack.c.b16 %v376, %v374
      %v415 = vpack.c.b16 %v379, %v377
      %v416 = vpack.c.b16 %v380, %v378
      %v417 = vpack.c.b16 %v383, %v381
      %v418 = vpack.c.b16 %v384, %v382
      %v419 = vpack.c.b16 %v387, %v385
      %v420 = vpack.c.b16 %v388, %v386
      %v485 = vunpack.c.l.b16 %v261
      %v486 = vunpack.c.l.b16 %v262
      %v487 = vunpack.c.l.b16 %v263
      %v488 = vunpack.c.l.b16 %v264
      %v489 = vunpack.c.l.b16 %v265
      %v490 = vunpack.c.l.b16 %v266
      %v491 = vunpack.c.l.b16 %v267
      %v492 = vunpack.c.l.b16 %v268
      %v493 = vunpack.c.l.b16 %v269
      %v494 = vunpack.c.l.b16 %v270
      %v495 = vunpack.c.l.b16 %v271
      %v496 = vunpack.c.l.b16 %v272
      %v497 = vunpack.c.l.b16 %v273
      %v498 = vunpack.c.l.b16 %v274
      %v499 = vunpack.c.l.b16 %v275
      %v500 = vunpack.c.l.b16 %v276
      %v501 = vunpack.c.l.b16 %v277
      %v502 = vunpack.c.l.b16 %v278
      %v503 = vunpack.c.l.b16 %v279
      %v504 = vunpack.c.l.b16 %v280
      %v505 = vunpack.c.l.b16 %v281
      %v506 = vunpack.c.l.b16 %v282
      %v507 = vunpack.c.l.b16 %v283
      %v508 = vunpack.c.l.b16 %v284
      %v509 = vunpack.c.l.b16 %v285
      %v510 = vunpack.c.l.b16 %v286
      %v511 = vunpack.c.l.b16 %v287
      %v512 = vunpack.c.l.b16 %v288
      %v513 = vunpack.c.l.b16 %v289
      %v514 = vunpack.c.l.b16 %v290
      %v515 = vunpack.c.l.b16 %v291
      %v516 = vunpack.c.l.b16 %v292
      %v517 = vpack.c.b16 %v486, %v485
      %v518 = vpack.c.b16 %v488, %v487
      %v519 = vpack.c.b16 %v490, %v489
      %v520 = vpack.c.b16 %v492, %v491
      %v521 = vpack.c.b16 %v494, %v493
      %v522 = vpack.c.b16 %v496, %v495
      %v523 = vpack.c.b16 %v498, %v497
      %v524 = vpack.c.b16 %v500, %v499
      %v525 = vpack.c.b16 %v502, %v501
      %v526 = vpack.c.b16 %v504, %v503
      %v527 = vpack.c.b16 %v506, %v505
      %v528 = vpack.c.b16 %v508, %v507
      %v529 = vpack.c.b16 %v510, %v509
      %v530 = vpack.c.b16 %v512, %v511
      %v531 = vpack.c.b16 %v514, %v513
      %v532 = vpack.c.b16 %v516, %v515
      %549 = vmatpush.bf16.msra.mxu0 %v524
      %550 = vmatpush.bf16.msra.mxu0 %v523
      %551 = vmatpush.bf16.msra.mxu0 %v522
      %552 = vmatpush.bf16.msra.mxu0 %v521
      %553 = vmatpush.bf16.msra.mxu0 %v520
      %554 = vmatpush.bf16.msra.mxu0 %v519
      %555 = vmatpush.bf16.msra.mxu0 %v518
      %556 = vmatpush.bf16.msra.mxu0 %v517
      %557 = vmatmul.bf16.gmra.mxu0 %v389
      %v558 = vpop.f32.mrf.mxu0
      %v559 = vadd.f32 0.0, %v558
      %v560 = vpop.f32.mrf.mxu0
      %v561 = vadd.f32 0.0, %v560
      %562 = vmatmul.bf16.gmra.mxu0 %v391
      %v563 = vpop.f32.mrf.mxu0
      %v564 = vadd.f32 0.0, %v563
      %v565 = vpop.f32.mrf.mxu0
      %v566 = vadd.f32 0.0, %v565
      %567 = vmatmul.bf16.gmra.mxu0 %v393
      %v568 = vpop.f32.mrf.mxu0
      %v569 = vadd.f32 0.0, %v568
      %v570 = vpop.f32.mrf.mxu0
      %v571 = vadd.f32 0.0, %v570
      %572 = vmatmul.bf16.gmra.mxu0 %v395
      %v573 = vpop.f32.mrf.mxu0
      %v574 = vadd.f32 0.0, %v573
      %v575 = vpop.f32.mrf.mxu0
      %v576 = vadd.f32 0.0, %v575
      %577 = vmatmul.bf16.gmra.mxu0 %v397
      %v578 = vpop.f32.mrf.mxu0
      %v579 = vadd.f32 0.0, %v578
      %v580 = vpop.f32.mrf.mxu0
      %v581 = vadd.f32 0.0, %v580
      %582 = vmatmul.bf16.gmra.mxu0 %v399
      %v583 = vpop.f32.mrf.mxu0
      %v584 = vadd.f32 0.0, %v583
      %v585 = vpop.f32.mrf.mxu0
      %v586 = vadd.f32 0.0, %v585
      %587 = vmatmul.bf16.gmra.mxu0 %v401
      %v588 = vpop.f32.mrf.mxu0
      %v589 = vadd.f32 0.0, %v588
      %v590 = vpop.f32.mrf.mxu0
      %v591 = vadd.f32 0.0, %v590
      %592 = vmatmul.bf16.gmra.mxu0 %v403
      %v593 = vpop.f32.mrf.mxu0
      %v594 = vadd.f32 0.0, %v593
      %v595 = vpop.f32.mrf.mxu0
      %v596 = vadd.f32 0.0, %v595
      %597 = vmatmul.bf16.gmra.mxu0 %v405
      %v598 = vpop.f32.mrf.mxu0
      %v599 = vadd.f32 0.0, %v598
      %v600 = vpop.f32.mrf.mxu0
      %v601 = vadd.f32 0.0, %v600
      %602 = vmatmul.bf16.gmra.mxu0 %v407
      %v603 = vpop.f32.mrf.mxu0
      %v604 = vadd.f32 0.0, %v603
      %v605 = vpop.f32.mrf.mxu0
      %v606 = vadd.f32 0.0, %v605
      %607 = vmatmul.bf16.gmra.mxu0 %v409
      %v608 = vpop.f32.mrf.mxu0
      %v609 = vadd.f32 0.0, %v608
      %v610 = vpop.f32.mrf.mxu0
      %v611 = vadd.f32 0.0, %v610
      %612 = vmatmul.bf16.gmra.mxu0 %v411
      %v613 = vpop.f32.mrf.mxu0
      %v614 = vadd.f32 0.0, %v613
      %v615 = vpop.f32.mrf.mxu0
      %v616 = vadd.f32 0.0, %v615
      %617 = vmatmul.bf16.gmra.mxu0 %v413
      %v618 = vpop.f32.mrf.mxu0
      %v619 = vadd.f32 0.0, %v618
      %v620 = vpop.f32.mrf.mxu0
      %v621 = vadd.f32 0.0, %v620
      %622 = vmatmul.bf16.gmra.mxu0 %v415
      %v623 = vpop.f32.mrf.mxu0
      %v624 = vadd.f32 0.0, %v623
      %v625 = vpop.f32.mrf.mxu0
      %v626 = vadd.f32 0.0, %v625
      %627 = vmatmul.bf16.gmra.mxu0 %v417
      %v628 = vpop.f32.mrf.mxu0
      %v629 = vadd.f32 0.0, %v628
      %v630 = vpop.f32.mrf.mxu0
      %v631 = vadd.f32 0.0, %v630
      %632 = vmatmul.bf16.gmra.mxu0 %v419
      %v633 = vpop.f32.mrf.mxu0
      %v634 = vadd.f32 0.0, %v633
      %v635 = vpop.f32.mrf.mxu0
      %v636 = vadd.f32 0.0, %v635
      %637 = vdwg.mxu0
      %638 = vmatpush.bf16.msra.mxu0 %v532
      %639 = vmatpush.bf16.msra.mxu0 %v531
      %640 = vmatpush.bf16.msra.mxu0 %v530
      %641 = vmatpush.bf16.msra.mxu0 %v529
      %642 = vmatpush.bf16.msra.mxu0 %v528
      %643 = vmatpush.bf16.msra.mxu0 %v527
      %644 = vmatpush.bf16.msra.mxu0 %v526
      %645 = vmatpush.bf16.msra.mxu0 %v525
      %646 = vmatmul.bf16.gmra.mxu0 %v390
      %v647 = vpop.f32.mrf.mxu0
      %v648 = vadd.f32 %v559, %v647
      %v649 = vpop.f32.mrf.mxu0
      %v650 = vadd.f32 %v561, %v649
      %651 = vmatmul.bf16.gmra.mxu0 %v392
      %v652 = vpop.f32.mrf.mxu0
      %v653 = vadd.f32 %v564, %v652
      %v654 = vpop.f32.mrf.mxu0
      %v655 = vadd.f32 %v566, %v654
      %656 = vmatmul.bf16.gmra.mxu0 %v394
      %v657 = vpop.f32.mrf.mxu0
      %v658 = vadd.f32 %v569, %v657
      %v659 = vpop.f32.mrf.mxu0
      %v660 = vadd.f32 %v571, %v659
      %661 = vmatmul.bf16.gmra.mxu0 %v396
      %v662 = vpop.f32.mrf.mxu0
      %v663 = vadd.f32 %v574, %v662
      %v664 = vpop.f32.mrf.mxu0
      %v665 = vadd.f32 %v576, %v664
      %666 = vmatmul.bf16.gmra.mxu0 %v398
      %v667 = vpop.f32.mrf.mxu0
      %v668 = vadd.f32 %v579, %v667
      %v669 = vpop.f32.mrf.mxu0
      %v670 = vadd.f32 %v581, %v669
      %671 = vmatmul.bf16.gmra.mxu0 %v400
      %v672 = vpop.f32.mrf.mxu0
      %v673 = vadd.f32 %v584, %v672
      %v674 = vpop.f32.mrf.mxu0
      %v675 = vadd.f32 %v586, %v674
      %676 = vmatmul.bf16.gmra.mxu0 %v402
      %v677 = vpop.f32.mrf.mxu0
      %v678 = vadd.f32 %v589, %v677
      %v679 = vpop.f32.mrf.mxu0
      %v680 = vadd.f32 %v591, %v679
      %681 = vmatmul.bf16.gmra.mxu0 %v404
      %v682 = vpop.f32.mrf.mxu0
      %v683 = vadd.f32 %v594, %v682
      %v684 = vpop.f32.mrf.mxu0
      %v685 = vadd.f32 %v596, %v684
      %686 = vmatmul.bf16.gmra.mxu0 %v406
      %v687 = vpop.f32.mrf.mxu0
      %v688 = vadd.f32 %v599, %v687
      %v689 = vpop.f32.mrf.mxu0
      %v690 = vadd.f32 %v601, %v689
      %691 = vmatmul.bf16.gmra.mxu0 %v408
      %v692 = vpop.f32.mrf.mxu0
      %v693 = vadd.f32 %v604, %v692
      %v694 = vpop.f32.mrf.mxu0
      %v695 = vadd.f32 %v606, %v694
      %696 = vmatmul.bf16.gmra.mxu0 %v410
      %v697 = vpop.f32.mrf.mxu0
      %v698 = vadd.f32 %v609, %v697
      %v699 = vpop.f32.mrf.mxu0
      %v700 = vadd.f32 %v611, %v699
      %701 = vmatmul.bf16.gmra.mxu0 %v412
      %v702 = vpop.f32.mrf.mxu0
      %v703 = vadd.f32 %v614, %v702
      %v704 = vpop.f32.mrf.mxu0
      %v705 = vadd.f32 %v616, %v704
      %706 = vmatmul.bf16.gmra.mxu0 %v414
      %v707 = vpop.f32.mrf.mxu0
      %v708 = vadd.f32 %v619, %v707
      %v709 = vpop.f32.mrf.mxu0
      %v710 = vadd.f32 %v621, %v709
      %711 = vmatmul.bf16.gmra.mxu0 %v416
      %v712 = vpop.f32.mrf.mxu0
      %v713 = vadd.f32 %v624, %v712
      %v714 = vpop.f32.mrf.mxu0
      %v715 = vadd.f32 %v626, %v714
      %716 = vmatmul.bf16.gmra.mxu0 %v418
      %v717 = vpop.f32.mrf.mxu0
      %v718 = vadd.f32 %v629, %v717
      %v719 = vpop.f32.mrf.mxu0
      %v720 = vadd.f32 %v631, %v719
      %721 = vmatmul.bf16.gmra.mxu0 %v420
      %v722 = vpop.f32.mrf.mxu0
      %v723 = vadd.f32 %v634, %v722
      %v724 = vpop.f32.mrf.mxu0
      %v725 = vadd.f32 %v636, %v724
      %726 = vdwg.mxu0
      %v727 = vpack.c.bf16 %v648, %v648
      %v728 = vpack.c.bf16 %v650, %v650
      %v729 = vpack.c.bf16 %v653, %v653
      %v730 = vpack.c.bf16 %v655, %v655
      %v731 = vpack.c.bf16 %v658, %v658
      %v732 = vpack.c.bf16 %v660, %v660
      %v733 = vpack.c.bf16 %v663, %v663
      %v734 = vpack.c.bf16 %v665, %v665
      %v735 = vpack.c.bf16 %v668, %v668
      %v736 = vpack.c.bf16 %v670, %v670
      %v737 = vpack.c.bf16 %v673, %v673
      %v738 = vpack.c.bf16 %v675, %v675
      %v739 = vpack.c.bf16 %v678, %v678
      %v740 = vpack.c.bf16 %v680, %v680
      %v741 = vpack.c.bf16 %v683, %v683
      %v742 = vpack.c.bf16 %v685, %v685
      %v743 = vpack.c.bf16 %v688, %v688
      %v744 = vpack.c.bf16 %v690, %v690
      %v745 = vpack.c.bf16 %v693, %v693
      %v746 = vpack.c.bf16 %v695, %v695
      %v747 = vpack.c.bf16 %v698, %v698
      %v748 = vpack.c.bf16 %v700, %v700
      %v749 = vpack.c.bf16 %v703, %v703
      %v750 = vpack.c.bf16 %v705, %v705
      %v751 = vpack.c.bf16 %v708, %v708
      %v752 = vpack.c.bf16 %v710, %v710
      %v753 = vpack.c.bf16 %v713, %v713
      %v754 = vpack.c.bf16 %v715, %v715
      %v755 = vpack.c.bf16 %v718, %v718
      %v756 = vpack.c.bf16 %v720, %v720
      %v757 = vpack.c.bf16 %v723, %v723
      %v758 = vpack.c.bf16 %v725, %v725
      %759 = vst [vmem:[%s221] sm:$0xf] %v727
      %760 = vst [vmem:[%s221 + $0x4] sm:$0xf] %v728
      %761 = vst [vmem:[%s221 + $0x8] sm:$0xf] %v729
      %762 = vst [vmem:[%s221 + $0xc] sm:$0xf] %v730
      %763 = vst [vmem:[%s221 + $0x10] sm:$0xf] %v731
      %764 = vst [vmem:[%s221 + $0x14] sm:$0xf] %v732
      %765 = vst [vmem:[%s221 + $0x18] sm:$0xf] %v733
      %766 = vst [vmem:[%s221 + $0x1c] sm:$0xf] %v734
      %767 = vst [vmem:[%s221 + $0x20] sm:$0xf] %v735
      %768 = vst [vmem:[%s221 + $0x24] sm:$0xf] %v736
      %769 = vst [vmem:[%s221 + $0x28] sm:$0xf] %v737
      %770 = vst [vmem:[%s221 + $0x2c] sm:$0xf] %v738
      %771 = vst [vmem:[%s221 + $0x30] sm:$0xf] %v739
      %772 = vst [vmem:[%s221 + $0x34] sm:$0xf] %v740
      %773 = vst [vmem:[%s221 + $0x38] sm:$0xf] %v741
      %774 = vst [vmem:[%s221 + $0x3c] sm:$0xf] %v742
      %775 = vst [vmem:[%s221 + $0x40] sm:$0xf] %v743
      %776 = vst [vmem:[%s221 + $0x44] sm:$0xf] %v744
      %777 = vst [vmem:[%s221 + $0x48] sm:$0xf] %v745
      %778 = vst [vmem:[%s221 + $0x4c] sm:$0xf] %v746
      %779 = vst [vmem:[%s221 + $0x50] sm:$0xf] %v747
      %780 = vst [vmem:[%s221 + $0x54] sm:$0xf] %v748
      %781 = vst [vmem:[%s221 + $0x58] sm:$0xf] %v749
      %782 = vst [vmem:[%s221 + $0x5c] sm:$0xf] %v750
      %783 = vst [vmem:[%s221 + $0x60] sm:$0xf] %v751
      %784 = vst [vmem:[%s221 + $0x64] sm:$0xf] %v752
      %785 = vst [vmem:[%s221 + $0x68] sm:$0xf] %v753
      %786 = vst [vmem:[%s221 + $0x6c] sm:$0xf] %v754
      %787 = vst [vmem:[%s221 + $0x70] sm:$0xf] %v755
      %788 = vst [vmem:[%s221 + $0x74] sm:$0xf] %v756
      %789 = vst [vmem:[%s221 + $0x78] sm:$0xf] %v757
      %790 = vst [vmem:[%s221 + $0x7c] sm:$0xf] %v758
      %v791 = vadd.f32 %v648, %v650
      %v792 = vadd.f32 %v791, %v653
      %v793 = vadd.f32 %v792, %v655
      %v794 = vadd.f32 %v793, %v658
      %v795 = vadd.f32 %v794, %v660
      %v796 = vadd.f32 %v795, %v663
      %v797 = vadd.f32 %v796, %v665
      %v798 = vadd.f32 %v797, %v668
      %v799 = vadd.f32 %v798, %v670
      %v800 = vadd.f32 %v799, %v673
      %v801 = vadd.f32 %v800, %v675
      %v802 = vadd.f32 %v801, %v678
      %v803 = vadd.f32 %v802, %v680
      %v804 = vadd.f32 %v803, %v683
      %v805 = vadd.f32 %v804, %v685
      %v806 = vadd.f32 %v805, %v688
      %v807 = vadd.f32 %v806, %v690
      %v808 = vadd.f32 %v807, %v693
      %v809 = vadd.f32 %v808, %v695
      %v810 = vadd.f32 %v809, %v698
      %v811 = vadd.f32 %v810, %v700
      %v812 = vadd.f32 %v811, %v703
      %v813 = vadd.f32 %v812, %v705
      %v814 = vadd.f32 %v813, %v708
      %v815 = vadd.f32 %v814, %v710
      %v816 = vadd.f32 %v815, %v713
      %v817 = vadd.f32 %v816, %v715
      %v818 = vadd.f32 %v817, %v718
      %v819 = vadd.f32 %v818, %v720
      %v820 = vadd.f32 %v819, %v723
      %v821 = vadd.f32 %v820, %v725
      %v822 = vrot.slane %v821, 4
      %v823 = vadd.f32 %v821, %v822
      %v824 = vrot.slane %v823, 2
      %v825 = vadd.f32 %v823, %v824
      %v826 = vrot.slane %v825, 1
      %v827 = vadd.f32 %v825, %v826
      %v828 = vmul.f32 %v648, %v648
      %v829 = vmul.f32 %v650, %v650
      %v830 = vmul.f32 %v653, %v653
      %v831 = vmul.f32 %v655, %v655
      %v832 = vmul.f32 %v658, %v658
      %v833 = vmul.f32 %v660, %v660
      %v834 = vmul.f32 %v663, %v663
      %v835 = vmul.f32 %v665, %v665
      %v836 = vmul.f32 %v668, %v668
      %v837 = vmul.f32 %v670, %v670
      %v838 = vmul.f32 %v673, %v673
      %v839 = vmul.f32 %v675, %v675
      %v840 = vmul.f32 %v678, %v678
      %v841 = vmul.f32 %v680, %v680
      %v842 = vmul.f32 %v683, %v683
      %v843 = vmul.f32 %v685, %v685
      %v844 = vmul.f32 %v688, %v688
      %v845 = vmul.f32 %v690, %v690
      %v846 = vmul.f32 %v693, %v693
      %v847 = vmul.f32 %v695, %v695
      %v848 = vmul.f32 %v698, %v698
      %v849 = vmul.f32 %v700, %v700
      %v850 = vmul.f32 %v703, %v703
      %v851 = vmul.f32 %v705, %v705
      %v852 = vmul.f32 %v708, %v708
      %v853 = vmul.f32 %v710, %v710
      %v854 = vmul.f32 %v713, %v713
      %v855 = vmul.f32 %v715, %v715
      %v856 = vmul.f32 %v718, %v718
      %v857 = vmul.f32 %v720, %v720
      %v858 = vmul.f32 %v723, %v723
      %v859 = vmul.f32 %v725, %v725
      %v860 = vadd.f32 %v828, %v829
      %v861 = vadd.f32 %v860, %v830
      %v862 = vadd.f32 %v861, %v831
      %v863 = vadd.f32 %v862, %v832
      %v864 = vadd.f32 %v863, %v833
      %v865 = vadd.f32 %v864, %v834
      %v866 = vadd.f32 %v865, %v835
      %v867 = vadd.f32 %v866, %v836
      %v868 = vadd.f32 %v867, %v837
      %v869 = vadd.f32 %v868, %v838
      %v870 = vadd.f32 %v869, %v839
      %v871 = vadd.f32 %v870, %v840
      %v872 = vadd.f32 %v871, %v841
      %v873 = vadd.f32 %v872, %v842
      %v874 = vadd.f32 %v873, %v843
      %v875 = vadd.f32 %v874, %v844
      %v876 = vadd.f32 %v875, %v845
      %v877 = vadd.f32 %v876, %v846
      %v878 = vadd.f32 %v877, %v847
      %v879 = vadd.f32 %v878, %v848
      %v880 = vadd.f32 %v879, %v849
      %v881 = vadd.f32 %v880, %v850
      %v882 = vadd.f32 %v881, %v851
      %v883 = vadd.f32 %v882, %v852
      %v884 = vadd.f32 %v883, %v853
      %v885 = vadd.f32 %v884, %v854
      %v886 = vadd.f32 %v885, %v855
      %v887 = vadd.f32 %v886, %v856
      %v888 = vadd.f32 %v887, %v857
      %v889 = vadd.f32 %v888, %v858
      %v890 = vadd.f32 %v889, %v859
      %v891 = vrot.slane %v890, 4
      %v892 = vadd.f32 %v890, %v891
      %v893 = vrot.slane %v892, 2
      %v894 = vadd.f32 %v892, %v893
      %v895 = vrot.slane %v894, 1
      %v896 = vadd.f32 %v894, %v895
      %vm897 = vcmask 1040384
      %v898 = vsel %vm897, %v827, %v896
      %899 = vst [vmem:[%s227] sm:$0x3] %v898
      %s900 = smul.u32 32, %s20
      %p901 = scmp.lt.s32.totalorder %s19, 1
      %s902 = scalar_select %p901, %s19, 1
      %p903 = scmp.lt.s32.totalorder %s900, 31
      %s904 = scalar_select %p903, %s900, 31
      %s905 = smul.addr %s902, 32
      %s906 = sadd.s32 %s904, %s905
      %s907 = smul.addr %s906, 4
      %s908 = scalar_lea.vmem %s2, %s907
      %s909 = sadd.s32 %s19, %s20
      %p910 = scmp.lt.s32.totalorder %s909, 1
      %s911 = scalar_select %p910, %s909, 1
      %s912 = smul.addr %s911, 2
      %s913 = scalar_lea.vmem %s3, %s912
      // Predicated region
      $region29: #{discriminator_forward.15} parent=27 // pred_check
        %p914 = pneg %p96
      $region30: #{discriminator_forward.15} parent=27 // pred_check_branch
        %916 = sbr.rel (%p914) target = $region32
      $region31: #{discriminator_forward.15} parent=27 // pred_region
        %s917 = smul.u32 32, %s20
      $region32: #{discriminator_forward.15} parent=27 // pred_fallthru
        _
      // Predicated region
      $region33: #{discriminator_forward.15} parent=27 // pred_check
        %p918 = pneg %p124
      $region34: #{discriminator_forward.15} parent=27 // pred_check_branch
        %920 = sbr.rel (%p918) target = $region36
      $region35: #{discriminator_forward.15} parent=27 // pred_region
        %s921 = sadd.s32 %s19, %s20
      $region36: #{discriminator_forward.15} parent=27 // pred_fallthru
        _
    $region28: #{discriminator_forward.15} parent=5 // pred_fallthru
      _
    %p922 = scmp.le.s32.totalorder 2, %s10
    // Predicated region
    $region37: #{discriminator_forward.15} parent=5 // pred_check
      %p923 = pneg %p922
    $region38: #{discriminator_forward.15} parent=5 // pred_check_branch
      %925 = sbr.rel (%p923) target = $region40
    $region39: #{discriminator_forward.15} parent=5 // pred_region
      %s926 = ssub.s32 %s10, 2
      // Predicated region
      $region41: #{discriminator_forward.15} parent=39 // pred_check
        %p927 = pneg %p102
      $region42: #{discriminator_forward.15} parent=39 // pred_check_branch
        %929 = sbr.rel (%p927) target = $region44
      $region43: #{discriminator_forward.15} parent=39 // pred_region
        %s930 = smul.u32 32, %s22
        %p931 = scmp.lt.s32.totalorder %s21, 1
        %s932 = scalar_select %p931, %s21, 1
        %p933 = scmp.lt.s32.totalorder %s930, 31
        %s934 = scalar_select %p933, %s930, 31
        %s935 = smul.addr %s932, 32
        %s936 = sadd.s32 %s934, %s935
        %s937 = smul.addr %s936, 4
        %s938 = scalar_lea.vmem %s2, %s937
      $region44: #{discriminator_forward.15} parent=39 // pred_fallthru
        _
      // Predicated region
      $region45: #{discriminator_forward.15} parent=39 // pred_check
        %p939 = pneg %p130
      $region46: #{discriminator_forward.15} parent=39 // pred_check_branch
        %941 = sbr.rel (%p939) target = $region48
      $region47: #{discriminator_forward.15} parent=39 // pred_region
        %s942 = sadd.s32 %s21, %s22
        %p943 = scmp.lt.s32.totalorder %s942, 1
        %s944 = scalar_select %p943, %s942, 1
        %s945 = smul.addr %s944, 2
        %s946 = scalar_lea.vmem %s3, %s945
      $region48: #{discriminator_forward.15} parent=39 // pred_fallthru
        _
    $region40: #{discriminator_forward.15} parent=5 // pred_fallthru
      _
  $region6: #{discriminator_forward.15} parent=0 // loop_footer
    %s14 = sadd.s32 1, %s10
  $region7: #{discriminator_forward.15} parent=0 // loop_footer_branch
    %9 = sbr.rel target = $region3
  $region8: #{discriminator_forward.15} parent=0 // loop_exit
    _

// kernel: discriminator_forward.17
$region0: #{discriminator_forward.17}
  #allocation0 [shape = 'u32[]', space=smem, size = 0x4, offset = 0x4, fixed_abs, tag = 'smem constant byte address 0x4 - core index']
  #allocation1 [shape = 'u32[72,128]{1,0:T(1,128)}', space=vmem, size = 0x9000, scoped, tag = 'internal scratch']
  %s0 = inlined_call_operand.vmem [shape: bf16[2,64,512], index: 0, kind: input, shape index: {}]
  %s1 = inlined_call_operand.vmem [shape: bf16[512,128], index: 1, kind: input, shape index: {}]
  %s2 = inlined_call_operand.vmem [shape: bf16[2,64,128], index: 2, kind: output, shape index: {0}]
  %s3 = inlined_call_operand.vmem [shape: f32[2,2,128], index: 3, kind: output, shape index: {1}]
  %4 = xla_tuple %s2, %s3
  %s5 = sld [smem:[#allocation0]]
  $region49: #{discriminator_forward.17} parent=0
    _
  %s7 = ssub.s32 1, %s5
  %s8 = scalar_select 0, %s7, %s5
  loop: start=0, step=1, limit=4
  $region2: #{discriminator_forward.17} parent=0 // loop_pre_header
    _
  $region3: #{discriminator_forward.17} parent=0 // loop_header
    %s10 = sphi 0, %s14
    %p11 = scmp.ge.s32.totalorder %s10, 4
    %s17 = sphi 0, %s29
    %s18 = sphi 0, %s25
    %s19 = sphi 0, %s17
    %s20 = sphi 0, %s18
    %s21 = sphi 0, %s19
    %s22 = sphi 0, %s20
    %s34 = sphi 0, %s36
    %s37 = sphi 0, %s34
    %s38 = sphi 0, %s37
    %s54 = sphi 0, %s38
    %s58 = sphi 0, %s58
    %s60 = sphi 0, %s58
    %s61 = sphi 0, %s60
    %s75 = sphi 0, %s61
    %s83 = sphi 0, %s85
    %s86 = sphi 0, %s83
    %s87 = sphi 0, %s86
    %s103 = sphi 0, %s87
    %s111 = sphi 0, %s113
    %s114 = sphi 0, %s111
    %s115 = sphi 0, %s114
    %s131 = sphi 0, %s115
  $region4: #{discriminator_forward.17} parent=0 // loop_header_branch
    %13 = sbr.rel (%p11) target = $region8
  $region5: #{discriminator_forward.17} parent=0 // loop_body
    %s15 = ssub.s32 %s10, 1
    %s16 = ssub.s32 %s10, 2
    %s23 = sadd.s32 1, %s18
    %p24 = scmp.ge.s32.totalorder %s23, 1
    %s25 = scalar_select %p24, 0, %s23
    %s26 = sadd.s32 1, %s17
    %s27 = scalar_select %p24, %s26, %s17
    %p28 = scmp.ge.s32.totalorder %s27, 2
    %s29 = scalar_select %p28, 0, %s27
    %s30 = ssub.s32 %s17, %s29
    %s31 = ssub.s32 %s18, %s25
    %s32 = sor.u32 %s30, %s31
    %p33 = scmp.eq.s32.totalorder %s32, 0
    %s35 = sadd.s32 %s34, 1
    %s36 = scalar_select %p33, %s34, %s35
    %p39 = pneg %p33
    %p40 = scmp.eq.s32.totalorder %s10, 1
    %p41 = por %p39, %p40
    %p42 = scmp.ne.s32.totalorder %s34, %s37
    %p43 = scmp.eq.s32.totalorder %s10, 0
    %p44 = por %p42, %p43
    %p45 = scmp.ne.s32.totalorder %s34, %s37
    %p46 = scmp.eq.s32.totalorder %s15, 1
    %p47 = por %p45, %p46
    %p48 = scmp.ne.s32.totalorder %s37, %s38
    %p49 = scmp.eq.s32.totalorder %s15, 0
    %p50 = por %p48, %p49
    %p51 = scmp.ne.s32.totalorder %s37, %s38
    %p52 = scmp.eq.s32.totalorder %s16, 1
    %p53 = por %p51, %p52
    %p55 = scmp.ne.s32.totalorder %s38, %s54
    %p56 = scmp.eq.s32.totalorder %s16, 0
    %p57 = por %p55, %p56
    %s59 = sadd.s32 %s58, 1
    %p62 = scmp.eq.s32.totalorder %s10, 1
    %p63 = scmp.ne.s32.totalorder %s58, %s60
    %p64 = scmp.eq.s32.totalorder %s10, 0
    %p65 = por %p63, %p64
    %p66 = scmp.ne.s32.totalorder %s58, %s60
    %p67 = scmp.eq.s32.totalorder %s15, 1
    %p68 = por %p66, %p67
    %p69 = scmp.ne.s32.totalorder %s60, %s61
    %p70 = scmp.eq.s32.totalorder %s15, 0
    %p71 = por %p69, %p70
    %p72 = scmp.ne.s32.totalorder %s60, %s61
    %p73 = scmp.eq.s32.totalorder %s16, 1
    %p74 = por %p72, %p73
    %p76 = scmp.ne.s32.totalorder %s61, %s75
    %p77 = scmp.eq.s32.totalorder %s16, 0
    %p78 = por %p76, %p77
    %s79 = ssub.s32 %s17, %s29
    %s80 = ssub.s32 %s18, %s25
    %s81 = sor.u32 %s79, %s80
    %p82 = scmp.eq.s32.totalorder %s81, 0
    %s84 = sadd.s32 %s83, 1
    %s85 = scalar_select %p82, %s83, %s84
    %p88 = pneg %p82
    %p89 = scmp.eq.s32.totalorder %s10, 1
    %p90 = por %p88, %p89
    %p91 = scmp.ne.s32.totalorder %s83, %s86
    %p92 = scmp.eq.s32.totalorder %s10, 0
    %p93 = por %p91, %p92
    %p94 = scmp.ne.s32.totalorder %s83, %s86
    %p95 = scmp.eq.s32.totalorder %s15, 1
    %p96 = por %p94, %p95
    %p97 = scmp.ne.s32.totalorder %s86, %s87
    %p98 = scmp.eq.s32.totalorder %s15, 0
    %p99 = por %p97, %p98
    %p100 = scmp.ne.s32.totalorder %s86, %s87
    %p101 = scmp.eq.s32.totalorder %s16, 1
    %p102 = por %p100, %p101
    %p104 = scmp.ne.s32.totalorder %s87, %s103
    %p105 = scmp.eq.s32.totalorder %s16, 0
    %p106 = por %p104, %p105
    %s107 = sadd.s32 %s17, %s18
    %s108 = sadd.s32 %s29, %s25
    %s109 = ssub.s32 %s107, %s108
    %p110 = scmp.eq.s32.totalorder %s109, 0
    %s112 = sadd.s32 %s111, 1
    %s113 = scalar_select %p110, %s111, %s112
    %p116 = pneg %p110
    %p117 = scmp.eq.s32.totalorder %s10, 1
    %p118 = por %p116, %p117
    %p119 = scmp.ne.s32.totalorder %s111, %s114
    %p120 = scmp.eq.s32.totalorder %s10, 0
    %p121 = por %p119, %p120
    %p122 = scmp.ne.s32.totalorder %s111, %s114
    %p123 = scmp.eq.s32.totalorder %s15, 1
    %p124 = por %p122, %p123
    %p125 = scmp.ne.s32.totalorder %s114, %s115
    %p126 = scmp.eq.s32.totalorder %s15, 0
    %p127 = por %p125, %p126
    %p128 = scmp.ne.s32.totalorder %s114, %s115
    %p129 = scmp.eq.s32.totalorder %s16, 1
    %p130 = por %p128, %p129
    %p132 = scmp.ne.s32.totalorder %s115, %s131
    %p133 = scmp.eq.s32.totalorder %s16, 0
    %p134 = por %p132, %p133
    %p135 = scmp.le.s32.totalorder 1, %s10
    %p136 = scmp.lt.s32.totalorder %s10, 3
    %p137 = pnand %p135, %p136
    %p138 = pneg %p137
    // Predicated region
    $region9: #{discriminator_forward.17} parent=5 // pred_check
      _
    $region10: #{discriminator_forward.17} parent=5 // pred_check_branch
      %140 = sbr.rel (%p137) target = $region12
    $region11: #{discriminator_forward.17} parent=5 // pred_region
      %s141 = ssub.s32 %s10, 1
      // Predicated region
      $region13: #{discriminator_forward.17} parent=11 // pred_check
        %p142 = pneg %p71
      $region14: #{discriminator_forward.17} parent=11 // pred_check_branch
        %144 = sbr.rel (%p142) target = $region16
      $region15: #{discriminator_forward.17} parent=11 // pred_region
        _
      $region16: #{discriminator_forward.17} parent=11 // pred_fallthru
        _
    $region12: #{discriminator_forward.17} parent=5 // pred_fallthru
      _
    %p145 = scmp.lt.s32.totalorder %s10, 2
    // Predicated region
    $region17: #{discriminator_forward.17} parent=5 // pred_check
      %p146 = pneg %p145
    $region18: #{discriminator_forward.17} parent=5 // pred_check_branch
      %148 = sbr.rel (%p146) target = $region20
    $region19: #{discriminator_forward.17} parent=5 // pred_region
      // Predicated region
      $region21: #{discriminator_forward.17} parent=19 // pred_check
        %p149 = pneg %p44
      $region22: #{discriminator_forward.17} parent=19 // pred_check_branch
        %151 = sbr.rel (%p149) target = $region24
      $region23: #{discriminator_forward.17} parent=19 // pred_region
        %s152 = smul.u32 8, %s18
        %p153 = scmp.lt.s32.totalorder %s17, 1
        %s154 = scalar_select %p153, %s17, 1
        %p155 = scmp.lt.s32.totalorder %s152, 7
        %s156 = scalar_select %p155, %s152, 7
        %s157 = smul.addr %s156, 4
        %s158 = smul.addr %s154, 32
        %s159 = sadd.s32 %s157, %s158
        %s160 = smul.addr %s159, 4
        %s161 = scalar_lea.vmem %s0, %s160
        %s162 = smul.u32 8, %s18
      $region24: #{discriminator_forward.17} parent=19 // pred_fallthru
        _
    $region20: #{discriminator_forward.17} parent=5 // pred_fallthru
      _
    %p163 = scmp.le.s32.totalorder 1, %s10
    %p164 = scmp.lt.s32.totalorder %s10, 3
    %p165 = pnand %p163, %p164
    %p166 = pneg %p165
    // Predicated region
    $region25: #{discriminator_forward.17} parent=5 // pred_check
      _
    $region26: #{discriminator_forward.17} parent=5 // pred_check_branch
      %168 = sbr.rel (%p165) target = $region28
    $region27: #{discriminator_forward.17} parent=5 // pred_region
      %s169 = ssub.s32 %s10, 1
      %s170 = smul.u32 8, %s20
      %p171 = scmp.lt.s32.totalorder %s19, 1
      %s172 = scalar_select %p171, %s19, 1
      %p173 = scmp.lt.s32.totalorder %s170, 7
      %s174 = scalar_select %p173, %s170, 7
      %s175 = smul.addr %s174, 4
      %s176 = smul.addr %s172, 32
      %s177 = sadd.s32 %s175, %s176
      %s178 = smul.addr %s177, 4
      %s179 = scalar_lea.vmem %s0, %s178
      %p180 = pneg %p50
      %p181 = pneg %p47
      %p182 = pneg %p71
      %p183 = pneg %p68
      %p184 = pneg %p99
      %p185 = pneg %p96
      %s186 = smul.u32 8, %s20
      %p187 = scmp.lt.s32.totalorder %s19, 1
      %s188 = scalar_select %p187, %s19, 1
      %p189 = scmp.lt.s32.totalorder %s186, 7
      %s190 = scalar_select %p189, %s186, 7
      %s191 = smul.addr %s188, 8
      %s192 = sadd.s32 %s190, %s191
      %s193 = smul.addr %s192, 4
      %s194 = scalar_lea.vmem %s2, %s193
      %p195 = pneg %p127
      %p196 = pneg %p124
      %s197 = sadd.s32 %s19, %s20
      %p198 = scmp.lt.s32.totalorder %s197, 1
      %s199 = scalar_select %p198, %s197, 1
      %s200 = smul.addr %s199, 2
      %s201 = scalar_lea.vmem %s3, %s200
      %s202 = smul.u32 8, %s20
      %p203 = scmp.lt.s32.totalorder %s19, 1
      %s204 = scalar_select %p203, %s19, 1
      %p205 = scmp.lt.s32.totalorder %s202, 7
      %s206 = scalar_select %p205, %s202, 7
      %s207 = smul.addr %s206, 4
      %s208 = smul.addr %s204, 32
      %s209 = sadd.s32 %s207, %s208
      %s210 = smul.addr %s209, 4
      %s211 = scalar_lea.vmem %s0, %s210
      %s212 = smul.u32 8, %s20
      %s213 = smul.u32 8, %s20
      %p214 = scmp.lt.s32.totalorder %s19, 1
      %s215 = scalar_select %p214, %s19, 1
      %p216 = scmp.lt.s32.totalorder %s213, 7
      %s217 = scalar_select %p216, %s213, 7
      %s218 = smul.addr %s215, 8
      %s219 = sadd.s32 %s217, %s218
      %s220 = smul.addr %s219, 4
      %s221 = scalar_lea.vmem %s2, %s220
      %s222 = smul.u32 8, %s20
      %s223 = sadd.s32 %s19, %s20
      %p224 = scmp.lt.s32.totalorder %s223, 1
      %s225 = scalar_select %p224, %s223, 1
      %s226 = smul.addr %s225, 2
      %s227 = scalar_lea.vmem %s3, %s226
      %s228 = sadd.s32 %s19, %s20
      %v229 = vld [vmem:[%s211] sm:$0xff]
      %v230 = vld [vmem:[%s211 + $0x8] sm:$0xff]
      %v231 = vld [vmem:[%s211 + $0x10] sm:$0xff]
      %v232 = vld [vmem:[%s211 + $0x18] sm:$0xff]
      %v233 = vld [vmem:[%s211 + $0x20] sm:$0xff]
      %v234 = vld [vmem:[%s211 + $0x28] sm:$0xff]
      %v235 = vld [vmem:[%s211 + $0x30] sm:$0xff]
      %v236 = vld [vmem:[%s211 + $0x38] sm:$0xff]
      %v237 = vld [vmem:[%s211 + $0x40] sm:$0xff]
      %v238 = vld [vmem:[%s211 + $0x48] sm:$0xff]
      %v239 = vld [vmem:[%s211 + $0x50] sm:$0xff]
      %v240 = vld [vmem:[%s211 + $0x58] sm:$0xff]
      %v241 = vld [vmem:[%s211 + $0x60] sm:$0xff]
      %v242 = vld [vmem:[%s211 + $0x68] sm:$0xff]
      %v243 = vld [vmem:[%s211 + $0x70] sm:$0xff]
      %v244 = vld [vmem:[%s211 + $0x78] sm:$0xff]
      %v245 = vld [vmem:[%s1] sm:$0xf]
      %v246 = vld [vmem:[%s1 + $0x4] sm:$0xf]
      %v247 = vld [vmem:[%s1 + $0x8] sm:$0xf]
      %v248 = vld [vmem:[%s1 + $0xc] sm:$0xf]
      %v249 = vld [vmem:[%s1 + $0x10] sm:$0xf]
      %v250 = vld [vmem:[%s1 + $0x14] sm:$0xf]
      %v251 = vld [vmem:[%s1 + $0x18] sm:$0xf]
      %v252 = vld [vmem:[%s1 + $0x1c] sm:$0xf]
      %v253 = vld [vmem:[%s1 + $0x20] sm:$0xf]
      %v254 = vld [vmem:[%s1 + $0x24] sm:$0xf]
      %v255 = vld [vmem:[%s1 + $0x28] sm:$0xf]
      %v256 = vld [vmem:[%s1 + $0x2c] sm:$0xf]
      %v257 = vld [vmem:[%s1 + $0x30] sm:$0xf]
      %v258 = vld [vmem:[%s1 + $0x34] sm:$0xf]
      %v259 = vld [vmem:[%s1 + $0x38] sm:$0xf]
      %v260 = vld [vmem:[%s1 + $0x3c] sm:$0xf]
      %v261 = vld [vmem:[%s1 + $0x40] sm:$0xf]
      %v262 = vld [vmem:[%s1 + $0x44] sm:$0xf]
      %v263 = vld [vmem:[%s1 + $0x48] sm:$0xf]
      %v264 = vld [vmem:[%s1 + $0x4c] sm:$0xf]
      %v265 = vld [vmem:[%s1 + $0x50] sm:$0xf]
      %v266 = vld [vmem:[%s1 + $0x54] sm:$0xf]
      %v267 = vld [vmem:[%s1 + $0x58] sm:$0xf]
      %v268 = vld [vmem:[%s1 + $0x5c] sm:$0xf]
      %v269 = vld [vmem:[%s1 + $0x60] sm:$0xf]
      %v270 = vld [vmem:[%s1 + $0x64] sm:$0xf]
      %v271 = vld [vmem:[%s1 + $0x68] sm:$0xf]
      %v272 = vld [vmem:[%s1 + $0x6c] sm:$0xf]
      %v273 = vld [vmem:[%s1 + $0x70] sm:$0xf]
      %v274 = vld [vmem:[%s1 + $0x74] sm:$0xf]
      %v275 = vld [vmem:[%s1 + $0x78] sm:$0xf]
      %v276 = vld [vmem:[%s1 + $0x7c] sm:$0xf]
      %v277 = vld [vmem:[%s1 + $0x80] sm:$0xf]
      %v278 = vld [vmem:[%s1 + $0x84] sm:$0xf]
      %v279 = vld [vmem:[%s1 + $0x88] sm:$0xf]
      %v280 = vld [vmem:[%s1 + $0x8c] sm:$0xf]
      %v281 = vld [vmem:[%s1 + $0x90] sm:$0xf]
      %v282 = vld [vmem:[%s1 + $0x94] sm:$0xf]
      %v283 = vld [vmem:[%s1 + $0x98] sm:$0xf]
      %v284 = vld [vmem:[%s1 + $0x9c] sm:$0xf]
      %v285 = vld [vmem:[%s1 + $0xa0] sm:$0xf]
      %v286 = vld [vmem:[%s1 + $0xa4] sm:$0xf]
      %v287 = vld [vmem:[%s1 + $0xa8] sm:$0xf]
      %v288 = vld [vmem:[%s1 + $0xac] sm:$0xf]
      %v289 = vld [vmem:[%s1 + $0xb0] sm:$0xf]
      %v290 = vld [vmem:[%s1 + $0xb4] sm:$0xf]
      %v291 = vld [vmem:[%s1 + $0xb8] sm:$0xf]
      %v292 = vld [vmem:[%s1 + $0xbc] sm:$0xf]
      %v293 = vld [vmem:[%s1 + $0xc0] sm:$0xf]
      %v294 = vld [vmem:[%s1 + $0xc4] sm:$0xf]
      %v295 = vld [vmem:[%s1 + $0xc8] sm:$0xf]
      %v296 = vld [vmem:[%s1 + $0xcc] sm:$0xf]
      %v297 = vld [vmem:[%s1 + $0xd0] sm:$0xf]
      %v298 = vld [vmem:[%s1 + $0xd4] sm:$0xf]
      %v299 = vld [vmem:[%s1 + $0xd8] sm:$0xf]
      %v300 = vld [vmem:[%s1 + $0xdc] sm:$0xf]
      %v301 = vld [vmem:[%s1 + $0xe0] sm:$0xf]
      %v302 = vld [vmem:[%s1 + $0xe4] sm:$0xf]
      %v303 = vld [vmem:[%s1 + $0xe8] sm:$0xf]
      %v304 = vld [vmem:[%s1 + $0xec] sm:$0xf]
      %v305 = vld [vmem:[%s1 + $0xf0] sm:$0xf]
      %v306 = vld [vmem:[%s1 + $0xf4] sm:$0xf]
      %v307 = vld [vmem:[%s1 + $0xf8] sm:$0xf]
      %v308 = vld [vmem:[%s1 + $0xfc] sm:$0xf]
      %v325 = vunpack.c.l.b16 %v229
      %v326 = vunpack.c.h.b16 %v229
      %v327 = vunpack.c.l.b16 %v230
      %v328 = vunpack.c.h.b16 %v230
      %v329 = vunpack.c.l.b16 %v231
      %v330 = vunpack.c.h.b16 %v231
      %v331 = vunpack.c.l.b16 %v232
      %v332 = vunpack.c.h.b16 %v232
      %v333 = vunpack.c.l.b16 %v233
      %v334 = vunpack.c.h.b16 %v233
      %v335 = vunpack.c.l.b16 %v234
      %v336 = vunpack.c.h.b16 %v234
      %v337 = vunpack.c.l.b16 %v235
      %v338 = vunpack.c.h.b16 %v235
      %v339 = vunpack.c.l.b16 %v236
      %v340 = vunpack.c.h.b16 %v236
      %v341 = vunpack.c.l.b16 %v237
      %v342 = vunpack.c.h.b16 %v237
      %v343 = vunpack.c.l.b16 %v238
      %v344 = vunpack.c.h.b16 %v238
      %v345 = vunpack.c.l.b16 %v239
      %v346 = vunpack.c.h.b16 %v239
      %v347 = vunpack.c.l.b16 %v240
      %v348 = vunpack.c.h.b16 %v240
      %v349 = vunpack.c.l.b16 %v241
      %v350 = vunpack.c.h.b16 %v241
      %v351 = vunpack.c.l.b16 %v242
      %v352 = vunpack.c.h.b16 %v242
      %v353 = vunpack.c.l.b16 %v243
      %v354 = vunpack.c.h.b16 %v243
      %v355 = vunpack.c.l.b16 %v244
      %v356 = vunpack.c.h.b16 %v244
      %v357 = vpack.c.b16 %v329, %v325
      %v358 = vpack.c.b16 %v330, %v326
      %v359 = vpack.c.b16 %v331, %v327
      %v360 = vpack.c.b16 %v332, %v328
      %v361 = vpack.c.b16 %v337, %v333
      %v362 = vpack.c.b16 %v338, %v334
      %v363 = vpack.c.b16 %v339, %v335
      %v364 = vpack.c.b16 %v340, %v336
      %v365 = vpack.c.b16 %v345, %v341
      %v366 = vpack.c.b16 %v346, %v342
      %v367 = vpack.c.b16 %v347, %v343
      %v368 = vpack.c.b16 %v348, %v344
      %v369 = vpack.c.b16 %v353, %v349
      %v370 = vpack.c.b16 %v354, %v350
      %v371 = vpack.c.b16 %v355, %v351
      %v372 = vpack.c.b16 %v356, %v352
      %v453 = vunpack.c.l.b16 %v245
      %v454 = vunpack.c.l.b16 %v246
      %v455 = vunpack.c.l.b16 %v247
      %v456 = vunpack.c.l.b16 %v248
      %v457 = vunpack.c.l.b16 %v249
      %v458 = vunpack.c.l.b16 %v250
      %v459 = vunpack.c.l.b16 %v251
      %v460 = vunpack.c.l.b16 %v252
      %v461 = vunpack.c.l.b16 %v253
      %v462 = vunpack.c.l.b16 %v254
      %v463 = vunpack.c.l.b16 %v255
      %v464 = vunpack.c.l.b16 %v256
      %v465 = vunpack.c.l.b16 %v257
      %v466 = vunpack.c.l.b16 %v258
      %v467 = vunpack.c.l.b16 %v259
      %v468 = vunpack.c.l.b16 %v260
      %v469 = vunpack.c.l.b16 %v261
      %v470 = vunpack.c.l.b16 %v262
      %v471 = vunpack.c.l.b16 %v263
      %v472 = vunpack.c.l.b16 %v264
      %v473 = vunpack.c.l.b16 %v265
      %v474 = vunpack.c.l.b16 %v266
      %v475 = vunpack.c.l.b16 %v267
      %v476 = vunpack.c.l.b16 %v268
      %v477 = vunpack.c.l.b16 %v269
      %v478 = vunpack.c.l.b16 %v270
      %v479 = vunpack.c.l.b16 %v271
      %v480 = vunpack.c.l.b16 %v272
      %v481 = vunpack.c.l.b16 %v273
      %v482 = vunpack.c.l.b16 %v274
      %v483 = vunpack.c.l.b16 %v275
      %v484 = vunpack.c.l.b16 %v276
      %v485 = vunpack.c.l.b16 %v277
      %v486 = vunpack.c.l.b16 %v278
      %v487 = vunpack.c.l.b16 %v279
      %v488 = vunpack.c.l.b16 %v280
      %v489 = vunpack.c.l.b16 %v281
      %v490 = vunpack.c.l.b16 %v282
      %v491 = vunpack.c.l.b16 %v283
      %v492 = vunpack.c.l.b16 %v284
      %v493 = vunpack.c.l.b16 %v285
      %v494 = vunpack.c.l.b16 %v286
      %v495 = vunpack.c.l.b16 %v287
      %v496 = vunpack.c.l.b16 %v288
      %v497 = vunpack.c.l.b16 %v289
      %v498 = vunpack.c.l.b16 %v290
      %v499 = vunpack.c.l.b16 %v291
      %v500 = vunpack.c.l.b16 %v292
      %v501 = vunpack.c.l.b16 %v293
      %v502 = vunpack.c.l.b16 %v294
      %v503 = vunpack.c.l.b16 %v295
      %v504 = vunpack.c.l.b16 %v296
      %v505 = vunpack.c.l.b16 %v297
      %v506 = vunpack.c.l.b16 %v298
      %v507 = vunpack.c.l.b16 %v299
      %v508 = vunpack.c.l.b16 %v300
      %v509 = vunpack.c.l.b16 %v301
      %v510 = vunpack.c.l.b16 %v302
      %v511 = vunpack.c.l.b16 %v303
      %v512 = vunpack.c.l.b16 %v304
      %v513 = vunpack.c.l.b16 %v305
      %v514 = vunpack.c.l.b16 %v306
      %v515 = vunpack.c.l.b16 %v307
      %v516 = vunpack.c.l.b16 %v308
      %v517 = vpack.c.b16 %v454, %v453
      %v518 = vpack.c.b16 %v456, %v455
      %v519 = vpack.c.b16 %v458, %v457
      %v520 = vpack.c.b16 %v460, %v459
      %v521 = vpack.c.b16 %v462, %v461
      %v522 = vpack.c.b16 %v464, %v463
      %v523 = vpack.c.b16 %v466, %v465
      %v524 = vpack.c.b16 %v468, %v467
      %v525 = vpack.c.b16 %v470, %v469
      %v526 = vpack.c.b16 %v472, %v471
      %v527 = vpack.c.b16 %v474, %v473
      %v528 = vpack.c.b16 %v476, %v475
      %v529 = vpack.c.b16 %v478, %v477
      %v530 = vpack.c.b16 %v480, %v479
      %v531 = vpack.c.b16 %v482, %v481
      %v532 = vpack.c.b16 %v484, %v483
      %v533 = vpack.c.b16 %v486, %v485
      %v534 = vpack.c.b16 %v488, %v487
      %v535 = vpack.c.b16 %v490, %v489
      %v536 = vpack.c.b16 %v492, %v491
      %v537 = vpack.c.b16 %v494, %v493
      %v538 = vpack.c.b16 %v496, %v495
      %v539 = vpack.c.b16 %v498, %v497
      %v540 = vpack.c.b16 %v500, %v499
      %v541 = vpack.c.b16 %v502, %v501
      %v542 = vpack.c.b16 %v504, %v503
      %v543 = vpack.c.b16 %v506, %v505
      %v544 = vpack.c.b16 %v508, %v507
      %v545 = vpack.c.b16 %v510, %v509
      %v546 = vpack.c.b16 %v512, %v511
      %v547 = vpack.c.b16 %v514, %v513
      %v548 = vpack.c.b16 %v516, %v515
      %581 = vmatpush.bf16.msra.mxu0 %v524
      %582 = vmatpush.bf16.msra.mxu0 %v523
      %583 = vmatpush.bf16.msra.mxu0 %v522
      %584 = vmatpush.bf16.msra.mxu0 %v521
      %585 = vmatpush.bf16.msra.mxu0 %v520
      %586 = vmatpush.bf16.msra.mxu0 %v519
      %587 = vmatpush.bf16.msra.mxu0 %v518
      %588 = vmatpush.bf16.msra.mxu0 %v517
      %589 = vmatmul.bf16.gmra.mxu0 %v357
      %v590 = vpop.f32.mrf.mxu0
      %v591 = vadd.f32 0.0, %v590
      %v592 = vpop.f32.mrf.mxu0
      %v593 = vadd.f32 0.0, %v592
      %594 = vmatmul.bf16.gmra.mxu0 %v361
      %v595 = vpop.f32.mrf.mxu0
      %v596 = vadd.f32 0.0, %v595
      %v597 = vpop.f32.mrf.mxu0
      %v598 = vadd.f32 0.0, %v597
      %599 = vmatmul.bf16.gmra.mxu0 %v365
      %v600 = vpop.f32.mrf.mxu0
      %v601 = vadd.f32 0.0, %v600
      %v602 = vpop.f32.mrf.mxu0
      %v603 = vadd.f32 0.0, %v602
      %604 = vmatmul.bf16.gmra.mxu0 %v369
      %v605 = vpop.f32.mrf.mxu0
      %v606 = vadd.f32 0.0, %v605
      %v607 = vpop.f32.mrf.mxu0
      %v608 = vadd.f32 0.0, %v607
      %609 = vdwg.mxu0
      %610 = vmatpush.bf16.msra.mxu0 %v532
      %611 = vmatpush.bf16.msra.mxu0 %v531
      %612 = vmatpush.bf16.msra.mxu0 %v530
      %613 = vmatpush.bf16.msra.mxu0 %v529
      %614 = vmatpush.bf16.msra.mxu0 %v528
      %615 = vmatpush.bf16.msra.mxu0 %v527
      %616 = vmatpush.bf16.msra.mxu0 %v526
      %617 = vmatpush.bf16.msra.mxu0 %v525
      %618 = vmatmul.bf16.gmra.mxu0 %v358
      %v619 = vpop.f32.mrf.mxu0
      %v620 = vadd.f32 %v591, %v619
      %v621 = vpop.f32.mrf.mxu0
      %v622 = vadd.f32 %v593, %v621
      %623 = vmatmul.bf16.gmra.mxu0 %v362
      %v624 = vpop.f32.mrf.mxu0
      %v625 = vadd.f32 %v596, %v624
      %v626 = vpop.f32.mrf.mxu0
      %v627 = vadd.f32 %v598, %v626
      %628 = vmatmul.bf16.gmra.mxu0 %v366
      %v629 = vpop.f32.mrf.mxu0
      %v630 = vadd.f32 %v601, %v629
      %v631 = vpop.f32.mrf.mxu0
      %v632 = vadd.f32 %v603, %v631
      %633 = vmatmul.bf16.gmra.mxu0 %v370
      %v634 = vpop.f32.mrf.mxu0
      %v635 = vadd.f32 %v606, %v634
      %v636 = vpop.f32.mrf.mxu0
      %v637 = vadd.f32 %v608, %v636
      %638 = vdwg.mxu0
      %639 = vmatpush.bf16.msra.mxu0 %v540
      %640 = vmatpush.bf16.msra.mxu0 %v539
      %641 = vmatpush.bf16.msra.mxu0 %v538
      %642 = vmatpush.bf16.msra.mxu0 %v537
      %643 = vmatpush.bf16.msra.mxu0 %v536
      %644 = vmatpush.bf16.msra.mxu0 %v535
      %645 = vmatpush.bf16.msra.mxu0 %v534
      %646 = vmatpush.bf16.msra.mxu0 %v533
      %647 = vmatmul.bf16.gmra.mxu0 %v359
      %v648 = vpop.f32.mrf.mxu0
      %v649 = vadd.f32 %v620, %v648
      %v650 = vpop.f32.mrf.mxu0
      %v651 = vadd.f32 %v622, %v650
      %652 = vmatmul.bf16.gmra.mxu0 %v363
      %v653 = vpop.f32.mrf.mxu0
      %v654 = vadd.f32 %v625, %v653
      %v655 = vpop.f32.mrf.mxu0
      %v656 = vadd.f32 %v627, %v655
      %657 = vmatmul.bf16.gmra.mxu0 %v367
      %v658 = vpop.f32.mrf.mxu0
      %v659 = vadd.f32 %v630, %v658
      %v660 = vpop.f32.mrf.mxu0
      %v661 = vadd.f32 %v632, %v660
      %662 = vmatmul.bf16.gmra.mxu0 %v371
      %v663 = vpop.f32.mrf.mxu0
      %v664 = vadd.f32 %v635, %v663
      %v665 = vpop.f32.mrf.mxu0
      %v666 = vadd.f32 %v637, %v665
      %667 = vdwg.mxu0
      %668 = vmatpush.bf16.msra.mxu0 %v548
      %669 = vmatpush.bf16.msra.mxu0 %v547
      %670 = vmatpush.bf16.msra.mxu0 %v546
      %671 = vmatpush.bf16.msra.mxu0 %v545
      %672 = vmatpush.bf16.msra.mxu0 %v544
      %673 = vmatpush.bf16.msra.mxu0 %v543
      %674 = vmatpush.bf16.msra.mxu0 %v542
      %675 = vmatpush.bf16.msra.mxu0 %v541
      %676 = vmatmul.bf16.gmra.mxu0 %v360
      %v677 = vpop.f32.mrf.mxu0
      %v678 = vadd.f32 %v649, %v677
      %v679 = vpop.f32.mrf.mxu0
      %v680 = vadd.f32 %v651, %v679
      %681 = vmatmul.bf16.gmra.mxu0 %v364
      %v682 = vpop.f32.mrf.mxu0
      %v683 = vadd.f32 %v654, %v682
      %v684 = vpop.f32.mrf.mxu0
      %v685 = vadd.f32 %v656, %v684
      %686 = vmatmul.bf16.gmra.mxu0 %v368
      %v687 = vpop.f32.mrf.mxu0
      %v688 = vadd.f32 %v659, %v687
      %v689 = vpop.f32.mrf.mxu0
      %v690 = vadd.f32 %v661, %v689
      %691 = vmatmul.bf16.gmra.mxu0 %v372
      %v692 = vpop.f32.mrf.mxu0
      %v693 = vadd.f32 %v664, %v692
      %v694 = vpop.f32.mrf.mxu0
      %v695 = vadd.f32 %v666, %v694
      %696 = vdwg.mxu0
      %v697 = vpack.c.bf16 %v678, %v678
      %v698 = vpack.c.bf16 %v680, %v680
      %v699 = vpack.c.bf16 %v683, %v683
      %v700 = vpack.c.bf16 %v685, %v685
      %v701 = vpack.c.bf16 %v688, %v688
      %v702 = vpack.c.bf16 %v690, %v690
      %v703 = vpack.c.bf16 %v693, %v693
      %v704 = vpack.c.bf16 %v695, %v695
      %705 = vst [vmem:[%s221] sm:$0xf] %v697
      %706 = vst [vmem:[%s221 + $0x4] sm:$0xf] %v698
      %707 = vst [vmem:[%s221 + $0x8] sm:$0xf] %v699
      %708 = vst [vmem:[%s221 + $0xc] sm:$0xf] %v700
      %709 = vst [vmem:[%s221 + $0x10] sm:$0xf] %v701
      %710 = vst [vmem:[%s221 + $0x14] sm:$0xf] %v702
      %711 = vst [vmem:[%s221 + $0x18] sm:$0xf] %v703
      %712 = vst [vmem:[%s221 + $0x1c] sm:$0xf] %v704
      %v713 = vadd.f32 %v678, %v680
      %v714 = vadd.f32 %v713, %v683
      %v715 = vadd.f32 %v714, %v685
      %v716 = vadd.f32 %v715, %v688
      %v717 = vadd.f32 %v716, %v690
      %v718 = vadd.f32 %v717, %v693
      %v719 = vadd.f32 %v718, %v695
      %v720 = vrot.slane %v719, 4
      %v721 = vadd.f32 %v719, %v720
      %v722 = vrot.slane %v721, 2
      %v723 = vadd.f32 %v721, %v722
      %v724 = vrot.slane %v723, 1
      %v725 = vadd.f32 %v723, %v724
      %v726 = vmul.f32 %v678, %v678
      %v727 = vmul.f32 %v680, %v680
      %v728 = vmul.f32 %v683, %v683
      %v729 = vmul.f32 %v685, %v685
      %v730 = vmul.f32 %v688, %v688
      %v731 = vmul.f32 %v690, %v690
      %v732 = vmul.f32 %v693, %v693
      %v733 = vmul.f32 %v695, %v695
      %v734 = vadd.f32 %v726, %v727
      %v735 = vadd.f32 %v734, %v728
      %v736 = vadd.f32 %v735, %v729
      %v737 = vadd.f32 %v736, %v730
      %v738 = vadd.f32 %v737, %v731
      %v739 = vadd.f32 %v738, %v732
      %v740 = vadd.f32 %v739, %v733
      %v741 = vrot.slane %v740, 4
      %v742 = vadd.f32 %v740, %v741
      %v743 = vrot.slane %v742, 2
      %v744 = vadd.f32 %v742, %v743
      %v745 = vrot.slane %v744, 1
      %v746 = vadd.f32 %v744, %v745
      %vm747 = vcmask 1040384
      %v748 = vsel %vm747, %v725, %v746
      %749 = vst [vmem:[%s227] sm:$0x3] %v748
      %s750 = smul.u32 8, %s20
      %p751 = scmp.lt.s32.totalorder %s19, 1
      %s752 = scalar_select %p751, %s19, 1
      %p753 = scmp.lt.s32.totalorder %s750, 7
      %s754 = scalar_select %p753, %s750, 7
      %s755 = smul.addr %s752, 8
      %s756 = sadd.s32 %s754, %s755
      %s757 = smul.addr %s756, 4
      %s758 = scalar_lea.vmem %s2, %s757
      %s759 = sadd.s32 %s19, %s20
      %p760 = scmp.lt.s32.totalorder %s759, 1
      %s761 = scalar_select %p760, %s759, 1
      %s762 = smul.addr %s761, 2
      %s763 = scalar_lea.vmem %s3, %s762
      // Predicated region
      $region29: #{discriminator_forward.17} parent=27 // pred_check
        %p764 = pneg %p96
      $region30: #{discriminator_forward.17} parent=27 // pred_check_branch
        %766 = sbr.rel (%p764) target = $region32
      $region31: #{discriminator_forward.17} parent=27 // pred_region
        %s767 = smul.u32 8, %s20
      $region32: #{discriminator_forward.17} parent=27 // pred_fallthru
        _
      // Predicated region
      $region33: #{discriminator_forward.17} parent=27 // pred_check
        %p768 = pneg %p124
      $region34: #{discriminator_forward.17} parent=27 // pred_check_branch
        %770 = sbr.rel (%p768) target = $region36
      $region35: #{discriminator_forward.17} parent=27 // pred_region
        %s771 = sadd.s32 %s19, %s20
      $region36: #{discriminator_forward.17} parent=27 // pred_fallthru
        _
    $region28: #{discriminator_forward.17} parent=5 // pred_fallthru
      _
    %p772 = scmp.le.s32.totalorder 2, %s10
    // Predicated region
    $region37: #{discriminator_forward.17} parent=5 // pred_check
      %p773 = pneg %p772
    $region38: #{discriminator_forward.17} parent=5 // pred_check_branch
      %775 = sbr.rel (%p773) target = $region40
    $region39: #{discriminator_forward.17} parent=5 // pred_region
      %s776 = ssub.s32 %s10, 2
      // Predicated region
      $region41: #{discriminator_forward.17} parent=39 // pred_check
        %p777 = pneg %p102
      $region42: #{discriminator_forward.17} parent=39 // pred_check_branch
        %779 = sbr.rel (%p777) target = $region44
      $region43: #{discriminator_forward.17} parent=39 // pred_region
        %s780 = smul.u32 8, %s22
        %p781 = scmp.lt.s32.totalorder %s21, 1
        %s782 = scalar_select %p781, %s21, 1
        %p783 = scmp.lt.s32.totalorder %s780, 7
        %s784 = scalar_select %p783, %s780, 7
        %s785 = smul.addr %s782, 8
        %s786 = sadd.s32 %s784, %s785
        %s787 = smul.addr %s786, 4
        %s788 = scalar_lea.vmem %s2, %s787
      $region44: #{discriminator_forward.17} parent=39 // pred_fallthru
        _
      // Predicated region
      $region45: #{discriminator_forward.17} parent=39 // pred_check
        %p789 = pneg %p130
      $region46: #{discriminator_forward.17} parent=39 // pred_check_branch
        %791 = sbr.rel (%p789) target = $region48
      $region47: #{discriminator_forward.17} parent=39 // pred_region
        %s792 = sadd.s32 %s21, %s22
        %p793 = scmp.lt.s32.totalorder %s792, 1
        %s794 = scalar_select %p793, %s792, 1
        %s795 = smul.addr %s794, 2
        %s796 = scalar_lea.vmem %s3, %s795
      $region48: #{discriminator_forward.17} parent=39 // pred_fallthru
        _
    $region40: #{discriminator_forward.17} parent=5 // pred_fallthru
      _
  $region6: #{discriminator_forward.17} parent=0 // loop_footer
    %s14 = sadd.s32 1, %s10
  $region7: #{discriminator_forward.17} parent=0 // loop_footer_branch
    %9 = sbr.rel target = $region3
  $region8: #{discriminator_forward.17} parent=0 // loop_exit
    _

// kernel: discriminator_forward.18
$region0: #{discriminator_forward.18}
  #allocation0 [shape = 'u32[]', space=smem, size = 0x4, offset = 0x4, fixed_abs, tag = 'smem constant byte address 0x4 - core index']
  #allocation1 [shape = 'u32[72,128]{1,0:T(1,128)}', space=vmem, size = 0x9000, scoped, tag = 'internal scratch']
  %s0 = inlined_call_operand.vmem [shape: bf16[2,64,128], index: 0, kind: input, shape index: {}]
  %s1 = inlined_call_operand.vmem [shape: f32[2,2,128], index: 1, kind: input, shape index: {}]
  %s2 = inlined_call_operand.vmem [shape: bf16[2,64,128], index: 2, kind: output, shape index: {}]
  %s3 = sld [smem:[#allocation0]]
  $region41: #{discriminator_forward.18} parent=0
    _
  %s5 = ssub.s32 1, %s3
  %s6 = scalar_select 0, %s5, %s3
  loop: start=0, step=1, limit=4
  $region2: #{discriminator_forward.18} parent=0 // loop_pre_header
    _
  $region3: #{discriminator_forward.18} parent=0 // loop_header
    %s8 = sphi 0, %s12
    %p9 = scmp.ge.s32.totalorder %s8, 4
    %s15 = sphi 0, %s27
    %s16 = sphi 0, %s23
    %s17 = sphi 0, %s15
    %s18 = sphi 0, %s16
    %s19 = sphi 0, %s17
    %s20 = sphi 0, %s18
    %s32 = sphi 0, %s34
    %s35 = sphi 0, %s32
    %s36 = sphi 0, %s35
    %s52 = sphi 0, %s36
    %s58 = sphi 0, %s60
    %s61 = sphi 0, %s58
    %s62 = sphi 0, %s61
    %s78 = sphi 0, %s62
    %s86 = sphi 0, %s88
    %s89 = sphi 0, %s86
    %s90 = sphi 0, %s89
    %s106 = sphi 0, %s90
  $region4: #{discriminator_forward.18} parent=0 // loop_header_branch
    %11 = sbr.rel (%p9) target = $region8
  $region5: #{discriminator_forward.18} parent=0 // loop_body
    %s13 = ssub.s32 %s8, 1
    %s14 = ssub.s32 %s8, 2
    %s21 = sadd.s32 1, %s16
    %p22 = scmp.ge.s32.totalorder %s21, 1
    %s23 = scalar_select %p22, 0, %s21
    %s24 = sadd.s32 1, %s15
    %s25 = scalar_select %p22, %s24, %s15
    %p26 = scmp.ge.s32.totalorder %s25, 2
    %s27 = scalar_select %p26, 0, %s25
    %s28 = ssub.s32 %s15, %s27
    %s29 = ssub.s32 %s16, %s23
    %s30 = sor.u32 %s28, %s29
    %p31 = scmp.eq.s32.totalorder %s30, 0
    %s33 = sadd.s32 %s32, 1
    %s34 = scalar_select %p31, %s32, %s33
    %p37 = pneg %p31
    %p38 = scmp.eq.s32.totalorder %s8, 1
    %p39 = por %p37, %p38
    %p40 = scmp.ne.s32.totalorder %s32, %s35
    %p41 = scmp.eq.s32.totalorder %s8, 0
    %p42 = por %p40, %p41
    %p43 = scmp.ne.s32.totalorder %s32, %s35
    %p44 = scmp.eq.s32.totalorder %s13, 1
    %p45 = por %p43, %p44
    %p46 = scmp.ne.s32.totalorder %s35, %s36
    %p47 = scmp.eq.s32.totalorder %s13, 0
    %p48 = por %p46, %p47
    %p49 = scmp.ne.s32.totalorder %s35, %s36
    %p50 = scmp.eq.s32.totalorder %s14, 1
    %p51 = por %p49, %p50
    %p53 = scmp.ne.s32.totalorder %s36, %s52
    %p54 = scmp.eq.s32.totalorder %s14, 0
    %p55 = por %p53, %p54
    %s56 = ssub.s32 %s15, %s27
    %p57 = scmp.eq.s32.totalorder %s56, 0
    %s59 = sadd.s32 %s58, 1
    %s60 = scalar_select %p57, %s58, %s59
    %p63 = pneg %p57
    %p64 = scmp.eq.s32.totalorder %s8, 1
    %p65 = por %p63, %p64
    %p66 = scmp.ne.s32.totalorder %s58, %s61
    %p67 = scmp.eq.s32.totalorder %s8, 0
    %p68 = por %p66, %p67
    %p69 = scmp.ne.s32.totalorder %s58, %s61
    %p70 = scmp.eq.s32.totalorder %s13, 1
    %p71 = por %p69, %p70
    %p72 = scmp.ne.s32.totalorder %s61, %s62
    %p73 = scmp.eq.s32.totalorder %s13, 0
    %p74 = por %p72, %p73
    %p75 = scmp.ne.s32.totalorder %s61, %s62
    %p76 = scmp.eq.s32.totalorder %s14, 1
    %p77 = por %p75, %p76
    %p79 = scmp.ne.s32.totalorder %s62, %s78
    %p80 = scmp.eq.s32.totalorder %s14, 0
    %p81 = por %p79, %p80
    %s82 = ssub.s32 %s15, %s27
    %s83 = ssub.s32 %s16, %s23
    %s84 = sor.u32 %s82, %s83
    %p85 = scmp.eq.s32.totalorder %s84, 0
    %s87 = sadd.s32 %s86, 1
    %s88 = scalar_select %p85, %s86, %s87
    %p91 = pneg %p85
    %p92 = scmp.eq.s32.totalorder %s8, 1
    %p93 = por %p91, %p92
    %p94 = scmp.ne.s32.totalorder %s86, %s89
    %p95 = scmp.eq.s32.totalorder %s8, 0
    %p96 = por %p94, %p95
    %p97 = scmp.ne.s32.totalorder %s86, %s89
    %p98 = scmp.eq.s32.totalorder %s13, 1
    %p99 = por %p97, %p98
    %p100 = scmp.ne.s32.totalorder %s89, %s90
    %p101 = scmp.eq.s32.totalorder %s13, 0
    %p102 = por %p100, %p101
    %p103 = scmp.ne.s32.totalorder %s89, %s90
    %p104 = scmp.eq.s32.totalorder %s14, 1
    %p105 = por %p103, %p104
    %p107 = scmp.ne.s32.totalorder %s90, %s106
    %p108 = scmp.eq.s32.totalorder %s14, 0
    %p109 = por %p107, %p108
    %p110 = scmp.le.s32.totalorder 1, %s8
    %p111 = scmp.lt.s32.totalorder %s8, 3
    %p112 = pnand %p110, %p111
    %p113 = pneg %p112
    // Predicated region
    $region9: #{discriminator_forward.18} parent=5 // pred_check
      _
    $region10: #{discriminator_forward.18} parent=5 // pred_check_branch
      %115 = sbr.rel (%p112) target = $region12
    $region11: #{discriminator_forward.18} parent=5 // pred_region
      %s116 = ssub.s32 %s8, 1
    $region12: #{discriminator_forward.18} parent=5 // pred_fallthru
      _
    %p117 = scmp.lt.s32.totalorder %s8, 2
    // Predicated region
    $region13: #{discriminator_forward.18} parent=5 // pred_check
      %p118 = pneg %p117
    $region14: #{discriminator_forward.18} parent=5 // pred_check_branch
      %120 = sbr.rel (%p118) target = $region16
    $region15: #{discriminator_forward.18} parent=5 // pred_region
      // Predicated region
      $region17: #{discriminator_forward.18} parent=15 // pred_check
        %p121 = pneg %p42
      $region18: #{discriminator_forward.18} parent=15 // pred_check_branch
        %123 = sbr.rel (%p121) target = $region20
      $region19: #{discriminator_forward.18} parent=15 // pred_region
        %s124 = smul.u32 8, %s16
        %p125 = scmp.lt.s32.totalorder %s15, 1
        %s126 = scalar_select %p125, %s15, 1
        %p127 = scmp.lt.s32.totalorder %s124, 7
        %s128 = scalar_select %p127, %s124, 7
        %s129 = smul.addr %s126, 8
        %s130 = sadd.s32 %s128, %s129
        %s131 = smul.addr %s130, 4
        %s132 = scalar_lea.vmem %s0, %s131
        %s133 = smul.u32 8, %s16
      $region20: #{discriminator_forward.18} parent=15 // pred_fallthru
        _
      // Predicated region
      $region21: #{discriminator_forward.18} parent=15 // pred_check
        %p134 = pneg %p68
      $region22: #{discriminator_forward.18} parent=15 // pred_check_branch
        %136 = sbr.rel (%p134) target = $region24
      $region23: #{discriminator_forward.18} parent=15 // pred_region
        %p137 = scmp.lt.s32.totalorder %s15, 1
        %s138 = scalar_select %p137, %s15, 1
        %s139 = smul.addr %s138, 2
        %s140 = scalar_lea.vmem %s1, %s139
      $region24: #{discriminator_forward.18} parent=15 // pred_fallthru
        _
    $region16: #{discriminator_forward.18} parent=5 // pred_fallthru
      _
    %p141 = scmp.le.s32.totalorder 1, %s8
    %p142 = scmp.lt.s32.totalorder %s8, 3
    %p143 = pnand %p141, %p142
    %p144 = pneg %p143
    // Predicated region
    $region25: #{discriminator_forward.18} parent=5 // pred_check
      _
    $region26: #{discriminator_forward.18} parent=5 // pred_check_branch
      %146 = sbr.rel (%p143) target = $region28
    $region27: #{discriminator_forward.18} parent=5 // pred_region
      %s147 = ssub.s32 %s8, 1
      %s148 = smul.u32 8, %s18
      %p149 = scmp.lt.s32.totalorder %s17, 1
      %s150 = scalar_select %p149, %s17, 1
      %p151 = scmp.lt.s32.totalorder %s148, 7
      %s152 = scalar_select %p151, %s148, 7
      %s153 = smul.addr %s150, 8
      %s154 = sadd.s32 %s152, %s153
      %s155 = smul.addr %s154, 4
      %s156 = scalar_lea.vmem %s0, %s155
      %p157 = pneg %p48
      %p158 = pneg %p45
      %p159 = scmp.lt.s32.totalorder %s17, 1
      %s160 = scalar_select %p159, %s17, 1
      %s161 = smul.addr %s160, 2
      %s162 = scalar_lea.vmem %s1, %s161
      %p163 = pneg %p74
      %p164 = pneg %p71
      %p165 = pneg %p102
      %p166 = pneg %p99
      %s167 = smul.u32 8, %s18
      %p168 = scmp.lt.s32.totalorder %s17, 1
      %s169 = scalar_select %p168, %s17, 1
      %p170 = scmp.lt.s32.totalorder %s167, 7
      %s171 = scalar_select %p170, %s167, 7
      %s172 = smul.addr %s169, 8
      %s173 = sadd.s32 %s171, %s172
      %s174 = smul.addr %s173, 4
      %s175 = scalar_lea.vmem %s2, %s174
      %s176 = smul.u32 8, %s18
      %p177 = scmp.lt.s32.totalorder %s17, 1
      %s178 = scalar_select %p177, %s17, 1
      %p179 = scmp.lt.s32.totalorder %s176, 7
      %s180 = scalar_select %p179, %s176, 7
      %s181 = smul.addr %s178, 8
      %s182 = sadd.s32 %s180, %s181
      %s183 = smul.addr %s182, 4
      %s184 = scalar_lea.vmem %s0, %s183
      %s185 = smul.u32 8, %s18
      %p186 = scmp.lt.s32.totalorder %s17, 1
      %s187 = scalar_select %p186, %s17, 1
      %s188 = smul.addr %s187, 2
      %s189 = scalar_lea.vmem %s1, %s188
      %s190 = smul.u32 8, %s18
      %p191 = scmp.lt.s32.totalorder %s17, 1
      %s192 = scalar_select %p191, %s17, 1
      %p193 = scmp.lt.s32.totalorder %s190, 7
      %s194 = scalar_select %p193, %s190, 7
      %s195 = smul.addr %s192, 8
      %s196 = sadd.s32 %s194, %s195
      %s197 = smul.addr %s196, 4
      %s198 = scalar_lea.vmem %s2, %s197
      %s199 = smul.u32 8, %s18
      %v200 = vld [vmem:[%s184] sm:$0xf]
      %v201 = vld [vmem:[%s184 + $0x4] sm:$0xf]
      %v202 = vld [vmem:[%s184 + $0x8] sm:$0xf]
      %v203 = vld [vmem:[%s184 + $0xc] sm:$0xf]
      %v204 = vld [vmem:[%s184 + $0x10] sm:$0xf]
      %v205 = vld [vmem:[%s184 + $0x14] sm:$0xf]
      %v206 = vld [vmem:[%s184 + $0x18] sm:$0xf]
      %v207 = vld [vmem:[%s184 + $0x1c] sm:$0xf]
      %v208 = vunpack.c.l.bf16 %v200
      %v209 = vunpack.c.l.bf16 %v201
      %v210 = vunpack.c.l.bf16 %v202
      %v211 = vunpack.c.l.bf16 %v203
      %v212 = vunpack.c.l.bf16 %v204
      %v213 = vunpack.c.l.bf16 %v205
      %v214 = vunpack.c.l.bf16 %v206
      %v215 = vunpack.c.l.bf16 %v207
      %v216 = vld [vmem:[%s189] sm:$0x3]
      %v217 = vperm.slane %v216, 0
      %v218 = vmul.f32 %v208, %v217
      %v219 = vmul.f32 %v209, %v217
      %v220 = vmul.f32 %v210, %v217
      %v221 = vmul.f32 %v211, %v217
      %v222 = vmul.f32 %v212, %v217
      %v223 = vmul.f32 %v213, %v217
      %v224 = vmul.f32 %v214, %v217
      %v225 = vmul.f32 %v215, %v217
      %v226 = vperm.slane %v216, 1
      %v227 = vadd.f32 %v218, %v226
      %v228 = vadd.f32 %v219, %v226
      %v229 = vadd.f32 %v220, %v226
      %v230 = vadd.f32 %v221, %v226
      %v231 = vadd.f32 %v222, %v226
      %v232 = vadd.f32 %v223, %v226
      %v233 = vadd.f32 %v224, %v226
      %v234 = vadd.f32 %v225, %v226
      %vm235 = vcmp.gt.f32.partialorder %v227, 0.0
      %vm236 = vcmp.gt.f32.partialorder %v228, 0.0
      %vm237 = vcmp.gt.f32.partialorder %v229, 0.0
      %vm238 = vcmp.gt.f32.partialorder %v230, 0.0
      %vm239 = vcmp.gt.f32.partialorder %v231, 0.0
      %vm240 = vcmp.gt.f32.partialorder %v232, 0.0
      %vm241 = vcmp.gt.f32.partialorder %v233, 0.0
      %vm242 = vcmp.gt.f32.partialorder %v234, 0.0
      %v243 = vmul.f32 %v227, 0.2
      %v244 = vmul.f32 %v228, 0.2
      %v245 = vmul.f32 %v229, 0.2
      %v246 = vmul.f32 %v230, 0.2
      %v247 = vmul.f32 %v231, 0.2
      %v248 = vmul.f32 %v232, 0.2
      %v249 = vmul.f32 %v233, 0.2
      %v250 = vmul.f32 %v234, 0.2
      %v251 = vsel %vm235, %v227, %v243
      %v252 = vsel %vm236, %v228, %v244
      %v253 = vsel %vm237, %v229, %v245
      %v254 = vsel %vm238, %v230, %v246
      %v255 = vsel %vm239, %v231, %v247
      %v256 = vsel %vm240, %v232, %v248
      %v257 = vsel %vm241, %v233, %v249
      %v258 = vsel %vm242, %v234, %v250
      %v259 = vpack.c.bf16 %v251, %v251
      %v260 = vpack.c.bf16 %v252, %v252
      %v261 = vpack.c.bf16 %v253, %v253
      %v262 = vpack.c.bf16 %v254, %v254
      %v263 = vpack.c.bf16 %v255, %v255
      %v264 = vpack.c.bf16 %v256, %v256
      %v265 = vpack.c.bf16 %v257, %v257
      %v266 = vpack.c.bf16 %v258, %v258
      %267 = vst [vmem:[%s198] sm:$0xf] %v259
      %268 = vst [vmem:[%s198 + $0x4] sm:$0xf] %v260
      %269 = vst [vmem:[%s198 + $0x8] sm:$0xf] %v261
      %270 = vst [vmem:[%s198 + $0xc] sm:$0xf] %v262
      %271 = vst [vmem:[%s198 + $0x10] sm:$0xf] %v263
      %272 = vst [vmem:[%s198 + $0x14] sm:$0xf] %v264
      %273 = vst [vmem:[%s198 + $0x18] sm:$0xf] %v265
      %274 = vst [vmem:[%s198 + $0x1c] sm:$0xf] %v266
      %s275 = smul.u32 8, %s18
      %p276 = scmp.lt.s32.totalorder %s17, 1
      %s277 = scalar_select %p276, %s17, 1
      %p278 = scmp.lt.s32.totalorder %s275, 7
      %s279 = scalar_select %p278, %s275, 7
      %s280 = smul.addr %s277, 8
      %s281 = sadd.s32 %s279, %s280
      %s282 = smul.addr %s281, 4
      %s283 = scalar_lea.vmem %s2, %s282
      // Predicated region
      $region29: #{discriminator_forward.18} parent=27 // pred_check
        %p284 = pneg %p99
      $region30: #{discriminator_forward.18} parent=27 // pred_check_branch
        %286 = sbr.rel (%p284) target = $region32
      $region31: #{discriminator_forward.18} parent=27 // pred_region
        %s287 = smul.u32 8, %s18
      $region32: #{discriminator_forward.18} parent=27 // pred_fallthru
        _
    $region28: #{discriminator_forward.18} parent=5 // pred_fallthru
      _
    %p288 = scmp.le.s32.totalorder 2, %s8
    // Predicated region
    $region33: #{discriminator_forward.18} parent=5 // pred_check
      %p289 = pneg %p288
    $region34: #{discriminator_forward.18} parent=5 // pred_check_branch
      %291 = sbr.rel (%p289) target = $region36
    $region35: #{discriminator_forward.18} parent=5 // pred_region
      %s292 = ssub.s32 %s8, 2
      // Predicated region
      $region37: #{discriminator_forward.18} parent=35 // pred_check
        %p293 = pneg %p105
      $region38: #{discriminator_forward.18} parent=35 // pred_check_branch
        %295 = sbr.rel (%p293) target = $region40
      $region39: #{discriminator_forward.18} parent=35 // pred_region
        %s296 = smul.u32 8, %s20
        %p297 = scmp.lt.s32.totalorder %s19, 1
        %s298 = scalar_select %p297, %s19, 1
        %p299 = scmp.lt.s32.totalorder %s296, 7
        %s300 = scalar_select %p299, %s296, 7
        %s301 = smul.addr %s298, 8
        %s302 = sadd.s32 %s300, %s301
        %s303 = smul.addr %s302, 4
        %s304 = scalar_lea.vmem %s2, %s303
      $region40: #{discriminator_forward.18} parent=35 // pred_fallthru
        _
    $region36: #{discriminator_forward.18} parent=5 // pred_fallthru
      _
  $region6: #{discriminator_forward.18} parent=0 // loop_footer
    %s12 = sadd.s32 1, %s8
  $region7: #{discriminator_forward.18} parent=0 // loop_footer_branch
    %7 = sbr.rel target = $region3
  $region8: #{discriminator_forward.18} parent=0 // loop_exit
    _

// kernel: discriminator_forward.20
$region0: #{discriminator_forward.20}
  #allocation0 [shape = 'u32[]', space=smem, size = 0x4, offset = 0x4, fixed_abs, tag = 'smem constant byte address 0x4 - core index']
  #allocation1 [shape = 'u32[72,128]{1,0:T(1,128)}', space=vmem, size = 0x9000, scoped, tag = 'internal scratch']
  %s0 = inlined_call_operand.vmem [shape: bf16[2,16,128], index: 0, kind: input, shape index: {}]
  %s1 = inlined_call_operand.vmem [shape: f32[2,2,128], index: 1, kind: input, shape index: {}]
  %s2 = inlined_call_operand.vmem [shape: bf16[2,16,128], index: 2, kind: output, shape index: {}]
  %s3 = sld [smem:[#allocation0]]
  $region41: #{discriminator_forward.20} parent=0
    _
  %s5 = ssub.s32 1, %s3
  %s6 = scalar_select 0, %s5, %s3
  loop: start=0, step=1, limit=4
  $region2: #{discriminator_forward.20} parent=0 // loop_pre_header
    _
  $region3: #{discriminator_forward.20} parent=0 // loop_header
    %s8 = sphi 0, %s12
    %p9 = scmp.ge.s32.totalorder %s8, 4
    %s15 = sphi 0, %s27
    %s16 = sphi 0, %s23
    %s17 = sphi 0, %s15
    %s18 = sphi 0, %s16
    %s19 = sphi 0, %s17
    %s20 = sphi 0, %s18
    %s32 = sphi 0, %s34
    %s35 = sphi 0, %s32
    %s36 = sphi 0, %s35
    %s52 = sphi 0, %s36
    %s58 = sphi 0, %s60
    %s61 = sphi 0, %s58
    %s62 = sphi 0, %s61
    %s78 = sphi 0, %s62
    %s86 = sphi 0, %s88
    %s89 = sphi 0, %s86
    %s90 = sphi 0, %s89
    %s106 = sphi 0, %s90
  $region4: #{discriminator_forward.20} parent=0 // loop_header_branch
    %11 = sbr.rel (%p9) target = $region8
  $region5: #{discriminator_forward.20} parent=0 // loop_body
    %s13 = ssub.s32 %s8, 1
    %s14 = ssub.s32 %s8, 2
    %s21 = sadd.s32 1, %s16
    %p22 = scmp.ge.s32.totalorder %s21, 1
    %s23 = scalar_select %p22, 0, %s21
    %s24 = sadd.s32 1, %s15
    %s25 = scalar_select %p22, %s24, %s15
    %p26 = scmp.ge.s32.totalorder %s25, 2
    %s27 = scalar_select %p26, 0, %s25
    %s28 = ssub.s32 %s15, %s27
    %s29 = ssub.s32 %s16, %s23
    %s30 = sor.u32 %s28, %s29
    %p31 = scmp.eq.s32.totalorder %s30, 0
    %s33 = sadd.s32 %s32, 1
    %s34 = scalar_select %p31, %s32, %s33
    %p37 = pneg %p31
    %p38 = scmp.eq.s32.totalorder %s8, 1
    %p39 = por %p37, %p38
    %p40 = scmp.ne.s32.totalorder %s32, %s35
    %p41 = scmp.eq.s32.totalorder %s8, 0
    %p42 = por %p40, %p41
    %p43 = scmp.ne.s32.totalorder %s32, %s35
    %p44 = scmp.eq.s32.totalorder %s13, 1
    %p45 = por %p43, %p44
    %p46 = scmp.ne.s32.totalorder %s35, %s36
    %p47 = scmp.eq.s32.totalorder %s13, 0
    %p48 = por %p46, %p47
    %p49 = scmp.ne.s32.totalorder %s35, %s36
    %p50 = scmp.eq.s32.totalorder %s14, 1
    %p51 = por %p49, %p50
    %p53 = scmp.ne.s32.totalorder %s36, %s52
    %p54 = scmp.eq.s32.totalorder %s14, 0
    %p55 = por %p53, %p54
    %s56 = ssub.s32 %s15, %s27
    %p57 = scmp.eq.s32.totalorder %s56, 0
    %s59 = sadd.s32 %s58, 1
    %s60 = scalar_select %p57, %s58, %s59
    %p63 = pneg %p57
    %p64 = scmp.eq.s32.totalorder %s8, 1
    %p65 = por %p63, %p64
    %p66 = scmp.ne.s32.totalorder %s58, %s61
    %p67 = scmp.eq.s32.totalorder %s8, 0
    %p68 = por %p66, %p67
    %p69 = scmp.ne.s32.totalorder %s58, %s61
    %p70 = scmp.eq.s32.totalorder %s13, 1
    %p71 = por %p69, %p70
    %p72 = scmp.ne.s32.totalorder %s61, %s62
    %p73 = scmp.eq.s32.totalorder %s13, 0
    %p74 = por %p72, %p73
    %p75 = scmp.ne.s32.totalorder %s61, %s62
    %p76 = scmp.eq.s32.totalorder %s14, 1
    %p77 = por %p75, %p76
    %p79 = scmp.ne.s32.totalorder %s62, %s78
    %p80 = scmp.eq.s32.totalorder %s14, 0
    %p81 = por %p79, %p80
    %s82 = ssub.s32 %s15, %s27
    %s83 = ssub.s32 %s16, %s23
    %s84 = sor.u32 %s82, %s83
    %p85 = scmp.eq.s32.totalorder %s84, 0
    %s87 = sadd.s32 %s86, 1
    %s88 = scalar_select %p85, %s86, %s87
    %p91 = pneg %p85
    %p92 = scmp.eq.s32.totalorder %s8, 1
    %p93 = por %p91, %p92
    %p94 = scmp.ne.s32.totalorder %s86, %s89
    %p95 = scmp.eq.s32.totalorder %s8, 0
    %p96 = por %p94, %p95
    %p97 = scmp.ne.s32.totalorder %s86, %s89
    %p98 = scmp.eq.s32.totalorder %s13, 1
    %p99 = por %p97, %p98
    %p100 = scmp.ne.s32.totalorder %s89, %s90
    %p101 = scmp.eq.s32.totalorder %s13, 0
    %p102 = por %p100, %p101
    %p103 = scmp.ne.s32.totalorder %s89, %s90
    %p104 = scmp.eq.s32.totalorder %s14, 1
    %p105 = por %p103, %p104
    %p107 = scmp.ne.s32.totalorder %s90, %s106
    %p108 = scmp.eq.s32.totalorder %s14, 0
    %p109 = por %p107, %p108
    %p110 = scmp.le.s32.totalorder 1, %s8
    %p111 = scmp.lt.s32.totalorder %s8, 3
    %p112 = pnand %p110, %p111
    %p113 = pneg %p112
    // Predicated region
    $region9: #{discriminator_forward.20} parent=5 // pred_check
      _
    $region10: #{discriminator_forward.20} parent=5 // pred_check_branch
      %115 = sbr.rel (%p112) target = $region12
    $region11: #{discriminator_forward.20} parent=5 // pred_region
      %s116 = ssub.s32 %s8, 1
    $region12: #{discriminator_forward.20} parent=5 // pred_fallthru
      _
    %p117 = scmp.lt.s32.totalorder %s8, 2
    // Predicated region
    $region13: #{discriminator_forward.20} parent=5 // pred_check
      %p118 = pneg %p117
    $region14: #{discriminator_forward.20} parent=5 // pred_check_branch
      %120 = sbr.rel (%p118) target = $region16
    $region15: #{discriminator_forward.20} parent=5 // pred_region
      // Predicated region
      $region17: #{discriminator_forward.20} parent=15 // pred_check
        %p121 = pneg %p42
      $region18: #{discriminator_forward.20} parent=15 // pred_check_branch
        %123 = sbr.rel (%p121) target = $region20
      $region19: #{discriminator_forward.20} parent=15 // pred_region
        %s124 = smul.u32 2, %s16
        %p125 = scmp.lt.s32.totalorder %s15, 1
        %s126 = scalar_select %p125, %s15, 1
        %p127 = scmp.lt.s32.totalorder %s124, 1
        %s128 = scalar_select %p127, %s124, 1
        %s129 = smul.addr %s126, 2
        %s130 = sadd.s32 %s128, %s129
        %s131 = smul.addr %s130, 4
        %s132 = scalar_lea.vmem %s0, %s131
        %s133 = smul.u32 2, %s16
      $region20: #{discriminator_forward.20} parent=15 // pred_fallthru
        _
      // Predicated region
      $region21: #{discriminator_forward.20} parent=15 // pred_check
        %p134 = pneg %p68
      $region22: #{discriminator_forward.20} parent=15 // pred_check_branch
        %136 = sbr.rel (%p134) target = $region24
      $region23: #{discriminator_forward.20} parent=15 // pred_region
        %p137 = scmp.lt.s32.totalorder %s15, 1
        %s138 = scalar_select %p137, %s15, 1
        %s139 = smul.addr %s138, 2
        %s140 = scalar_lea.vmem %s1, %s139
      $region24: #{discriminator_forward.20} parent=15 // pred_fallthru
        _
    $region16: #{discriminator_forward.20} parent=5 // pred_fallthru
      _
    %p141 = scmp.le.s32.totalorder 1, %s8
    %p142 = scmp.lt.s32.totalorder %s8, 3
    %p143 = pnand %p141, %p142
    %p144 = pneg %p143
    // Predicated region
    $region25: #{discriminator_forward.20} parent=5 // pred_check
      _
    $region26: #{discriminator_forward.20} parent=5 // pred_check_branch
      %146 = sbr.rel (%p143) target = $region28
    $region27: #{discriminator_forward.20} parent=5 // pred_region
      %s147 = ssub.s32 %s8, 1
      %s148 = smul.u32 2, %s18
      %p149 = scmp.lt.s32.totalorder %s17, 1
      %s150 = scalar_select %p149, %s17, 1
      %p151 = scmp.lt.s32.totalorder %s148, 1
      %s152 = scalar_select %p151, %s148, 1
      %s153 = smul.addr %s150, 2
      %s154 = sadd.s32 %s152, %s153
      %s155 = smul.addr %s154, 4
      %s156 = scalar_lea.vmem %s0, %s155
      %p157 = pneg %p48
      %p158 = pneg %p45
      %p159 = scmp.lt.s32.totalorder %s17, 1
      %s160 = scalar_select %p159, %s17, 1
      %s161 = smul.addr %s160, 2
      %s162 = scalar_lea.vmem %s1, %s161
      %p163 = pneg %p74
      %p164 = pneg %p71
      %p165 = pneg %p102
      %p166 = pneg %p99
      %s167 = smul.u32 2, %s18
      %p168 = scmp.lt.s32.totalorder %s17, 1
      %s169 = scalar_select %p168, %s17, 1
      %p170 = scmp.lt.s32.totalorder %s167, 1
      %s171 = scalar_select %p170, %s167, 1
      %s172 = smul.addr %s169, 2
      %s173 = sadd.s32 %s171, %s172
      %s174 = smul.addr %s173, 4
      %s175 = scalar_lea.vmem %s2, %s174
      %s176 = smul.u32 2, %s18
      %p177 = scmp.lt.s32.totalorder %s17, 1
      %s178 = scalar_select %p177, %s17, 1
      %p179 = scmp.lt.s32.totalorder %s176, 1
      %s180 = scalar_select %p179, %s176, 1
      %s181 = smul.addr %s178, 2
      %s182 = sadd.s32 %s180, %s181
      %s183 = smul.addr %s182, 4
      %s184 = scalar_lea.vmem %s0, %s183
      %s185 = smul.u32 2, %s18
      %p186 = scmp.lt.s32.totalorder %s17, 1
      %s187 = scalar_select %p186, %s17, 1
      %s188 = smul.addr %s187, 2
      %s189 = scalar_lea.vmem %s1, %s188
      %s190 = smul.u32 2, %s18
      %p191 = scmp.lt.s32.totalorder %s17, 1
      %s192 = scalar_select %p191, %s17, 1
      %p193 = scmp.lt.s32.totalorder %s190, 1
      %s194 = scalar_select %p193, %s190, 1
      %s195 = smul.addr %s192, 2
      %s196 = sadd.s32 %s194, %s195
      %s197 = smul.addr %s196, 4
      %s198 = scalar_lea.vmem %s2, %s197
      %s199 = smul.u32 2, %s18
      %v200 = vld [vmem:[%s184] sm:$0xf]
      %v201 = vld [vmem:[%s184 + $0x4] sm:$0xf]
      %v202 = vunpack.c.l.bf16 %v200
      %v203 = vunpack.c.l.bf16 %v201
      %v204 = vld [vmem:[%s189] sm:$0x3]
      %v205 = vperm.slane %v204, 0
      %v206 = vmul.f32 %v202, %v205
      %v207 = vmul.f32 %v203, %v205
      %v208 = vperm.slane %v204, 1
      %v209 = vadd.f32 %v206, %v208
      %v210 = vadd.f32 %v207, %v208
      %vm211 = vcmp.gt.f32.partialorder %v209, 0.0
      %vm212 = vcmp.gt.f32.partialorder %v210, 0.0
      %v213 = vmul.f32 %v209, 0.2
      %v214 = vmul.f32 %v210, 0.2
      %v215 = vsel %vm211, %v209, %v213
      %v216 = vsel %vm212, %v210, %v214
      %v217 = vpack.c.bf16 %v215, %v215
      %v218 = vpack.c.bf16 %v216, %v216
      %219 = vst [vmem:[%s198] sm:$0xf] %v217
      %220 = vst [vmem:[%s198 + $0x4] sm:$0xf] %v218
      %s221 = smul.u32 2, %s18
      %p222 = scmp.lt.s32.totalorder %s17, 1
      %s223 = scalar_select %p222, %s17, 1
      %p224 = scmp.lt.s32.totalorder %s221, 1
      %s225 = scalar_select %p224, %s221, 1
      %s226 = smul.addr %s223, 2
      %s227 = sadd.s32 %s225, %s226
      %s228 = smul.addr %s227, 4
      %s229 = scalar_lea.vmem %s2, %s228
      // Predicated region
      $region29: #{discriminator_forward.20} parent=27 // pred_check
        %p230 = pneg %p99
      $region30: #{discriminator_forward.20} parent=27 // pred_check_branch
        %232 = sbr.rel (%p230) target = $region32
      $region31: #{discriminator_forward.20} parent=27 // pred_region
        %s233 = smul.u32 2, %s18
      $region32: #{discriminator_forward.20} parent=27 // pred_fallthru
        _
    $region28: #{discriminator_forward.20} parent=5 // pred_fallthru
      _
    %p234 = scmp.le.s32.totalorder 2, %s8
    // Predicated region
    $region33: #{discriminator_forward.20} parent=5 // pred_check
      %p235 = pneg %p234
    $region34: #{discriminator_forward.20} parent=5 // pred_check_branch
      %237 = sbr.rel (%p235) target = $region36
    $region35: #{discriminator_forward.20} parent=5 // pred_region
      %s238 = ssub.s32 %s8, 2
      // Predicated region
      $region37: #{discriminator_forward.20} parent=35 // pred_check
        %p239 = pneg %p105
      $region38: #{discriminator_forward.20} parent=35 // pred_check_branch
        %241 = sbr.rel (%p239) target = $region40
      $region39: #{discriminator_forward.20} parent=35 // pred_region
        %s242 = smul.u32 2, %s20
        %p243 = scmp.lt.s32.totalorder %s19, 1
        %s244 = scalar_select %p243, %s19, 1
        %p245 = scmp.lt.s32.totalorder %s242, 1
        %s246 = scalar_select %p245, %s242, 1
        %s247 = smul.addr %s244, 2
        %s248 = sadd.s32 %s246, %s247
        %s249 = smul.addr %s248, 4
        %s250 = scalar_lea.vmem %s2, %s249
      $region40: #{discriminator_forward.20} parent=35 // pred_fallthru
        _
    $region36: #{discriminator_forward.20} parent=5 // pred_fallthru
      _
  $region6: #{discriminator_forward.20} parent=0 // loop_footer
    %s12 = sadd.s32 1, %s8
  $region7: #{discriminator_forward.20} parent=0 // loop_footer_branch
    %7 = sbr.rel target = $region3
  $region8: #{discriminator_forward.20} parent=0 // loop_exit
    _

// kernel: discriminator_forward.19
$region0: #{discriminator_forward.19}
  #allocation0 [shape = 'u32[]', space=smem, size = 0x4, offset = 0x4, fixed_abs, tag = 'smem constant byte address 0x4 - core index']
  #allocation1 [shape = 'u32[72,128]{1,0:T(1,128)}', space=vmem, size = 0x9000, scoped, tag = 'internal scratch']
  %s0 = inlined_call_operand.vmem [shape: bf16[2,16,1024], index: 0, kind: input, shape index: {}]
  %s1 = inlined_call_operand.vmem [shape: bf16[1024,128], index: 1, kind: input, shape index: {}]
  %s2 = inlined_call_operand.vmem [shape: bf16[2,16,128], index: 2, kind: output, shape index: {0}]
  %s3 = inlined_call_operand.vmem [shape: f32[2,2,128], index: 3, kind: output, shape index: {1}]
  %4 = xla_tuple %s2, %s3
  %s5 = sld [smem:[#allocation0]]
  $region49: #{discriminator_forward.19} parent=0
    _
  %s7 = ssub.s32 1, %s5
  %s8 = scalar_select 0, %s7, %s5
  loop: start=0, step=1, limit=4
  $region2: #{discriminator_forward.19} parent=0 // loop_pre_header
    _
  $region3: #{discriminator_forward.19} parent=0 // loop_header
    %s10 = sphi 0, %s14
    %p11 = scmp.ge.s32.totalorder %s10, 4
    %s17 = sphi 0, %s29
    %s18 = sphi 0, %s25
    %s19 = sphi 0, %s17
    %s20 = sphi 0, %s18
    %s21 = sphi 0, %s19
    %s22 = sphi 0, %s20
    %s34 = sphi 0, %s36
    %s37 = sphi 0, %s34
    %s38 = sphi 0, %s37
    %s54 = sphi 0, %s38
    %s58 = sphi 0, %s58
    %s60 = sphi 0, %s58
    %s61 = sphi 0, %s60
    %s75 = sphi 0, %s61
    %s83 = sphi 0, %s85
    %s86 = sphi 0, %s83
    %s87 = sphi 0, %s86
    %s103 = sphi 0, %s87
    %s111 = sphi 0, %s113
    %s114 = sphi 0, %s111
    %s115 = sphi 0, %s114
    %s131 = sphi 0, %s115
  $region4: #{discriminator_forward.19} parent=0 // loop_header_branch
    %13 = sbr.rel (%p11) target = $region8
  $region5: #{discriminator_forward.19} parent=0 // loop_body
    %s15 = ssub.s32 %s10, 1
    %s16 = ssub.s32 %s10, 2
    %s23 = sadd.s32 1, %s18
    %p24 = scmp.ge.s32.totalorder %s23, 1
    %s25 = scalar_select %p24, 0, %s23
    %s26 = sadd.s32 1, %s17
    %s27 = scalar_select %p24, %s26, %s17
    %p28 = scmp.ge.s32.totalorder %s27, 2
    %s29 = scalar_select %p28, 0, %s27
    %s30 = ssub.s32 %s17, %s29
    %s31 = ssub.s32 %s18, %s25
    %s32 = sor.u32 %s30, %s31
    %p33 = scmp.eq.s32.totalorder %s32, 0
    %s35 = sadd.s32 %s34, 1
    %s36 = scalar_select %p33, %s34, %s35
    %p39 = pneg %p33
    %p40 = scmp.eq.s32.totalorder %s10, 1
    %p41 = por %p39, %p40
    %p42 = scmp.ne.s32.totalorder %s34, %s37
    %p43 = scmp.eq.s32.totalorder %s10, 0
    %p44 = por %p42, %p43
    %p45 = scmp.ne.s32.totalorder %s34, %s37
    %p46 = scmp.eq.s32.totalorder %s15, 1
    %p47 = por %p45, %p46
    %p48 = scmp.ne.s32.totalorder %s37, %s38
    %p49 = scmp.eq.s32.totalorder %s15, 0
    %p50 = por %p48, %p49
    %p51 = scmp.ne.s32.totalorder %s37, %s38
    %p52 = scmp.eq.s32.totalorder %s16, 1
    %p53 = por %p51, %p52
    %p55 = scmp.ne.s32.totalorder %s38, %s54
    %p56 = scmp.eq.s32.totalorder %s16, 0
    %p57 = por %p55, %p56
    %s59 = sadd.s32 %s58, 1
    %p62 = scmp.eq.s32.totalorder %s10, 1
    %p63 = scmp.ne.s32.totalorder %s58, %s60
    %p64 = scmp.eq.s32.totalorder %s10, 0
    %p65 = por %p63, %p64
    %p66 = scmp.ne.s32.totalorder %s58, %s60
    %p67 = scmp.eq.s32.totalorder %s15, 1
    %p68 = por %p66, %p67
    %p69 = scmp.ne.s32.totalorder %s60, %s61
    %p70 = scmp.eq.s32.totalorder %s15, 0
    %p71 = por %p69, %p70
    %p72 = scmp.ne.s32.totalorder %s60, %s61
    %p73 = scmp.eq.s32.totalorder %s16, 1
    %p74 = por %p72, %p73
    %p76 = scmp.ne.s32.totalorder %s61, %s75
    %p77 = scmp.eq.s32.totalorder %s16, 0
    %p78 = por %p76, %p77
    %s79 = ssub.s32 %s17, %s29
    %s80 = ssub.s32 %s18, %s25
    %s81 = sor.u32 %s79, %s80
    %p82 = scmp.eq.s32.totalorder %s81, 0
    %s84 = sadd.s32 %s83, 1
    %s85 = scalar_select %p82, %s83, %s84
    %p88 = pneg %p82
    %p89 = scmp.eq.s32.totalorder %s10, 1
    %p90 = por %p88, %p89
    %p91 = scmp.ne.s32.totalorder %s83, %s86
    %p92 = scmp.eq.s32.totalorder %s10, 0
    %p93 = por %p91, %p92
    %p94 = scmp.ne.s32.totalorder %s83, %s86
    %p95 = scmp.eq.s32.totalorder %s15, 1
    %p96 = por %p94, %p95
    %p97 = scmp.ne.s32.totalorder %s86, %s87
    %p98 = scmp.eq.s32.totalorder %s15, 0
    %p99 = por %p97, %p98
    %p100 = scmp.ne.s32.totalorder %s86, %s87
    %p101 = scmp.eq.s32.totalorder %s16, 1
    %p102 = por %p100, %p101
    %p104 = scmp.ne.s32.totalorder %s87, %s103
    %p105 = scmp.eq.s32.totalorder %s16, 0
    %p106 = por %p104, %p105
    %s107 = sadd.s32 %s17, %s18
    %s108 = sadd.s32 %s29, %s25
    %s109 = ssub.s32 %s107, %s108
    %p110 = scmp.eq.s32.totalorder %s109, 0
    %s112 = sadd.s32 %s111, 1
    %s113 = scalar_select %p110, %s111, %s112
    %p116 = pneg %p110
    %p117 = scmp.eq.s32.totalorder %s10, 1
    %p118 = por %p116, %p117
    %p119 = scmp.ne.s32.totalorder %s111, %s114
    %p120 = scmp.eq.s32.totalorder %s10, 0
    %p121 = por %p119, %p120
    %p122 = scmp.ne.s32.totalorder %s111, %s114
    %p123 = scmp.eq.s32.totalorder %s15, 1
    %p124 = por %p122, %p123
    %p125 = scmp.ne.s32.totalorder %s114, %s115
    %p126 = scmp.eq.s32.totalorder %s15, 0
    %p127 = por %p125, %p126
    %p128 = scmp.ne.s32.totalorder %s114, %s115
    %p129 = scmp.eq.s32.totalorder %s16, 1
    %p130 = por %p128, %p129
    %p132 = scmp.ne.s32.totalorder %s115, %s131
    %p133 = scmp.eq.s32.totalorder %s16, 0
    %p134 = por %p132, %p133
    %p135 = scmp.le.s32.totalorder 1, %s10
    %p136 = scmp.lt.s32.totalorder %s10, 3
    %p137 = pnand %p135, %p136
    %p138 = pneg %p137
    // Predicated region
    $region9: #{discriminator_forward.19} parent=5 // pred_check
      _
    $region10: #{discriminator_forward.19} parent=5 // pred_check_branch
      %140 = sbr.rel (%p137) target = $region12
    $region11: #{discriminator_forward.19} parent=5 // pred_region
      %s141 = ssub.s32 %s10, 1
      // Predicated region
      $region13: #{discriminator_forward.19} parent=11 // pred_check
        %p142 = pneg %p71
      $region14: #{discriminator_forward.19} parent=11 // pred_check_branch
        %144 = sbr.rel (%p142) target = $region16
      $region15: #{discriminator_forward.19} parent=11 // pred_region
        _
      $region16: #{discriminator_forward.19} parent=11 // pred_fallthru
        _
    $region12: #{discriminator_forward.19} parent=5 // pred_fallthru
      _
    %p145 = scmp.lt.s32.totalorder %s10, 2
    // Predicated region
    $region17: #{discriminator_forward.19} parent=5 // pred_check
      %p146 = pneg %p145
    $region18: #{discriminator_forward.19} parent=5 // pred_check_branch
      %148 = sbr.rel (%p146) target = $region20
    $region19: #{discriminator_forward.19} parent=5 // pred_region
      // Predicated region
      $region21: #{discriminator_forward.19} parent=19 // pred_check
        %p149 = pneg %p44
      $region22: #{discriminator_forward.19} parent=19 // pred_check_branch
        %151 = sbr.rel (%p149) target = $region24
      $region23: #{discriminator_forward.19} parent=19 // pred_region
        %s152 = smul.u32 2, %s18
        %p153 = scmp.lt.s32.totalorder %s17, 1
        %s154 = scalar_select %p153, %s17, 1
        %p155 = scmp.lt.s32.totalorder %s152, 1
        %s156 = scalar_select %p155, %s152, 1
        %s157 = smul.addr %s156, 8
        %s158 = smul.addr %s154, 16
        %s159 = sadd.s32 %s157, %s158
        %s160 = smul.addr %s159, 4
        %s161 = scalar_lea.vmem %s0, %s160
        %s162 = smul.u32 2, %s18
      $region24: #{discriminator_forward.19} parent=19 // pred_fallthru
        _
    $region20: #{discriminator_forward.19} parent=5 // pred_fallthru
      _
    %p163 = scmp.le.s32.totalorder 1, %s10
    %p164 = scmp.lt.s32.totalorder %s10, 3
    %p165 = pnand %p163, %p164
    %p166 = pneg %p165
    // Predicated region
    $region25: #{discriminator_forward.19} parent=5 // pred_check
      _
    $region26: #{discriminator_forward.19} parent=5 // pred_check_branch
      %168 = sbr.rel (%p165) target = $region28
    $region27: #{discriminator_forward.19} parent=5 // pred_region
      %s169 = ssub.s32 %s10, 1
      %s170 = smul.u32 2, %s20
      %p171 = scmp.lt.s32.totalorder %s19, 1
      %s172 = scalar_select %p171, %s19, 1
      %p173 = scmp.lt.s32.totalorder %s170, 1
      %s174 = scalar_select %p173, %s170, 1
      %s175 = smul.addr %s174, 8
      %s176 = smul.addr %s172, 16
      %s177 = sadd.s32 %s175, %s176
      %s178 = smul.addr %s177, 4
      %s179 = scalar_lea.vmem %s0, %s178
      %p180 = pneg %p50
      %p181 = pneg %p47
      %p182 = pneg %p71
      %p183 = pneg %p68
      %p184 = pneg %p99
      %p185 = pneg %p96
      %s186 = smul.u32 2, %s20
      %p187 = scmp.lt.s32.totalorder %s19, 1
      %s188 = scalar_select %p187, %s19, 1
      %p189 = scmp.lt.s32.totalorder %s186, 1
      %s190 = scalar_select %p189, %s186, 1
      %s191 = smul.addr %s188, 2
      %s192 = sadd.s32 %s190, %s191
      %s193 = smul.addr %s192, 4
      %s194 = scalar_lea.vmem %s2, %s193
      %p195 = pneg %p127
      %p196 = pneg %p124
      %s197 = sadd.s32 %s19, %s20
      %p198 = scmp.lt.s32.totalorder %s197, 1
      %s199 = scalar_select %p198, %s197, 1
      %s200 = smul.addr %s199, 2
      %s201 = scalar_lea.vmem %s3, %s200
      %s202 = smul.u32 2, %s20
      %p203 = scmp.lt.s32.totalorder %s19, 1
      %s204 = scalar_select %p203, %s19, 1
      %p205 = scmp.lt.s32.totalorder %s202, 1
      %s206 = scalar_select %p205, %s202, 1
      %s207 = smul.addr %s206, 8
      %s208 = smul.addr %s204, 16
      %s209 = sadd.s32 %s207, %s208
      %s210 = smul.addr %s209, 4
      %s211 = scalar_lea.vmem %s0, %s210
      %s212 = smul.u32 2, %s20
      %s213 = smul.u32 2, %s20
      %p214 = scmp.lt.s32.totalorder %s19, 1
      %s215 = scalar_select %p214, %s19, 1
      %p216 = scmp.lt.s32.totalorder %s213, 1
      %s217 = scalar_select %p216, %s213, 1
      %s218 = smul.addr %s215, 2
      %s219 = sadd.s32 %s217, %s218
      %s220 = smul.addr %s219, 4
      %s221 = scalar_lea.vmem %s2, %s220
      %s222 = smul.u32 2, %s20
      %s223 = sadd.s32 %s19, %s20
      %p224 = scmp.lt.s32.totalorder %s223, 1
      %s225 = scalar_select %p224, %s223, 1
      %s226 = smul.addr %s225, 2
      %s227 = scalar_lea.vmem %s3, %s226
      %s228 = sadd.s32 %s19, %s20
      %v229 = vld [vmem:[%s211] sm:$0xff]
      %v230 = vld [vmem:[%s211 + $0x8] sm:$0xff]
      %v231 = vld [vmem:[%s211 + $0x10] sm:$0xff]
      %v232 = vld [vmem:[%s211 + $0x18] sm:$0xff]
      %v233 = vld [vmem:[%s211 + $0x20] sm:$0xff]
      %v234 = vld [vmem:[%s211 + $0x28] sm:$0xff]
      %v235 = vld [vmem:[%s211 + $0x30] sm:$0xff]
      %v236 = vld [vmem:[%s211 + $0x38] sm:$0xff]
      %v237 = vld [vmem:[%s1] sm:$0xf]
      %v238 = vld [vmem:[%s1 + $0x4] sm:$0xf]
      %v239 = vld [vmem:[%s1 + $0x8] sm:$0xf]
      %v240 = vld [vmem:[%s1 + $0xc] sm:$0xf]
      %v241 = vld [vmem:[%s1 + $0x10] sm:$0xf]
      %v242 = vld [vmem:[%s1 + $0x14] sm:$0xf]
      %v243 = vld [vmem:[%s1 + $0x18] sm:$0xf]
      %v244 = vld [vmem:[%s1 + $0x1c] sm:$0xf]
      %v245 = vld [vmem:[%s1 + $0x20] sm:$0xf]
      %v246 = vld [vmem:[%s1 + $0x24] sm:$0xf]
      %v247 = vld [vmem:[%s1 + $0x28] sm:$0xf]
      %v248 = vld [vmem:[%s1 + $0x2c] sm:$0xf]
      %v249 = vld [vmem:[%s1 + $0x30] sm:$0xf]
      %v250 = vld [vmem:[%s1 + $0x34] sm:$0xf]
      %v251 = vld [vmem:[%s1 + $0x38] sm:$0xf]
      %v252 = vld [vmem:[%s1 + $0x3c] sm:$0xf]
      %v253 = vld [vmem:[%s1 + $0x40] sm:$0xf]
      %v254 = vld [vmem:[%s1 + $0x44] sm:$0xf]
      %v255 = vld [vmem:[%s1 + $0x48] sm:$0xf]
      %v256 = vld [vmem:[%s1 + $0x4c] sm:$0xf]
      %v257 = vld [vmem:[%s1 + $0x50] sm:$0xf]
      %v258 = vld [vmem:[%s1 + $0x54] sm:$0xf]
      %v259 = vld [vmem:[%s1 + $0x58] sm:$0xf]
      %v260 = vld [vmem:[%s1 + $0x5c] sm:$0xf]
      %v261 = vld [vmem:[%s1 + $0x60] sm:$0xf]
      %v262 = vld [vmem:[%s1 + $0x64] sm:$0xf]
      %v263 = vld [vmem:[%s1 + $0x68] sm:$0xf]
      %v264 = vld [vmem:[%s1 + $0x6c] sm:$0xf]
      %v265 = vld [vmem:[%s1 + $0x70] sm:$0xf]
      %v266 = vld [vmem:[%s1 + $0x74] sm:$0xf]
      %v267 = vld [vmem:[%s1 + $0x78] sm:$0xf]
      %v268 = vld [vmem:[%s1 + $0x7c] sm:$0xf]
      %v269 = vld [vmem:[%s1 + $0x80] sm:$0xf]
      %v270 = vld [vmem:[%s1 + $0x84] sm:$0xf]
      %v271 = vld [vmem:[%s1 + $0x88] sm:$0xf]
      %v272 = vld [vmem:[%s1 + $0x8c] sm:$0xf]
      %v273 = vld [vmem:[%s1 + $0x90] sm:$0xf]
      %v274 = vld [vmem:[%s1 + $0x94] sm:$0xf]
      %v275 = vld [vmem:[%s1 + $0x98] sm:$0xf]
      %v276 = vld [vmem:[%s1 + $0x9c] sm:$0xf]
      %v277 = vld [vmem:[%s1 + $0xa0] sm:$0xf]
      %v278 = vld [vmem:[%s1 + $0xa4] sm:$0xf]
      %v279 = vld [vmem:[%s1 + $0xa8] sm:$0xf]
      %v280 = vld [vmem:[%s1 + $0xac] sm:$0xf]
      %v281 = vld [vmem:[%s1 + $0xb0] sm:$0xf]
      %v282 = vld [vmem:[%s1 + $0xb4] sm:$0xf]
      %v283 = vld [vmem:[%s1 + $0xb8] sm:$0xf]
      %v284 = vld [vmem:[%s1 + $0xbc] sm:$0xf]
      %v285 = vld [vmem:[%s1 + $0xc0] sm:$0xf]
      %v286 = vld [vmem:[%s1 + $0xc4] sm:$0xf]
      %v287 = vld [vmem:[%s1 + $0xc8] sm:$0xf]
      %v288 = vld [vmem:[%s1 + $0xcc] sm:$0xf]
      %v289 = vld [vmem:[%s1 + $0xd0] sm:$0xf]
      %v290 = vld [vmem:[%s1 + $0xd4] sm:$0xf]
      %v291 = vld [vmem:[%s1 + $0xd8] sm:$0xf]
      %v292 = vld [vmem:[%s1 + $0xdc] sm:$0xf]
      %v293 = vld [vmem:[%s1 + $0xe0] sm:$0xf]
      %v294 = vld [vmem:[%s1 + $0xe4] sm:$0xf]
      %v295 = vld [vmem:[%s1 + $0xe8] sm:$0xf]
      %v296 = vld [vmem:[%s1 + $0xec] sm:$0xf]
      %v297 = vld [vmem:[%s1 + $0xf0] sm:$0xf]
      %v298 = vld [vmem:[%s1 + $0xf4] sm:$0xf]
      %v299 = vld [vmem:[%s1 + $0xf8] sm:$0xf]
      %v300 = vld [vmem:[%s1 + $0xfc] sm:$0xf]
      %v301 = vld [vmem:[%s1 + $0x100] sm:$0xf]
      %v302 = vld [vmem:[%s1 + $0x104] sm:$0xf]
      %v303 = vld [vmem:[%s1 + $0x108] sm:$0xf]
      %v304 = vld [vmem:[%s1 + $0x10c] sm:$0xf]
      %v305 = vld [vmem:[%s1 + $0x110] sm:$0xf]
      %v306 = vld [vmem:[%s1 + $0x114] sm:$0xf]
      %v307 = vld [vmem:[%s1 + $0x118] sm:$0xf]
      %v308 = vld [vmem:[%s1 + $0x11c] sm:$0xf]
      %v309 = vld [vmem:[%s1 + $0x120] sm:$0xf]
      %v310 = vld [vmem:[%s1 + $0x124] sm:$0xf]
      %v311 = vld [vmem:[%s1 + $0x128] sm:$0xf]
      %v312 = vld [vmem:[%s1 + $0x12c] sm:$0xf]
      %v313 = vld [vmem:[%s1 + $0x130] sm:$0xf]
      %v314 = vld [vmem:[%s1 + $0x134] sm:$0xf]
      %v315 = vld [vmem:[%s1 + $0x138] sm:$0xf]
      %v316 = vld [vmem:[%s1 + $0x13c] sm:$0xf]
      %v317 = vld [vmem:[%s1 + $0x140] sm:$0xf]
      %v318 = vld [vmem:[%s1 + $0x144] sm:$0xf]
      %v319 = vld [vmem:[%s1 + $0x148] sm:$0xf]
      %v320 = vld [vmem:[%s1 + $0x14c] sm:$0xf]
      %v321 = vld [vmem:[%s1 + $0x150] sm:$0xf]
      %v322 = vld [vmem:[%s1 + $0x154] sm:$0xf]
      %v323 = vld [vmem:[%s1 + $0x158] sm:$0xf]
      %v324 = vld [vmem:[%s1 + $0x15c] sm:$0xf]
      %v325 = vld [vmem:[%s1 + $0x160] sm:$0xf]
      %v326 = vld [vmem:[%s1 + $0x164] sm:$0xf]
      %v327 = vld [vmem:[%s1 + $0x168] sm:$0xf]
      %v328 = vld [vmem:[%s1 + $0x16c] sm:$0xf]
      %v329 = vld [vmem:[%s1 + $0x170] sm:$0xf]
      %v330 = vld [vmem:[%s1 + $0x174] sm:$0xf]
      %v331 = vld [vmem:[%s1 + $0x178] sm:$0xf]
      %v332 = vld [vmem:[%s1 + $0x17c] sm:$0xf]
      %v333 = vld [vmem:[%s1 + $0x180] sm:$0xf]
      %v334 = vld [vmem:[%s1 + $0x184] sm:$0xf]
      %v335 = vld [vmem:[%s1 + $0x188] sm:$0xf]
      %v336 = vld [vmem:[%s1 + $0x18c] sm:$0xf]
      %v337 = vld [vmem:[%s1 + $0x190] sm:$0xf]
      %v338 = vld [vmem:[%s1 + $0x194] sm:$0xf]
      %v339 = vld [vmem:[%s1 + $0x198] sm:$0xf]
      %v340 = vld [vmem:[%s1 + $0x19c] sm:$0xf]
      %v341 = vld [vmem:[%s1 + $0x1a0] sm:$0xf]
      %v342 = vld [vmem:[%s1 + $0x1a4] sm:$0xf]
      %v343 = vld [vmem:[%s1 + $0x1a8] sm:$0xf]
      %v344 = vld [vmem:[%s1 + $0x1ac] sm:$0xf]
      %v345 = vld [vmem:[%s1 + $0x1b0] sm:$0xf]
      %v346 = vld [vmem:[%s1 + $0x1b4] sm:$0xf]
      %v347 = vld [vmem:[%s1 + $0x1b8] sm:$0xf]
      %v348 = vld [vmem:[%s1 + $0x1bc] sm:$0xf]
      %v349 = vld [vmem:[%s1 + $0x1c0] sm:$0xf]
      %v350 = vld [vmem:[%s1 + $0x1c4] sm:$0xf]
      %v351 = vld [vmem:[%s1 + $0x1c8] sm:$0xf]
      %v352 = vld [vmem:[%s1 + $0x1cc] sm:$0xf]
      %v353 = vld [vmem:[%s1 + $0x1d0] sm:$0xf]
      %v354 = vld [vmem:[%s1 + $0x1d4] sm:$0xf]
      %v355 = vld [vmem:[%s1 + $0x1d8] sm:$0xf]
      %v356 = vld [vmem:[%s1 + $0x1dc] sm:$0xf]
      %v357 = vld [vmem:[%s1 + $0x1e0] sm:$0xf]
      %v358 = vld [vmem:[%s1 + $0x1e4] sm:$0xf]
      %v359 = vld [vmem:[%s1 + $0x1e8] sm:$0xf]
      %v360 = vld [vmem:[%s1 + $0x1ec] sm:$0xf]
      %v361 = vld [vmem:[%s1 + $0x1f0] sm:$0xf]
      %v362 = vld [vmem:[%s1 + $0x1f4] sm:$0xf]
      %v363 = vld [vmem:[%s1 + $0x1f8] sm:$0xf]
      %v364 = vld [vmem:[%s1 + $0x1fc] sm:$0xf]
      %v373 = vunpack.c.l.b16 %v229
      %v374 = vunpack.c.h.b16 %v229
      %v375 = vunpack.c.l.b16 %v230
      %v376 = vunpack.c.h.b16 %v230
      %v377 = vunpack.c.l.b16 %v231
      %v378 = vunpack.c.h.b16 %v231
      %v379 = vunpack.c.l.b16 %v232
      %v380 = vunpack.c.h.b16 %v232
      %v381 = vunpack.c.l.b16 %v233
      %v382 = vunpack.c.h.b16 %v233
      %v383 = vunpack.c.l.b16 %v234
      %v384 = vunpack.c.h.b16 %v234
      %v385 = vunpack.c.l.b16 %v235
      %v386 = vunpack.c.h.b16 %v235
      %v387 = vunpack.c.l.b16 %v236
      %v388 = vunpack.c.h.b16 %v236
      %v389 = vpack.c.b16 %v381, %v373
      %v390 = vpack.c.b16 %v382, %v374
      %v391 = vpack.c.b16 %v383, %v375
      %v392 = vpack.c.b16 %v384, %v376
      %v393 = vpack.c.b16 %v385, %v377
      %v394 = vpack.c.b16 %v386, %v378
      %v395 = vpack.c.b16 %v387, %v379
      %v396 = vpack.c.b16 %v388, %v380
      %v533 = vunpack.c.l.b16 %v237
      %v534 = vunpack.c.l.b16 %v238
      %v535 = vunpack.c.l.b16 %v239
      %v536 = vunpack.c.l.b16 %v240
      %v537 = vunpack.c.l.b16 %v241
      %v538 = vunpack.c.l.b16 %v242
      %v539 = vunpack.c.l.b16 %v243
      %v540 = vunpack.c.l.b16 %v244
      %v541 = vunpack.c.l.b16 %v245
      %v542 = vunpack.c.l.b16 %v246
      %v543 = vunpack.c.l.b16 %v247
      %v544 = vunpack.c.l.b16 %v248
      %v545 = vunpack.c.l.b16 %v249
      %v546 = vunpack.c.l.b16 %v250
      %v547 = vunpack.c.l.b16 %v251
      %v548 = vunpack.c.l.b16 %v252
      %v549 = vunpack.c.l.b16 %v253
      %v550 = vunpack.c.l.b16 %v254
      %v551 = vunpack.c.l.b16 %v255
      %v552 = vunpack.c.l.b16 %v256
      %v553 = vunpack.c.l.b16 %v257
      %v554 = vunpack.c.l.b16 %v258
      %v555 = vunpack.c.l.b16 %v259
      %v556 = vunpack.c.l.b16 %v260
      %v557 = vunpack.c.l.b16 %v261
      %v558 = vunpack.c.l.b16 %v262
      %v559 = vunpack.c.l.b16 %v263
      %v560 = vunpack.c.l.b16 %v264
      %v561 = vunpack.c.l.b16 %v265
      %v562 = vunpack.c.l.b16 %v266
      %v563 = vunpack.c.l.b16 %v267
      %v564 = vunpack.c.l.b16 %v268
      %v565 = vunpack.c.l.b16 %v269
      %v566 = vunpack.c.l.b16 %v270
      %v567 = vunpack.c.l.b16 %v271
      %v568 = vunpack.c.l.b16 %v272
      %v569 = vunpack.c.l.b16 %v273
      %v570 = vunpack.c.l.b16 %v274
      %v571 = vunpack.c.l.b16 %v275
      %v572 = vunpack.c.l.b16 %v276
      %v573 = vunpack.c.l.b16 %v277
      %v574 = vunpack.c.l.b16 %v278
      %v575 = vunpack.c.l.b16 %v279
      %v576 = vunpack.c.l.b16 %v280
      %v577 = vunpack.c.l.b16 %v281
      %v578 = vunpack.c.l.b16 %v282
      %v579 = vunpack.c.l.b16 %v283
      %v580 = vunpack.c.l.b16 %v284
      %v581 = vunpack.c.l.b16 %v285
      %v582 = vunpack.c.l.b16 %v286
      %v583 = vunpack.c.l.b16 %v287
      %v584 = vunpack.c.l.b16 %v288
      %v585 = vunpack.c.l.b16 %v289
      %v586 = vunpack.c.l.b16 %v290
      %v587 = vunpack.c.l.b16 %v291
      %v588 = vunpack.c.l.b16 %v292
      %v589 = vunpack.c.l.b16 %v293
      %v590 = vunpack.c.l.b16 %v294
      %v591 = vunpack.c.l.b16 %v295
      %v592 = vunpack.c.l.b16 %v296
      %v593 = vunpack.c.l.b16 %v297
      %v594 = vunpack.c.l.b16 %v298
      %v595 = vunpack.c.l.b16 %v299
      %v596 = vunpack.c.l.b16 %v300
      %v597 = vunpack.c.l.b16 %v301
      %v598 = vunpack.c.l.b16 %v302
      %v599 = vunpack.c.l.b16 %v303
      %v600 = vunpack.c.l.b16 %v304
      %v601 = vunpack.c.l.b16 %v305
      %v602 = vunpack.c.l.b16 %v306
      %v603 = vunpack.c.l.b16 %v307
      %v604 = vunpack.c.l.b16 %v308
      %v605 = vunpack.c.l.b16 %v309
      %v606 = vunpack.c.l.b16 %v310
      %v607 = vunpack.c.l.b16 %v311
      %v608 = vunpack.c.l.b16 %v312
      %v609 = vunpack.c.l.b16 %v313
      %v610 = vunpack.c.l.b16 %v314
      %v611 = vunpack.c.l.b16 %v315
      %v612 = vunpack.c.l.b16 %v316
      %v613 = vunpack.c.l.b16 %v317
      %v614 = vunpack.c.l.b16 %v318
      %v615 = vunpack.c.l.b16 %v319
      %v616 = vunpack.c.l.b16 %v320
      %v617 = vunpack.c.l.b16 %v321
      %v618 = vunpack.c.l.b16 %v322
      %v619 = vunpack.c.l.b16 %v323
      %v620 = vunpack.c.l.b16 %v324
      %v621 = vunpack.c.l.b16 %v325
      %v622 = vunpack.c.l.b16 %v326
      %v623 = vunpack.c.l.b16 %v327
      %v624 = vunpack.c.l.b16 %v328
      %v625 = vunpack.c.l.b16 %v329
      %v626 = vunpack.c.l.b16 %v330
      %v627 = vunpack.c.l.b16 %v331
      %v628 = vunpack.c.l.b16 %v332
      %v629 = vunpack.c.l.b16 %v333
      %v630 = vunpack.c.l.b16 %v334
      %v631 = vunpack.c.l.b16 %v335
      %v632 = vunpack.c.l.b16 %v336
      %v633 = vunpack.c.l.b16 %v337
      %v634 = vunpack.c.l.b16 %v338
      %v635 = vunpack.c.l.b16 %v339
      %v636 = vunpack.c.l.b16 %v340
      %v637 = vunpack.c.l.b16 %v341
      %v638 = vunpack.c.l.b16 %v342
      %v639 = vunpack.c.l.b16 %v343
      %v640 = vunpack.c.l.b16 %v344
      %v641 = vunpack.c.l.b16 %v345
      %v642 = vunpack.c.l.b16 %v346
      %v643 = vunpack.c.l.b16 %v347
      %v644 = vunpack.c.l.b16 %v348
      %v645 = vunpack.c.l.b16 %v349
      %v646 = vunpack.c.l.b16 %v350
      %v647 = vunpack.c.l.b16 %v351
      %v648 = vunpack.c.l.b16 %v352
      %v649 = vunpack.c.l.b16 %v353
      %v650 = vunpack.c.l.b16 %v354
      %v651 = vunpack.c.l.b16 %v355
      %v652 = vunpack.c.l.b16 %v356
      %v653 = vunpack.c.l.b16 %v357
      %v654 = vunpack.c.l.b16 %v358
      %v655 = vunpack.c.l.b16 %v359
      %v656 = vunpack.c.l.b16 %v360
      %v657 = vunpack.c.l.b16 %v361
      %v658 = vunpack.c.l.b16 %v362
      %v659 = vunpack.c.l.b16 %v363
      %v660 = vunpack.c.l.b16 %v364
      %v661 = vpack.c.b16 %v534, %v533
      %v662 = vpack.c.b16 %v536, %v535
      %v663 = vpack.c.b16 %v538, %v537
      %v664 = vpack.c.b16 %v540, %v539
      %v665 = vpack.c.b16 %v542, %v541
      %v666 = vpack.c.b16 %v544, %v543
      %v667 = vpack.c.b16 %v546, %v545
      %v668 = vpack.c.b16 %v548, %v547
      %v669 = vpack.c.b16 %v550, %v549
      %v670 = vpack.c.b16 %v552, %v551
      %v671 = vpack.c.b16 %v554, %v553
      %v672 = vpack.c.b16 %v556, %v555
      %v673 = vpack.c.b16 %v558, %v557
      %v674 = vpack.c.b16 %v560, %v559
      %v675 = vpack.c.b16 %v562, %v561
      %v676 = vpack.c.b16 %v564, %v563
      %v677 = vpack.c.b16 %v566, %v565
      %v678 = vpack.c.b16 %v568, %v567
      %v679 = vpack.c.b16 %v570, %v569
      %v680 = vpack.c.b16 %v572, %v571
      %v681 = vpack.c.b16 %v574, %v573
      %v682 = vpack.c.b16 %v576, %v575
      %v683 = vpack.c.b16 %v578, %v577
      %v684 = vpack.c.b16 %v580, %v579
      %v685 = vpack.c.b16 %v582, %v581
      %v686 = vpack.c.b16 %v584, %v583
      %v687 = vpack.c.b16 %v586, %v585
      %v688 = vpack.c.b16 %v588, %v587
      %v689 = vpack.c.b16 %v590, %v589
      %v690 = vpack.c.b16 %v592, %v591
      %v691 = vpack.c.b16 %v594, %v593
      %v692 = vpack.c.b16 %v596, %v595
      %v693 = vpack.c.b16 %v598, %v597
      %v694 = vpack.c.b16 %v600, %v599
      %v695 = vpack.c.b16 %v602, %v601
      %v696 = vpack.c.b16 %v604, %v603
      %v697 = vpack.c.b16 %v606, %v605
      %v698 = vpack.c.b16 %v608, %v607
      %v699 = vpack.c.b16 %v610, %v609
      %v700 = vpack.c.b16 %v612, %v611
      %v701 = vpack.c.b16 %v614, %v613
      %v702 = vpack.c.b16 %v616, %v615
      %v703 = vpack.c.b16 %v618, %v617
      %v704 = vpack.c.b16 %v620, %v619
      %v705 = vpack.c.b16 %v622, %v621
      %v706 = vpack.c.b16 %v624, %v623
      %v707 = vpack.c.b16 %v626, %v625
      %v708 = vpack.c.b16 %v628, %v627
      %v709 = vpack.c.b16 %v630, %v629
      %v710 = vpack.c.b16 %v632, %v631
      %v711 = vpack.c.b16 %v634, %v633
      %v712 = vpack.c.b16 %v636, %v635
      %v713 = vpack.c.b16 %v638, %v637
      %v714 = vpack.c.b16 %v640, %v639
      %v715 = vpack.c.b16 %v642, %v641
      %v716 = vpack.c.b16 %v644, %v643
      %v717 = vpack.c.b16 %v646, %v645
      %v718 = vpack.c.b16 %v648, %v647
      %v719 = vpack.c.b16 %v650, %v649
      %v720 = vpack.c.b16 %v652, %v651
      %v721 = vpack.c.b16 %v654, %v653
      %v722 = vpack.c.b16 %v656, %v655
      %v723 = vpack.c.b16 %v658, %v657
      %v724 = vpack.c.b16 %v660, %v659
      %789 = vmatpush.bf16.msra.mxu0 %v668
      %790 = vmatpush.bf16.msra.mxu0 %v667
      %791 = vmatpush.bf16.msra.mxu0 %v666
      %792 = vmatpush.bf16.msra.mxu0 %v665
      %793 = vmatpush.bf16.msra.mxu0 %v664
      %794 = vmatpush.bf16.msra.mxu0 %v663
      %795 = vmatpush.bf16.msra.mxu0 %v662
      %796 = vmatpush.bf16.msra.mxu0 %v661
      %797 = vmatmul.bf16.gmra.mxu0 %v389
      %v798 = vpop.f32.mrf.mxu0
      %v799 = vadd.f32 0.0, %v798
      %v800 = vpop.f32.mrf.mxu0
      %v801 = vadd.f32 0.0, %v800
      %802 = vdwg.mxu0
      %803 = vmatpush.bf16.msra.mxu0 %v676
      %804 = vmatpush.bf16.msra.mxu0 %v675
      %805 = vmatpush.bf16.msra.mxu0 %v674
      %806 = vmatpush.bf16.msra.mxu0 %v673
      %807 = vmatpush.bf16.msra.mxu0 %v672
      %808 = vmatpush.bf16.msra.mxu0 %v671
      %809 = vmatpush.bf16.msra.mxu0 %v670
      %810 = vmatpush.bf16.msra.mxu0 %v669
      %811 = vmatmul.bf16.gmra.mxu0 %v390
      %v812 = vpop.f32.mrf.mxu0
      %v813 = vadd.f32 %v799, %v812
      %v814 = vpop.f32.mrf.mxu0
      %v815 = vadd.f32 %v801, %v814
      %816 = vdwg.mxu0
      %817 = vmatpush.bf16.msra.mxu0 %v684
      %818 = vmatpush.bf16.msra.mxu0 %v683
      %819 = vmatpush.bf16.msra.mxu0 %v682
      %820 = vmatpush.bf16.msra.mxu0 %v681
      %821 = vmatpush.bf16.msra.mxu0 %v680
      %822 = vmatpush.bf16.msra.mxu0 %v679
      %823 = vmatpush.bf16.msra.mxu0 %v678
      %824 = vmatpush.bf16.msra.mxu0 %v677
      %825 = vmatmul.bf16.gmra.mxu0 %v391
      %v826 = vpop.f32.mrf.mxu0
      %v827 = vadd.f32 %v813, %v826
      %v828 = vpop.f32.mrf.mxu0
      %v829 = vadd.f32 %v815, %v828
      %830 = vdwg.mxu0
      %831 = vmatpush.bf16.msra.mxu0 %v692
      %832 = vmatpush.bf16.msra.mxu0 %v691
      %833 = vmatpush.bf16.msra.mxu0 %v690
      %834 = vmatpush.bf16.msra.mxu0 %v689
      %835 = vmatpush.bf16.msra.mxu0 %v688
      %836 = vmatpush.bf16.msra.mxu0 %v687
      %837 = vmatpush.bf16.msra.mxu0 %v686
      %838 = vmatpush.bf16.msra.mxu0 %v685
      %839 = vmatmul.bf16.gmra.mxu0 %v392
      %v840 = vpop.f32.mrf.mxu0
      %v841 = vadd.f32 %v827, %v840
      %v842 = vpop.f32.mrf.mxu0
      %v843 = vadd.f32 %v829, %v842
      %844 = vdwg.mxu0
      %845 = vmatpush.bf16.msra.mxu0 %v700
      %846 = vmatpush.bf16.msra.mxu0 %v699
      %847 = vmatpush.bf16.msra.mxu0 %v698
      %848 = vmatpush.bf16.msra.mxu0 %v697
      %849 = vmatpush.bf16.msra.mxu0 %v696
      %850 = vmatpush.bf16.msra.mxu0 %v695
      %851 = vmatpush.bf16.msra.mxu0 %v694
      %852 = vmatpush.bf16.msra.mxu0 %v693
      %853 = vmatmul.bf16.gmra.mxu0 %v393
      %v854 = vpop.f32.mrf.mxu0
      %v855 = vadd.f32 %v841, %v854
      %v856 = vpop.f32.mrf.mxu0
      %v857 = vadd.f32 %v843, %v856
      %858 = vdwg.mxu0
      %859 = vmatpush.bf16.msra.mxu0 %v708
      %860 = vmatpush.bf16.msra.mxu0 %v707
      %861 = vmatpush.bf16.msra.mxu0 %v706
      %862 = vmatpush.bf16.msra.mxu0 %v705
      %863 = vmatpush.bf16.msra.mxu0 %v704
      %864 = vmatpush.bf16.msra.mxu0 %v703
      %865 = vmatpush.bf16.msra.mxu0 %v702
      %866 = vmatpush.bf16.msra.mxu0 %v701
      %867 = vmatmul.bf16.gmra.mxu0 %v394
      %v868 = vpop.f32.mrf.mxu0
      %v869 = vadd.f32 %v855, %v868
      %v870 = vpop.f32.mrf.mxu0
      %v871 = vadd.f32 %v857, %v870
      %872 = vdwg.mxu0
      %873 = vmatpush.bf16.msra.mxu0 %v716
      %874 = vmatpush.bf16.msra.mxu0 %v715
      %875 = vmatpush.bf16.msra.mxu0 %v714
      %876 = vmatpush.bf16.msra.mxu0 %v713
      %877 = vmatpush.bf16.msra.mxu0 %v712
      %878 = vmatpush.bf16.msra.mxu0 %v711
      %879 = vmatpush.bf16.msra.mxu0 %v710
      %880 = vmatpush.bf16.msra.mxu0 %v709
      %881 = vmatmul.bf16.gmra.mxu0 %v395
      %v882 = vpop.f32.mrf.mxu0
      %v883 = vadd.f32 %v869, %v882
      %v884 = vpop.f32.mrf.mxu0
      %v885 = vadd.f32 %v871, %v884
      %886 = vdwg.mxu0
      %887 = vmatpush.bf16.msra.mxu0 %v724
      %888 = vmatpush.bf16.msra.mxu0 %v723
      %889 = vmatpush.bf16.msra.mxu0 %v722
      %890 = vmatpush.bf16.msra.mxu0 %v721
      %891 = vmatpush.bf16.msra.mxu0 %v720
      %892 = vmatpush.bf16.msra.mxu0 %v719
      %893 = vmatpush.bf16.msra.mxu0 %v718
      %894 = vmatpush.bf16.msra.mxu0 %v717
      %895 = vmatmul.bf16.gmra.mxu0 %v396
      %v896 = vpop.f32.mrf.mxu0
      %v897 = vadd.f32 %v883, %v896
      %v898 = vpop.f32.mrf.mxu0
      %v899 = vadd.f32 %v885, %v898
      %900 = vdwg.mxu0
      %v901 = vpack.c.bf16 %v897, %v897
      %v902 = vpack.c.bf16 %v899, %v899
      %903 = vst [vmem:[%s221] sm:$0xf] %v901
      %904 = vst [vmem:[%s221 + $0x4] sm:$0xf] %v902
      %v905 = vadd.f32 %v897, %v899
      %v906 = vrot.slane %v905, 4
      %v907 = vadd.f32 %v905, %v906
      %v908 = vrot.slane %v907, 2
      %v909 = vadd.f32 %v907, %v908
      %v910 = vrot.slane %v909, 1
      %v911 = vadd.f32 %v909, %v910
      %v912 = vmul.f32 %v897, %v897
      %v913 = vmul.f32 %v899, %v899
      %v914 = vadd.f32 %v912, %v913
      %v915 = vrot.slane %v914, 4
      %v916 = vadd.f32 %v914, %v915
      %v917 = vrot.slane %v916, 2
      %v918 = vadd.f32 %v916, %v917
      %v919 = vrot.slane %v918, 1
      %v920 = vadd.f32 %v918, %v919
      %vm921 = vcmask 1040384
      %v922 = vsel %vm921, %v911, %v920
      %923 = vst [vmem:[%s227] sm:$0x3] %v922
      %s924 = smul.u32 2, %s20
      %p925 = scmp.lt.s32.totalorder %s19, 1
      %s926 = scalar_select %p925, %s19, 1
      %p927 = scmp.lt.s32.totalorder %s924, 1
      %s928 = scalar_select %p927, %s924, 1
      %s929 = smul.addr %s926, 2
      %s930 = sadd.s32 %s928, %s929
      %s931 = smul.addr %s930, 4
      %s932 = scalar_lea.vmem %s2, %s931
      %s933 = sadd.s32 %s19, %s20
      %p934 = scmp.lt.s32.totalorder %s933, 1
      %s935 = scalar_select %p934, %s933, 1
      %s936 = smul.addr %s935, 2
      %s937 = scalar_lea.vmem %s3, %s936
      // Predicated region
      $region29: #{discriminator_forward.19} parent=27 // pred_check
        %p938 = pneg %p96
      $region30: #{discriminator_forward.19} parent=27 // pred_check_branch
        %940 = sbr.rel (%p938) target = $region32
      $region31: #{discriminator_forward.19} parent=27 // pred_region
        %s941 = smul.u32 2, %s20
      $region32: #{discriminator_forward.19} parent=27 // pred_fallthru
        _
      // Predicated region
      $region33: #{discriminator_forward.19} parent=27 // pred_check
        %p942 = pneg %p124
      $region34: #{discriminator_forward.19} parent=27 // pred_check_branch
        %944 = sbr.rel (%p942) target = $region36
      $region35: #{discriminator_forward.19} parent=27 // pred_region
        %s945 = sadd.s32 %s19, %s20
      $region36: #{discriminator_forward.19} parent=27 // pred_fallthru
        _
    $region28: #{discriminator_forward.19} parent=5 // pred_fallthru
      _
    %p946 = scmp.le.s32.totalorder 2, %s10
    // Predicated region
    $region37: #{discriminator_forward.19} parent=5 // pred_check
      %p947 = pneg %p946
    $region38: #{discriminator_forward.19} parent=5 // pred_check_branch
      %949 = sbr.rel (%p947) target = $region40
    $region39: #{discriminator_forward.19} parent=5 // pred_region
      %s950 = ssub.s32 %s10, 2
      // Predicated region
      $region41: #{discriminator_forward.19} parent=39 // pred_check
        %p951 = pneg %p102
      $region42: #{discriminator_forward.19} parent=39 // pred_check_branch
        %953 = sbr.rel (%p951) target = $region44
      $region43: #{discriminator_forward.19} parent=39 // pred_region
        %s954 = smul.u32 2, %s22
        %p955 = scmp.lt.s32.totalorder %s21, 1
        %s956 = scalar_select %p955, %s21, 1
        %p957 = scmp.lt.s32.totalorder %s954, 1
        %s958 = scalar_select %p957, %s954, 1
        %s959 = smul.addr %s956, 2
        %s960 = sadd.s32 %s958, %s959
        %s961 = smul.addr %s960, 4
        %s962 = scalar_lea.vmem %s2, %s961
      $region44: #{discriminator_forward.19} parent=39 // pred_fallthru
        _
      // Predicated region
      $region45: #{discriminator_forward.19} parent=39 // pred_check
        %p963 = pneg %p130
      $region46: #{discriminator_forward.19} parent=39 // pred_check_branch
        %965 = sbr.rel (%p963) target = $region48
      $region47: #{discriminator_forward.19} parent=39 // pred_region
        %s966 = sadd.s32 %s21, %s22
        %p967 = scmp.lt.s32.totalorder %s966, 1
        %s968 = scalar_select %p967, %s966, 1
        %s969 = smul.addr %s968, 2
        %s970 = scalar_lea.vmem %s3, %s969
      $region48: #{discriminator_forward.19} parent=39 // pred_fallthru
        _
    $region40: #{discriminator_forward.19} parent=5 // pred_fallthru
      _
  $region6: #{discriminator_forward.19} parent=0 // loop_footer
    %s14 = sadd.s32 1, %s10
  $region7: #{discriminator_forward.19} parent=0 // loop_footer_branch
    %9 = sbr.rel target = $region3
  $region8: #{discriminator_forward.19} parent=0 // loop_exit
    _

// kernel: discriminator_forward.21
$region0: #{discriminator_forward.21}
  #allocation0 [shape = 'u32[]', space=smem, size = 0x4, offset = 0x4, fixed_abs, tag = 'smem constant byte address 0x4 - core index']
  #allocation1 [shape = 'u32[72,128]{1,0:T(1,128)}', space=vmem, size = 0x9000, scoped, tag = 'internal scratch']
  %s0 = inlined_call_operand.vmem [shape: bf16[2,8,2048], index: 0, kind: input, shape index: {}]
  %s1 = inlined_call_operand.vmem [shape: bf16[2048,128], index: 1, kind: input, shape index: {}]
  %s2 = inlined_call_operand.vmem [shape: f32[2,8,128], index: 2, kind: output, shape index: {}]
  %s3 = sld [smem:[#allocation0]]
  $region41: #{discriminator_forward.21} parent=0
    _
  %s5 = ssub.s32 1, %s3
  %s6 = scalar_select 0, %s5, %s3
  loop: start=0, step=1, limit=4
  $region2: #{discriminator_forward.21} parent=0 // loop_pre_header
    _
  $region3: #{discriminator_forward.21} parent=0 // loop_header
    %s8 = sphi 0, %s12
    %p9 = scmp.ge.s32.totalorder %s8, 4
    %s15 = sphi 0, %s27
    %s16 = sphi 0, %s23
    %s17 = sphi 0, %s15
    %s18 = sphi 0, %s16
    %s19 = sphi 0, %s17
    %s20 = sphi 0, %s18
    %s32 = sphi 0, %s34
    %s35 = sphi 0, %s32
    %s36 = sphi 0, %s35
    %s52 = sphi 0, %s36
    %s56 = sphi 0, %s56
    %s58 = sphi 0, %s56
    %s59 = sphi 0, %s58
    %s73 = sphi 0, %s59
    %s81 = sphi 0, %s83
    %s84 = sphi 0, %s81
    %s85 = sphi 0, %s84
    %s101 = sphi 0, %s85
  $region4: #{discriminator_forward.21} parent=0 // loop_header_branch
    %11 = sbr.rel (%p9) target = $region8
  $region5: #{discriminator_forward.21} parent=0 // loop_body
    %s13 = ssub.s32 %s8, 1
    %s14 = ssub.s32 %s8, 2
    %s21 = sadd.s32 1, %s16
    %p22 = scmp.ge.s32.totalorder %s21, 1
    %s23 = scalar_select %p22, 0, %s21
    %s24 = sadd.s32 1, %s15
    %s25 = scalar_select %p22, %s24, %s15
    %p26 = scmp.ge.s32.totalorder %s25, 2
    %s27 = scalar_select %p26, 0, %s25
    %s28 = ssub.s32 %s15, %s27
    %s29 = ssub.s32 %s16, %s23
    %s30 = sor.u32 %s28, %s29
    %p31 = scmp.eq.s32.totalorder %s30, 0
    %s33 = sadd.s32 %s32, 1
    %s34 = scalar_select %p31, %s32, %s33
    %p37 = pneg %p31
    %p38 = scmp.eq.s32.totalorder %s8, 1
    %p39 = por %p37, %p38
    %p40 = scmp.ne.s32.totalorder %s32, %s35
    %p41 = scmp.eq.s32.totalorder %s8, 0
    %p42 = por %p40, %p41
    %p43 = scmp.ne.s32.totalorder %s32, %s35
    %p44 = scmp.eq.s32.totalorder %s13, 1
    %p45 = por %p43, %p44
    %p46 = scmp.ne.s32.totalorder %s35, %s36
    %p47 = scmp.eq.s32.totalorder %s13, 0
    %p48 = por %p46, %p47
    %p49 = scmp.ne.s32.totalorder %s35, %s36
    %p50 = scmp.eq.s32.totalorder %s14, 1
    %p51 = por %p49, %p50
    %p53 = scmp.ne.s32.totalorder %s36, %s52
    %p54 = scmp.eq.s32.totalorder %s14, 0
    %p55 = por %p53, %p54
    %s57 = sadd.s32 %s56, 1
    %p60 = scmp.eq.s32.totalorder %s8, 1
    %p61 = scmp.ne.s32.totalorder %s56, %s58
    %p62 = scmp.eq.s32.totalorder %s8, 0
    %p63 = por %p61, %p62
    %p64 = scmp.ne.s32.totalorder %s56, %s58
    %p65 = scmp.eq.s32.totalorder %s13, 1
    %p66 = por %p64, %p65
    %p67 = scmp.ne.s32.totalorder %s58, %s59
    %p68 = scmp.eq.s32.totalorder %s13, 0
    %p69 = por %p67, %p68
    %p70 = scmp.ne.s32.totalorder %s58, %s59
    %p71 = scmp.eq.s32.totalorder %s14, 1
    %p72 = por %p70, %p71
    %p74 = scmp.ne.s32.totalorder %s59, %s73
    %p75 = scmp.eq.s32.totalorder %s14, 0
    %p76 = por %p74, %p75
    %s77 = ssub.s32 %s15, %s27
    %s78 = ssub.s32 %s16, %s23
    %s79 = sor.u32 %s77, %s78
    %p80 = scmp.eq.s32.totalorder %s79, 0
    %s82 = sadd.s32 %s81, 1
    %s83 = scalar_select %p80, %s81, %s82
    %p86 = pneg %p80
    %p87 = scmp.eq.s32.totalorder %s8, 1
    %p88 = por %p86, %p87
    %p89 = scmp.ne.s32.totalorder %s81, %s84
    %p90 = scmp.eq.s32.totalorder %s8, 0
    %p91 = por %p89, %p90
    %p92 = scmp.ne.s32.totalorder %s81, %s84
    %p93 = scmp.eq.s32.totalorder %s13, 1
    %p94 = por %p92, %p93
    %p95 = scmp.ne.s32.totalorder %s84, %s85
    %p96 = scmp.eq.s32.totalorder %s13, 0
    %p97 = por %p95, %p96
    %p98 = scmp.ne.s32.totalorder %s84, %s85
    %p99 = scmp.eq.s32.totalorder %s14, 1
    %p100 = por %p98, %p99
    %p102 = scmp.ne.s32.totalorder %s85, %s101
    %p103 = scmp.eq.s32.totalorder %s14, 0
    %p104 = por %p102, %p103
    %p105 = scmp.le.s32.totalorder 1, %s8
    %p106 = scmp.lt.s32.totalorder %s8, 3
    %p107 = pnand %p105, %p106
    %p108 = pneg %p107
    // Predicated region
    $region9: #{discriminator_forward.21} parent=5 // pred_check
      _
    $region10: #{discriminator_forward.21} parent=5 // pred_check_branch
      %110 = sbr.rel (%p107) target = $region12
    $region11: #{discriminator_forward.21} parent=5 // pred_region
      %s111 = ssub.s32 %s8, 1
      // Predicated region
      $region13: #{discriminator_forward.21} parent=11 // pred_check
        %p112 = pneg %p69
      $region14: #{discriminator_forward.21} parent=11 // pred_check_branch
        %114 = sbr.rel (%p112) target = $region16
      $region15: #{discriminator_forward.21} parent=11 // pred_region
        _
      $region16: #{discriminator_forward.21} parent=11 // pred_fallthru
        _
    $region12: #{discriminator_forward.21} parent=5 // pred_fallthru
      _
    %p115 = scmp.lt.s32.totalorder %s8, 2
    // Predicated region
    $region17: #{discriminator_forward.21} parent=5 // pred_check
      %p116 = pneg %p115
    $region18: #{discriminator_forward.21} parent=5 // pred_check_branch
      %118 = sbr.rel (%p116) target = $region20
    $region19: #{discriminator_forward.21} parent=5 // pred_region
      // Predicated region
      $region21: #{discriminator_forward.21} parent=19 // pred_check
        %p119 = pneg %p42
      $region22: #{discriminator_forward.21} parent=19 // pred_check_branch
        %121 = sbr.rel (%p119) target = $region24
      $region23: #{discriminator_forward.21} parent=19 // pred_region
        %p122 = scmp.lt.s32.totalorder %s15, 1
        %s123 = scalar_select %p122, %s15, 1
        %p124 = scmp.lt.s32.totalorder %s16, 0
        %s125 = scalar_select %p124, %s16, 0
        %s126 = smul.addr %s125, 16
        %s127 = smul.addr %s123, 16
        %s128 = sadd.s32 %s126, %s127
        %s129 = smul.addr %s128, 4
        %s130 = scalar_lea.vmem %s0, %s129
      $region24: #{discriminator_forward.21} parent=19 // pred_fallthru
        _
    $region20: #{discriminator_forward.21} parent=5 // pred_fallthru
      _
    %p131 = scmp.le.s32.totalorder 1, %s8
    %p132 = scmp.lt.s32.totalorder %s8, 3
    %p133 = pnand %p131, %p132
    %p134 = pneg %p133
    // Predicated region
    $region25: #{discriminator_forward.21} parent=5 // pred_check
      _
    $region26: #{discriminator_forward.21} parent=5 // pred_check_branch
      %136 = sbr.rel (%p133) target = $region28
    $region27: #{discriminator_forward.21} parent=5 // pred_region
      %s137 = ssub.s32 %s8, 1
      %p138 = scmp.lt.s32.totalorder %s17, 1
      %s139 = scalar_select %p138, %s17, 1
      %p140 = scmp.lt.s32.totalorder %s18, 0
      %s141 = scalar_select %p140, %s18, 0
      %s142 = smul.addr %s141, 16
      %s143 = smul.addr %s139, 16
      %s144 = sadd.s32 %s142, %s143
      %s145 = smul.addr %s144, 4
      %s146 = scalar_lea.vmem %s0, %s145
      %p147 = pneg %p48
      %p148 = pneg %p45
      %p149 = pneg %p69
      %p150 = pneg %p66
      %p151 = pneg %p97
      %p152 = pneg %p94
      %p153 = scmp.lt.s32.totalorder %s17, 1
      %s154 = scalar_select %p153, %s17, 1
      %p155 = scmp.lt.s32.totalorder %s18, 0
      %s156 = scalar_select %p155, %s18, 0
      %s157 = sadd.s32 %s156, %s154
      %s158 = smul.addr %s157, 8
      %s159 = scalar_lea.vmem %s2, %s158
      %p160 = scmp.lt.s32.totalorder %s17, 1
      %s161 = scalar_select %p160, %s17, 1
      %p162 = scmp.lt.s32.totalorder %s18, 0
      %s163 = scalar_select %p162, %s18, 0
      %s164 = smul.addr %s163, 16
      %s165 = smul.addr %s161, 16
      %s166 = sadd.s32 %s164, %s165
      %s167 = smul.addr %s166, 4
      %s168 = scalar_lea.vmem %s0, %s167
      %p169 = scmp.lt.s32.totalorder %s17, 1
      %s170 = scalar_select %p169, %s17, 1
      %p171 = scmp.lt.s32.totalorder %s18, 0
      %s172 = scalar_select %p171, %s18, 0
      %s173 = sadd.s32 %s172, %s170
      %s174 = smul.addr %s173, 8
      %s175 = scalar_lea.vmem %s2, %s174
      %v176 = vld [vmem:[%s168] sm:$0xff]
      %v177 = vld [vmem:[%s168 + $0x8] sm:$0xff]
      %v178 = vld [vmem:[%s168 + $0x10] sm:$0xff]
      %v179 = vld [vmem:[%s168 + $0x18] sm:$0xff]
      %v180 = vld [vmem:[%s168 + $0x20] sm:$0xff]
      %v181 = vld [vmem:[%s168 + $0x28] sm:$0xff]
      %v182 = vld [vmem:[%s168 + $0x30] sm:$0xff]
      %v183 = vld [vmem:[%s168 + $0x38] sm:$0xff]
      %v184 = vld [vmem:[%s1] sm:$0xf]
      %v185 = vld [vmem:[%s1 + $0x4] sm:$0xf]
      %v186 = vld [vmem:[%s1 + $0x8] sm:$0xf]
      %v187 = vld [vmem:[%s1 + $0xc] sm:$0xf]
      %v188 = vld [vmem:[%s1 + $0x10] sm:$0xf]
      %v189 = vld [vmem:[%s1 + $0x14] sm:$0xf]
      %v190 = vld [vmem:[%s1 + $0x18] sm:$0xf]
      %v191 = vld [vmem:[%s1 + $0x1c] sm:$0xf]
      %v192 = vld [vmem:[%s1 + $0x20] sm:$0xf]
      %v193 = vld [vmem:[%s1 + $0x24] sm:$0xf]
      %v194 = vld [vmem:[%s1 + $0x28] sm:$0xf]
      %v195 = vld [vmem:[%s1 + $0x2c] sm:$0xf]
      %v196 = vld [vmem:[%s1 + $0x30] sm:$0xf]
      %v197 = vld [vmem:[%s1 + $0x34] sm:$0xf]
      %v198 = vld [vmem:[%s1 + $0x38] sm:$0xf]
      %v199 = vld [vmem:[%s1 + $0x3c] sm:$0xf]
      %v200 = vld [vmem:[%s1 + $0x40] sm:$0xf]
      %v201 = vld [vmem:[%s1 + $0x44] sm:$0xf]
      %v202 = vld [vmem:[%s1 + $0x48] sm:$0xf]
      %v203 = vld [vmem:[%s1 + $0x4c] sm:$0xf]
      %v204 = vld [vmem:[%s1 + $0x50] sm:$0xf]
      %v205 = vld [vmem:[%s1 + $0x54] sm:$0xf]
      %v206 = vld [vmem:[%s1 + $0x58] sm:$0xf]
      %v207 = vld [vmem:[%s1 + $0x5c] sm:$0xf]
      %v208 = vld [vmem:[%s1 + $0x60] sm:$0xf]
      %v209 = vld [vmem:[%s1 + $0x64] sm:$0xf]
      %v210 = vld [vmem:[%s1 + $0x68] sm:$0xf]
      %v211 = vld [vmem:[%s1 + $0x6c] sm:$0xf]
      %v212 = vld [vmem:[%s1 + $0x70] sm:$0xf]
      %v213 = vld [vmem:[%s1 + $0x74] sm:$0xf]
      %v214 = vld [vmem:[%s1 + $0x78] sm:$0xf]
      %v215 = vld [vmem:[%s1 + $0x7c] sm:$0xf]
      %v216 = vld [vmem:[%s1 + $0x80] sm:$0xf]
      %v217 = vld [vmem:[%s1 + $0x84] sm:$0xf]
      %v218 = vld [vmem:[%s1 + $0x88] sm:$0xf]
      %v219 = vld [vmem:[%s1 + $0x8c] sm:$0xf]
      %v220 = vld [vmem:[%s1 + $0x90] sm:$0xf]
      %v221 = vld [vmem:[%s1 + $0x94] sm:$0xf]
      %v222 = vld [vmem:[%s1 + $0x98] sm:$0xf]
      %v223 = vld [vmem:[%s1 + $0x9c] sm:$0xf]
      %v224 = vld [vmem:[%s1 + $0xa0] sm:$0xf]
      %v225 = vld [vmem:[%s1 + $0xa4] sm:$0xf]
      %v226 = vld [vmem:[%s1 + $0xa8] sm:$0xf]
      %v227 = vld [vmem:[%s1 + $0xac] sm:$0xf]
      %v228 = vld [vmem:[%s1 + $0xb0] sm:$0xf]
      %v229 = vld [vmem:[%s1 + $0xb4] sm:$0xf]
      %v230 = vld [vmem:[%s1 + $0xb8] sm:$0xf]
      %v231 = vld [vmem:[%s1 + $0xbc] sm:$0xf]
      %v232 = vld [vmem:[%s1 + $0xc0] sm:$0xf]
      %v233 = vld [vmem:[%s1 + $0xc4] sm:$0xf]
      %v234 = vld [vmem:[%s1 + $0xc8] sm:$0xf]
      %v235 = vld [vmem:[%s1 + $0xcc] sm:$0xf]
      %v236 = vld [vmem:[%s1 + $0xd0] sm:$0xf]
      %v237 = vld [vmem:[%s1 + $0xd4] sm:$0xf]
      %v238 = vld [vmem:[%s1 + $0xd8] sm:$0xf]
      %v239 = vld [vmem:[%s1 + $0xdc] sm:$0xf]
      %v240 = vld [vmem:[%s1 + $0xe0] sm:$0xf]
      %v241 = vld [vmem:[%s1 + $0xe4] sm:$0xf]
      %v242 = vld [vmem:[%s1 + $0xe8] sm:$0xf]
      %v243 = vld [vmem:[%s1 + $0xec] sm:$0xf]
      %v244 = vld [vmem:[%s1 + $0xf0] sm:$0xf]
      %v245 = vld [vmem:[%s1 + $0xf4] sm:$0xf]
      %v246 = vld [vmem:[%s1 + $0xf8] sm:$0xf]
      %v247 = vld [vmem:[%s1 + $0xfc] sm:$0xf]
      %v248 = vld [vmem:[%s1 + $0x100] sm:$0xf]
      %v249 = vld [vmem:[%s1 + $0x104] sm:$0xf]
      %v250 = vld [vmem:[%s1 + $0x108] sm:$0xf]
      %v251 = vld [vmem:[%s1 + $0x10c] sm:$0xf]
      %v252 = vld [vmem:[%s1 + $0x110] sm:$0xf]
      %v253 = vld [vmem:[%s1 + $0x114] sm:$0xf]
      %v254 = vld [vmem:[%s1 + $0x118] sm:$0xf]
      %v255 = vld [vmem:[%s1 + $0x11c] sm:$0xf]
      %v256 = vld [vmem:[%s1 + $0x120] sm:$0xf]
      %v257 = vld [vmem:[%s1 + $0x124] sm:$0xf]
      %v258 = vld [vmem:[%s1 + $0x128] sm:$0xf]
      %v259 = vld [vmem:[%s1 + $0x12c] sm:$0xf]
      %v260 = vld [vmem:[%s1 + $0x130] sm:$0xf]
      %v261 = vld [vmem:[%s1 + $0x134] sm:$0xf]
      %v262 = vld [vmem:[%s1 + $0x138] sm:$0xf]
      %v263 = vld [vmem:[%s1 + $0x13c] sm:$0xf]
      %v264 = vld [vmem:[%s1 + $0x140] sm:$0xf]
      %v265 = vld [vmem:[%s1 + $0x144] sm:$0xf]
      %v266 = vld [vmem:[%s1 + $0x148] sm:$0xf]
      %v267 = vld [vmem:[%s1 + $0x14c] sm:$0xf]
      %v268 = vld [vmem:[%s1 + $0x150] sm:$0xf]
      %v269 = vld [vmem:[%s1 + $0x154] sm:$0xf]
      %v270 = vld [vmem:[%s1 + $0x158] sm:$0xf]
      %v271 = vld [vmem:[%s1 + $0x15c] sm:$0xf]
      %v272 = vld [vmem:[%s1 + $0x160] sm:$0xf]
      %v273 = vld [vmem:[%s1 + $0x164] sm:$0xf]
      %v274 = vld [vmem:[%s1 + $0x168] sm:$0xf]
      %v275 = vld [vmem:[%s1 + $0x16c] sm:$0xf]
      %v276 = vld [vmem:[%s1 + $0x170] sm:$0xf]
      %v277 = vld [vmem:[%s1 + $0x174] sm:$0xf]
      %v278 = vld [vmem:[%s1 + $0x178] sm:$0xf]
      %v279 = vld [vmem:[%s1 + $0x17c] sm:$0xf]
      %v280 = vld [vmem:[%s1 + $0x180] sm:$0xf]
      %v281 = vld [vmem:[%s1 + $0x184] sm:$0xf]
      %v282 = vld [vmem:[%s1 + $0x188] sm:$0xf]
      %v283 = vld [vmem:[%s1 + $0x18c] sm:$0xf]
      %v284 = vld [vmem:[%s1 + $0x190] sm:$0xf]
      %v285 = vld [vmem:[%s1 + $0x194] sm:$0xf]
      %v286 = vld [vmem:[%s1 + $0x198] sm:$0xf]
      %v287 = vld [vmem:[%s1 + $0x19c] sm:$0xf]
      %v288 = vld [vmem:[%s1 + $0x1a0] sm:$0xf]
      %v289 = vld [vmem:[%s1 + $0x1a4] sm:$0xf]
      %v290 = vld [vmem:[%s1 + $0x1a8] sm:$0xf]
      %v291 = vld [vmem:[%s1 + $0x1ac] sm:$0xf]
      %v292 = vld [vmem:[%s1 + $0x1b0] sm:$0xf]
      %v293 = vld [vmem:[%s1 + $0x1b4] sm:$0xf]
      %v294 = vld [vmem:[%s1 + $0x1b8] sm:$0xf]
      %v295 = vld [vmem:[%s1 + $0x1bc] sm:$0xf]
      %v296 = vld [vmem:[%s1 + $0x1c0] sm:$0xf]
      %v297 = vld [vmem:[%s1 + $0x1c4] sm:$0xf]
      %v298 = vld [vmem:[%s1 + $0x1c8] sm:$0xf]
      %v299 = vld [vmem:[%s1 + $0x1cc] sm:$0xf]
      %v300 = vld [vmem:[%s1 + $0x1d0] sm:$0xf]
      %v301 = vld [vmem:[%s1 + $0x1d4] sm:$0xf]
      %v302 = vld [vmem:[%s1 + $0x1d8] sm:$0xf]
      %v303 = vld [vmem:[%s1 + $0x1dc] sm:$0xf]
      %v304 = vld [vmem:[%s1 + $0x1e0] sm:$0xf]
      %v305 = vld [vmem:[%s1 + $0x1e4] sm:$0xf]
      %v306 = vld [vmem:[%s1 + $0x1e8] sm:$0xf]
      %v307 = vld [vmem:[%s1 + $0x1ec] sm:$0xf]
      %v308 = vld [vmem:[%s1 + $0x1f0] sm:$0xf]
      %v309 = vld [vmem:[%s1 + $0x1f4] sm:$0xf]
      %v310 = vld [vmem:[%s1 + $0x1f8] sm:$0xf]
      %v311 = vld [vmem:[%s1 + $0x1fc] sm:$0xf]
      %v312 = vld [vmem:[%s1 + $0x200] sm:$0xf]
      %v313 = vld [vmem:[%s1 + $0x204] sm:$0xf]
      %v314 = vld [vmem:[%s1 + $0x208] sm:$0xf]
      %v315 = vld [vmem:[%s1 + $0x20c] sm:$0xf]
      %v316 = vld [vmem:[%s1 + $0x210] sm:$0xf]
      %v317 = vld [vmem:[%s1 + $0x214] sm:$0xf]
      %v318 = vld [vmem:[%s1 + $0x218] sm:$0xf]
      %v319 = vld [vmem:[%s1 + $0x21c] sm:$0xf]
      %v320 = vld [vmem:[%s1 + $0x220] sm:$0xf]
      %v321 = vld [vmem:[%s1 + $0x224] sm:$0xf]
      %v322 = vld [vmem:[%s1 + $0x228] sm:$0xf]
      %v323 = vld [vmem:[%s1 + $0x22c] sm:$0xf]
      %v324 = vld [vmem:[%s1 + $0x230] sm:$0xf]
      %v325 = vld [vmem:[%s1 + $0x234] sm:$0xf]
      %v326 = vld [vmem:[%s1 + $0x238] sm:$0xf]
      %v327 = vld [vmem:[%s1 + $0x23c] sm:$0xf]
      %v328 = vld [vmem:[%s1 + $0x240] sm:$0xf]
      %v329 = vld [vmem:[%s1 + $0x244] sm:$0xf]
      %v330 = vld [vmem:[%s1 + $0x248] sm:$0xf]
      %v331 = vld [vmem:[%s1 + $0x24c] sm:$0xf]
      %v332 = vld [vmem:[%s1 + $0x250] sm:$0xf]
      %v333 = vld [vmem:[%s1 + $0x254] sm:$0xf]
      %v334 = vld [vmem:[%s1 + $0x258] sm:$0xf]
      %v335 = vld [vmem:[%s1 + $0x25c] sm:$0xf]
      %v336 = vld [vmem:[%s1 + $0x260] sm:$0xf]
      %v337 = vld [vmem:[%s1 + $0x264] sm:$0xf]
      %v338 = vld [vmem:[%s1 + $0x268] sm:$0xf]
      %v339 = vld [vmem:[%s1 + $0x26c] sm:$0xf]
      %v340 = vld [vmem:[%s1 + $0x270] sm:$0xf]
      %v341 = vld [vmem:[%s1 + $0x274] sm:$0xf]
      %v342 = vld [vmem:[%s1 + $0x278] sm:$0xf]
      %v343 = vld [vmem:[%s1 + $0x27c] sm:$0xf]
      %v344 = vld [vmem:[%s1 + $0x280] sm:$0xf]
      %v345 = vld [vmem:[%s1 + $0x284] sm:$0xf]
      %v346 = vld [vmem:[%s1 + $0x288] sm:$0xf]
      %v347 = vld [vmem:[%s1 + $0x28c] sm:$0xf]
      %v348 = vld [vmem:[%s1 + $0x290] sm:$0xf]
      %v349 = vld [vmem:[%s1 + $0x294] sm:$0xf]
      %v350 = vld [vmem:[%s1 + $0x298] sm:$0xf]
      %v351 = vld [vmem:[%s1 + $0x29c] sm:$0xf]
      %v352 = vld [vmem:[%s1 + $0x2a0] sm:$0xf]
      %v353 = vld [vmem:[%s1 + $0x2a4] sm:$0xf]
      %v354 = vld [vmem:[%s1 + $0x2a8] sm:$0xf]
      %v355 = vld [vmem:[%s1 + $0x2ac] sm:$0xf]
      %v356 = vld [vmem:[%s1 + $0x2b0] sm:$0xf]
      %v357 = vld [vmem:[%s1 + $0x2b4] sm:$0xf]
      %v358 = vld [vmem:[%s1 + $0x2b8] sm:$0xf]
      %v359 = vld [vmem:[%s1 + $0x2bc] sm:$0xf]
      %v360 = vld [vmem:[%s1 + $0x2c0] sm:$0xf]
      %v361 = vld [vmem:[%s1 + $0x2c4] sm:$0xf]
      %v362 = vld [vmem:[%s1 + $0x2c8] sm:$0xf]
      %v363 = vld [vmem:[%s1 + $0x2cc] sm:$0xf]
      %v364 = vld [vmem:[%s1 + $0x2d0] sm:$0xf]
      %v365 = vld [vmem:[%s1 + $0x2d4] sm:$0xf]
      %v366 = vld [vmem:[%s1 + $0x2d8] sm:$0xf]
      %v367 = vld [vmem:[%s1 + $0x2dc] sm:$0xf]
      %v368 = vld [vmem:[%s1 + $0x2e0] sm:$0xf]
      %v369 = vld [vmem:[%s1 + $0x2e4] sm:$0xf]
      %v370 = vld [vmem:[%s1 + $0x2e8] sm:$0xf]
      %v371 = vld [vmem:[%s1 + $0x2ec] sm:$0xf]
      %v372 = vld [vmem:[%s1 + $0x2f0] sm:$0xf]
      %v373 = vld [vmem:[%s1 + $0x2f4] sm:$0xf]
      %v374 = vld [vmem:[%s1 + $0x2f8] sm:$0xf]
      %v375 = vld [vmem:[%s1 + $0x2fc] sm:$0xf]
      %v376 = vld [vmem:[%s1 + $0x300] sm:$0xf]
      %v377 = vld [vmem:[%s1 + $0x304] sm:$0xf]
      %v378 = vld [vmem:[%s1 + $0x308] sm:$0xf]
      %v379 = vld [vmem:[%s1 + $0x30c] sm:$0xf]
      %v380 = vld [vmem:[%s1 + $0x310] sm:$0xf]
      %v381 = vld [vmem:[%s1 + $0x314] sm:$0xf]
      %v382 = vld [vmem:[%s1 + $0x318] sm:$0xf]
      %v383 = vld [vmem:[%s1 + $0x31c] sm:$0xf]
      %v384 = vld [vmem:[%s1 + $0x320] sm:$0xf]
      %v385 = vld [vmem:[%s1 + $0x324] sm:$0xf]
      %v386 = vld [vmem:[%s1 + $0x328] sm:$0xf]
      %v387 = vld [vmem:[%s1 + $0x32c] sm:$0xf]
      %v388 = vld [vmem:[%s1 + $0x330] sm:$0xf]
      %v389 = vld [vmem:[%s1 + $0x334] sm:$0xf]
      %v390 = vld [vmem:[%s1 + $0x338] sm:$0xf]
      %v391 = vld [vmem:[%s1 + $0x33c] sm:$0xf]
      %v392 = vld [vmem:[%s1 + $0x340] sm:$0xf]
      %v393 = vld [vmem:[%s1 + $0x344] sm:$0xf]
      %v394 = vld [vmem:[%s1 + $0x348] sm:$0xf]
      %v395 = vld [vmem:[%s1 + $0x34c] sm:$0xf]
      %v396 = vld [vmem:[%s1 + $0x350] sm:$0xf]
      %v397 = vld [vmem:[%s1 + $0x354] sm:$0xf]
      %v398 = vld [vmem:[%s1 + $0x358] sm:$0xf]
      %v399 = vld [vmem:[%s1 + $0x35c] sm:$0xf]
      %v400 = vld [vmem:[%s1 + $0x360] sm:$0xf]
      %v401 = vld [vmem:[%s1 + $0x364] sm:$0xf]
      %v402 = vld [vmem:[%s1 + $0x368] sm:$0xf]
      %v403 = vld [vmem:[%s1 + $0x36c] sm:$0xf]
      %v404 = vld [vmem:[%s1 + $0x370] sm:$0xf]
      %v405 = vld [vmem:[%s1 + $0x374] sm:$0xf]
      %v406 = vld [vmem:[%s1 + $0x378] sm:$0xf]
      %v407 = vld [vmem:[%s1 + $0x37c] sm:$0xf]
      %v408 = vld [vmem:[%s1 + $0x380] sm:$0xf]
      %v409 = vld [vmem:[%s1 + $0x384] sm:$0xf]
      %v410 = vld [vmem:[%s1 + $0x388] sm:$0xf]
      %v411 = vld [vmem:[%s1 + $0x38c] sm:$0xf]
      %v412 = vld [vmem:[%s1 + $0x390] sm:$0xf]
      %v413 = vld [vmem:[%s1 + $0x394] sm:$0xf]
      %v414 = vld [vmem:[%s1 + $0x398] sm:$0xf]
      %v415 = vld [vmem:[%s1 + $0x39c] sm:$0xf]
      %v416 = vld [vmem:[%s1 + $0x3a0] sm:$0xf]
      %v417 = vld [vmem:[%s1 + $0x3a4] sm:$0xf]
      %v418 = vld [vmem:[%s1 + $0x3a8] sm:$0xf]
      %v419 = vld [vmem:[%s1 + $0x3ac] sm:$0xf]
      %v420 = vld [vmem:[%s1 + $0x3b0] sm:$0xf]
      %v421 = vld [vmem:[%s1 + $0x3b4] sm:$0xf]
      %v422 = vld [vmem:[%s1 + $0x3b8] sm:$0xf]
      %v423 = vld [vmem:[%s1 + $0x3bc] sm:$0xf]
      %v424 = vld [vmem:[%s1 + $0x3c0] sm:$0xf]
      %v425 = vld [vmem:[%s1 + $0x3c4] sm:$0xf]
      %v426 = vld [vmem:[%s1 + $0x3c8] sm:$0xf]
      %v427 = vld [vmem:[%s1 + $0x3cc] sm:$0xf]
      %v428 = vld [vmem:[%s1 + $0x3d0] sm:$0xf]
      %v429 = vld [vmem:[%s1 + $0x3d4] sm:$0xf]
      %v430 = vld [vmem:[%s1 + $0x3d8] sm:$0xf]
      %v431 = vld [vmem:[%s1 + $0x3dc] sm:$0xf]
      %v432 = vld [vmem:[%s1 + $0x3e0] sm:$0xf]
      %v433 = vld [vmem:[%s1 + $0x3e4] sm:$0xf]
      %v434 = vld [vmem:[%s1 + $0x3e8] sm:$0xf]
      %v435 = vld [vmem:[%s1 + $0x3ec] sm:$0xf]
      %v436 = vld [vmem:[%s1 + $0x3f0] sm:$0xf]
      %v437 = vld [vmem:[%s1 + $0x3f4] sm:$0xf]
      %v438 = vld [vmem:[%s1 + $0x3f8] sm:$0xf]
      %v439 = vld [vmem:[%s1 + $0x3fc] sm:$0xf]
      %v448 = vunpack.c.l.b16 %v176
      %v449 = vunpack.c.h.b16 %v176
      %v450 = vunpack.c.l.b16 %v177
      %v451 = vunpack.c.h.b16 %v177
      %v452 = vunpack.c.l.b16 %v178
      %v453 = vunpack.c.h.b16 %v178
      %v454 = vunpack.c.l.b16 %v179
      %v455 = vunpack.c.h.b16 %v179
      %v456 = vunpack.c.l.b16 %v180
      %v457 = vunpack.c.h.b16 %v180
      %v458 = vunpack.c.l.b16 %v181
      %v459 = vunpack.c.h.b16 %v181
      %v460 = vunpack.c.l.b16 %v182
      %v461 = vunpack.c.h.b16 %v182
      %v462 = vunpack.c.l.b16 %v183
      %v463 = vunpack.c.h.b16 %v183
      %v464 = vpack.c.b16 %v448, %v448
      %v465 = vpack.c.b16 %v449, %v449
      %v466 = vpack.c.b16 %v450, %v450
      %v467 = vpack.c.b16 %v451, %v451
      %v468 = vpack.c.b16 %v452, %v452
      %v469 = vpack.c.b16 %v453, %v453
      %v470 = vpack.c.b16 %v454, %v454
      %v471 = vpack.c.b16 %v455, %v455
      %v472 = vpack.c.b16 %v456, %v456
      %v473 = vpack.c.b16 %v457, %v457
      %v474 = vpack.c.b16 %v458, %v458
      %v475 = vpack.c.b16 %v459, %v459
      %v476 = vpack.c.b16 %v460, %v460
      %v477 = vpack.c.b16 %v461, %v461
      %v478 = vpack.c.b16 %v462, %v462
      %v479 = vpack.c.b16 %v463, %v463
      %v752 = vunpack.c.l.b16 %v184
      %v753 = vunpack.c.l.b16 %v185
      %v754 = vunpack.c.l.b16 %v186
      %v755 = vunpack.c.l.b16 %v187
      %v756 = vunpack.c.l.b16 %v188
      %v757 = vunpack.c.l.b16 %v189
      %v758 = vunpack.c.l.b16 %v190
      %v759 = vunpack.c.l.b16 %v191
      %v760 = vunpack.c.l.b16 %v192
      %v761 = vunpack.c.l.b16 %v193
      %v762 = vunpack.c.l.b16 %v194
      %v763 = vunpack.c.l.b16 %v195
      %v764 = vunpack.c.l.b16 %v196
      %v765 = vunpack.c.l.b16 %v197
      %v766 = vunpack.c.l.b16 %v198
      %v767 = vunpack.c.l.b16 %v199
      %v768 = vunpack.c.l.b16 %v200
      %v769 = vunpack.c.l.b16 %v201
      %v770 = vunpack.c.l.b16 %v202
      %v771 = vunpack.c.l.b16 %v203
      %v772 = vunpack.c.l.b16 %v204
      %v773 = vunpack.c.l.b16 %v205
      %v774 = vunpack.c.l.b16 %v206
      %v775 = vunpack.c.l.b16 %v207
      %v776 = vunpack.c.l.b16 %v208
      %v777 = vunpack.c.l.b16 %v209
      %v778 = vunpack.c.l.b16 %v210
      %v779 = vunpack.c.l.b16 %v211
      %v780 = vunpack.c.l.b16 %v212
      %v781 = vunpack.c.l.b16 %v213
      %v782 = vunpack.c.l.b16 %v214
      %v783 = vunpack.c.l.b16 %v215
      %v784 = vunpack.c.l.b16 %v216
      %v785 = vunpack.c.l.b16 %v217
      %v786 = vunpack.c.l.b16 %v218
      %v787 = vunpack.c.l.b16 %v219
      %v788 = vunpack.c.l.b16 %v220
      %v789 = vunpack.c.l.b16 %v221
      %v790 = vunpack.c.l.b16 %v222
      %v791 = vunpack.c.l.b16 %v223
      %v792 = vunpack.c.l.b16 %v224
      %v793 = vunpack.c.l.b16 %v225
      %v794 = vunpack.c.l.b16 %v226
      %v795 = vunpack.c.l.b16 %v227
      %v796 = vunpack.c.l.b16 %v228
      %v797 = vunpack.c.l.b16 %v229
      %v798 = vunpack.c.l.b16 %v230
      %v799 = vunpack.c.l.b16 %v231
      %v800 = vunpack.c.l.b16 %v232
      %v801 = vunpack.c.l.b16 %v233
      %v802 = vunpack.c.l.b16 %v234
      %v803 = vunpack.c.l.b16 %v235
      %v804 = vunpack.c.l.b16 %v236
      %v805 = vunpack.c.l.b16 %v237
      %v806 = vunpack.c.l.b16 %v238
      %v807 = vunpack.c.l.b16 %v239
      %v808 = vunpack.c.l.b16 %v240
      %v809 = vunpack.c.l.b16 %v241
      %v810 = vunpack.c.l.b16 %v242
      %v811 = vunpack.c.l.b16 %v243
      %v812 = vunpack.c.l.b16 %v244
      %v813 = vunpack.c.l.b16 %v245
      %v814 = vunpack.c.l.b16 %v246
      %v815 = vunpack.c.l.b16 %v247
      %v816 = vunpack.c.l.b16 %v248
      %v817 = vunpack.c.l.b16 %v249
      %v818 = vunpack.c.l.b16 %v250
      %v819 = vunpack.c.l.b16 %v251
      %v820 = vunpack.c.l.b16 %v252
      %v821 = vunpack.c.l.b16 %v253
      %v822 = vunpack.c.l.b16 %v254
      %v823 = vunpack.c.l.b16 %v255
      %v824 = vunpack.c.l.b16 %v256
      %v825 = vunpack.c.l.b16 %v257
      %v826 = vunpack.c.l.b16 %v258
      %v827 = vunpack.c.l.b16 %v259
      %v828 = vunpack.c.l.b16 %v260
      %v829 = vunpack.c.l.b16 %v261
      %v830 = vunpack.c.l.b16 %v262
      %v831 = vunpack.c.l.b16 %v263
      %v832 = vunpack.c.l.b16 %v264
      %v833 = vunpack.c.l.b16 %v265
      %v834 = vunpack.c.l.b16 %v266
      %v835 = vunpack.c.l.b16 %v267
      %v836 = vunpack.c.l.b16 %v268
      %v837 = vunpack.c.l.b16 %v269
      %v838 = vunpack.c.l.b16 %v270
      %v839 = vunpack.c.l.b16 %v271
      %v840 = vunpack.c.l.b16 %v272
      %v841 = vunpack.c.l.b16 %v273
      %v842 = vunpack.c.l.b16 %v274
      %v843 = vunpack.c.l.b16 %v275
      %v844 = vunpack.c.l.b16 %v276
      %v845 = vunpack.c.l.b16 %v277
      %v846 = vunpack.c.l.b16 %v278
      %v847 = vunpack.c.l.b16 %v279
      %v848 = vunpack.c.l.b16 %v280
      %v849 = vunpack.c.l.b16 %v281
      %v850 = vunpack.c.l.b16 %v282
      %v851 = vunpack.c.l.b16 %v283
      %v852 = vunpack.c.l.b16 %v284
      %v853 = vunpack.c.l.b16 %v285
      %v854 = vunpack.c.l.b16 %v286
      %v855 = vunpack.c.l.b16 %v287
      %v856 = vunpack.c.l.b16 %v288
      %v857 = vunpack.c.l.b16 %v289
      %v858 = vunpack.c.l.b16 %v290
      %v859 = vunpack.c.l.b16 %v291
      %v860 = vunpack.c.l.b16 %v292
      %v861 = vunpack.c.l.b16 %v293
      %v862 = vunpack.c.l.b16 %v294
      %v863 = vunpack.c.l.b16 %v295
      %v864 = vunpack.c.l.b16 %v296
      %v865 = vunpack.c.l.b16 %v297
      %v866 = vunpack.c.l.b16 %v298
      %v867 = vunpack.c.l.b16 %v299
      %v868 = vunpack.c.l.b16 %v300
      %v869 = vunpack.c.l.b16 %v301
      %v870 = vunpack.c.l.b16 %v302
      %v871 = vunpack.c.l.b16 %v303
      %v872 = vunpack.c.l.b16 %v304
      %v873 = vunpack.c.l.b16 %v305
      %v874 = vunpack.c.l.b16 %v306
      %v875 = vunpack.c.l.b16 %v307
      %v876 = vunpack.c.l.b16 %v308
      %v877 = vunpack.c.l.b16 %v309
      %v878 = vunpack.c.l.b16 %v310
      %v879 = vunpack.c.l.b16 %v311
      %v880 = vunpack.c.l.b16 %v312
      %v881 = vunpack.c.l.b16 %v313
      %v882 = vunpack.c.l.b16 %v314
      %v883 = vunpack.c.l.b16 %v315
      %v884 = vunpack.c.l.b16 %v316
      %v885 = vunpack.c.l.b16 %v317
      %v886 = vunpack.c.l.b16 %v318
      %v887 = vunpack.c.l.b16 %v319
      %v888 = vunpack.c.l.b16 %v320
      %v889 = vunpack.c.l.b16 %v321
      %v890 = vunpack.c.l.b16 %v322
      %v891 = vunpack.c.l.b16 %v323
      %v892 = vunpack.c.l.b16 %v324
      %v893 = vunpack.c.l.b16 %v325
      %v894 = vunpack.c.l.b16 %v326
      %v895 = vunpack.c.l.b16 %v327
      %v896 = vunpack.c.l.b16 %v328
      %v897 = vunpack.c.l.b16 %v329
      %v898 = vunpack.c.l.b16 %v330
      %v899 = vunpack.c.l.b16 %v331
      %v900 = vunpack.c.l.b16 %v332
      %v901 = vunpack.c.l.b16 %v333
      %v902 = vunpack.c.l.b16 %v334
      %v903 = vunpack.c.l.b16 %v335
      %v904 = vunpack.c.l.b16 %v336
      %v905 = vunpack.c.l.b16 %v337
      %v906 = vunpack.c.l.b16 %v338
      %v907 = vunpack.c.l.b16 %v339
      %v908 = vunpack.c.l.b16 %v340
      %v909 = vunpack.c.l.b16 %v341
      %v910 = vunpack.c.l.b16 %v342
      %v911 = vunpack.c.l.b16 %v343
      %v912 = vunpack.c.l.b16 %v344
      %v913 = vunpack.c.l.b16 %v345
      %v914 = vunpack.c.l.b16 %v346
      %v915 = vunpack.c.l.b16 %v347
      %v916 = vunpack.c.l.b16 %v348
      %v917 = vunpack.c.l.b16 %v349
      %v918 = vunpack.c.l.b16 %v350
      %v919 = vunpack.c.l.b16 %v351
      %v920 = vunpack.c.l.b16 %v352
      %v921 = vunpack.c.l.b16 %v353
      %v922 = vunpack.c.l.b16 %v354
      %v923 = vunpack.c.l.b16 %v355
      %v924 = vunpack.c.l.b16 %v356
      %v925 = vunpack.c.l.b16 %v357
      %v926 = vunpack.c.l.b16 %v358
      %v927 = vunpack.c.l.b16 %v359
      %v928 = vunpack.c.l.b16 %v360
      %v929 = vunpack.c.l.b16 %v361
      %v930 = vunpack.c.l.b16 %v362
      %v931 = vunpack.c.l.b16 %v363
      %v932 = vunpack.c.l.b16 %v364
      %v933 = vunpack.c.l.b16 %v365
      %v934 = vunpack.c.l.b16 %v366
      %v935 = vunpack.c.l.b16 %v367
      %v936 = vunpack.c.l.b16 %v368
      %v937 = vunpack.c.l.b16 %v369
      %v938 = vunpack.c.l.b16 %v370
      %v939 = vunpack.c.l.b16 %v371
      %v940 = vunpack.c.l.b16 %v372
      %v941 = vunpack.c.l.b16 %v373
      %v942 = vunpack.c.l.b16 %v374
      %v943 = vunpack.c.l.b16 %v375
      %v944 = vunpack.c.l.b16 %v376
      %v945 = vunpack.c.l.b16 %v377
      %v946 = vunpack.c.l.b16 %v378
      %v947 = vunpack.c.l.b16 %v379
      %v948 = vunpack.c.l.b16 %v380
      %v949 = vunpack.c.l.b16 %v381
      %v950 = vunpack.c.l.b16 %v382
      %v951 = vunpack.c.l.b16 %v383
      %v952 = vunpack.c.l.b16 %v384
      %v953 = vunpack.c.l.b16 %v385
      %v954 = vunpack.c.l.b16 %v386
      %v955 = vunpack.c.l.b16 %v387
      %v956 = vunpack.c.l.b16 %v388
      %v957 = vunpack.c.l.b16 %v389
      %v958 = vunpack.c.l.b16 %v390
      %v959 = vunpack.c.l.b16 %v391
      %v960 = vunpack.c.l.b16 %v392
      %v961 = vunpack.c.l.b16 %v393
      %v962 = vunpack.c.l.b16 %v394
      %v963 = vunpack.c.l.b16 %v395
      %v964 = vunpack.c.l.b16 %v396
      %v965 = vunpack.c.l.b16 %v397
      %v966 = vunpack.c.l.b16 %v398
      %v967 = vunpack.c.l.b16 %v399
      %v968 = vunpack.c.l.b16 %v400
      %v969 = vunpack.c.l.b16 %v401
      %v970 = vunpack.c.l.b16 %v402
      %v971 = vunpack.c.l.b16 %v403
      %v972 = vunpack.c.l.b16 %v404
      %v973 = vunpack.c.l.b16 %v405
      %v974 = vunpack.c.l.b16 %v406
      %v975 = vunpack.c.l.b16 %v407
      %v976 = vunpack.c.l.b16 %v408
      %v977 = vunpack.c.l.b16 %v409
      %v978 = vunpack.c.l.b16 %v410
      %v979 = vunpack.c.l.b16 %v411
      %v980 = vunpack.c.l.b16 %v412
      %v981 = vunpack.c.l.b16 %v413
      %v982 = vunpack.c.l.b16 %v414
      %v983 = vunpack.c.l.b16 %v415
      %v984 = vunpack.c.l.b16 %v416
      %v985 = vunpack.c.l.b16 %v417
      %v986 = vunpack.c.l.b16 %v418
      %v987 = vunpack.c.l.b16 %v419
      %v988 = vunpack.c.l.b16 %v420
      %v989 = vunpack.c.l.b16 %v421
      %v990 = vunpack.c.l.b16 %v422
      %v991 = vunpack.c.l.b16 %v423
      %v992 = vunpack.c.l.b16 %v424
      %v993 = vunpack.c.l.b16 %v425
      %v994 = vunpack.c.l.b16 %v426
      %v995 = vunpack.c.l.b16 %v427
      %v996 = vunpack.c.l.b16 %v428
      %v997 = vunpack.c.l.b16 %v429
      %v998 = vunpack.c.l.b16 %v430
      %v999 = vunpack.c.l.b16 %v431
      %v1000 = vunpack.c.l.b16 %v432
      %v1001 = vunpack.c.l.b16 %v433
      %v1002 = vunpack.c.l.b16 %v434
      %v1003 = vunpack.c.l.b16 %v435
      %v1004 = vunpack.c.l.b16 %v436
      %v1005 = vunpack.c.l.b16 %v437
      %v1006 = vunpack.c.l.b16 %v438
      %v1007 = vunpack.c.l.b16 %v439
      %v1008 = vpack.c.b16 %v753, %v752
      %v1009 = vpack.c.b16 %v755, %v754
      %v1010 = vpack.c.b16 %v757, %v756
      %v1011 = vpack.c.b16 %v759, %v758
      %v1012 = vpack.c.b16 %v761, %v760
      %v1013 = vpack.c.b16 %v763, %v762
      %v1014 = vpack.c.b16 %v765, %v764
      %v1015 = vpack.c.b16 %v767, %v766
      %v1016 = vpack.c.b16 %v769, %v768
      %v1017 = vpack.c.b16 %v771, %v770
      %v1018 = vpack.c.b16 %v773, %v772
      %v1019 = vpack.c.b16 %v775, %v774
      %v1020 = vpack.c.b16 %v777, %v776
      %v1021 = vpack.c.b16 %v779, %v778
      %v1022 = vpack.c.b16 %v781, %v780
      %v1023 = vpack.c.b16 %v783, %v782
      %v1024 = vpack.c.b16 %v785, %v784
      %v1025 = vpack.c.b16 %v787, %v786
      %v1026 = vpack.c.b16 %v789, %v788
      %v1027 = vpack.c.b16 %v791, %v790
      %v1028 = vpack.c.b16 %v793, %v792
      %v1029 = vpack.c.b16 %v795, %v794
      %v1030 = vpack.c.b16 %v797, %v796
      %v1031 = vpack.c.b16 %v799, %v798
      %v1032 = vpack.c.b16 %v801, %v800
      %v1033 = vpack.c.b16 %v803, %v802
      %v1034 = vpack.c.b16 %v805, %v804
      %v1035 = vpack.c.b16 %v807, %v806
      %v1036 = vpack.c.b16 %v809, %v808
      %v1037 = vpack.c.b16 %v811, %v810
      %v1038 = vpack.c.b16 %v813, %v812
      %v1039 = vpack.c.b16 %v815, %v814
      %v1040 = vpack.c.b16 %v817, %v816
      %v1041 = vpack.c.b16 %v819, %v818
      %v1042 = vpack.c.b16 %v821, %v820
      %v1043 = vpack.c.b16 %v823, %v822
      %v1044 = vpack.c.b16 %v825, %v824
      %v1045 = vpack.c.b16 %v827, %v826
      %v1046 = vpack.c.b16 %v829, %v828
      %v1047 = vpack.c.b16 %v831, %v830
      %v1048 = vpack.c.b16 %v833, %v832
      %v1049 = vpack.c.b16 %v835, %v834
      %v1050 = vpack.c.b16 %v837, %v836
      %v1051 = vpack.c.b16 %v839, %v838
      %v1052 = vpack.c.b16 %v841, %v840
      %v1053 = vpack.c.b16 %v843, %v842
      %v1054 = vpack.c.b16 %v845, %v844
      %v1055 = vpack.c.b16 %v847, %v846
      %v1056 = vpack.c.b16 %v849, %v848
      %v1057 = vpack.c.b16 %v851, %v850
      %v1058 = vpack.c.b16 %v853, %v852
      %v1059 = vpack.c.b16 %v855, %v854
      %v1060 = vpack.c.b16 %v857, %v856
      %v1061 = vpack.c.b16 %v859, %v858
      %v1062 = vpack.c.b16 %v861, %v860
      %v1063 = vpack.c.b16 %v863, %v862
      %v1064 = vpack.c.b16 %v865, %v864
      %v1065 = vpack.c.b16 %v867, %v866
      %v1066 = vpack.c.b16 %v869, %v868
      %v1067 = vpack.c.b16 %v871, %v870
      %v1068 = vpack.c.b16 %v873, %v872
      %v1069 = vpack.c.b16 %v875, %v874
      %v1070 = vpack.c.b16 %v877, %v876
      %v1071 = vpack.c.b16 %v879, %v878
      %v1072 = vpack.c.b16 %v881, %v880
      %v1073 = vpack.c.b16 %v883, %v882
      %v1074 = vpack.c.b16 %v885, %v884
      %v1075 = vpack.c.b16 %v887, %v886
      %v1076 = vpack.c.b16 %v889, %v888
      %v1077 = vpack.c.b16 %v891, %v890
      %v1078 = vpack.c.b16 %v893, %v892
      %v1079 = vpack.c.b16 %v895, %v894
      %v1080 = vpack.c.b16 %v897, %v896
      %v1081 = vpack.c.b16 %v899, %v898
      %v1082 = vpack.c.b16 %v901, %v900
      %v1083 = vpack.c.b16 %v903, %v902
      %v1084 = vpack.c.b16 %v905, %v904
      %v1085 = vpack.c.b16 %v907, %v906
      %v1086 = vpack.c.b16 %v909, %v908
      %v1087 = vpack.c.b16 %v911, %v910
      %v1088 = vpack.c.b16 %v913, %v912
      %v1089 = vpack.c.b16 %v915, %v914
      %v1090 = vpack.c.b16 %v917, %v916
      %v1091 = vpack.c.b16 %v919, %v918
      %v1092 = vpack.c.b16 %v921, %v920
      %v1093 = vpack.c.b16 %v923, %v922
      %v1094 = vpack.c.b16 %v925, %v924
      %v1095 = vpack.c.b16 %v927, %v926
      %v1096 = vpack.c.b16 %v929, %v928
      %v1097 = vpack.c.b16 %v931, %v930
      %v1098 = vpack.c.b16 %v933, %v932
      %v1099 = vpack.c.b16 %v935, %v934
      %v1100 = vpack.c.b16 %v937, %v936
      %v1101 = vpack.c.b16 %v939, %v938
      %v1102 = vpack.c.b16 %v941, %v940
      %v1103 = vpack.c.b16 %v943, %v942
      %v1104 = vpack.c.b16 %v945, %v944
      %v1105 = vpack.c.b16 %v947, %v946
      %v1106 = vpack.c.b16 %v949, %v948
      %v1107 = vpack.c.b16 %v951, %v950
      %v1108 = vpack.c.b16 %v953, %v952
      %v1109 = vpack.c.b16 %v955, %v954
      %v1110 = vpack.c.b16 %v957, %v956
      %v1111 = vpack.c.b16 %v959, %v958
      %v1112 = vpack.c.b16 %v961, %v960
      %v1113 = vpack.c.b16 %v963, %v962
      %v1114 = vpack.c.b16 %v965, %v964
      %v1115 = vpack.c.b16 %v967, %v966
      %v1116 = vpack.c.b16 %v969, %v968
      %v1117 = vpack.c.b16 %v971, %v970
      %v1118 = vpack.c.b16 %v973, %v972
      %v1119 = vpack.c.b16 %v975, %v974
      %v1120 = vpack.c.b16 %v977, %v976
      %v1121 = vpack.c.b16 %v979, %v978
      %v1122 = vpack.c.b16 %v981, %v980
      %v1123 = vpack.c.b16 %v983, %v982
      %v1124 = vpack.c.b16 %v985, %v984
      %v1125 = vpack.c.b16 %v987, %v986
      %v1126 = vpack.c.b16 %v989, %v988
      %v1127 = vpack.c.b16 %v991, %v990
      %v1128 = vpack.c.b16 %v993, %v992
      %v1129 = vpack.c.b16 %v995, %v994
      %v1130 = vpack.c.b16 %v997, %v996
      %v1131 = vpack.c.b16 %v999, %v998
      %v1132 = vpack.c.b16 %v1001, %v1000
      %v1133 = vpack.c.b16 %v1003, %v1002
      %v1134 = vpack.c.b16 %v1005, %v1004
      %v1135 = vpack.c.b16 %v1007, %v1006
      %1264 = vmatpush.bf16.msra.mxu0 %v1015
      %1265 = vmatpush.bf16.msra.mxu0 %v1014
      %1266 = vmatpush.bf16.msra.mxu0 %v1013
      %1267 = vmatpush.bf16.msra.mxu0 %v1012
      %1268 = vmatpush.bf16.msra.mxu0 %v1011
      %1269 = vmatpush.bf16.msra.mxu0 %v1010
      %1270 = vmatpush.bf16.msra.mxu0 %v1009
      %1271 = vmatpush.bf16.msra.mxu0 %v1008
      %1272 = vmatmul.bf16.gmra.mxu0 %v464
      %v1273 = vpop.f32.mrf.mxu0
      %v1274 = vadd.f32 0.0, %v1273
      %v1275 = vpop.f32.mrf.mxu0
      %1276 = vdwg.mxu0
      %1277 = vmatpush.bf16.msra.mxu0 %v1023
      %1278 = vmatpush.bf16.msra.mxu0 %v1022
      %1279 = vmatpush.bf16.msra.mxu0 %v1021
      %1280 = vmatpush.bf16.msra.mxu0 %v1020
      %1281 = vmatpush.bf16.msra.mxu0 %v1019
      %1282 = vmatpush.bf16.msra.mxu0 %v1018
      %1283 = vmatpush.bf16.msra.mxu0 %v1017
      %1284 = vmatpush.bf16.msra.mxu0 %v1016
      %1285 = vmatmul.bf16.gmra.mxu0 %v465
      %v1286 = vpop.f32.mrf.mxu0
      %v1287 = vadd.f32 %v1274, %v1286
      %v1288 = vpop.f32.mrf.mxu0
      %1289 = vdwg.mxu0
      %1290 = vmatpush.bf16.msra.mxu0 %v1031
      %1291 = vmatpush.bf16.msra.mxu0 %v1030
      %1292 = vmatpush.bf16.msra.mxu0 %v1029
      %1293 = vmatpush.bf16.msra.mxu0 %v1028
      %1294 = vmatpush.bf16.msra.mxu0 %v1027
      %1295 = vmatpush.bf16.msra.mxu0 %v1026
      %1296 = vmatpush.bf16.msra.mxu0 %v1025
      %1297 = vmatpush.bf16.msra.mxu0 %v1024
      %1298 = vmatmul.bf16.gmra.mxu0 %v466
      %v1299 = vpop.f32.mrf.mxu0
      %v1300 = vadd.f32 %v1287, %v1299
      %v1301 = vpop.f32.mrf.mxu0
      %1302 = vdwg.mxu0
      %1303 = vmatpush.bf16.msra.mxu0 %v1039
      %1304 = vmatpush.bf16.msra.mxu0 %v1038
      %1305 = vmatpush.bf16.msra.mxu0 %v1037
      %1306 = vmatpush.bf16.msra.mxu0 %v1036
      %1307 = vmatpush.bf16.msra.mxu0 %v1035
      %1308 = vmatpush.bf16.msra.mxu0 %v1034
      %1309 = vmatpush.bf16.msra.mxu0 %v1033
      %1310 = vmatpush.bf16.msra.mxu0 %v1032
      %1311 = vmatmul.bf16.gmra.mxu0 %v467
      %v1312 = vpop.f32.mrf.mxu0
      %v1313 = vadd.f32 %v1300, %v1312
      %v1314 = vpop.f32.mrf.mxu0
      %1315 = vdwg.mxu0
      %1316 = vmatpush.bf16.msra.mxu0 %v1047
      %1317 = vmatpush.bf16.msra.mxu0 %v1046
      %1318 = vmatpush.bf16.msra.mxu0 %v1045
      %1319 = vmatpush.bf16.msra.mxu0 %v1044
      %1320 = vmatpush.bf16.msra.mxu0 %v1043
      %1321 = vmatpush.bf16.msra.mxu0 %v1042
      %1322 = vmatpush.bf16.msra.mxu0 %v1041
      %1323 = vmatpush.bf16.msra.mxu0 %v1040
      %1324 = vmatmul.bf16.gmra.mxu0 %v468
      %v1325 = vpop.f32.mrf.mxu0
      %v1326 = vadd.f32 %v1313, %v1325
      %v1327 = vpop.f32.mrf.mxu0
      %1328 = vdwg.mxu0
      %1329 = vmatpush.bf16.msra.mxu0 %v1055
      %1330 = vmatpush.bf16.msra.mxu0 %v1054
      %1331 = vmatpush.bf16.msra.mxu0 %v1053
      %1332 = vmatpush.bf16.msra.mxu0 %v1052
      %1333 = vmatpush.bf16.msra.mxu0 %v1051
      %1334 = vmatpush.bf16.msra.mxu0 %v1050
      %1335 = vmatpush.bf16.msra.mxu0 %v1049
      %1336 = vmatpush.bf16.msra.mxu0 %v1048
      %1337 = vmatmul.bf16.gmra.mxu0 %v469
      %v1338 = vpop.f32.mrf.mxu0
      %v1339 = vadd.f32 %v1326, %v1338
      %v1340 = vpop.f32.mrf.mxu0
      %1341 = vdwg.mxu0
      %1342 = vmatpush.bf16.msra.mxu0 %v1063
      %1343 = vmatpush.bf16.msra.mxu0 %v1062
      %1344 = vmatpush.bf16.msra.mxu0 %v1061
      %1345 = vmatpush.bf16.msra.mxu0 %v1060
      %1346 = vmatpush.bf16.msra.mxu0 %v1059
      %1347 = vmatpush.bf16.msra.mxu0 %v1058
      %1348 = vmatpush.bf16.msra.mxu0 %v1057
      %1349 = vmatpush.bf16.msra.mxu0 %v1056
      %1350 = vmatmul.bf16.gmra.mxu0 %v470
      %v1351 = vpop.f32.mrf.mxu0
      %v1352 = vadd.f32 %v1339, %v1351
      %v1353 = vpop.f32.mrf.mxu0
      %1354 = vdwg.mxu0
      %1355 = vmatpush.bf16.msra.mxu0 %v1071
      %1356 = vmatpush.bf16.msra.mxu0 %v1070
      %1357 = vmatpush.bf16.msra.mxu0 %v1069
      %1358 = vmatpush.bf16.msra.mxu0 %v1068
      %1359 = vmatpush.bf16.msra.mxu0 %v1067
      %1360 = vmatpush.bf16.msra.mxu0 %v1066
      %1361 = vmatpush.bf16.msra.mxu0 %v1065
      %1362 = vmatpush.bf16.msra.mxu0 %v1064
      %1363 = vmatmul.bf16.gmra.mxu0 %v471
      %v1364 = vpop.f32.mrf.mxu0
      %v1365 = vadd.f32 %v1352, %v1364
      %v1366 = vpop.f32.mrf.mxu0
      %1367 = vdwg.mxu0
      %1368 = vmatpush.bf16.msra.mxu0 %v1079
      %1369 = vmatpush.bf16.msra.mxu0 %v1078
      %1370 = vmatpush.bf16.msra.mxu0 %v1077
      %1371 = vmatpush.bf16.msra.mxu0 %v1076
      %1372 = vmatpush.bf16.msra.mxu0 %v1075
      %1373 = vmatpush.bf16.msra.mxu0 %v1074
      %1374 = vmatpush.bf16.msra.mxu0 %v1073
      %1375 = vmatpush.bf16.msra.mxu0 %v1072
      %1376 = vmatmul.bf16.gmra.mxu0 %v472
      %v1377 = vpop.f32.mrf.mxu0
      %v1378 = vadd.f32 %v1365, %v1377
      %v1379 = vpop.f32.mrf.mxu0
      %1380 = vdwg.mxu0
      %1381 = vmatpush.bf16.msra.mxu0 %v1087
      %1382 = vmatpush.bf16.msra.mxu0 %v1086
      %1383 = vmatpush.bf16.msra.mxu0 %v1085
      %1384 = vmatpush.bf16.msra.mxu0 %v1084
      %1385 = vmatpush.bf16.msra.mxu0 %v1083
      %1386 = vmatpush.bf16.msra.mxu0 %v1082
      %1387 = vmatpush.bf16.msra.mxu0 %v1081
      %1388 = vmatpush.bf16.msra.mxu0 %v1080
      %1389 = vmatmul.bf16.gmra.mxu0 %v473
      %v1390 = vpop.f32.mrf.mxu0
      %v1391 = vadd.f32 %v1378, %v1390
      %v1392 = vpop.f32.mrf.mxu0
      %1393 = vdwg.mxu0
      %1394 = vmatpush.bf16.msra.mxu0 %v1095
      %1395 = vmatpush.bf16.msra.mxu0 %v1094
      %1396 = vmatpush.bf16.msra.mxu0 %v1093
      %1397 = vmatpush.bf16.msra.mxu0 %v1092
      %1398 = vmatpush.bf16.msra.mxu0 %v1091
      %1399 = vmatpush.bf16.msra.mxu0 %v1090
      %1400 = vmatpush.bf16.msra.mxu0 %v1089
      %1401 = vmatpush.bf16.msra.mxu0 %v1088
      %1402 = vmatmul.bf16.gmra.mxu0 %v474
      %v1403 = vpop.f32.mrf.mxu0
      %v1404 = vadd.f32 %v1391, %v1403
      %v1405 = vpop.f32.mrf.mxu0
      %1406 = vdwg.mxu0
      %1407 = vmatpush.bf16.msra.mxu0 %v1103
      %1408 = vmatpush.bf16.msra.mxu0 %v1102
      %1409 = vmatpush.bf16.msra.mxu0 %v1101
      %1410 = vmatpush.bf16.msra.mxu0 %v1100
      %1411 = vmatpush.bf16.msra.mxu0 %v1099
      %1412 = vmatpush.bf16.msra.mxu0 %v1098
      %1413 = vmatpush.bf16.msra.mxu0 %v1097
      %1414 = vmatpush.bf16.msra.mxu0 %v1096
      %1415 = vmatmul.bf16.gmra.mxu0 %v475
      %v1416 = vpop.f32.mrf.mxu0
      %v1417 = vadd.f32 %v1404, %v1416
      %v1418 = vpop.f32.mrf.mxu0
      %1419 = vdwg.mxu0
      %1420 = vmatpush.bf16.msra.mxu0 %v1111
      %1421 = vmatpush.bf16.msra.mxu0 %v1110
      %1422 = vmatpush.bf16.msra.mxu0 %v1109
      %1423 = vmatpush.bf16.msra.mxu0 %v1108
      %1424 = vmatpush.bf16.msra.mxu0 %v1107
      %1425 = vmatpush.bf16.msra.mxu0 %v1106
      %1426 = vmatpush.bf16.msra.mxu0 %v1105
      %1427 = vmatpush.bf16.msra.mxu0 %v1104
      %1428 = vmatmul.bf16.gmra.mxu0 %v476
      %v1429 = vpop.f32.mrf.mxu0
      %v1430 = vadd.f32 %v1417, %v1429
      %v1431 = vpop.f32.mrf.mxu0
      %1432 = vdwg.mxu0
      %1433 = vmatpush.bf16.msra.mxu0 %v1119
      %1434 = vmatpush.bf16.msra.mxu0 %v1118
      %1435 = vmatpush.bf16.msra.mxu0 %v1117
      %1436 = vmatpush.bf16.msra.mxu0 %v1116
      %1437 = vmatpush.bf16.msra.mxu0 %v1115
      %1438 = vmatpush.bf16.msra.mxu0 %v1114
      %1439 = vmatpush.bf16.msra.mxu0 %v1113
      %1440 = vmatpush.bf16.msra.mxu0 %v1112
      %1441 = vmatmul.bf16.gmra.mxu0 %v477
      %v1442 = vpop.f32.mrf.mxu0
      %v1443 = vadd.f32 %v1430, %v1442
      %v1444 = vpop.f32.mrf.mxu0
      %1445 = vdwg.mxu0
      %1446 = vmatpush.bf16.msra.mxu0 %v1127
      %1447 = vmatpush.bf16.msra.mxu0 %v1126
      %1448 = vmatpush.bf16.msra.mxu0 %v1125
      %1449 = vmatpush.bf16.msra.mxu0 %v1124
      %1450 = vmatpush.bf16.msra.mxu0 %v1123
      %1451 = vmatpush.bf16.msra.mxu0 %v1122
      %1452 = vmatpush.bf16.msra.mxu0 %v1121
      %1453 = vmatpush.bf16.msra.mxu0 %v1120
      %1454 = vmatmul.bf16.gmra.mxu0 %v478
      %v1455 = vpop.f32.mrf.mxu0
      %v1456 = vadd.f32 %v1443, %v1455
      %v1457 = vpop.f32.mrf.mxu0
      %1458 = vdwg.mxu0
      %1459 = vmatpush.bf16.msra.mxu0 %v1135
      %1460 = vmatpush.bf16.msra.mxu0 %v1134
      %1461 = vmatpush.bf16.msra.mxu0 %v1133
      %1462 = vmatpush.bf16.msra.mxu0 %v1132
      %1463 = vmatpush.bf16.msra.mxu0 %v1131
      %1464 = vmatpush.bf16.msra.mxu0 %v1130
      %1465 = vmatpush.bf16.msra.mxu0 %v1129
      %1466 = vmatpush.bf16.msra.mxu0 %v1128
      %1467 = vmatmul.bf16.gmra.mxu0 %v479
      %v1468 = vpop.f32.mrf.mxu0
      %v1469 = vadd.f32 %v1456, %v1468
      %v1470 = vpop.f32.mrf.mxu0
      %1471 = vdwg.mxu0
      %v1472 = vxor.u32 %v1469, 2147483648
      %v1473 = vmul.f32 %v1472, 1.442695
      %v1474 = vpow.pop %v1473
      %v1475 = vadd.f32 %v1474, 1.0
      %v1476 = vrcp.pop %v1475
      %v1477 = vmul.f32 %v1475, %v1476
      %v1478 = vsub.f32 1.0, %v1477
      %v1479 = vmul.f32 %v1476, %v1478
      %v1480 = vadd.f32 %v1476, %v1479
      %vm1481 = vweird.f32 %v1475
      %vm1482 = vweird.f32 %v1476
      %vm1483 = vmor %vm1481, %vm1482
      %v1484 = vsel %vm1483, %v1476, %v1480
      %v1485 = vand.u32 2147483647, %v1475
      %vm1486 = vcmp.eq.f32.partialorder %v1485, 8.507059e+37
      %v1487 = vand.u32 %v1475, 2147483648
      %v1488 = vor.u32 1.1754944e-38, %v1487
      %v1489 = vsel %vm1486, %v1488, %v1484
      %v1490 = vmul.f32 1.0, %v1489
      %1491 = vst [vmem:[%s175] sm:$0xff] %v1490
      %p1492 = scmp.lt.s32.totalorder %s17, 1
      %s1493 = scalar_select %p1492, %s17, 1
      %p1494 = scmp.lt.s32.totalorder %s18, 0
      %s1495 = scalar_select %p1494, %s18, 0
      %s1496 = sadd.s32 %s1495, %s1493
      %s1497 = smul.addr %s1496, 8
      %s1498 = scalar_lea.vmem %s2, %s1497
      // Predicated region
      $region29: #{discriminator_forward.21} parent=27 // pred_check
        %p1499 = pneg %p94
      $region30: #{discriminator_forward.21} parent=27 // pred_check_branch
        %1501 = sbr.rel (%p1499) target = $region32
      $region31: #{discriminator_forward.21} parent=27 // pred_region
        _
      $region32: #{discriminator_forward.21} parent=27 // pred_fallthru
        _
    $region28: #{discriminator_forward.21} parent=5 // pred_fallthru
      _
    %p1502 = scmp.le.s32.totalorder 2, %s8
    // Predicated region
    $region33: #{discriminator_forward.21} parent=5 // pred_check
      %p1503 = pneg %p1502
    $region34: #{discriminator_forward.21} parent=5 // pred_check_branch
      %1505 = sbr.rel (%p1503) target = $region36
    $region35: #{discriminator_forward.21} parent=5 // pred_region
      %s1506 = ssub.s32 %s8, 2
      // Predicated region
      $region37: #{discriminator_forward.21} parent=35 // pred_check
        %p1507 = pneg %p100
      $region38: #{discriminator_forward.21} parent=35 // pred_check_branch
        %1509 = sbr.rel (%p1507) target = $region40
      $region39: #{discriminator_forward.21} parent=35 // pred_region
        %p1510 = scmp.lt.s32.totalorder %s19, 1
        %s1511 = scalar_select %p1510, %s19, 1
        %p1512 = scmp.lt.s32.totalorder %s20, 0
        %s1513 = scalar_select %p1512, %s20, 0
        %s1514 = sadd.s32 %s1513, %s1511
        %s1515 = smul.addr %s1514, 8
        %s1516 = scalar_lea.vmem %s2, %s1515
      $region40: #{discriminator_forward.21} parent=35 // pred_fallthru
        _
    $region36: #{discriminator_forward.21} parent=5 // pred_fallthru
      _
  $region6: #{discriminator_forward.21} parent=0 // loop_footer
    %s12 = sadd.s32 1, %s8
  $region7: #{discriminator_forward.21} parent=0 // loop_footer_branch
    %7 = sbr.rel target = $region3
  $region8: #{discriminator_forward.21} parent=0 // loop_exit
    _

</llo_original>
